<compile_context>
chip_gen: v6e
topology: v6e:2x2x1
jax: 0.10.0
libtpu: 0.0.40
codegen_flags: <defaults>
</compile_context>

<pallas_src>
import jax
import jax.numpy as jnp
from jax.experimental import pallas as pl
from jax.experimental.pallas import tpu as pltpu


def _round_up(x, m):
    return ((x + m - 1) // m) * m


def mlp_kernel(x_ref, w1_ref, b1_ref, w2_ref, b2_ref, w3_ref, b3_ref, o_ref):
    # Cast the f32 input tile to bf16 in-kernel (VPU, hidden under the MXU work)
    # so the HBM->VMEM DMA of x is a single pass over the original array.
    xb = x_ref[...].astype(jnp.bfloat16)

    # layer1 (+ folded BN1) + ReLU
    h = jnp.dot(xb, w1_ref[...], preferred_element_type=jnp.float32)
    h = jnp.maximum(h + b1_ref[...], 0.0).astype(jnp.bfloat16)

    # layer2 (+ folded BN2) + ReLU    (Dropout(0.3) is identity in eval mode)
    h = jnp.dot(h, w2_ref[...], preferred_element_type=jnp.float32)
    h = jnp.maximum(h + b2_ref[...], 0.0).astype(jnp.bfloat16)

    # layer3 (classes padded to a lane-dense multiple of 128)
    o = jnp.dot(h, w3_ref[...], preferred_element_type=jnp.float32)
    o_ref[...] = (o + b3_ref[...]).astype(o_ref.dtype)


def mlp_forward(x_nchw, params):
    B = x_nchw.shape[0]
    x = x_nchw.reshape(B, -1).astype(jnp.float32)   # (B, 3072) == torch flatten(start_dim=1)
    d_in = x.shape[1]

    (w1, b1, g1, be1, rm1, rv1,
     w2, b2, g2, be2, rm2, rv2,
     w3, b3) = params
    eps = 1e-5
    classes = w3.shape[1]

    # Fold BatchNorm1d (inference) into the linear weights/biases (plain JAX glue).
    s1 = g1 / jnp.sqrt(rv1 + eps)
    s2 = g2 / jnp.sqrt(rv2 + eps)
    w1f = w1 * s1[None, :]
    b1f = (b1 - rm1) * s1 + be1
    w2f = w2 * s2[None, :]
    b2f = (b2 - rm2) * s2 + be2

    # Pad classifier to a lane-dense (multiple-of-128) output width.
    c_pad = _round_up(classes, 128)
    w3p = jnp.zeros((w3.shape[0], c_pad), jnp.float32).at[:, :classes].set(w3)
    b3p = jnp.zeros((c_pad,), jnp.float32).at[:classes].set(b3)

    # Batch tiling.
    #   TB=512 f32 x tiles: 6 MiB/buffer * 2 (double-buffer) + ~6.9 MiB weights
    #   (double-buffered bf16) + ~0.5 MiB out tiles ~= 19 MiB  ->  fits the 32 MiB
    #   scoped VMEM limit on v5e/v6e and v7x's 64 MiB physical VMEM.
    #   Small batches pad to one full 128-row tile (clean bf16 (16,128) packing,
    #   full-height MXU pass; cost is negligible since tiny batch is latency-bound).
    if B >= 1024:
        TB = 512
    elif B >= 256:
        TB = 256
    else:
        TB = 128
    b_pad = _round_up(B, TB)
    if b_pad != B:
        x = jnp.pad(x, ((0, b_pad - B), (0, 0)))

    # bf16 MXU weights (x stays f32; cast happens inside the kernel).
    w1b = w1f.astype(jnp.bfloat16)
    w2b = w2f.astype(jnp.bfloat16)
    w3b = w3p.astype(jnp.bfloat16)

    def row(v):
        return v.reshape(1, -1).astype(jnp.float32)

    n_tiles = b_pad // TB
    const2d = lambda i: (0, 0)   # weights/biases: same block every step -> VMEM-resident

    out = pl.pallas_call(
        mlp_kernel,
        out_shape=jax.ShapeDtypeStruct((b_pad, c_pad), jnp.float32),
        grid=(n_tiles,),
        in_specs=[
            pl.BlockSpec((TB, d_in), lambda i: (i, 0)),          # x tile (pipelined DMA)
            pl.BlockSpec(w1b.shape, const2d),
            pl.BlockSpec((1, w1b.shape[1]), const2d),
            pl.BlockSpec(w2b.shape, const2d),
            pl.BlockSpec((1, w2b.shape[1]), const2d),
            pl.BlockSpec(w3b.shape, const2d),
            pl.BlockSpec((1, w3b.shape[1]), const2d),
        ],
        out_specs=pl.BlockSpec((TB, c_pad), lambda i: (i, 0)),
        compiler_params=pltpu.CompilerParams(
            dimension_semantics=("parallel",),
            vmem_limit_bytes=32 << 20,
        ),
    )(x, w1b, row(b1f), w2b, row(b2f), w3b, row(b3p))

    return out[:B, :classes]


def init_params(key, classes=10):
    ks = jax.random.split(key, 6)

    def linear(kw, kb, fan_in, fan_out):
        bound = 1.0 / jnp.sqrt(fan_in)
        w = jax.random.uniform(kw, (fan_in, fan_out), jnp.float32, -bound, bound)
        b = jax.random.uniform(kb, (fan_out,), jnp.float32, -bound, bound)
        return w, b

    w1, b1 = linear(ks[0], ks[1], 3072, 512)
    w2, b2 = linear(ks[2], ks[3], 512, 256)
    w3, b3 = linear(ks[4], ks[5], 256, classes)

    # BatchNorm1d defaults: gamma=1, beta=0, running_mean=0, running_var=1
    g1, be1 = jnp.ones((512,), jnp.float32), jnp.zeros((512,), jnp.float32)
    rm1, rv1 = jnp.zeros((512,), jnp.float32), jnp.ones((512,), jnp.float32)
    g2, be2 = jnp.ones((256,), jnp.float32), jnp.zeros((256,), jnp.float32)
    rm2, rv2 = jnp.zeros((256,), jnp.float32), jnp.ones((256,), jnp.float32)

    return (w1, b1, g1, be1, rm1, rv1,
            w2, b2, g2, be2, rm2, rv2,
            w3, b3)


if __name__ == "__main__":
    key = jax.random.PRNGKey(0)
    k_x, k_p = jax.random.split(key)

    # Small example input: 3072 = 3*32*32 flattened features, batch=2.
    x = jax.random.normal(k_x, (2, 3, 32, 32), jnp.float32)
    params = init_params(k_p, classes=10)

    out = mlp_forward(x, params)
    jax.block_until_ready(out)

    # Reference in pure f32 JAX (eval-mode semantics).  Kernel uses bf16 MXU
    # operands with f32 accumulation, so allow a modest tolerance.
    xf = x.reshape(2, -1)
    (w1, b1, g1, be1, rm1, rv1,
     w2, b2, g2, be2, rm2, rv2, w3, b3) = params
    eps = 1e-5
    h = jnp.maximum((xf @ w1 + b1 - rm1) / jnp.sqrt(rv1 + eps) * g1 + be1, 0.0)
    h = jnp.maximum((h @ w2 + b2 - rm2) / jnp.sqrt(rv2 + eps) * g2 + be2, 0.0)
    ref = h @ w3 + b3

    assert out.shape == (2, 10)
    assert jnp.allclose(out, ref, atol=5e-2, rtol=5e-2), (
        float(jnp.max(jnp.abs(out - ref))))

    print("KERNEL_OK")
</pallas_src>

<mosaic_0001>
module attributes {stable_mosaic.version = 11 : i64} {
  func.func @mlp_kernel(%arg0: i32, %arg1: memref<128x3072xf32, #tpu.memory_space<vmem>>, %arg2: memref<3072x512xbf16, #tpu.memory_space<vmem>>, %arg3: memref<1x512xf32, #tpu.memory_space<vmem>>, %arg4: memref<512x256xbf16, #tpu.memory_space<vmem>>, %arg5: memref<1x256xf32, #tpu.memory_space<vmem>>, %arg6: memref<256x128xbf16, #tpu.memory_space<vmem>>, %arg7: memref<1x128xf32, #tpu.memory_space<vmem>>, %arg8: memref<128x128xf32, #tpu.memory_space<vmem>>) attributes {dimension_semantics = [#tpu.dimension_semantics<parallel>], iteration_bounds = array<i64: 1>, scalar_prefetch = 0 : i64, scratch_operands = 0 : i64, tpu.core_type = #tpu.core_type<tc>, window_params = [{transform_indices = @transform_0, window_bounds = array<i64: 128, 3072>}, {pipeline_mode = #tpu.pipeline_mode<synchronous>, transform_indices = @transform_1, window_bounds = array<i64: 3072, 512>}, {pipeline_mode = #tpu.pipeline_mode<synchronous>, transform_indices = @transform_2, window_bounds = array<i64: 1, 512>}, {pipeline_mode = #tpu.pipeline_mode<synchronous>, transform_indices = @transform_3, window_bounds = array<i64: 512, 256>}, {pipeline_mode = #tpu.pipeline_mode<synchronous>, transform_indices = @transform_4, window_bounds = array<i64: 1, 256>}, {pipeline_mode = #tpu.pipeline_mode<synchronous>, transform_indices = @transform_5, window_bounds = array<i64: 256, 128>}, {pipeline_mode = #tpu.pipeline_mode<synchronous>, transform_indices = @transform_6, window_bounds = array<i64: 1, 128>}, {transform_indices = @transform_7, window_bounds = array<i64: 128, 128>}]} {
    %c0 = arith.constant 0 : index
    %c0_0 = arith.constant 0 : index
    %0 = vector.load %arg1[%c0, %c0_0] : memref<128x3072xf32, #tpu.memory_space<vmem>>, vector<128x3072xf32>
    %1 = arith.truncf %0 : vector<128x3072xf32> to vector<128x3072xbf16>
    %c0_1 = arith.constant 0 : index
    %c0_2 = arith.constant 0 : index
    %2 = vector.load %arg2[%c0_1, %c0_2] : memref<3072x512xbf16, #tpu.memory_space<vmem>>, vector<3072x512xbf16>
    %cst = arith.constant dense<0.000000e+00> : vector<128x512xf32>
    %3 = tpu.matmul %1, %2, %cst {dimension_numbers = #tpu.dot_dimension_numbers<[1], [0], [0], [1], [0, 0, 1, 1], [], []>} : vector<128x3072xbf16>, vector<3072x512xbf16>, vector<128x512xf32> -> vector<128x512xf32>
    %c0_3 = arith.constant 0 : index
    %c0_4 = arith.constant 0 : index
    %4 = vector.load %arg3[%c0_3, %c0_4] : memref<1x512xf32, #tpu.memory_space<vmem>>, vector<1x512xf32>
    %5 = vector.broadcast %4 : vector<1x512xf32> to vector<128x512xf32>
    %6 = arith.addf %3, %5 : vector<128x512xf32>
    %cst_5 = arith.constant 0.000000e+00 : f32
    %7 = vector.broadcast %cst_5 : f32 to vector<128x512xf32>
    %8 = arith.maximumf %6, %7 : vector<128x512xf32>
    %9 = arith.truncf %8 : vector<128x512xf32> to vector<128x512xbf16>
    %c0_6 = arith.constant 0 : index
    %c0_7 = arith.constant 0 : index
    %10 = vector.load %arg4[%c0_6, %c0_7] : memref<512x256xbf16, #tpu.memory_space<vmem>>, vector<512x256xbf16>
    %cst_8 = arith.constant dense<0.000000e+00> : vector<128x256xf32>
    %11 = tpu.matmul %9, %10, %cst_8 {dimension_numbers = #tpu.dot_dimension_numbers<[1], [0], [0], [1], [0, 0, 1, 1], [], []>} : vector<128x512xbf16>, vector<512x256xbf16>, vector<128x256xf32> -> vector<128x256xf32>
    %c0_9 = arith.constant 0 : index
    %c0_10 = arith.constant 0 : index
    %12 = vector.load %arg5[%c0_9, %c0_10] : memref<1x256xf32, #tpu.memory_space<vmem>>, vector<1x256xf32>
    %13 = vector.broadcast %12 : vector<1x256xf32> to vector<128x256xf32>
    %14 = arith.addf %11, %13 : vector<128x256xf32>
    %cst_11 = arith.constant 0.000000e+00 : f32
    %15 = vector.broadcast %cst_11 : f32 to vector<128x256xf32>
    %16 = arith.maximumf %14, %15 : vector<128x256xf32>
    %17 = arith.truncf %16 : vector<128x256xf32> to vector<128x256xbf16>
    %c0_12 = arith.constant 0 : index
    %c0_13 = arith.constant 0 : index
    %18 = vector.load %arg6[%c0_12, %c0_13] : memref<256x128xbf16, #tpu.memory_space<vmem>>, vector<256x128xbf16>
    %cst_14 = arith.constant dense<0.000000e+00> : vector<128x128xf32>
    %19 = tpu.matmul %17, %18, %cst_14 {dimension_numbers = #tpu.dot_dimension_numbers<[1], [0], [0], [1], [0, 0, 1, 1], [], []>} : vector<128x256xbf16>, vector<256x128xbf16>, vector<128x128xf32> -> vector<128x128xf32>
    %c0_15 = arith.constant 0 : index
    %c0_16 = arith.constant 0 : index
    %20 = vector.load %arg7[%c0_15, %c0_16] : memref<1x128xf32, #tpu.memory_space<vmem>>, vector<1x128xf32>
    %21 = vector.broadcast %20 : vector<1x128xf32> to vector<128x128xf32>
    %22 = arith.addf %19, %21 : vector<128x128xf32>
    %c0_17 = arith.constant 0 : index
    %c0_18 = arith.constant 0 : index
    %23 = vector.load %arg8[%c0_17, %c0_18] : memref<128x128xf32, #tpu.memory_space<vmem>>, vector<128x128xf32>
    tpu.vector_store %arg8[%c0_17, %c0_18], %22 {strides = array<i32>} : memref<128x128xf32, #tpu.memory_space<vmem>>, vector<128x128xf32>,
    return
  }
  func.func @transform_0(%arg0: i32) -> (i32, i32) {
    %c0_i32 = arith.constant 0 : i32
    %c0_i32_0 = arith.constant 0 : i32
    return %arg0, %c0_i32 : i32, i32
  }
  func.func @transform_1(%arg0: i32) -> (i32, i32) {
    %c0_i32 = arith.constant 0 : i32
    %c0_i32_0 = arith.constant 0 : i32
    %c0_i32_1 = arith.constant 0 : i32
    return %c0_i32, %c0_i32_0 : i32, i32
  }
  func.func @transform_2(%arg0: i32) -> (i32, i32) {
    %c0_i32 = arith.constant 0 : i32
    %c0_i32_0 = arith.constant 0 : i32
    %c0_i32_1 = arith.constant 0 : i32
    return %c0_i32, %c0_i32_0 : i32, i32
  }
  func.func @transform_3(%arg0: i32) -> (i32, i32) {
    %c0_i32 = arith.constant 0 : i32
    %c0_i32_0 = arith.constant 0 : i32
    %c0_i32_1 = arith.constant 0 : i32
    return %c0_i32, %c0_i32_0 : i32, i32
  }
  func.func @transform_4(%arg0: i32) -> (i32, i32) {
    %c0_i32 = arith.constant 0 : i32
    %c0_i32_0 = arith.constant 0 : i32
    %c0_i32_1 = arith.constant 0 : i32
    return %c0_i32, %c0_i32_0 : i32, i32
  }
  func.func @transform_5(%arg0: i32) -> (i32, i32) {
    %c0_i32 = arith.constant 0 : i32
    %c0_i32_0 = arith.constant 0 : i32
    %c0_i32_1 = arith.constant 0 : i32
    return %c0_i32, %c0_i32_0 : i32, i32
  }
  func.func @transform_6(%arg0: i32) -> (i32, i32) {
    %c0_i32 = arith.constant 0 : i32
    %c0_i32_0 = arith.constant 0 : i32
    %c0_i32_1 = arith.constant 0 : i32
    return %c0_i32, %c0_i32_0 : i32, i32
  }
  func.func @transform_7(%arg0: i32) -> (i32, i32) {
    %c0_i32 = arith.constant 0 : i32
    %c0_i32_0 = arith.constant 0 : i32
    return %arg0, %c0_i32 : i32, i32
  }
}

</mosaic_0001>

<llo_original>
// kernel: tpu_custom_call.1
$region0: #{tpu_custom_call.1}
  #allocation0 [shape = 'u32[]', space=smem, size = 0x4, offset = 0x4, fixed_abs, tag = 'smem constant byte address 0x4 - core index']
  #allocation1 [shape = 'u32[144,128]{1,0:T(1,128)}', space=vmem, size = 0x12000, scoped, tag = 'internal scratch']
  %s0 = inlined_call_operand.hbm [shape: f32[128,3072], index: 0, kind: input, shape index: {}]
  %s1 = inlined_call_operand.hbm [shape: bf16[3072,512], index: 1, kind: input, shape index: {}]
  %s2 = inlined_call_operand.hbm [shape: f32[1,512], index: 2, kind: input, shape index: {}]
  %s3 = inlined_call_operand.hbm [shape: bf16[512,256], index: 3, kind: input, shape index: {}]
  %s4 = inlined_call_operand.hbm [shape: f32[1,256], index: 4, kind: input, shape index: {}]
  %s5 = inlined_call_operand.hbm [shape: bf16[256,128], index: 5, kind: input, shape index: {}]
  %s6 = inlined_call_operand.hbm [shape: f32[1,128], index: 6, kind: input, shape index: {}]
  %s7 = inlined_call_operand.hbm [shape: f32[128,128], index: 7, kind: output, shape index: {}]
  %s8 = sld [smem:[#allocation0]]
  $region66: #{tpu_custom_call.1} parent=0
    _
  %s10 = ssub.s32 1, %s8
  %s11 = scalar_select 0, %s10, %s8
  $region1: #{tpu_custom_call.1} parent=0
    #allocation2 [shape = 'u8[1572864]{0}', space=vmem, size = 0x180000, scoped, tag = 'input window, operand 0, single buffered']
    #allocation3 [shape = 's32[1]{0}', space=sflag, size = 0x4, scoped, tag = 'scoped memory for tpu_custom_call.1']
    #allocation4 [shape = 's32[1]{0}', space=sflag, size = 0x4, scoped, tag = 'scoped memory for tpu_custom_call.1']
    #allocation5 [shape = 'u8[3145728]{0}', space=vmem, size = 0x300000, scoped, tag = 'input window, operand 1, single buffered']
    #allocation6 [shape = 's32[1]{0}', space=sflag, size = 0x4, scoped, tag = 'scoped memory for tpu_custom_call.1']
    #allocation7 [shape = 'u8[2048]{0}', space=vmem, size = 0x800, scoped, tag = 'input window, operand 2, single buffered']
    #allocation8 [shape = 'u8[262144]{0}', space=vmem, size = 0x40000, scoped, tag = 'input window, operand 3, single buffered']
    #allocation9 [shape = 's32[1]{0}', space=sflag, size = 0x4, scoped, tag = 'scoped memory for tpu_custom_call.1']
    #allocation10 [shape = 'u8[1024]{0}', space=vmem, size = 0x400, scoped, tag = 'input window, operand 4, single buffered']
    #allocation11 [shape = 'u8[65536]{0}', space=vmem, size = 0x10000, scoped, tag = 'input window, operand 5, single buffered']
    #allocation12 [shape = 's32[1]{0}', space=sflag, size = 0x4, scoped, tag = 'scoped memory for tpu_custom_call.1']
    #allocation13 [shape = 'u8[512]{0}', space=vmem, size = 0x400, scoped, tag = 'input window, operand 6, single buffered']
    #allocation14 [shape = 'u8[65536]{0}', space=vmem, size = 0x10000, scoped, tag = 'output window, operand 0, single buffered']
    %12 = vsyncpa [#allocation3], 0
    %13 = vsyncpa [#allocation6], 0
    %14 = vsyncpa [#allocation9], 0
    %15 = vsyncpa [#allocation12], 0
    %16 = vsyncpa [#allocation4], 0
    // Predicated region
    $region2: #{tpu_custom_call.1} parent=1 // pred_check
      _
    $region3: #{tpu_custom_call.1} parent=1 // pred_check_branch
      %18 = sbr.rel (0) target = $region5
    $region4: #{tpu_custom_call.1} parent=1 // pred_region
      %s20 = ssub.s32 49152, 49152
      %21 = vsyncadd [#allocation3], %s20
      %s22 = sshll.u32 [#allocation2], 4
      %s23 = int_to_ptr.vmem [resolvable:$true] %s22
      %28 = dma.hbm_to_vmem [thread:$0]  %s0, 49152, %s23, [#allocation3], 3072, 3072, 192
    $region5: #{tpu_custom_call.1} parent=1 // pred_fallthru
      _
    // Predicated region
    $region6: #{tpu_custom_call.1} parent=1 // pred_check
      _
    $region7: #{tpu_custom_call.1} parent=1 // pred_check_branch
      %30 = sbr.rel (0) target = $region9
    $region8: #{tpu_custom_call.1} parent=1 // pred_region
      %s32 = ssub.s32 98304, 98304
      %33 = vsyncadd [#allocation6], %s32
      %s34 = sshll.u32 [#allocation5], 4
      %s35 = int_to_ptr.vmem [resolvable:$true] %s34
      %40 = dma.hbm_to_vmem [thread:$0]  %s1, 98304, %s35, [#allocation6], 256, 256, 16
    $region9: #{tpu_custom_call.1} parent=1 // pred_fallthru
      _
    // Predicated region
    $region10: #{tpu_custom_call.1} parent=1 // pred_check
      _
    $region11: #{tpu_custom_call.1} parent=1 // pred_check_branch
      %42 = sbr.rel (0) target = $region13
    $region12: #{tpu_custom_call.1} parent=1 // pred_region
      %s44 = ssub.s32 64, 64
      %45 = vsyncadd [#allocation6], %s44
      %s47 = sshll.u32 [#allocation7], 4
      %s48 = int_to_ptr.vmem [resolvable:$true] %s47
      %50 = dma.hbm_to_vmem [thread:$0]  %s2, 64, %s48, [#allocation6]
    $region13: #{tpu_custom_call.1} parent=1 // pred_fallthru
      _
    // Predicated region
    $region14: #{tpu_custom_call.1} parent=1 // pred_check
      _
    $region15: #{tpu_custom_call.1} parent=1 // pred_check_branch
      %52 = sbr.rel (0) target = $region17
    $region16: #{tpu_custom_call.1} parent=1 // pred_region
      %s54 = ssub.s32 8192, 8192
      %55 = vsyncadd [#allocation9], %s54
      %s56 = sshll.u32 [#allocation8], 4
      %s57 = int_to_ptr.vmem [resolvable:$true] %s56
      %62 = dma.hbm_to_vmem [thread:$0]  %s3, 8192, %s57, [#allocation9], 128, 128, 8
    $region17: #{tpu_custom_call.1} parent=1 // pred_fallthru
      _
    // Predicated region
    $region18: #{tpu_custom_call.1} parent=1 // pred_check
      _
    $region19: #{tpu_custom_call.1} parent=1 // pred_check_branch
      %64 = sbr.rel (0) target = $region21
    $region20: #{tpu_custom_call.1} parent=1 // pred_region
      %s66 = ssub.s32 32, 32
      %67 = vsyncadd [#allocation9], %s66
      %s69 = sshll.u32 [#allocation10], 4
      %s70 = int_to_ptr.vmem [resolvable:$true] %s69
      %72 = dma.hbm_to_vmem [thread:$0]  %s4, 32, %s70, [#allocation9]
    $region21: #{tpu_custom_call.1} parent=1 // pred_fallthru
      _
    // Predicated region
    $region22: #{tpu_custom_call.1} parent=1 // pred_check
      _
    $region23: #{tpu_custom_call.1} parent=1 // pred_check_branch
      %74 = sbr.rel (0) target = $region25
    $region24: #{tpu_custom_call.1} parent=1 // pred_region
      %s76 = ssub.s32 2048, 2048
      %77 = vsyncadd [#allocation12], %s76
      %s78 = sshll.u32 [#allocation11], 4
      %s79 = int_to_ptr.vmem [resolvable:$true] %s78
      %84 = dma.hbm_to_vmem [thread:$0]  %s5, 2048, %s79, [#allocation12], 64, 64, 4
    $region25: #{tpu_custom_call.1} parent=1 // pred_fallthru
      _
    // Predicated region
    $region26: #{tpu_custom_call.1} parent=1 // pred_check
      _
    $region27: #{tpu_custom_call.1} parent=1 // pred_check_branch
      %86 = sbr.rel (0) target = $region29
    $region28: #{tpu_custom_call.1} parent=1 // pred_region
      %s88 = ssub.s32 16, 16
      %89 = vsyncadd [#allocation12], %s88
      %s91 = sshll.u32 [#allocation13], 4
      %s92 = int_to_ptr.vmem [resolvable:$true] %s91
      %94 = dma.hbm_to_vmem [thread:$0]  %s6, 16, %s92, [#allocation12]
    $region29: #{tpu_custom_call.1} parent=1 // pred_fallthru
      _
    // Predicated region
    $region30: #{tpu_custom_call.1} parent=1 // pred_check
      _
    $region31: #{tpu_custom_call.1} parent=1 // pred_check_branch
      %96 = sbr.rel (0) target = $region33
    $region32: #{tpu_custom_call.1} parent=1 // pred_region
      %97 = dma.done [#allocation3], 49152
    $region33: #{tpu_custom_call.1} parent=1 // pred_fallthru
      _
    // Predicated region
    $region34: #{tpu_custom_call.1} parent=1 // pred_check
      _
    $region35: #{tpu_custom_call.1} parent=1 // pred_check_branch
      %99 = sbr.rel (0) target = $region37
    $region36: #{tpu_custom_call.1} parent=1 // pred_region
      %100 = dma.done [#allocation6], 98304
    $region37: #{tpu_custom_call.1} parent=1 // pred_fallthru
      _
    // Predicated region
    $region38: #{tpu_custom_call.1} parent=1 // pred_check
      _
    $region39: #{tpu_custom_call.1} parent=1 // pred_check_branch
      %102 = sbr.rel (0) target = $region41
    $region40: #{tpu_custom_call.1} parent=1 // pred_region
      %103 = dma.done [#allocation6], 64
    $region41: #{tpu_custom_call.1} parent=1 // pred_fallthru
      _
    // Predicated region
    $region42: #{tpu_custom_call.1} parent=1 // pred_check
      _
    $region43: #{tpu_custom_call.1} parent=1 // pred_check_branch
      %105 = sbr.rel (0) target = $region45
    $region44: #{tpu_custom_call.1} parent=1 // pred_region
      %106 = dma.done [#allocation9], 8192
    $region45: #{tpu_custom_call.1} parent=1 // pred_fallthru
      _
    // Predicated region
    $region46: #{tpu_custom_call.1} parent=1 // pred_check
      _
    $region47: #{tpu_custom_call.1} parent=1 // pred_check_branch
      %108 = sbr.rel (0) target = $region49
    $region48: #{tpu_custom_call.1} parent=1 // pred_region
      %109 = dma.done [#allocation9], 32
    $region49: #{tpu_custom_call.1} parent=1 // pred_fallthru
      _
    // Predicated region
    $region50: #{tpu_custom_call.1} parent=1 // pred_check
      _
    $region51: #{tpu_custom_call.1} parent=1 // pred_check_branch
      %111 = sbr.rel (0) target = $region53
    $region52: #{tpu_custom_call.1} parent=1 // pred_region
      %112 = dma.done [#allocation12], 2048
    $region53: #{tpu_custom_call.1} parent=1 // pred_fallthru
      _
    // Predicated region
    $region54: #{tpu_custom_call.1} parent=1 // pred_check
      _
    $region55: #{tpu_custom_call.1} parent=1 // pred_check_branch
      %114 = sbr.rel (0) target = $region57
    $region56: #{tpu_custom_call.1} parent=1 // pred_region
      %115 = dma.done [#allocation12], 16
    $region57: #{tpu_custom_call.1} parent=1 // pred_fallthru
      _
    %v117 = vld [vmem:[#allocation2] sm:$0xff]
    %v118 = vld [vmem:[#allocation2 + $0x8] sm:$0xff]
    %v119 = vld [vmem:[#allocation2 + $0x10] sm:$0xff]
    %v120 = vld [vmem:[#allocation2 + $0x18] sm:$0xff]
    %v121 = vld [vmem:[#allocation2 + $0x20] sm:$0xff]
    %v122 = vld [vmem:[#allocation2 + $0x28] sm:$0xff]
    %v123 = vld [vmem:[#allocation2 + $0x30] sm:$0xff]
    %v124 = vld [vmem:[#allocation2 + $0x38] sm:$0xff]
    %v125 = vld [vmem:[#allocation2 + $0x40] sm:$0xff]
    %v126 = vld [vmem:[#allocation2 + $0x48] sm:$0xff]
    %v127 = vld [vmem:[#allocation2 + $0x50] sm:$0xff]
    %v128 = vld [vmem:[#allocation2 + $0x58] sm:$0xff]
    %v129 = vld [vmem:[#allocation2 + $0x60] sm:$0xff]
    %v130 = vld [vmem:[#allocation2 + $0x68] sm:$0xff]
    %v131 = vld [vmem:[#allocation2 + $0x70] sm:$0xff]
    %v132 = vld [vmem:[#allocation2 + $0x78] sm:$0xff]
    %v133 = vld [vmem:[#allocation2 + $0x80] sm:$0xff]
    %v134 = vld [vmem:[#allocation2 + $0x88] sm:$0xff]
    %v135 = vld [vmem:[#allocation2 + $0x90] sm:$0xff]
    %v136 = vld [vmem:[#allocation2 + $0x98] sm:$0xff]
    %v137 = vld [vmem:[#allocation2 + $0xa0] sm:$0xff]
    %v138 = vld [vmem:[#allocation2 + $0xa8] sm:$0xff]
    %v139 = vld [vmem:[#allocation2 + $0xb0] sm:$0xff]
    %v140 = vld [vmem:[#allocation2 + $0xb8] sm:$0xff]
    %v141 = vld [vmem:[#allocation2 + $0xc0] sm:$0xff]
    %v142 = vld [vmem:[#allocation2 + $0xc8] sm:$0xff]
    %v143 = vld [vmem:[#allocation2 + $0xd0] sm:$0xff]
    %v144 = vld [vmem:[#allocation2 + $0xd8] sm:$0xff]
    %v145 = vld [vmem:[#allocation2 + $0xe0] sm:$0xff]
    %v146 = vld [vmem:[#allocation2 + $0xe8] sm:$0xff]
    %v147 = vld [vmem:[#allocation2 + $0xf0] sm:$0xff]
    %v148 = vld [vmem:[#allocation2 + $0xf8] sm:$0xff]
    %v149 = vld [vmem:[#allocation2 + $0x100] sm:$0xff]
    %v150 = vld [vmem:[#allocation2 + $0x108] sm:$0xff]
    %v151 = vld [vmem:[#allocation2 + $0x110] sm:$0xff]
    %v152 = vld [vmem:[#allocation2 + $0x118] sm:$0xff]
    %v153 = vld [vmem:[#allocation2 + $0x120] sm:$0xff]
    %v154 = vld [vmem:[#allocation2 + $0x128] sm:$0xff]
    %v155 = vld [vmem:[#allocation2 + $0x130] sm:$0xff]
    %v156 = vld [vmem:[#allocation2 + $0x138] sm:$0xff]
    %v157 = vld [vmem:[#allocation2 + $0x140] sm:$0xff]
    %v158 = vld [vmem:[#allocation2 + $0x148] sm:$0xff]
    %v159 = vld [vmem:[#allocation2 + $0x150] sm:$0xff]
    %v160 = vld [vmem:[#allocation2 + $0x158] sm:$0xff]
    %v161 = vld [vmem:[#allocation2 + $0x160] sm:$0xff]
    %v162 = vld [vmem:[#allocation2 + $0x168] sm:$0xff]
    %v163 = vld [vmem:[#allocation2 + $0x170] sm:$0xff]
    %v164 = vld [vmem:[#allocation2 + $0x178] sm:$0xff]
    %v165 = vld [vmem:[#allocation2 + $0x180] sm:$0xff]
    %v166 = vld [vmem:[#allocation2 + $0x188] sm:$0xff]
    %v167 = vld [vmem:[#allocation2 + $0x190] sm:$0xff]
    %v168 = vld [vmem:[#allocation2 + $0x198] sm:$0xff]
    %v169 = vld [vmem:[#allocation2 + $0x1a0] sm:$0xff]
    %v170 = vld [vmem:[#allocation2 + $0x1a8] sm:$0xff]
    %v171 = vld [vmem:[#allocation2 + $0x1b0] sm:$0xff]
    %v172 = vld [vmem:[#allocation2 + $0x1b8] sm:$0xff]
    %v173 = vld [vmem:[#allocation2 + $0x1c0] sm:$0xff]
    %v174 = vld [vmem:[#allocation2 + $0x1c8] sm:$0xff]
    %v175 = vld [vmem:[#allocation2 + $0x1d0] sm:$0xff]
    %v176 = vld [vmem:[#allocation2 + $0x1d8] sm:$0xff]
    %v177 = vld [vmem:[#allocation2 + $0x1e0] sm:$0xff]
    %v178 = vld [vmem:[#allocation2 + $0x1e8] sm:$0xff]
    %v179 = vld [vmem:[#allocation2 + $0x1f0] sm:$0xff]
    %v180 = vld [vmem:[#allocation2 + $0x1f8] sm:$0xff]
    %v181 = vld [vmem:[#allocation2 + $0x200] sm:$0xff]
    %v182 = vld [vmem:[#allocation2 + $0x208] sm:$0xff]
    %v183 = vld [vmem:[#allocation2 + $0x210] sm:$0xff]
    %v184 = vld [vmem:[#allocation2 + $0x218] sm:$0xff]
    %v185 = vld [vmem:[#allocation2 + $0x220] sm:$0xff]
    %v186 = vld [vmem:[#allocation2 + $0x228] sm:$0xff]
    %v187 = vld [vmem:[#allocation2 + $0x230] sm:$0xff]
    %v188 = vld [vmem:[#allocation2 + $0x238] sm:$0xff]
    %v189 = vld [vmem:[#allocation2 + $0x240] sm:$0xff]
    %v190 = vld [vmem:[#allocation2 + $0x248] sm:$0xff]
    %v191 = vld [vmem:[#allocation2 + $0x250] sm:$0xff]
    %v192 = vld [vmem:[#allocation2 + $0x258] sm:$0xff]
    %v193 = vld [vmem:[#allocation2 + $0x260] sm:$0xff]
    %v194 = vld [vmem:[#allocation2 + $0x268] sm:$0xff]
    %v195 = vld [vmem:[#allocation2 + $0x270] sm:$0xff]
    %v196 = vld [vmem:[#allocation2 + $0x278] sm:$0xff]
    %v197 = vld [vmem:[#allocation2 + $0x280] sm:$0xff]
    %v198 = vld [vmem:[#allocation2 + $0x288] sm:$0xff]
    %v199 = vld [vmem:[#allocation2 + $0x290] sm:$0xff]
    %v200 = vld [vmem:[#allocation2 + $0x298] sm:$0xff]
    %v201 = vld [vmem:[#allocation2 + $0x2a0] sm:$0xff]
    %v202 = vld [vmem:[#allocation2 + $0x2a8] sm:$0xff]
    %v203 = vld [vmem:[#allocation2 + $0x2b0] sm:$0xff]
    %v204 = vld [vmem:[#allocation2 + $0x2b8] sm:$0xff]
    %v205 = vld [vmem:[#allocation2 + $0x2c0] sm:$0xff]
    %v206 = vld [vmem:[#allocation2 + $0x2c8] sm:$0xff]
    %v207 = vld [vmem:[#allocation2 + $0x2d0] sm:$0xff]
    %v208 = vld [vmem:[#allocation2 + $0x2d8] sm:$0xff]
    %v209 = vld [vmem:[#allocation2 + $0x2e0] sm:$0xff]
    %v210 = vld [vmem:[#allocation2 + $0x2e8] sm:$0xff]
    %v211 = vld [vmem:[#allocation2 + $0x2f0] sm:$0xff]
    %v212 = vld [vmem:[#allocation2 + $0x2f8] sm:$0xff]
    %v213 = vld [vmem:[#allocation2 + $0x300] sm:$0xff]
    %v214 = vld [vmem:[#allocation2 + $0x308] sm:$0xff]
    %v215 = vld [vmem:[#allocation2 + $0x310] sm:$0xff]
    %v216 = vld [vmem:[#allocation2 + $0x318] sm:$0xff]
    %v217 = vld [vmem:[#allocation2 + $0x320] sm:$0xff]
    %v218 = vld [vmem:[#allocation2 + $0x328] sm:$0xff]
    %v219 = vld [vmem:[#allocation2 + $0x330] sm:$0xff]
    %v220 = vld [vmem:[#allocation2 + $0x338] sm:$0xff]
    %v221 = vld [vmem:[#allocation2 + $0x340] sm:$0xff]
    %v222 = vld [vmem:[#allocation2 + $0x348] sm:$0xff]
    %v223 = vld [vmem:[#allocation2 + $0x350] sm:$0xff]
    %v224 = vld [vmem:[#allocation2 + $0x358] sm:$0xff]
    %v225 = vld [vmem:[#allocation2 + $0x360] sm:$0xff]
    %v226 = vld [vmem:[#allocation2 + $0x368] sm:$0xff]
    %v227 = vld [vmem:[#allocation2 + $0x370] sm:$0xff]
    %v228 = vld [vmem:[#allocation2 + $0x378] sm:$0xff]
    %v229 = vld [vmem:[#allocation2 + $0x380] sm:$0xff]
    %v230 = vld [vmem:[#allocation2 + $0x388] sm:$0xff]
    %v231 = vld [vmem:[#allocation2 + $0x390] sm:$0xff]
    %v232 = vld [vmem:[#allocation2 + $0x398] sm:$0xff]
    %v233 = vld [vmem:[#allocation2 + $0x3a0] sm:$0xff]
    %v234 = vld [vmem:[#allocation2 + $0x3a8] sm:$0xff]
    %v235 = vld [vmem:[#allocation2 + $0x3b0] sm:$0xff]
    %v236 = vld [vmem:[#allocation2 + $0x3b8] sm:$0xff]
    %v237 = vld [vmem:[#allocation2 + $0x3c0] sm:$0xff]
    %v238 = vld [vmem:[#allocation2 + $0x3c8] sm:$0xff]
    %v239 = vld [vmem:[#allocation2 + $0x3d0] sm:$0xff]
    %v240 = vld [vmem:[#allocation2 + $0x3d8] sm:$0xff]
    %v241 = vld [vmem:[#allocation2 + $0x3e0] sm:$0xff]
    %v242 = vld [vmem:[#allocation2 + $0x3e8] sm:$0xff]
    %v243 = vld [vmem:[#allocation2 + $0x3f0] sm:$0xff]
    %v244 = vld [vmem:[#allocation2 + $0x3f8] sm:$0xff]
    %v245 = vld [vmem:[#allocation2 + $0x400] sm:$0xff]
    %v246 = vld [vmem:[#allocation2 + $0x408] sm:$0xff]
    %v247 = vld [vmem:[#allocation2 + $0x410] sm:$0xff]
    %v248 = vld [vmem:[#allocation2 + $0x418] sm:$0xff]
    %v249 = vld [vmem:[#allocation2 + $0x420] sm:$0xff]
    %v250 = vld [vmem:[#allocation2 + $0x428] sm:$0xff]
    %v251 = vld [vmem:[#allocation2 + $0x430] sm:$0xff]
    %v252 = vld [vmem:[#allocation2 + $0x438] sm:$0xff]
    %v253 = vld [vmem:[#allocation2 + $0x440] sm:$0xff]
    %v254 = vld [vmem:[#allocation2 + $0x448] sm:$0xff]
    %v255 = vld [vmem:[#allocation2 + $0x450] sm:$0xff]
    %v256 = vld [vmem:[#allocation2 + $0x458] sm:$0xff]
    %v257 = vld [vmem:[#allocation2 + $0x460] sm:$0xff]
    %v258 = vld [vmem:[#allocation2 + $0x468] sm:$0xff]
    %v259 = vld [vmem:[#allocation2 + $0x470] sm:$0xff]
    %v260 = vld [vmem:[#allocation2 + $0x478] sm:$0xff]
    %v261 = vld [vmem:[#allocation2 + $0x480] sm:$0xff]
    %v262 = vld [vmem:[#allocation2 + $0x488] sm:$0xff]
    %v263 = vld [vmem:[#allocation2 + $0x490] sm:$0xff]
    %v264 = vld [vmem:[#allocation2 + $0x498] sm:$0xff]
    %v265 = vld [vmem:[#allocation2 + $0x4a0] sm:$0xff]
    %v266 = vld [vmem:[#allocation2 + $0x4a8] sm:$0xff]
    %v267 = vld [vmem:[#allocation2 + $0x4b0] sm:$0xff]
    %v268 = vld [vmem:[#allocation2 + $0x4b8] sm:$0xff]
    %v269 = vld [vmem:[#allocation2 + $0x4c0] sm:$0xff]
    %v270 = vld [vmem:[#allocation2 + $0x4c8] sm:$0xff]
    %v271 = vld [vmem:[#allocation2 + $0x4d0] sm:$0xff]
    %v272 = vld [vmem:[#allocation2 + $0x4d8] sm:$0xff]
    %v273 = vld [vmem:[#allocation2 + $0x4e0] sm:$0xff]
    %v274 = vld [vmem:[#allocation2 + $0x4e8] sm:$0xff]
    %v275 = vld [vmem:[#allocation2 + $0x4f0] sm:$0xff]
    %v276 = vld [vmem:[#allocation2 + $0x4f8] sm:$0xff]
    %v277 = vld [vmem:[#allocation2 + $0x500] sm:$0xff]
    %v278 = vld [vmem:[#allocation2 + $0x508] sm:$0xff]
    %v279 = vld [vmem:[#allocation2 + $0x510] sm:$0xff]
    %v280 = vld [vmem:[#allocation2 + $0x518] sm:$0xff]
    %v281 = vld [vmem:[#allocation2 + $0x520] sm:$0xff]
    %v282 = vld [vmem:[#allocation2 + $0x528] sm:$0xff]
    %v283 = vld [vmem:[#allocation2 + $0x530] sm:$0xff]
    %v284 = vld [vmem:[#allocation2 + $0x538] sm:$0xff]
    %v285 = vld [vmem:[#allocation2 + $0x540] sm:$0xff]
    %v286 = vld [vmem:[#allocation2 + $0x548] sm:$0xff]
    %v287 = vld [vmem:[#allocation2 + $0x550] sm:$0xff]
    %v288 = vld [vmem:[#allocation2 + $0x558] sm:$0xff]
    %v289 = vld [vmem:[#allocation2 + $0x560] sm:$0xff]
    %v290 = vld [vmem:[#allocation2 + $0x568] sm:$0xff]
    %v291 = vld [vmem:[#allocation2 + $0x570] sm:$0xff]
    %v292 = vld [vmem:[#allocation2 + $0x578] sm:$0xff]
    %v293 = vld [vmem:[#allocation2 + $0x580] sm:$0xff]
    %v294 = vld [vmem:[#allocation2 + $0x588] sm:$0xff]
    %v295 = vld [vmem:[#allocation2 + $0x590] sm:$0xff]
    %v296 = vld [vmem:[#allocation2 + $0x598] sm:$0xff]
    %v297 = vld [vmem:[#allocation2 + $0x5a0] sm:$0xff]
    %v298 = vld [vmem:[#allocation2 + $0x5a8] sm:$0xff]
    %v299 = vld [vmem:[#allocation2 + $0x5b0] sm:$0xff]
    %v300 = vld [vmem:[#allocation2 + $0x5b8] sm:$0xff]
    %v301 = vld [vmem:[#allocation2 + $0x5c0] sm:$0xff]
    %v302 = vld [vmem:[#allocation2 + $0x5c8] sm:$0xff]
    %v303 = vld [vmem:[#allocation2 + $0x5d0] sm:$0xff]
    %v304 = vld [vmem:[#allocation2 + $0x5d8] sm:$0xff]
    %v305 = vld [vmem:[#allocation2 + $0x5e0] sm:$0xff]
    %v306 = vld [vmem:[#allocation2 + $0x5e8] sm:$0xff]
    %v307 = vld [vmem:[#allocation2 + $0x5f0] sm:$0xff]
    %v308 = vld [vmem:[#allocation2 + $0x5f8] sm:$0xff]
    %v309 = vld [vmem:[#allocation2 + $0x600] sm:$0xff]
    %v310 = vld [vmem:[#allocation2 + $0x608] sm:$0xff]
    %v311 = vld [vmem:[#allocation2 + $0x610] sm:$0xff]
    %v312 = vld [vmem:[#allocation2 + $0x618] sm:$0xff]
    %v313 = vld [vmem:[#allocation2 + $0x620] sm:$0xff]
    %v314 = vld [vmem:[#allocation2 + $0x628] sm:$0xff]
    %v315 = vld [vmem:[#allocation2 + $0x630] sm:$0xff]
    %v316 = vld [vmem:[#allocation2 + $0x638] sm:$0xff]
    %v317 = vld [vmem:[#allocation2 + $0x640] sm:$0xff]
    %v318 = vld [vmem:[#allocation2 + $0x648] sm:$0xff]
    %v319 = vld [vmem:[#allocation2 + $0x650] sm:$0xff]
    %v320 = vld [vmem:[#allocation2 + $0x658] sm:$0xff]
    %v321 = vld [vmem:[#allocation2 + $0x660] sm:$0xff]
    %v322 = vld [vmem:[#allocation2 + $0x668] sm:$0xff]
    %v323 = vld [vmem:[#allocation2 + $0x670] sm:$0xff]
    %v324 = vld [vmem:[#allocation2 + $0x678] sm:$0xff]
    %v325 = vld [vmem:[#allocation2 + $0x680] sm:$0xff]
    %v326 = vld [vmem:[#allocation2 + $0x688] sm:$0xff]
    %v327 = vld [vmem:[#allocation2 + $0x690] sm:$0xff]
    %v328 = vld [vmem:[#allocation2 + $0x698] sm:$0xff]
    %v329 = vld [vmem:[#allocation2 + $0x6a0] sm:$0xff]
    %v330 = vld [vmem:[#allocation2 + $0x6a8] sm:$0xff]
    %v331 = vld [vmem:[#allocation2 + $0x6b0] sm:$0xff]
    %v332 = vld [vmem:[#allocation2 + $0x6b8] sm:$0xff]
    %v333 = vld [vmem:[#allocation2 + $0x6c0] sm:$0xff]
    %v334 = vld [vmem:[#allocation2 + $0x6c8] sm:$0xff]
    %v335 = vld [vmem:[#allocation2 + $0x6d0] sm:$0xff]
    %v336 = vld [vmem:[#allocation2 + $0x6d8] sm:$0xff]
    %v337 = vld [vmem:[#allocation2 + $0x6e0] sm:$0xff]
    %v338 = vld [vmem:[#allocation2 + $0x6e8] sm:$0xff]
    %v339 = vld [vmem:[#allocation2 + $0x6f0] sm:$0xff]
    %v340 = vld [vmem:[#allocation2 + $0x6f8] sm:$0xff]
    %v341 = vld [vmem:[#allocation2 + $0x700] sm:$0xff]
    %v342 = vld [vmem:[#allocation2 + $0x708] sm:$0xff]
    %v343 = vld [vmem:[#allocation2 + $0x710] sm:$0xff]
    %v344 = vld [vmem:[#allocation2 + $0x718] sm:$0xff]
    %v345 = vld [vmem:[#allocation2 + $0x720] sm:$0xff]
    %v346 = vld [vmem:[#allocation2 + $0x728] sm:$0xff]
    %v347 = vld [vmem:[#allocation2 + $0x730] sm:$0xff]
    %v348 = vld [vmem:[#allocation2 + $0x738] sm:$0xff]
    %v349 = vld [vmem:[#allocation2 + $0x740] sm:$0xff]
    %v350 = vld [vmem:[#allocation2 + $0x748] sm:$0xff]
    %v351 = vld [vmem:[#allocation2 + $0x750] sm:$0xff]
    %v352 = vld [vmem:[#allocation2 + $0x758] sm:$0xff]
    %v353 = vld [vmem:[#allocation2 + $0x760] sm:$0xff]
    %v354 = vld [vmem:[#allocation2 + $0x768] sm:$0xff]
    %v355 = vld [vmem:[#allocation2 + $0x770] sm:$0xff]
    %v356 = vld [vmem:[#allocation2 + $0x778] sm:$0xff]
    %v357 = vld [vmem:[#allocation2 + $0x780] sm:$0xff]
    %v358 = vld [vmem:[#allocation2 + $0x788] sm:$0xff]
    %v359 = vld [vmem:[#allocation2 + $0x790] sm:$0xff]
    %v360 = vld [vmem:[#allocation2 + $0x798] sm:$0xff]
    %v361 = vld [vmem:[#allocation2 + $0x7a0] sm:$0xff]
    %v362 = vld [vmem:[#allocation2 + $0x7a8] sm:$0xff]
    %v363 = vld [vmem:[#allocation2 + $0x7b0] sm:$0xff]
    %v364 = vld [vmem:[#allocation2 + $0x7b8] sm:$0xff]
    %v365 = vld [vmem:[#allocation2 + $0x7c0] sm:$0xff]
    %v366 = vld [vmem:[#allocation2 + $0x7c8] sm:$0xff]
    %v367 = vld [vmem:[#allocation2 + $0x7d0] sm:$0xff]
    %v368 = vld [vmem:[#allocation2 + $0x7d8] sm:$0xff]
    %v369 = vld [vmem:[#allocation2 + $0x7e0] sm:$0xff]
    %v370 = vld [vmem:[#allocation2 + $0x7e8] sm:$0xff]
    %v371 = vld [vmem:[#allocation2 + $0x7f0] sm:$0xff]
    %v372 = vld [vmem:[#allocation2 + $0x7f8] sm:$0xff]
    %v373 = vld [vmem:[#allocation2 + $0x800] sm:$0xff]
    %v374 = vld [vmem:[#allocation2 + $0x808] sm:$0xff]
    %v375 = vld [vmem:[#allocation2 + $0x810] sm:$0xff]
    %v376 = vld [vmem:[#allocation2 + $0x818] sm:$0xff]
    %v377 = vld [vmem:[#allocation2 + $0x820] sm:$0xff]
    %v378 = vld [vmem:[#allocation2 + $0x828] sm:$0xff]
    %v379 = vld [vmem:[#allocation2 + $0x830] sm:$0xff]
    %v380 = vld [vmem:[#allocation2 + $0x838] sm:$0xff]
    %v381 = vld [vmem:[#allocation2 + $0x840] sm:$0xff]
    %v382 = vld [vmem:[#allocation2 + $0x848] sm:$0xff]
    %v383 = vld [vmem:[#allocation2 + $0x850] sm:$0xff]
    %v384 = vld [vmem:[#allocation2 + $0x858] sm:$0xff]
    %v385 = vld [vmem:[#allocation2 + $0x860] sm:$0xff]
    %v386 = vld [vmem:[#allocation2 + $0x868] sm:$0xff]
    %v387 = vld [vmem:[#allocation2 + $0x870] sm:$0xff]
    %v388 = vld [vmem:[#allocation2 + $0x878] sm:$0xff]
    %v389 = vld [vmem:[#allocation2 + $0x880] sm:$0xff]
    %v390 = vld [vmem:[#allocation2 + $0x888] sm:$0xff]
    %v391 = vld [vmem:[#allocation2 + $0x890] sm:$0xff]
    %v392 = vld [vmem:[#allocation2 + $0x898] sm:$0xff]
    %v393 = vld [vmem:[#allocation2 + $0x8a0] sm:$0xff]
    %v394 = vld [vmem:[#allocation2 + $0x8a8] sm:$0xff]
    %v395 = vld [vmem:[#allocation2 + $0x8b0] sm:$0xff]
    %v396 = vld [vmem:[#allocation2 + $0x8b8] sm:$0xff]
    %v397 = vld [vmem:[#allocation2 + $0x8c0] sm:$0xff]
    %v398 = vld [vmem:[#allocation2 + $0x8c8] sm:$0xff]
    %v399 = vld [vmem:[#allocation2 + $0x8d0] sm:$0xff]
    %v400 = vld [vmem:[#allocation2 + $0x8d8] sm:$0xff]
    %v401 = vld [vmem:[#allocation2 + $0x8e0] sm:$0xff]
    %v402 = vld [vmem:[#allocation2 + $0x8e8] sm:$0xff]
    %v403 = vld [vmem:[#allocation2 + $0x8f0] sm:$0xff]
    %v404 = vld [vmem:[#allocation2 + $0x8f8] sm:$0xff]
    %v405 = vld [vmem:[#allocation2 + $0x900] sm:$0xff]
    %v406 = vld [vmem:[#allocation2 + $0x908] sm:$0xff]
    %v407 = vld [vmem:[#allocation2 + $0x910] sm:$0xff]
    %v408 = vld [vmem:[#allocation2 + $0x918] sm:$0xff]
    %v409 = vld [vmem:[#allocation2 + $0x920] sm:$0xff]
    %v410 = vld [vmem:[#allocation2 + $0x928] sm:$0xff]
    %v411 = vld [vmem:[#allocation2 + $0x930] sm:$0xff]
    %v412 = vld [vmem:[#allocation2 + $0x938] sm:$0xff]
    %v413 = vld [vmem:[#allocation2 + $0x940] sm:$0xff]
    %v414 = vld [vmem:[#allocation2 + $0x948] sm:$0xff]
    %v415 = vld [vmem:[#allocation2 + $0x950] sm:$0xff]
    %v416 = vld [vmem:[#allocation2 + $0x958] sm:$0xff]
    %v417 = vld [vmem:[#allocation2 + $0x960] sm:$0xff]
    %v418 = vld [vmem:[#allocation2 + $0x968] sm:$0xff]
    %v419 = vld [vmem:[#allocation2 + $0x970] sm:$0xff]
    %v420 = vld [vmem:[#allocation2 + $0x978] sm:$0xff]
    %v421 = vld [vmem:[#allocation2 + $0x980] sm:$0xff]
    %v422 = vld [vmem:[#allocation2 + $0x988] sm:$0xff]
    %v423 = vld [vmem:[#allocation2 + $0x990] sm:$0xff]
    %v424 = vld [vmem:[#allocation2 + $0x998] sm:$0xff]
    %v425 = vld [vmem:[#allocation2 + $0x9a0] sm:$0xff]
    %v426 = vld [vmem:[#allocation2 + $0x9a8] sm:$0xff]
    %v427 = vld [vmem:[#allocation2 + $0x9b0] sm:$0xff]
    %v428 = vld [vmem:[#allocation2 + $0x9b8] sm:$0xff]
    %v429 = vld [vmem:[#allocation2 + $0x9c0] sm:$0xff]
    %v430 = vld [vmem:[#allocation2 + $0x9c8] sm:$0xff]
    %v431 = vld [vmem:[#allocation2 + $0x9d0] sm:$0xff]
    %v432 = vld [vmem:[#allocation2 + $0x9d8] sm:$0xff]
    %v433 = vld [vmem:[#allocation2 + $0x9e0] sm:$0xff]
    %v434 = vld [vmem:[#allocation2 + $0x9e8] sm:$0xff]
    %v435 = vld [vmem:[#allocation2 + $0x9f0] sm:$0xff]
    %v436 = vld [vmem:[#allocation2 + $0x9f8] sm:$0xff]
    %v437 = vld [vmem:[#allocation2 + $0xa00] sm:$0xff]
    %v438 = vld [vmem:[#allocation2 + $0xa08] sm:$0xff]
    %v439 = vld [vmem:[#allocation2 + $0xa10] sm:$0xff]
    %v440 = vld [vmem:[#allocation2 + $0xa18] sm:$0xff]
    %v441 = vld [vmem:[#allocation2 + $0xa20] sm:$0xff]
    %v442 = vld [vmem:[#allocation2 + $0xa28] sm:$0xff]
    %v443 = vld [vmem:[#allocation2 + $0xa30] sm:$0xff]
    %v444 = vld [vmem:[#allocation2 + $0xa38] sm:$0xff]
    %v445 = vld [vmem:[#allocation2 + $0xa40] sm:$0xff]
    %v446 = vld [vmem:[#allocation2 + $0xa48] sm:$0xff]
    %v447 = vld [vmem:[#allocation2 + $0xa50] sm:$0xff]
    %v448 = vld [vmem:[#allocation2 + $0xa58] sm:$0xff]
    %v449 = vld [vmem:[#allocation2 + $0xa60] sm:$0xff]
    %v450 = vld [vmem:[#allocation2 + $0xa68] sm:$0xff]
    %v451 = vld [vmem:[#allocation2 + $0xa70] sm:$0xff]
    %v452 = vld [vmem:[#allocation2 + $0xa78] sm:$0xff]
    %v453 = vld [vmem:[#allocation2 + $0xa80] sm:$0xff]
    %v454 = vld [vmem:[#allocation2 + $0xa88] sm:$0xff]
    %v455 = vld [vmem:[#allocation2 + $0xa90] sm:$0xff]
    %v456 = vld [vmem:[#allocation2 + $0xa98] sm:$0xff]
    %v457 = vld [vmem:[#allocation2 + $0xaa0] sm:$0xff]
    %v458 = vld [vmem:[#allocation2 + $0xaa8] sm:$0xff]
    %v459 = vld [vmem:[#allocation2 + $0xab0] sm:$0xff]
    %v460 = vld [vmem:[#allocation2 + $0xab8] sm:$0xff]
    %v461 = vld [vmem:[#allocation2 + $0xac0] sm:$0xff]
    %v462 = vld [vmem:[#allocation2 + $0xac8] sm:$0xff]
    %v463 = vld [vmem:[#allocation2 + $0xad0] sm:$0xff]
    %v464 = vld [vmem:[#allocation2 + $0xad8] sm:$0xff]
    %v465 = vld [vmem:[#allocation2 + $0xae0] sm:$0xff]
    %v466 = vld [vmem:[#allocation2 + $0xae8] sm:$0xff]
    %v467 = vld [vmem:[#allocation2 + $0xaf0] sm:$0xff]
    %v468 = vld [vmem:[#allocation2 + $0xaf8] sm:$0xff]
    %v469 = vld [vmem:[#allocation2 + $0xb00] sm:$0xff]
    %v470 = vld [vmem:[#allocation2 + $0xb08] sm:$0xff]
    %v471 = vld [vmem:[#allocation2 + $0xb10] sm:$0xff]
    %v472 = vld [vmem:[#allocation2 + $0xb18] sm:$0xff]
    %v473 = vld [vmem:[#allocation2 + $0xb20] sm:$0xff]
    %v474 = vld [vmem:[#allocation2 + $0xb28] sm:$0xff]
    %v475 = vld [vmem:[#allocation2 + $0xb30] sm:$0xff]
    %v476 = vld [vmem:[#allocation2 + $0xb38] sm:$0xff]
    %v477 = vld [vmem:[#allocation2 + $0xb40] sm:$0xff]
    %v478 = vld [vmem:[#allocation2 + $0xb48] sm:$0xff]
    %v479 = vld [vmem:[#allocation2 + $0xb50] sm:$0xff]
    %v480 = vld [vmem:[#allocation2 + $0xb58] sm:$0xff]
    %v481 = vld [vmem:[#allocation2 + $0xb60] sm:$0xff]
    %v482 = vld [vmem:[#allocation2 + $0xb68] sm:$0xff]
    %v483 = vld [vmem:[#allocation2 + $0xb70] sm:$0xff]
    %v484 = vld [vmem:[#allocation2 + $0xb78] sm:$0xff]
    %v485 = vld [vmem:[#allocation2 + $0xb80] sm:$0xff]
    %v486 = vld [vmem:[#allocation2 + $0xb88] sm:$0xff]
    %v487 = vld [vmem:[#allocation2 + $0xb90] sm:$0xff]
    %v488 = vld [vmem:[#allocation2 + $0xb98] sm:$0xff]
    %v489 = vld [vmem:[#allocation2 + $0xba0] sm:$0xff]
    %v490 = vld [vmem:[#allocation2 + $0xba8] sm:$0xff]
    %v491 = vld [vmem:[#allocation2 + $0xbb0] sm:$0xff]
    %v492 = vld [vmem:[#allocation2 + $0xbb8] sm:$0xff]
    %v493 = vld [vmem:[#allocation2 + $0xbc0] sm:$0xff]
    %v494 = vld [vmem:[#allocation2 + $0xbc8] sm:$0xff]
    %v495 = vld [vmem:[#allocation2 + $0xbd0] sm:$0xff]
    %v496 = vld [vmem:[#allocation2 + $0xbd8] sm:$0xff]
    %v497 = vld [vmem:[#allocation2 + $0xbe0] sm:$0xff]
    %v498 = vld [vmem:[#allocation2 + $0xbe8] sm:$0xff]
    %v499 = vld [vmem:[#allocation2 + $0xbf0] sm:$0xff]
    %v500 = vld [vmem:[#allocation2 + $0xbf8] sm:$0xff]
    %v501 = vpack.c.bf16 %v141, %v117
    %v502 = vpack.c.bf16 %v142, %v118
    %v503 = vpack.c.bf16 %v143, %v119
    %v504 = vpack.c.bf16 %v144, %v120
    %v505 = vpack.c.bf16 %v145, %v121
    %v506 = vpack.c.bf16 %v146, %v122
    %v507 = vpack.c.bf16 %v147, %v123
    %v508 = vpack.c.bf16 %v148, %v124
    %v509 = vpack.c.bf16 %v149, %v125
    %v510 = vpack.c.bf16 %v150, %v126
    %v511 = vpack.c.bf16 %v151, %v127
    %v512 = vpack.c.bf16 %v152, %v128
    %v513 = vpack.c.bf16 %v153, %v129
    %v514 = vpack.c.bf16 %v154, %v130
    %v515 = vpack.c.bf16 %v155, %v131
    %v516 = vpack.c.bf16 %v156, %v132
    %v517 = vpack.c.bf16 %v157, %v133
    %v518 = vpack.c.bf16 %v158, %v134
    %v519 = vpack.c.bf16 %v159, %v135
    %v520 = vpack.c.bf16 %v160, %v136
    %v521 = vpack.c.bf16 %v161, %v137
    %v522 = vpack.c.bf16 %v162, %v138
    %v523 = vpack.c.bf16 %v163, %v139
    %v524 = vpack.c.bf16 %v164, %v140
    %v525 = vpack.c.bf16 %v189, %v165
    %v526 = vpack.c.bf16 %v190, %v166
    %v527 = vpack.c.bf16 %v191, %v167
    %v528 = vpack.c.bf16 %v192, %v168
    %v529 = vpack.c.bf16 %v193, %v169
    %v530 = vpack.c.bf16 %v194, %v170
    %v531 = vpack.c.bf16 %v195, %v171
    %v532 = vpack.c.bf16 %v196, %v172
    %v533 = vpack.c.bf16 %v197, %v173
    %v534 = vpack.c.bf16 %v198, %v174
    %v535 = vpack.c.bf16 %v199, %v175
    %v536 = vpack.c.bf16 %v200, %v176
    %v537 = vpack.c.bf16 %v201, %v177
    %v538 = vpack.c.bf16 %v202, %v178
    %v539 = vpack.c.bf16 %v203, %v179
    %v540 = vpack.c.bf16 %v204, %v180
    %v541 = vpack.c.bf16 %v205, %v181
    %v542 = vpack.c.bf16 %v206, %v182
    %v543 = vpack.c.bf16 %v207, %v183
    %v544 = vpack.c.bf16 %v208, %v184
    %v545 = vpack.c.bf16 %v209, %v185
    %v546 = vpack.c.bf16 %v210, %v186
    %v547 = vpack.c.bf16 %v211, %v187
    %v548 = vpack.c.bf16 %v212, %v188
    %v549 = vpack.c.bf16 %v237, %v213
    %v550 = vpack.c.bf16 %v238, %v214
    %v551 = vpack.c.bf16 %v239, %v215
    %v552 = vpack.c.bf16 %v240, %v216
    %v553 = vpack.c.bf16 %v241, %v217
    %v554 = vpack.c.bf16 %v242, %v218
    %v555 = vpack.c.bf16 %v243, %v219
    %v556 = vpack.c.bf16 %v244, %v220
    %v557 = vpack.c.bf16 %v245, %v221
    %v558 = vpack.c.bf16 %v246, %v222
    %v559 = vpack.c.bf16 %v247, %v223
    %v560 = vpack.c.bf16 %v248, %v224
    %v561 = vpack.c.bf16 %v249, %v225
    %v562 = vpack.c.bf16 %v250, %v226
    %v563 = vpack.c.bf16 %v251, %v227
    %v564 = vpack.c.bf16 %v252, %v228
    %v565 = vpack.c.bf16 %v253, %v229
    %v566 = vpack.c.bf16 %v254, %v230
    %v567 = vpack.c.bf16 %v255, %v231
    %v568 = vpack.c.bf16 %v256, %v232
    %v569 = vpack.c.bf16 %v257, %v233
    %v570 = vpack.c.bf16 %v258, %v234
    %v571 = vpack.c.bf16 %v259, %v235
    %v572 = vpack.c.bf16 %v260, %v236
    %v573 = vpack.c.bf16 %v285, %v261
    %v574 = vpack.c.bf16 %v286, %v262
    %v575 = vpack.c.bf16 %v287, %v263
    %v576 = vpack.c.bf16 %v288, %v264
    %v577 = vpack.c.bf16 %v289, %v265
    %v578 = vpack.c.bf16 %v290, %v266
    %v579 = vpack.c.bf16 %v291, %v267
    %v580 = vpack.c.bf16 %v292, %v268
    %v581 = vpack.c.bf16 %v293, %v269
    %v582 = vpack.c.bf16 %v294, %v270
    %v583 = vpack.c.bf16 %v295, %v271
    %v584 = vpack.c.bf16 %v296, %v272
    %v585 = vpack.c.bf16 %v297, %v273
    %v586 = vpack.c.bf16 %v298, %v274
    %v587 = vpack.c.bf16 %v299, %v275
    %v588 = vpack.c.bf16 %v300, %v276
    %v589 = vpack.c.bf16 %v301, %v277
    %v590 = vpack.c.bf16 %v302, %v278
    %v591 = vpack.c.bf16 %v303, %v279
    %v592 = vpack.c.bf16 %v304, %v280
    %v593 = vpack.c.bf16 %v305, %v281
    %v594 = vpack.c.bf16 %v306, %v282
    %v595 = vpack.c.bf16 %v307, %v283
    %v596 = vpack.c.bf16 %v308, %v284
    %v597 = vpack.c.bf16 %v333, %v309
    %v598 = vpack.c.bf16 %v334, %v310
    %v599 = vpack.c.bf16 %v335, %v311
    %v600 = vpack.c.bf16 %v336, %v312
    %v601 = vpack.c.bf16 %v337, %v313
    %v602 = vpack.c.bf16 %v338, %v314
    %v603 = vpack.c.bf16 %v339, %v315
    %v604 = vpack.c.bf16 %v340, %v316
    %v605 = vpack.c.bf16 %v341, %v317
    %v606 = vpack.c.bf16 %v342, %v318
    %v607 = vpack.c.bf16 %v343, %v319
    %v608 = vpack.c.bf16 %v344, %v320
    %v609 = vpack.c.bf16 %v345, %v321
    %v610 = vpack.c.bf16 %v346, %v322
    %v611 = vpack.c.bf16 %v347, %v323
    %v612 = vpack.c.bf16 %v348, %v324
    %v613 = vpack.c.bf16 %v349, %v325
    %v614 = vpack.c.bf16 %v350, %v326
    %v615 = vpack.c.bf16 %v351, %v327
    %v616 = vpack.c.bf16 %v352, %v328
    %v617 = vpack.c.bf16 %v353, %v329
    %v618 = vpack.c.bf16 %v354, %v330
    %v619 = vpack.c.bf16 %v355, %v331
    %v620 = vpack.c.bf16 %v356, %v332
    %v621 = vpack.c.bf16 %v381, %v357
    %v622 = vpack.c.bf16 %v382, %v358
    %v623 = vpack.c.bf16 %v383, %v359
    %v624 = vpack.c.bf16 %v384, %v360
    %v625 = vpack.c.bf16 %v385, %v361
    %v626 = vpack.c.bf16 %v386, %v362
    %v627 = vpack.c.bf16 %v387, %v363
    %v628 = vpack.c.bf16 %v388, %v364
    %v629 = vpack.c.bf16 %v389, %v365
    %v630 = vpack.c.bf16 %v390, %v366
    %v631 = vpack.c.bf16 %v391, %v367
    %v632 = vpack.c.bf16 %v392, %v368
    %v633 = vpack.c.bf16 %v393, %v369
    %v634 = vpack.c.bf16 %v394, %v370
    %v635 = vpack.c.bf16 %v395, %v371
    %v636 = vpack.c.bf16 %v396, %v372
    %v637 = vpack.c.bf16 %v397, %v373
    %v638 = vpack.c.bf16 %v398, %v374
    %v639 = vpack.c.bf16 %v399, %v375
    %v640 = vpack.c.bf16 %v400, %v376
    %v641 = vpack.c.bf16 %v401, %v377
    %v642 = vpack.c.bf16 %v402, %v378
    %v643 = vpack.c.bf16 %v403, %v379
    %v644 = vpack.c.bf16 %v404, %v380
    %v645 = vpack.c.bf16 %v429, %v405
    %v646 = vpack.c.bf16 %v430, %v406
    %v647 = vpack.c.bf16 %v431, %v407
    %v648 = vpack.c.bf16 %v432, %v408
    %v649 = vpack.c.bf16 %v433, %v409
    %v650 = vpack.c.bf16 %v434, %v410
    %v651 = vpack.c.bf16 %v435, %v411
    %v652 = vpack.c.bf16 %v436, %v412
    %v653 = vpack.c.bf16 %v437, %v413
    %v654 = vpack.c.bf16 %v438, %v414
    %v655 = vpack.c.bf16 %v439, %v415
    %v656 = vpack.c.bf16 %v440, %v416
    %v657 = vpack.c.bf16 %v441, %v417
    %v658 = vpack.c.bf16 %v442, %v418
    %v659 = vpack.c.bf16 %v443, %v419
    %v660 = vpack.c.bf16 %v444, %v420
    %v661 = vpack.c.bf16 %v445, %v421
    %v662 = vpack.c.bf16 %v446, %v422
    %v663 = vpack.c.bf16 %v447, %v423
    %v664 = vpack.c.bf16 %v448, %v424
    %v665 = vpack.c.bf16 %v449, %v425
    %v666 = vpack.c.bf16 %v450, %v426
    %v667 = vpack.c.bf16 %v451, %v427
    %v668 = vpack.c.bf16 %v452, %v428
    %v669 = vpack.c.bf16 %v477, %v453
    %v670 = vpack.c.bf16 %v478, %v454
    %v671 = vpack.c.bf16 %v479, %v455
    %v672 = vpack.c.bf16 %v480, %v456
    %v673 = vpack.c.bf16 %v481, %v457
    %v674 = vpack.c.bf16 %v482, %v458
    %v675 = vpack.c.bf16 %v483, %v459
    %v676 = vpack.c.bf16 %v484, %v460
    %v677 = vpack.c.bf16 %v485, %v461
    %v678 = vpack.c.bf16 %v486, %v462
    %v679 = vpack.c.bf16 %v487, %v463
    %v680 = vpack.c.bf16 %v488, %v464
    %v681 = vpack.c.bf16 %v489, %v465
    %v682 = vpack.c.bf16 %v490, %v466
    %v683 = vpack.c.bf16 %v491, %v467
    %v684 = vpack.c.bf16 %v492, %v468
    %v685 = vpack.c.bf16 %v493, %v469
    %v686 = vpack.c.bf16 %v494, %v470
    %v687 = vpack.c.bf16 %v495, %v471
    %v688 = vpack.c.bf16 %v496, %v472
    %v689 = vpack.c.bf16 %v497, %v473
    %v690 = vpack.c.bf16 %v498, %v474
    %v691 = vpack.c.bf16 %v499, %v475
    %v692 = vpack.c.bf16 %v500, %v476
    %v693 = vld [vmem:[#allocation5] sm:$0xff]
    %v694 = vld [vmem:[#allocation5 + $0x8] sm:$0xff]
    %v695 = vld [vmem:[#allocation5 + $0x10] sm:$0xff]
    %v696 = vld [vmem:[#allocation5 + $0x18] sm:$0xff]
    %v697 = vld [vmem:[#allocation5 + $0x20] sm:$0xff]
    %v698 = vld [vmem:[#allocation5 + $0x28] sm:$0xff]
    %v699 = vld [vmem:[#allocation5 + $0x30] sm:$0xff]
    %v700 = vld [vmem:[#allocation5 + $0x38] sm:$0xff]
    %v701 = vld [vmem:[#allocation5 + $0x40] sm:$0xff]
    %v702 = vld [vmem:[#allocation5 + $0x48] sm:$0xff]
    %v703 = vld [vmem:[#allocation5 + $0x50] sm:$0xff]
    %v704 = vld [vmem:[#allocation5 + $0x58] sm:$0xff]
    %v705 = vld [vmem:[#allocation5 + $0x60] sm:$0xff]
    %v706 = vld [vmem:[#allocation5 + $0x68] sm:$0xff]
    %v707 = vld [vmem:[#allocation5 + $0x70] sm:$0xff]
    %v708 = vld [vmem:[#allocation5 + $0x78] sm:$0xff]
    %v709 = vld [vmem:[#allocation5 + $0x80] sm:$0xff]
    %v710 = vld [vmem:[#allocation5 + $0x88] sm:$0xff]
    %v711 = vld [vmem:[#allocation5 + $0x90] sm:$0xff]
    %v712 = vld [vmem:[#allocation5 + $0x98] sm:$0xff]
    %v713 = vld [vmem:[#allocation5 + $0xa0] sm:$0xff]
    %v714 = vld [vmem:[#allocation5 + $0xa8] sm:$0xff]
    %v715 = vld [vmem:[#allocation5 + $0xb0] sm:$0xff]
    %v716 = vld [vmem:[#allocation5 + $0xb8] sm:$0xff]
    %v717 = vld [vmem:[#allocation5 + $0xc0] sm:$0xff]
    %v718 = vld [vmem:[#allocation5 + $0xc8] sm:$0xff]
    %v719 = vld [vmem:[#allocation5 + $0xd0] sm:$0xff]
    %v720 = vld [vmem:[#allocation5 + $0xd8] sm:$0xff]
    %v721 = vld [vmem:[#allocation5 + $0xe0] sm:$0xff]
    %v722 = vld [vmem:[#allocation5 + $0xe8] sm:$0xff]
    %v723 = vld [vmem:[#allocation5 + $0xf0] sm:$0xff]
    %v724 = vld [vmem:[#allocation5 + $0xf8] sm:$0xff]
    %v725 = vld [vmem:[#allocation5 + $0x100] sm:$0xff]
    %v726 = vld [vmem:[#allocation5 + $0x108] sm:$0xff]
    %v727 = vld [vmem:[#allocation5 + $0x110] sm:$0xff]
    %v728 = vld [vmem:[#allocation5 + $0x118] sm:$0xff]
    %v729 = vld [vmem:[#allocation5 + $0x120] sm:$0xff]
    %v730 = vld [vmem:[#allocation5 + $0x128] sm:$0xff]
    %v731 = vld [vmem:[#allocation5 + $0x130] sm:$0xff]
    %v732 = vld [vmem:[#allocation5 + $0x138] sm:$0xff]
    %v733 = vld [vmem:[#allocation5 + $0x140] sm:$0xff]
    %v734 = vld [vmem:[#allocation5 + $0x148] sm:$0xff]
    %v735 = vld [vmem:[#allocation5 + $0x150] sm:$0xff]
    %v736 = vld [vmem:[#allocation5 + $0x158] sm:$0xff]
    %v737 = vld [vmem:[#allocation5 + $0x160] sm:$0xff]
    %v738 = vld [vmem:[#allocation5 + $0x168] sm:$0xff]
    %v739 = vld [vmem:[#allocation5 + $0x170] sm:$0xff]
    %v740 = vld [vmem:[#allocation5 + $0x178] sm:$0xff]
    %v741 = vld [vmem:[#allocation5 + $0x180] sm:$0xff]
    %v742 = vld [vmem:[#allocation5 + $0x188] sm:$0xff]
    %v743 = vld [vmem:[#allocation5 + $0x190] sm:$0xff]
    %v744 = vld [vmem:[#allocation5 + $0x198] sm:$0xff]
    %v745 = vld [vmem:[#allocation5 + $0x1a0] sm:$0xff]
    %v746 = vld [vmem:[#allocation5 + $0x1a8] sm:$0xff]
    %v747 = vld [vmem:[#allocation5 + $0x1b0] sm:$0xff]
    %v748 = vld [vmem:[#allocation5 + $0x1b8] sm:$0xff]
    %v749 = vld [vmem:[#allocation5 + $0x1c0] sm:$0xff]
    %v750 = vld [vmem:[#allocation5 + $0x1c8] sm:$0xff]
    %v751 = vld [vmem:[#allocation5 + $0x1d0] sm:$0xff]
    %v752 = vld [vmem:[#allocation5 + $0x1d8] sm:$0xff]
    %v753 = vld [vmem:[#allocation5 + $0x1e0] sm:$0xff]
    %v754 = vld [vmem:[#allocation5 + $0x1e8] sm:$0xff]
    %v755 = vld [vmem:[#allocation5 + $0x1f0] sm:$0xff]
    %v756 = vld [vmem:[#allocation5 + $0x1f8] sm:$0xff]
    %v757 = vld [vmem:[#allocation5 + $0x200] sm:$0xff]
    %v758 = vld [vmem:[#allocation5 + $0x208] sm:$0xff]
    %v759 = vld [vmem:[#allocation5 + $0x210] sm:$0xff]
    %v760 = vld [vmem:[#allocation5 + $0x218] sm:$0xff]
    %v761 = vld [vmem:[#allocation5 + $0x220] sm:$0xff]
    %v762 = vld [vmem:[#allocation5 + $0x228] sm:$0xff]
    %v763 = vld [vmem:[#allocation5 + $0x230] sm:$0xff]
    %v764 = vld [vmem:[#allocation5 + $0x238] sm:$0xff]
    %v765 = vld [vmem:[#allocation5 + $0x240] sm:$0xff]
    %v766 = vld [vmem:[#allocation5 + $0x248] sm:$0xff]
    %v767 = vld [vmem:[#allocation5 + $0x250] sm:$0xff]
    %v768 = vld [vmem:[#allocation5 + $0x258] sm:$0xff]
    %v769 = vld [vmem:[#allocation5 + $0x260] sm:$0xff]
    %v770 = vld [vmem:[#allocation5 + $0x268] sm:$0xff]
    %v771 = vld [vmem:[#allocation5 + $0x270] sm:$0xff]
    %v772 = vld [vmem:[#allocation5 + $0x278] sm:$0xff]
    %v773 = vld [vmem:[#allocation5 + $0x280] sm:$0xff]
    %v774 = vld [vmem:[#allocation5 + $0x288] sm:$0xff]
    %v775 = vld [vmem:[#allocation5 + $0x290] sm:$0xff]
    %v776 = vld [vmem:[#allocation5 + $0x298] sm:$0xff]
    %v777 = vld [vmem:[#allocation5 + $0x2a0] sm:$0xff]
    %v778 = vld [vmem:[#allocation5 + $0x2a8] sm:$0xff]
    %v779 = vld [vmem:[#allocation5 + $0x2b0] sm:$0xff]
    %v780 = vld [vmem:[#allocation5 + $0x2b8] sm:$0xff]
    %v781 = vld [vmem:[#allocation5 + $0x2c0] sm:$0xff]
    %v782 = vld [vmem:[#allocation5 + $0x2c8] sm:$0xff]
    %v783 = vld [vmem:[#allocation5 + $0x2d0] sm:$0xff]
    %v784 = vld [vmem:[#allocation5 + $0x2d8] sm:$0xff]
    %v785 = vld [vmem:[#allocation5 + $0x2e0] sm:$0xff]
    %v786 = vld [vmem:[#allocation5 + $0x2e8] sm:$0xff]
    %v787 = vld [vmem:[#allocation5 + $0x2f0] sm:$0xff]
    %v788 = vld [vmem:[#allocation5 + $0x2f8] sm:$0xff]
    %v789 = vld [vmem:[#allocation5 + $0x300] sm:$0xff]
    %v790 = vld [vmem:[#allocation5 + $0x308] sm:$0xff]
    %v791 = vld [vmem:[#allocation5 + $0x310] sm:$0xff]
    %v792 = vld [vmem:[#allocation5 + $0x318] sm:$0xff]
    %v793 = vld [vmem:[#allocation5 + $0x320] sm:$0xff]
    %v794 = vld [vmem:[#allocation5 + $0x328] sm:$0xff]
    %v795 = vld [vmem:[#allocation5 + $0x330] sm:$0xff]
    %v796 = vld [vmem:[#allocation5 + $0x338] sm:$0xff]
    %v797 = vld [vmem:[#allocation5 + $0x340] sm:$0xff]
    %v798 = vld [vmem:[#allocation5 + $0x348] sm:$0xff]
    %v799 = vld [vmem:[#allocation5 + $0x350] sm:$0xff]
    %v800 = vld [vmem:[#allocation5 + $0x358] sm:$0xff]
    %v801 = vld [vmem:[#allocation5 + $0x360] sm:$0xff]
    %v802 = vld [vmem:[#allocation5 + $0x368] sm:$0xff]
    %v803 = vld [vmem:[#allocation5 + $0x370] sm:$0xff]
    %v804 = vld [vmem:[#allocation5 + $0x378] sm:$0xff]
    %v805 = vld [vmem:[#allocation5 + $0x380] sm:$0xff]
    %v806 = vld [vmem:[#allocation5 + $0x388] sm:$0xff]
    %v807 = vld [vmem:[#allocation5 + $0x390] sm:$0xff]
    %v808 = vld [vmem:[#allocation5 + $0x398] sm:$0xff]
    %v809 = vld [vmem:[#allocation5 + $0x3a0] sm:$0xff]
    %v810 = vld [vmem:[#allocation5 + $0x3a8] sm:$0xff]
    %v811 = vld [vmem:[#allocation5 + $0x3b0] sm:$0xff]
    %v812 = vld [vmem:[#allocation5 + $0x3b8] sm:$0xff]
    %v813 = vld [vmem:[#allocation5 + $0x3c0] sm:$0xff]
    %v814 = vld [vmem:[#allocation5 + $0x3c8] sm:$0xff]
    %v815 = vld [vmem:[#allocation5 + $0x3d0] sm:$0xff]
    %v816 = vld [vmem:[#allocation5 + $0x3d8] sm:$0xff]
    %v817 = vld [vmem:[#allocation5 + $0x3e0] sm:$0xff]
    %v818 = vld [vmem:[#allocation5 + $0x3e8] sm:$0xff]
    %v819 = vld [vmem:[#allocation5 + $0x3f0] sm:$0xff]
    %v820 = vld [vmem:[#allocation5 + $0x3f8] sm:$0xff]
    %v821 = vld [vmem:[#allocation5 + $0x400] sm:$0xff]
    %v822 = vld [vmem:[#allocation5 + $0x408] sm:$0xff]
    %v823 = vld [vmem:[#allocation5 + $0x410] sm:$0xff]
    %v824 = vld [vmem:[#allocation5 + $0x418] sm:$0xff]
    %v825 = vld [vmem:[#allocation5 + $0x420] sm:$0xff]
    %v826 = vld [vmem:[#allocation5 + $0x428] sm:$0xff]
    %v827 = vld [vmem:[#allocation5 + $0x430] sm:$0xff]
    %v828 = vld [vmem:[#allocation5 + $0x438] sm:$0xff]
    %v829 = vld [vmem:[#allocation5 + $0x440] sm:$0xff]
    %v830 = vld [vmem:[#allocation5 + $0x448] sm:$0xff]
    %v831 = vld [vmem:[#allocation5 + $0x450] sm:$0xff]
    %v832 = vld [vmem:[#allocation5 + $0x458] sm:$0xff]
    %v833 = vld [vmem:[#allocation5 + $0x460] sm:$0xff]
    %v834 = vld [vmem:[#allocation5 + $0x468] sm:$0xff]
    %v835 = vld [vmem:[#allocation5 + $0x470] sm:$0xff]
    %v836 = vld [vmem:[#allocation5 + $0x478] sm:$0xff]
    %v837 = vld [vmem:[#allocation5 + $0x480] sm:$0xff]
    %v838 = vld [vmem:[#allocation5 + $0x488] sm:$0xff]
    %v839 = vld [vmem:[#allocation5 + $0x490] sm:$0xff]
    %v840 = vld [vmem:[#allocation5 + $0x498] sm:$0xff]
    %v841 = vld [vmem:[#allocation5 + $0x4a0] sm:$0xff]
    %v842 = vld [vmem:[#allocation5 + $0x4a8] sm:$0xff]
    %v843 = vld [vmem:[#allocation5 + $0x4b0] sm:$0xff]
    %v844 = vld [vmem:[#allocation5 + $0x4b8] sm:$0xff]
    %v845 = vld [vmem:[#allocation5 + $0x4c0] sm:$0xff]
    %v846 = vld [vmem:[#allocation5 + $0x4c8] sm:$0xff]
    %v847 = vld [vmem:[#allocation5 + $0x4d0] sm:$0xff]
    %v848 = vld [vmem:[#allocation5 + $0x4d8] sm:$0xff]
    %v849 = vld [vmem:[#allocation5 + $0x4e0] sm:$0xff]
    %v850 = vld [vmem:[#allocation5 + $0x4e8] sm:$0xff]
    %v851 = vld [vmem:[#allocation5 + $0x4f0] sm:$0xff]
    %v852 = vld [vmem:[#allocation5 + $0x4f8] sm:$0xff]
    %v853 = vld [vmem:[#allocation5 + $0x500] sm:$0xff]
    %v854 = vld [vmem:[#allocation5 + $0x508] sm:$0xff]
    %v855 = vld [vmem:[#allocation5 + $0x510] sm:$0xff]
    %v856 = vld [vmem:[#allocation5 + $0x518] sm:$0xff]
    %v857 = vld [vmem:[#allocation5 + $0x520] sm:$0xff]
    %v858 = vld [vmem:[#allocation5 + $0x528] sm:$0xff]
    %v859 = vld [vmem:[#allocation5 + $0x530] sm:$0xff]
    %v860 = vld [vmem:[#allocation5 + $0x538] sm:$0xff]
    %v861 = vld [vmem:[#allocation5 + $0x540] sm:$0xff]
    %v862 = vld [vmem:[#allocation5 + $0x548] sm:$0xff]
    %v863 = vld [vmem:[#allocation5 + $0x550] sm:$0xff]
    %v864 = vld [vmem:[#allocation5 + $0x558] sm:$0xff]
    %v865 = vld [vmem:[#allocation5 + $0x560] sm:$0xff]
    %v866 = vld [vmem:[#allocation5 + $0x568] sm:$0xff]
    %v867 = vld [vmem:[#allocation5 + $0x570] sm:$0xff]
    %v868 = vld [vmem:[#allocation5 + $0x578] sm:$0xff]
    %v869 = vld [vmem:[#allocation5 + $0x580] sm:$0xff]
    %v870 = vld [vmem:[#allocation5 + $0x588] sm:$0xff]
    %v871 = vld [vmem:[#allocation5 + $0x590] sm:$0xff]
    %v872 = vld [vmem:[#allocation5 + $0x598] sm:$0xff]
    %v873 = vld [vmem:[#allocation5 + $0x5a0] sm:$0xff]
    %v874 = vld [vmem:[#allocation5 + $0x5a8] sm:$0xff]
    %v875 = vld [vmem:[#allocation5 + $0x5b0] sm:$0xff]
    %v876 = vld [vmem:[#allocation5 + $0x5b8] sm:$0xff]
    %v877 = vld [vmem:[#allocation5 + $0x5c0] sm:$0xff]
    %v878 = vld [vmem:[#allocation5 + $0x5c8] sm:$0xff]
    %v879 = vld [vmem:[#allocation5 + $0x5d0] sm:$0xff]
    %v880 = vld [vmem:[#allocation5 + $0x5d8] sm:$0xff]
    %v881 = vld [vmem:[#allocation5 + $0x5e0] sm:$0xff]
    %v882 = vld [vmem:[#allocation5 + $0x5e8] sm:$0xff]
    %v883 = vld [vmem:[#allocation5 + $0x5f0] sm:$0xff]
    %v884 = vld [vmem:[#allocation5 + $0x5f8] sm:$0xff]
    %v885 = vld [vmem:[#allocation5 + $0x600] sm:$0xff]
    %v886 = vld [vmem:[#allocation5 + $0x608] sm:$0xff]
    %v887 = vld [vmem:[#allocation5 + $0x610] sm:$0xff]
    %v888 = vld [vmem:[#allocation5 + $0x618] sm:$0xff]
    %v889 = vld [vmem:[#allocation5 + $0x620] sm:$0xff]
    %v890 = vld [vmem:[#allocation5 + $0x628] sm:$0xff]
    %v891 = vld [vmem:[#allocation5 + $0x630] sm:$0xff]
    %v892 = vld [vmem:[#allocation5 + $0x638] sm:$0xff]
    %v893 = vld [vmem:[#allocation5 + $0x640] sm:$0xff]
    %v894 = vld [vmem:[#allocation5 + $0x648] sm:$0xff]
    %v895 = vld [vmem:[#allocation5 + $0x650] sm:$0xff]
    %v896 = vld [vmem:[#allocation5 + $0x658] sm:$0xff]
    %v897 = vld [vmem:[#allocation5 + $0x660] sm:$0xff]
    %v898 = vld [vmem:[#allocation5 + $0x668] sm:$0xff]
    %v899 = vld [vmem:[#allocation5 + $0x670] sm:$0xff]
    %v900 = vld [vmem:[#allocation5 + $0x678] sm:$0xff]
    %v901 = vld [vmem:[#allocation5 + $0x680] sm:$0xff]
    %v902 = vld [vmem:[#allocation5 + $0x688] sm:$0xff]
    %v903 = vld [vmem:[#allocation5 + $0x690] sm:$0xff]
    %v904 = vld [vmem:[#allocation5 + $0x698] sm:$0xff]
    %v905 = vld [vmem:[#allocation5 + $0x6a0] sm:$0xff]
    %v906 = vld [vmem:[#allocation5 + $0x6a8] sm:$0xff]
    %v907 = vld [vmem:[#allocation5 + $0x6b0] sm:$0xff]
    %v908 = vld [vmem:[#allocation5 + $0x6b8] sm:$0xff]
    %v909 = vld [vmem:[#allocation5 + $0x6c0] sm:$0xff]
    %v910 = vld [vmem:[#allocation5 + $0x6c8] sm:$0xff]
    %v911 = vld [vmem:[#allocation5 + $0x6d0] sm:$0xff]
    %v912 = vld [vmem:[#allocation5 + $0x6d8] sm:$0xff]
    %v913 = vld [vmem:[#allocation5 + $0x6e0] sm:$0xff]
    %v914 = vld [vmem:[#allocation5 + $0x6e8] sm:$0xff]
    %v915 = vld [vmem:[#allocation5 + $0x6f0] sm:$0xff]
    %v916 = vld [vmem:[#allocation5 + $0x6f8] sm:$0xff]
    %v917 = vld [vmem:[#allocation5 + $0x700] sm:$0xff]
    %v918 = vld [vmem:[#allocation5 + $0x708] sm:$0xff]
    %v919 = vld [vmem:[#allocation5 + $0x710] sm:$0xff]
    %v920 = vld [vmem:[#allocation5 + $0x718] sm:$0xff]
    %v921 = vld [vmem:[#allocation5 + $0x720] sm:$0xff]
    %v922 = vld [vmem:[#allocation5 + $0x728] sm:$0xff]
    %v923 = vld [vmem:[#allocation5 + $0x730] sm:$0xff]
    %v924 = vld [vmem:[#allocation5 + $0x738] sm:$0xff]
    %v925 = vld [vmem:[#allocation5 + $0x740] sm:$0xff]
    %v926 = vld [vmem:[#allocation5 + $0x748] sm:$0xff]
    %v927 = vld [vmem:[#allocation5 + $0x750] sm:$0xff]
    %v928 = vld [vmem:[#allocation5 + $0x758] sm:$0xff]
    %v929 = vld [vmem:[#allocation5 + $0x760] sm:$0xff]
    %v930 = vld [vmem:[#allocation5 + $0x768] sm:$0xff]
    %v931 = vld [vmem:[#allocation5 + $0x770] sm:$0xff]
    %v932 = vld [vmem:[#allocation5 + $0x778] sm:$0xff]
    %v933 = vld [vmem:[#allocation5 + $0x780] sm:$0xff]
    %v934 = vld [vmem:[#allocation5 + $0x788] sm:$0xff]
    %v935 = vld [vmem:[#allocation5 + $0x790] sm:$0xff]
    %v936 = vld [vmem:[#allocation5 + $0x798] sm:$0xff]
    %v937 = vld [vmem:[#allocation5 + $0x7a0] sm:$0xff]
    %v938 = vld [vmem:[#allocation5 + $0x7a8] sm:$0xff]
    %v939 = vld [vmem:[#allocation5 + $0x7b0] sm:$0xff]
    %v940 = vld [vmem:[#allocation5 + $0x7b8] sm:$0xff]
    %v941 = vld [vmem:[#allocation5 + $0x7c0] sm:$0xff]
    %v942 = vld [vmem:[#allocation5 + $0x7c8] sm:$0xff]
    %v943 = vld [vmem:[#allocation5 + $0x7d0] sm:$0xff]
    %v944 = vld [vmem:[#allocation5 + $0x7d8] sm:$0xff]
    %v945 = vld [vmem:[#allocation5 + $0x7e0] sm:$0xff]
    %v946 = vld [vmem:[#allocation5 + $0x7e8] sm:$0xff]
    %v947 = vld [vmem:[#allocation5 + $0x7f0] sm:$0xff]
    %v948 = vld [vmem:[#allocation5 + $0x7f8] sm:$0xff]
    %v949 = vld [vmem:[#allocation5 + $0x800] sm:$0xff]
    %v950 = vld [vmem:[#allocation5 + $0x808] sm:$0xff]
    %v951 = vld [vmem:[#allocation5 + $0x810] sm:$0xff]
    %v952 = vld [vmem:[#allocation5 + $0x818] sm:$0xff]
    %v953 = vld [vmem:[#allocation5 + $0x820] sm:$0xff]
    %v954 = vld [vmem:[#allocation5 + $0x828] sm:$0xff]
    %v955 = vld [vmem:[#allocation5 + $0x830] sm:$0xff]
    %v956 = vld [vmem:[#allocation5 + $0x838] sm:$0xff]
    %v957 = vld [vmem:[#allocation5 + $0x840] sm:$0xff]
    %v958 = vld [vmem:[#allocation5 + $0x848] sm:$0xff]
    %v959 = vld [vmem:[#allocation5 + $0x850] sm:$0xff]
    %v960 = vld [vmem:[#allocation5 + $0x858] sm:$0xff]
    %v961 = vld [vmem:[#allocation5 + $0x860] sm:$0xff]
    %v962 = vld [vmem:[#allocation5 + $0x868] sm:$0xff]
    %v963 = vld [vmem:[#allocation5 + $0x870] sm:$0xff]
    %v964 = vld [vmem:[#allocation5 + $0x878] sm:$0xff]
    %v965 = vld [vmem:[#allocation5 + $0x880] sm:$0xff]
    %v966 = vld [vmem:[#allocation5 + $0x888] sm:$0xff]
    %v967 = vld [vmem:[#allocation5 + $0x890] sm:$0xff]
    %v968 = vld [vmem:[#allocation5 + $0x898] sm:$0xff]
    %v969 = vld [vmem:[#allocation5 + $0x8a0] sm:$0xff]
    %v970 = vld [vmem:[#allocation5 + $0x8a8] sm:$0xff]
    %v971 = vld [vmem:[#allocation5 + $0x8b0] sm:$0xff]
    %v972 = vld [vmem:[#allocation5 + $0x8b8] sm:$0xff]
    %v973 = vld [vmem:[#allocation5 + $0x8c0] sm:$0xff]
    %v974 = vld [vmem:[#allocation5 + $0x8c8] sm:$0xff]
    %v975 = vld [vmem:[#allocation5 + $0x8d0] sm:$0xff]
    %v976 = vld [vmem:[#allocation5 + $0x8d8] sm:$0xff]
    %v977 = vld [vmem:[#allocation5 + $0x8e0] sm:$0xff]
    %v978 = vld [vmem:[#allocation5 + $0x8e8] sm:$0xff]
    %v979 = vld [vmem:[#allocation5 + $0x8f0] sm:$0xff]
    %v980 = vld [vmem:[#allocation5 + $0x8f8] sm:$0xff]
    %v981 = vld [vmem:[#allocation5 + $0x900] sm:$0xff]
    %v982 = vld [vmem:[#allocation5 + $0x908] sm:$0xff]
    %v983 = vld [vmem:[#allocation5 + $0x910] sm:$0xff]
    %v984 = vld [vmem:[#allocation5 + $0x918] sm:$0xff]
    %v985 = vld [vmem:[#allocation5 + $0x920] sm:$0xff]
    %v986 = vld [vmem:[#allocation5 + $0x928] sm:$0xff]
    %v987 = vld [vmem:[#allocation5 + $0x930] sm:$0xff]
    %v988 = vld [vmem:[#allocation5 + $0x938] sm:$0xff]
    %v989 = vld [vmem:[#allocation5 + $0x940] sm:$0xff]
    %v990 = vld [vmem:[#allocation5 + $0x948] sm:$0xff]
    %v991 = vld [vmem:[#allocation5 + $0x950] sm:$0xff]
    %v992 = vld [vmem:[#allocation5 + $0x958] sm:$0xff]
    %v993 = vld [vmem:[#allocation5 + $0x960] sm:$0xff]
    %v994 = vld [vmem:[#allocation5 + $0x968] sm:$0xff]
    %v995 = vld [vmem:[#allocation5 + $0x970] sm:$0xff]
    %v996 = vld [vmem:[#allocation5 + $0x978] sm:$0xff]
    %v997 = vld [vmem:[#allocation5 + $0x980] sm:$0xff]
    %v998 = vld [vmem:[#allocation5 + $0x988] sm:$0xff]
    %v999 = vld [vmem:[#allocation5 + $0x990] sm:$0xff]
    %v1000 = vld [vmem:[#allocation5 + $0x998] sm:$0xff]
    %v1001 = vld [vmem:[#allocation5 + $0x9a0] sm:$0xff]
    %v1002 = vld [vmem:[#allocation5 + $0x9a8] sm:$0xff]
    %v1003 = vld [vmem:[#allocation5 + $0x9b0] sm:$0xff]
    %v1004 = vld [vmem:[#allocation5 + $0x9b8] sm:$0xff]
    %v1005 = vld [vmem:[#allocation5 + $0x9c0] sm:$0xff]
    %v1006 = vld [vmem:[#allocation5 + $0x9c8] sm:$0xff]
    %v1007 = vld [vmem:[#allocation5 + $0x9d0] sm:$0xff]
    %v1008 = vld [vmem:[#allocation5 + $0x9d8] sm:$0xff]
    %v1009 = vld [vmem:[#allocation5 + $0x9e0] sm:$0xff]
    %v1010 = vld [vmem:[#allocation5 + $0x9e8] sm:$0xff]
    %v1011 = vld [vmem:[#allocation5 + $0x9f0] sm:$0xff]
    %v1012 = vld [vmem:[#allocation5 + $0x9f8] sm:$0xff]
    %v1013 = vld [vmem:[#allocation5 + $0xa00] sm:$0xff]
    %v1014 = vld [vmem:[#allocation5 + $0xa08] sm:$0xff]
    %v1015 = vld [vmem:[#allocation5 + $0xa10] sm:$0xff]
    %v1016 = vld [vmem:[#allocation5 + $0xa18] sm:$0xff]
    %v1017 = vld [vmem:[#allocation5 + $0xa20] sm:$0xff]
    %v1018 = vld [vmem:[#allocation5 + $0xa28] sm:$0xff]
    %v1019 = vld [vmem:[#allocation5 + $0xa30] sm:$0xff]
    %v1020 = vld [vmem:[#allocation5 + $0xa38] sm:$0xff]
    %v1021 = vld [vmem:[#allocation5 + $0xa40] sm:$0xff]
    %v1022 = vld [vmem:[#allocation5 + $0xa48] sm:$0xff]
    %v1023 = vld [vmem:[#allocation5 + $0xa50] sm:$0xff]
    %v1024 = vld [vmem:[#allocation5 + $0xa58] sm:$0xff]
    %v1025 = vld [vmem:[#allocation5 + $0xa60] sm:$0xff]
    %v1026 = vld [vmem:[#allocation5 + $0xa68] sm:$0xff]
    %v1027 = vld [vmem:[#allocation5 + $0xa70] sm:$0xff]
    %v1028 = vld [vmem:[#allocation5 + $0xa78] sm:$0xff]
    %v1029 = vld [vmem:[#allocation5 + $0xa80] sm:$0xff]
    %v1030 = vld [vmem:[#allocation5 + $0xa88] sm:$0xff]
    %v1031 = vld [vmem:[#allocation5 + $0xa90] sm:$0xff]
    %v1032 = vld [vmem:[#allocation5 + $0xa98] sm:$0xff]
    %v1033 = vld [vmem:[#allocation5 + $0xaa0] sm:$0xff]
    %v1034 = vld [vmem:[#allocation5 + $0xaa8] sm:$0xff]
    %v1035 = vld [vmem:[#allocation5 + $0xab0] sm:$0xff]
    %v1036 = vld [vmem:[#allocation5 + $0xab8] sm:$0xff]
    %v1037 = vld [vmem:[#allocation5 + $0xac0] sm:$0xff]
    %v1038 = vld [vmem:[#allocation5 + $0xac8] sm:$0xff]
    %v1039 = vld [vmem:[#allocation5 + $0xad0] sm:$0xff]
    %v1040 = vld [vmem:[#allocation5 + $0xad8] sm:$0xff]
    %v1041 = vld [vmem:[#allocation5 + $0xae0] sm:$0xff]
    %v1042 = vld [vmem:[#allocation5 + $0xae8] sm:$0xff]
    %v1043 = vld [vmem:[#allocation5 + $0xaf0] sm:$0xff]
    %v1044 = vld [vmem:[#allocation5 + $0xaf8] sm:$0xff]
    %v1045 = vld [vmem:[#allocation5 + $0xb00] sm:$0xff]
    %v1046 = vld [vmem:[#allocation5 + $0xb08] sm:$0xff]
    %v1047 = vld [vmem:[#allocation5 + $0xb10] sm:$0xff]
    %v1048 = vld [vmem:[#allocation5 + $0xb18] sm:$0xff]
    %v1049 = vld [vmem:[#allocation5 + $0xb20] sm:$0xff]
    %v1050 = vld [vmem:[#allocation5 + $0xb28] sm:$0xff]
    %v1051 = vld [vmem:[#allocation5 + $0xb30] sm:$0xff]
    %v1052 = vld [vmem:[#allocation5 + $0xb38] sm:$0xff]
    %v1053 = vld [vmem:[#allocation5 + $0xb40] sm:$0xff]
    %v1054 = vld [vmem:[#allocation5 + $0xb48] sm:$0xff]
    %v1055 = vld [vmem:[#allocation5 + $0xb50] sm:$0xff]
    %v1056 = vld [vmem:[#allocation5 + $0xb58] sm:$0xff]
    %v1057 = vld [vmem:[#allocation5 + $0xb60] sm:$0xff]
    %v1058 = vld [vmem:[#allocation5 + $0xb68] sm:$0xff]
    %v1059 = vld [vmem:[#allocation5 + $0xb70] sm:$0xff]
    %v1060 = vld [vmem:[#allocation5 + $0xb78] sm:$0xff]
    %v1061 = vld [vmem:[#allocation5 + $0xb80] sm:$0xff]
    %v1062 = vld [vmem:[#allocation5 + $0xb88] sm:$0xff]
    %v1063 = vld [vmem:[#allocation5 + $0xb90] sm:$0xff]
    %v1064 = vld [vmem:[#allocation5 + $0xb98] sm:$0xff]
    %v1065 = vld [vmem:[#allocation5 + $0xba0] sm:$0xff]
    %v1066 = vld [vmem:[#allocation5 + $0xba8] sm:$0xff]
    %v1067 = vld [vmem:[#allocation5 + $0xbb0] sm:$0xff]
    %v1068 = vld [vmem:[#allocation5 + $0xbb8] sm:$0xff]
    %v1069 = vld [vmem:[#allocation5 + $0xbc0] sm:$0xff]
    %v1070 = vld [vmem:[#allocation5 + $0xbc8] sm:$0xff]
    %v1071 = vld [vmem:[#allocation5 + $0xbd0] sm:$0xff]
    %v1072 = vld [vmem:[#allocation5 + $0xbd8] sm:$0xff]
    %v1073 = vld [vmem:[#allocation5 + $0xbe0] sm:$0xff]
    %v1074 = vld [vmem:[#allocation5 + $0xbe8] sm:$0xff]
    %v1075 = vld [vmem:[#allocation5 + $0xbf0] sm:$0xff]
    %v1076 = vld [vmem:[#allocation5 + $0xbf8] sm:$0xff]
    %v1077 = vld [vmem:[#allocation5 + $0xc00] sm:$0xff]
    %v1078 = vld [vmem:[#allocation5 + $0xc08] sm:$0xff]
    %v1079 = vld [vmem:[#allocation5 + $0xc10] sm:$0xff]
    %v1080 = vld [vmem:[#allocation5 + $0xc18] sm:$0xff]
    %v1081 = vld [vmem:[#allocation5 + $0xc20] sm:$0xff]
    %v1082 = vld [vmem:[#allocation5 + $0xc28] sm:$0xff]
    %v1083 = vld [vmem:[#allocation5 + $0xc30] sm:$0xff]
    %v1084 = vld [vmem:[#allocation5 + $0xc38] sm:$0xff]
    %v1085 = vld [vmem:[#allocation5 + $0xc40] sm:$0xff]
    %v1086 = vld [vmem:[#allocation5 + $0xc48] sm:$0xff]
    %v1087 = vld [vmem:[#allocation5 + $0xc50] sm:$0xff]
    %v1088 = vld [vmem:[#allocation5 + $0xc58] sm:$0xff]
    %v1089 = vld [vmem:[#allocation5 + $0xc60] sm:$0xff]
    %v1090 = vld [vmem:[#allocation5 + $0xc68] sm:$0xff]
    %v1091 = vld [vmem:[#allocation5 + $0xc70] sm:$0xff]
    %v1092 = vld [vmem:[#allocation5 + $0xc78] sm:$0xff]
    %v1093 = vld [vmem:[#allocation5 + $0xc80] sm:$0xff]
    %v1094 = vld [vmem:[#allocation5 + $0xc88] sm:$0xff]
    %v1095 = vld [vmem:[#allocation5 + $0xc90] sm:$0xff]
    %v1096 = vld [vmem:[#allocation5 + $0xc98] sm:$0xff]
    %v1097 = vld [vmem:[#allocation5 + $0xca0] sm:$0xff]
    %v1098 = vld [vmem:[#allocation5 + $0xca8] sm:$0xff]
    %v1099 = vld [vmem:[#allocation5 + $0xcb0] sm:$0xff]
    %v1100 = vld [vmem:[#allocation5 + $0xcb8] sm:$0xff]
    %v1101 = vld [vmem:[#allocation5 + $0xcc0] sm:$0xff]
    %v1102 = vld [vmem:[#allocation5 + $0xcc8] sm:$0xff]
    %v1103 = vld [vmem:[#allocation5 + $0xcd0] sm:$0xff]
    %v1104 = vld [vmem:[#allocation5 + $0xcd8] sm:$0xff]
    %v1105 = vld [vmem:[#allocation5 + $0xce0] sm:$0xff]
    %v1106 = vld [vmem:[#allocation5 + $0xce8] sm:$0xff]
    %v1107 = vld [vmem:[#allocation5 + $0xcf0] sm:$0xff]
    %v1108 = vld [vmem:[#allocation5 + $0xcf8] sm:$0xff]
    %v1109 = vld [vmem:[#allocation5 + $0xd00] sm:$0xff]
    %v1110 = vld [vmem:[#allocation5 + $0xd08] sm:$0xff]
    %v1111 = vld [vmem:[#allocation5 + $0xd10] sm:$0xff]
    %v1112 = vld [vmem:[#allocation5 + $0xd18] sm:$0xff]
    %v1113 = vld [vmem:[#allocation5 + $0xd20] sm:$0xff]
    %v1114 = vld [vmem:[#allocation5 + $0xd28] sm:$0xff]
    %v1115 = vld [vmem:[#allocation5 + $0xd30] sm:$0xff]
    %v1116 = vld [vmem:[#allocation5 + $0xd38] sm:$0xff]
    %v1117 = vld [vmem:[#allocation5 + $0xd40] sm:$0xff]
    %v1118 = vld [vmem:[#allocation5 + $0xd48] sm:$0xff]
    %v1119 = vld [vmem:[#allocation5 + $0xd50] sm:$0xff]
    %v1120 = vld [vmem:[#allocation5 + $0xd58] sm:$0xff]
    %v1121 = vld [vmem:[#allocation5 + $0xd60] sm:$0xff]
    %v1122 = vld [vmem:[#allocation5 + $0xd68] sm:$0xff]
    %v1123 = vld [vmem:[#allocation5 + $0xd70] sm:$0xff]
    %v1124 = vld [vmem:[#allocation5 + $0xd78] sm:$0xff]
    %v1125 = vld [vmem:[#allocation5 + $0xd80] sm:$0xff]
    %v1126 = vld [vmem:[#allocation5 + $0xd88] sm:$0xff]
    %v1127 = vld [vmem:[#allocation5 + $0xd90] sm:$0xff]
    %v1128 = vld [vmem:[#allocation5 + $0xd98] sm:$0xff]
    %v1129 = vld [vmem:[#allocation5 + $0xda0] sm:$0xff]
    %v1130 = vld [vmem:[#allocation5 + $0xda8] sm:$0xff]
    %v1131 = vld [vmem:[#allocation5 + $0xdb0] sm:$0xff]
    %v1132 = vld [vmem:[#allocation5 + $0xdb8] sm:$0xff]
    %v1133 = vld [vmem:[#allocation5 + $0xdc0] sm:$0xff]
    %v1134 = vld [vmem:[#allocation5 + $0xdc8] sm:$0xff]
    %v1135 = vld [vmem:[#allocation5 + $0xdd0] sm:$0xff]
    %v1136 = vld [vmem:[#allocation5 + $0xdd8] sm:$0xff]
    %v1137 = vld [vmem:[#allocation5 + $0xde0] sm:$0xff]
    %v1138 = vld [vmem:[#allocation5 + $0xde8] sm:$0xff]
    %v1139 = vld [vmem:[#allocation5 + $0xdf0] sm:$0xff]
    %v1140 = vld [vmem:[#allocation5 + $0xdf8] sm:$0xff]
    %v1141 = vld [vmem:[#allocation5 + $0xe00] sm:$0xff]
    %v1142 = vld [vmem:[#allocation5 + $0xe08] sm:$0xff]
    %v1143 = vld [vmem:[#allocation5 + $0xe10] sm:$0xff]
    %v1144 = vld [vmem:[#allocation5 + $0xe18] sm:$0xff]
    %v1145 = vld [vmem:[#allocation5 + $0xe20] sm:$0xff]
    %v1146 = vld [vmem:[#allocation5 + $0xe28] sm:$0xff]
    %v1147 = vld [vmem:[#allocation5 + $0xe30] sm:$0xff]
    %v1148 = vld [vmem:[#allocation5 + $0xe38] sm:$0xff]
    %v1149 = vld [vmem:[#allocation5 + $0xe40] sm:$0xff]
    %v1150 = vld [vmem:[#allocation5 + $0xe48] sm:$0xff]
    %v1151 = vld [vmem:[#allocation5 + $0xe50] sm:$0xff]
    %v1152 = vld [vmem:[#allocation5 + $0xe58] sm:$0xff]
    %v1153 = vld [vmem:[#allocation5 + $0xe60] sm:$0xff]
    %v1154 = vld [vmem:[#allocation5 + $0xe68] sm:$0xff]
    %v1155 = vld [vmem:[#allocation5 + $0xe70] sm:$0xff]
    %v1156 = vld [vmem:[#allocation5 + $0xe78] sm:$0xff]
    %v1157 = vld [vmem:[#allocation5 + $0xe80] sm:$0xff]
    %v1158 = vld [vmem:[#allocation5 + $0xe88] sm:$0xff]
    %v1159 = vld [vmem:[#allocation5 + $0xe90] sm:$0xff]
    %v1160 = vld [vmem:[#allocation5 + $0xe98] sm:$0xff]
    %v1161 = vld [vmem:[#allocation5 + $0xea0] sm:$0xff]
    %v1162 = vld [vmem:[#allocation5 + $0xea8] sm:$0xff]
    %v1163 = vld [vmem:[#allocation5 + $0xeb0] sm:$0xff]
    %v1164 = vld [vmem:[#allocation5 + $0xeb8] sm:$0xff]
    %v1165 = vld [vmem:[#allocation5 + $0xec0] sm:$0xff]
    %v1166 = vld [vmem:[#allocation5 + $0xec8] sm:$0xff]
    %v1167 = vld [vmem:[#allocation5 + $0xed0] sm:$0xff]
    %v1168 = vld [vmem:[#allocation5 + $0xed8] sm:$0xff]
    %v1169 = vld [vmem:[#allocation5 + $0xee0] sm:$0xff]
    %v1170 = vld [vmem:[#allocation5 + $0xee8] sm:$0xff]
    %v1171 = vld [vmem:[#allocation5 + $0xef0] sm:$0xff]
    %v1172 = vld [vmem:[#allocation5 + $0xef8] sm:$0xff]
    %v1173 = vld [vmem:[#allocation5 + $0xf00] sm:$0xff]
    %v1174 = vld [vmem:[#allocation5 + $0xf08] sm:$0xff]
    %v1175 = vld [vmem:[#allocation5 + $0xf10] sm:$0xff]
    %v1176 = vld [vmem:[#allocation5 + $0xf18] sm:$0xff]
    %v1177 = vld [vmem:[#allocation5 + $0xf20] sm:$0xff]
    %v1178 = vld [vmem:[#allocation5 + $0xf28] sm:$0xff]
    %v1179 = vld [vmem:[#allocation5 + $0xf30] sm:$0xff]
    %v1180 = vld [vmem:[#allocation5 + $0xf38] sm:$0xff]
    %v1181 = vld [vmem:[#allocation5 + $0xf40] sm:$0xff]
    %v1182 = vld [vmem:[#allocation5 + $0xf48] sm:$0xff]
    %v1183 = vld [vmem:[#allocation5 + $0xf50] sm:$0xff]
    %v1184 = vld [vmem:[#allocation5 + $0xf58] sm:$0xff]
    %v1185 = vld [vmem:[#allocation5 + $0xf60] sm:$0xff]
    %v1186 = vld [vmem:[#allocation5 + $0xf68] sm:$0xff]
    %v1187 = vld [vmem:[#allocation5 + $0xf70] sm:$0xff]
    %v1188 = vld [vmem:[#allocation5 + $0xf78] sm:$0xff]
    %v1189 = vld [vmem:[#allocation5 + $0xf80] sm:$0xff]
    %v1190 = vld [vmem:[#allocation5 + $0xf88] sm:$0xff]
    %v1191 = vld [vmem:[#allocation5 + $0xf90] sm:$0xff]
    %v1192 = vld [vmem:[#allocation5 + $0xf98] sm:$0xff]
    %v1193 = vld [vmem:[#allocation5 + $0xfa0] sm:$0xff]
    %v1194 = vld [vmem:[#allocation5 + $0xfa8] sm:$0xff]
    %v1195 = vld [vmem:[#allocation5 + $0xfb0] sm:$0xff]
    %v1196 = vld [vmem:[#allocation5 + $0xfb8] sm:$0xff]
    %v1197 = vld [vmem:[#allocation5 + $0xfc0] sm:$0xff]
    %v1198 = vld [vmem:[#allocation5 + $0xfc8] sm:$0xff]
    %v1199 = vld [vmem:[#allocation5 + $0xfd0] sm:$0xff]
    %v1200 = vld [vmem:[#allocation5 + $0xfd8] sm:$0xff]
    %v1201 = vld [vmem:[#allocation5 + $0xfe0] sm:$0xff]
    %v1202 = vld [vmem:[#allocation5 + $0xfe8] sm:$0xff]
    %v1203 = vld [vmem:[#allocation5 + $0xff0] sm:$0xff]
    %v1204 = vld [vmem:[#allocation5 + $0xff8] sm:$0xff]
    %v1205 = vld [vmem:[#allocation5 + $0x1000] sm:$0xff]
    %v1206 = vld [vmem:[#allocation5 + $0x1008] sm:$0xff]
    %v1207 = vld [vmem:[#allocation5 + $0x1010] sm:$0xff]
    %v1208 = vld [vmem:[#allocation5 + $0x1018] sm:$0xff]
    %v1209 = vld [vmem:[#allocation5 + $0x1020] sm:$0xff]
    %v1210 = vld [vmem:[#allocation5 + $0x1028] sm:$0xff]
    %v1211 = vld [vmem:[#allocation5 + $0x1030] sm:$0xff]
    %v1212 = vld [vmem:[#allocation5 + $0x1038] sm:$0xff]
    %v1213 = vld [vmem:[#allocation5 + $0x1040] sm:$0xff]
    %v1214 = vld [vmem:[#allocation5 + $0x1048] sm:$0xff]
    %v1215 = vld [vmem:[#allocation5 + $0x1050] sm:$0xff]
    %v1216 = vld [vmem:[#allocation5 + $0x1058] sm:$0xff]
    %v1217 = vld [vmem:[#allocation5 + $0x1060] sm:$0xff]
    %v1218 = vld [vmem:[#allocation5 + $0x1068] sm:$0xff]
    %v1219 = vld [vmem:[#allocation5 + $0x1070] sm:$0xff]
    %v1220 = vld [vmem:[#allocation5 + $0x1078] sm:$0xff]
    %v1221 = vld [vmem:[#allocation5 + $0x1080] sm:$0xff]
    %v1222 = vld [vmem:[#allocation5 + $0x1088] sm:$0xff]
    %v1223 = vld [vmem:[#allocation5 + $0x1090] sm:$0xff]
    %v1224 = vld [vmem:[#allocation5 + $0x1098] sm:$0xff]
    %v1225 = vld [vmem:[#allocation5 + $0x10a0] sm:$0xff]
    %v1226 = vld [vmem:[#allocation5 + $0x10a8] sm:$0xff]
    %v1227 = vld [vmem:[#allocation5 + $0x10b0] sm:$0xff]
    %v1228 = vld [vmem:[#allocation5 + $0x10b8] sm:$0xff]
    %v1229 = vld [vmem:[#allocation5 + $0x10c0] sm:$0xff]
    %v1230 = vld [vmem:[#allocation5 + $0x10c8] sm:$0xff]
    %v1231 = vld [vmem:[#allocation5 + $0x10d0] sm:$0xff]
    %v1232 = vld [vmem:[#allocation5 + $0x10d8] sm:$0xff]
    %v1233 = vld [vmem:[#allocation5 + $0x10e0] sm:$0xff]
    %v1234 = vld [vmem:[#allocation5 + $0x10e8] sm:$0xff]
    %v1235 = vld [vmem:[#allocation5 + $0x10f0] sm:$0xff]
    %v1236 = vld [vmem:[#allocation5 + $0x10f8] sm:$0xff]
    %v1237 = vld [vmem:[#allocation5 + $0x1100] sm:$0xff]
    %v1238 = vld [vmem:[#allocation5 + $0x1108] sm:$0xff]
    %v1239 = vld [vmem:[#allocation5 + $0x1110] sm:$0xff]
    %v1240 = vld [vmem:[#allocation5 + $0x1118] sm:$0xff]
    %v1241 = vld [vmem:[#allocation5 + $0x1120] sm:$0xff]
    %v1242 = vld [vmem:[#allocation5 + $0x1128] sm:$0xff]
    %v1243 = vld [vmem:[#allocation5 + $0x1130] sm:$0xff]
    %v1244 = vld [vmem:[#allocation5 + $0x1138] sm:$0xff]
    %v1245 = vld [vmem:[#allocation5 + $0x1140] sm:$0xff]
    %v1246 = vld [vmem:[#allocation5 + $0x1148] sm:$0xff]
    %v1247 = vld [vmem:[#allocation5 + $0x1150] sm:$0xff]
    %v1248 = vld [vmem:[#allocation5 + $0x1158] sm:$0xff]
    %v1249 = vld [vmem:[#allocation5 + $0x1160] sm:$0xff]
    %v1250 = vld [vmem:[#allocation5 + $0x1168] sm:$0xff]
    %v1251 = vld [vmem:[#allocation5 + $0x1170] sm:$0xff]
    %v1252 = vld [vmem:[#allocation5 + $0x1178] sm:$0xff]
    %v1253 = vld [vmem:[#allocation5 + $0x1180] sm:$0xff]
    %v1254 = vld [vmem:[#allocation5 + $0x1188] sm:$0xff]
    %v1255 = vld [vmem:[#allocation5 + $0x1190] sm:$0xff]
    %v1256 = vld [vmem:[#allocation5 + $0x1198] sm:$0xff]
    %v1257 = vld [vmem:[#allocation5 + $0x11a0] sm:$0xff]
    %v1258 = vld [vmem:[#allocation5 + $0x11a8] sm:$0xff]
    %v1259 = vld [vmem:[#allocation5 + $0x11b0] sm:$0xff]
    %v1260 = vld [vmem:[#allocation5 + $0x11b8] sm:$0xff]
    %v1261 = vld [vmem:[#allocation5 + $0x11c0] sm:$0xff]
    %v1262 = vld [vmem:[#allocation5 + $0x11c8] sm:$0xff]
    %v1263 = vld [vmem:[#allocation5 + $0x11d0] sm:$0xff]
    %v1264 = vld [vmem:[#allocation5 + $0x11d8] sm:$0xff]
    %v1265 = vld [vmem:[#allocation5 + $0x11e0] sm:$0xff]
    %v1266 = vld [vmem:[#allocation5 + $0x11e8] sm:$0xff]
    %v1267 = vld [vmem:[#allocation5 + $0x11f0] sm:$0xff]
    %v1268 = vld [vmem:[#allocation5 + $0x11f8] sm:$0xff]
    %v1269 = vld [vmem:[#allocation5 + $0x1200] sm:$0xff]
    %v1270 = vld [vmem:[#allocation5 + $0x1208] sm:$0xff]
    %v1271 = vld [vmem:[#allocation5 + $0x1210] sm:$0xff]
    %v1272 = vld [vmem:[#allocation5 + $0x1218] sm:$0xff]
    %v1273 = vld [vmem:[#allocation5 + $0x1220] sm:$0xff]
    %v1274 = vld [vmem:[#allocation5 + $0x1228] sm:$0xff]
    %v1275 = vld [vmem:[#allocation5 + $0x1230] sm:$0xff]
    %v1276 = vld [vmem:[#allocation5 + $0x1238] sm:$0xff]
    %v1277 = vld [vmem:[#allocation5 + $0x1240] sm:$0xff]
    %v1278 = vld [vmem:[#allocation5 + $0x1248] sm:$0xff]
    %v1279 = vld [vmem:[#allocation5 + $0x1250] sm:$0xff]
    %v1280 = vld [vmem:[#allocation5 + $0x1258] sm:$0xff]
    %v1281 = vld [vmem:[#allocation5 + $0x1260] sm:$0xff]
    %v1282 = vld [vmem:[#allocation5 + $0x1268] sm:$0xff]
    %v1283 = vld [vmem:[#allocation5 + $0x1270] sm:$0xff]
    %v1284 = vld [vmem:[#allocation5 + $0x1278] sm:$0xff]
    %v1285 = vld [vmem:[#allocation5 + $0x1280] sm:$0xff]
    %v1286 = vld [vmem:[#allocation5 + $0x1288] sm:$0xff]
    %v1287 = vld [vmem:[#allocation5 + $0x1290] sm:$0xff]
    %v1288 = vld [vmem:[#allocation5 + $0x1298] sm:$0xff]
    %v1289 = vld [vmem:[#allocation5 + $0x12a0] sm:$0xff]
    %v1290 = vld [vmem:[#allocation5 + $0x12a8] sm:$0xff]
    %v1291 = vld [vmem:[#allocation5 + $0x12b0] sm:$0xff]
    %v1292 = vld [vmem:[#allocation5 + $0x12b8] sm:$0xff]
    %v1293 = vld [vmem:[#allocation5 + $0x12c0] sm:$0xff]
    %v1294 = vld [vmem:[#allocation5 + $0x12c8] sm:$0xff]
    %v1295 = vld [vmem:[#allocation5 + $0x12d0] sm:$0xff]
    %v1296 = vld [vmem:[#allocation5 + $0x12d8] sm:$0xff]
    %v1297 = vld [vmem:[#allocation5 + $0x12e0] sm:$0xff]
    %v1298 = vld [vmem:[#allocation5 + $0x12e8] sm:$0xff]
    %v1299 = vld [vmem:[#allocation5 + $0x12f0] sm:$0xff]
    %v1300 = vld [vmem:[#allocation5 + $0x12f8] sm:$0xff]
    %v1301 = vld [vmem:[#allocation5 + $0x1300] sm:$0xff]
    %v1302 = vld [vmem:[#allocation5 + $0x1308] sm:$0xff]
    %v1303 = vld [vmem:[#allocation5 + $0x1310] sm:$0xff]
    %v1304 = vld [vmem:[#allocation5 + $0x1318] sm:$0xff]
    %v1305 = vld [vmem:[#allocation5 + $0x1320] sm:$0xff]
    %v1306 = vld [vmem:[#allocation5 + $0x1328] sm:$0xff]
    %v1307 = vld [vmem:[#allocation5 + $0x1330] sm:$0xff]
    %v1308 = vld [vmem:[#allocation5 + $0x1338] sm:$0xff]
    %v1309 = vld [vmem:[#allocation5 + $0x1340] sm:$0xff]
    %v1310 = vld [vmem:[#allocation5 + $0x1348] sm:$0xff]
    %v1311 = vld [vmem:[#allocation5 + $0x1350] sm:$0xff]
    %v1312 = vld [vmem:[#allocation5 + $0x1358] sm:$0xff]
    %v1313 = vld [vmem:[#allocation5 + $0x1360] sm:$0xff]
    %v1314 = vld [vmem:[#allocation5 + $0x1368] sm:$0xff]
    %v1315 = vld [vmem:[#allocation5 + $0x1370] sm:$0xff]
    %v1316 = vld [vmem:[#allocation5 + $0x1378] sm:$0xff]
    %v1317 = vld [vmem:[#allocation5 + $0x1380] sm:$0xff]
    %v1318 = vld [vmem:[#allocation5 + $0x1388] sm:$0xff]
    %v1319 = vld [vmem:[#allocation5 + $0x1390] sm:$0xff]
    %v1320 = vld [vmem:[#allocation5 + $0x1398] sm:$0xff]
    %v1321 = vld [vmem:[#allocation5 + $0x13a0] sm:$0xff]
    %v1322 = vld [vmem:[#allocation5 + $0x13a8] sm:$0xff]
    %v1323 = vld [vmem:[#allocation5 + $0x13b0] sm:$0xff]
    %v1324 = vld [vmem:[#allocation5 + $0x13b8] sm:$0xff]
    %v1325 = vld [vmem:[#allocation5 + $0x13c0] sm:$0xff]
    %v1326 = vld [vmem:[#allocation5 + $0x13c8] sm:$0xff]
    %v1327 = vld [vmem:[#allocation5 + $0x13d0] sm:$0xff]
    %v1328 = vld [vmem:[#allocation5 + $0x13d8] sm:$0xff]
    %v1329 = vld [vmem:[#allocation5 + $0x13e0] sm:$0xff]
    %v1330 = vld [vmem:[#allocation5 + $0x13e8] sm:$0xff]
    %v1331 = vld [vmem:[#allocation5 + $0x13f0] sm:$0xff]
    %v1332 = vld [vmem:[#allocation5 + $0x13f8] sm:$0xff]
    %v1333 = vld [vmem:[#allocation5 + $0x1400] sm:$0xff]
    %v1334 = vld [vmem:[#allocation5 + $0x1408] sm:$0xff]
    %v1335 = vld [vmem:[#allocation5 + $0x1410] sm:$0xff]
    %v1336 = vld [vmem:[#allocation5 + $0x1418] sm:$0xff]
    %v1337 = vld [vmem:[#allocation5 + $0x1420] sm:$0xff]
    %v1338 = vld [vmem:[#allocation5 + $0x1428] sm:$0xff]
    %v1339 = vld [vmem:[#allocation5 + $0x1430] sm:$0xff]
    %v1340 = vld [vmem:[#allocation5 + $0x1438] sm:$0xff]
    %v1341 = vld [vmem:[#allocation5 + $0x1440] sm:$0xff]
    %v1342 = vld [vmem:[#allocation5 + $0x1448] sm:$0xff]
    %v1343 = vld [vmem:[#allocation5 + $0x1450] sm:$0xff]
    %v1344 = vld [vmem:[#allocation5 + $0x1458] sm:$0xff]
    %v1345 = vld [vmem:[#allocation5 + $0x1460] sm:$0xff]
    %v1346 = vld [vmem:[#allocation5 + $0x1468] sm:$0xff]
    %v1347 = vld [vmem:[#allocation5 + $0x1470] sm:$0xff]
    %v1348 = vld [vmem:[#allocation5 + $0x1478] sm:$0xff]
    %v1349 = vld [vmem:[#allocation5 + $0x1480] sm:$0xff]
    %v1350 = vld [vmem:[#allocation5 + $0x1488] sm:$0xff]
    %v1351 = vld [vmem:[#allocation5 + $0x1490] sm:$0xff]
    %v1352 = vld [vmem:[#allocation5 + $0x1498] sm:$0xff]
    %v1353 = vld [vmem:[#allocation5 + $0x14a0] sm:$0xff]
    %v1354 = vld [vmem:[#allocation5 + $0x14a8] sm:$0xff]
    %v1355 = vld [vmem:[#allocation5 + $0x14b0] sm:$0xff]
    %v1356 = vld [vmem:[#allocation5 + $0x14b8] sm:$0xff]
    %v1357 = vld [vmem:[#allocation5 + $0x14c0] sm:$0xff]
    %v1358 = vld [vmem:[#allocation5 + $0x14c8] sm:$0xff]
    %v1359 = vld [vmem:[#allocation5 + $0x14d0] sm:$0xff]
    %v1360 = vld [vmem:[#allocation5 + $0x14d8] sm:$0xff]
    %v1361 = vld [vmem:[#allocation5 + $0x14e0] sm:$0xff]
    %v1362 = vld [vmem:[#allocation5 + $0x14e8] sm:$0xff]
    %v1363 = vld [vmem:[#allocation5 + $0x14f0] sm:$0xff]
    %v1364 = vld [vmem:[#allocation5 + $0x14f8] sm:$0xff]
    %v1365 = vld [vmem:[#allocation5 + $0x1500] sm:$0xff]
    %v1366 = vld [vmem:[#allocation5 + $0x1508] sm:$0xff]
    %v1367 = vld [vmem:[#allocation5 + $0x1510] sm:$0xff]
    %v1368 = vld [vmem:[#allocation5 + $0x1518] sm:$0xff]
    %v1369 = vld [vmem:[#allocation5 + $0x1520] sm:$0xff]
    %v1370 = vld [vmem:[#allocation5 + $0x1528] sm:$0xff]
    %v1371 = vld [vmem:[#allocation5 + $0x1530] sm:$0xff]
    %v1372 = vld [vmem:[#allocation5 + $0x1538] sm:$0xff]
    %v1373 = vld [vmem:[#allocation5 + $0x1540] sm:$0xff]
    %v1374 = vld [vmem:[#allocation5 + $0x1548] sm:$0xff]
    %v1375 = vld [vmem:[#allocation5 + $0x1550] sm:$0xff]
    %v1376 = vld [vmem:[#allocation5 + $0x1558] sm:$0xff]
    %v1377 = vld [vmem:[#allocation5 + $0x1560] sm:$0xff]
    %v1378 = vld [vmem:[#allocation5 + $0x1568] sm:$0xff]
    %v1379 = vld [vmem:[#allocation5 + $0x1570] sm:$0xff]
    %v1380 = vld [vmem:[#allocation5 + $0x1578] sm:$0xff]
    %v1381 = vld [vmem:[#allocation5 + $0x1580] sm:$0xff]
    %v1382 = vld [vmem:[#allocation5 + $0x1588] sm:$0xff]
    %v1383 = vld [vmem:[#allocation5 + $0x1590] sm:$0xff]
    %v1384 = vld [vmem:[#allocation5 + $0x1598] sm:$0xff]
    %v1385 = vld [vmem:[#allocation5 + $0x15a0] sm:$0xff]
    %v1386 = vld [vmem:[#allocation5 + $0x15a8] sm:$0xff]
    %v1387 = vld [vmem:[#allocation5 + $0x15b0] sm:$0xff]
    %v1388 = vld [vmem:[#allocation5 + $0x15b8] sm:$0xff]
    %v1389 = vld [vmem:[#allocation5 + $0x15c0] sm:$0xff]
    %v1390 = vld [vmem:[#allocation5 + $0x15c8] sm:$0xff]
    %v1391 = vld [vmem:[#allocation5 + $0x15d0] sm:$0xff]
    %v1392 = vld [vmem:[#allocation5 + $0x15d8] sm:$0xff]
    %v1393 = vld [vmem:[#allocation5 + $0x15e0] sm:$0xff]
    %v1394 = vld [vmem:[#allocation5 + $0x15e8] sm:$0xff]
    %v1395 = vld [vmem:[#allocation5 + $0x15f0] sm:$0xff]
    %v1396 = vld [vmem:[#allocation5 + $0x15f8] sm:$0xff]
    %v1397 = vld [vmem:[#allocation5 + $0x1600] sm:$0xff]
    %v1398 = vld [vmem:[#allocation5 + $0x1608] sm:$0xff]
    %v1399 = vld [vmem:[#allocation5 + $0x1610] sm:$0xff]
    %v1400 = vld [vmem:[#allocation5 + $0x1618] sm:$0xff]
    %v1401 = vld [vmem:[#allocation5 + $0x1620] sm:$0xff]
    %v1402 = vld [vmem:[#allocation5 + $0x1628] sm:$0xff]
    %v1403 = vld [vmem:[#allocation5 + $0x1630] sm:$0xff]
    %v1404 = vld [vmem:[#allocation5 + $0x1638] sm:$0xff]
    %v1405 = vld [vmem:[#allocation5 + $0x1640] sm:$0xff]
    %v1406 = vld [vmem:[#allocation5 + $0x1648] sm:$0xff]
    %v1407 = vld [vmem:[#allocation5 + $0x1650] sm:$0xff]
    %v1408 = vld [vmem:[#allocation5 + $0x1658] sm:$0xff]
    %v1409 = vld [vmem:[#allocation5 + $0x1660] sm:$0xff]
    %v1410 = vld [vmem:[#allocation5 + $0x1668] sm:$0xff]
    %v1411 = vld [vmem:[#allocation5 + $0x1670] sm:$0xff]
    %v1412 = vld [vmem:[#allocation5 + $0x1678] sm:$0xff]
    %v1413 = vld [vmem:[#allocation5 + $0x1680] sm:$0xff]
    %v1414 = vld [vmem:[#allocation5 + $0x1688] sm:$0xff]
    %v1415 = vld [vmem:[#allocation5 + $0x1690] sm:$0xff]
    %v1416 = vld [vmem:[#allocation5 + $0x1698] sm:$0xff]
    %v1417 = vld [vmem:[#allocation5 + $0x16a0] sm:$0xff]
    %v1418 = vld [vmem:[#allocation5 + $0x16a8] sm:$0xff]
    %v1419 = vld [vmem:[#allocation5 + $0x16b0] sm:$0xff]
    %v1420 = vld [vmem:[#allocation5 + $0x16b8] sm:$0xff]
    %v1421 = vld [vmem:[#allocation5 + $0x16c0] sm:$0xff]
    %v1422 = vld [vmem:[#allocation5 + $0x16c8] sm:$0xff]
    %v1423 = vld [vmem:[#allocation5 + $0x16d0] sm:$0xff]
    %v1424 = vld [vmem:[#allocation5 + $0x16d8] sm:$0xff]
    %v1425 = vld [vmem:[#allocation5 + $0x16e0] sm:$0xff]
    %v1426 = vld [vmem:[#allocation5 + $0x16e8] sm:$0xff]
    %v1427 = vld [vmem:[#allocation5 + $0x16f0] sm:$0xff]
    %v1428 = vld [vmem:[#allocation5 + $0x16f8] sm:$0xff]
    %v1429 = vld [vmem:[#allocation5 + $0x1700] sm:$0xff]
    %v1430 = vld [vmem:[#allocation5 + $0x1708] sm:$0xff]
    %v1431 = vld [vmem:[#allocation5 + $0x1710] sm:$0xff]
    %v1432 = vld [vmem:[#allocation5 + $0x1718] sm:$0xff]
    %v1433 = vld [vmem:[#allocation5 + $0x1720] sm:$0xff]
    %v1434 = vld [vmem:[#allocation5 + $0x1728] sm:$0xff]
    %v1435 = vld [vmem:[#allocation5 + $0x1730] sm:$0xff]
    %v1436 = vld [vmem:[#allocation5 + $0x1738] sm:$0xff]
    %v1437 = vld [vmem:[#allocation5 + $0x1740] sm:$0xff]
    %v1438 = vld [vmem:[#allocation5 + $0x1748] sm:$0xff]
    %v1439 = vld [vmem:[#allocation5 + $0x1750] sm:$0xff]
    %v1440 = vld [vmem:[#allocation5 + $0x1758] sm:$0xff]
    %v1441 = vld [vmem:[#allocation5 + $0x1760] sm:$0xff]
    %v1442 = vld [vmem:[#allocation5 + $0x1768] sm:$0xff]
    %v1443 = vld [vmem:[#allocation5 + $0x1770] sm:$0xff]
    %v1444 = vld [vmem:[#allocation5 + $0x1778] sm:$0xff]
    %v1445 = vld [vmem:[#allocation5 + $0x1780] sm:$0xff]
    %v1446 = vld [vmem:[#allocation5 + $0x1788] sm:$0xff]
    %v1447 = vld [vmem:[#allocation5 + $0x1790] sm:$0xff]
    %v1448 = vld [vmem:[#allocation5 + $0x1798] sm:$0xff]
    %v1449 = vld [vmem:[#allocation5 + $0x17a0] sm:$0xff]
    %v1450 = vld [vmem:[#allocation5 + $0x17a8] sm:$0xff]
    %v1451 = vld [vmem:[#allocation5 + $0x17b0] sm:$0xff]
    %v1452 = vld [vmem:[#allocation5 + $0x17b8] sm:$0xff]
    %v1453 = vld [vmem:[#allocation5 + $0x17c0] sm:$0xff]
    %v1454 = vld [vmem:[#allocation5 + $0x17c8] sm:$0xff]
    %v1455 = vld [vmem:[#allocation5 + $0x17d0] sm:$0xff]
    %v1456 = vld [vmem:[#allocation5 + $0x17d8] sm:$0xff]
    %v1457 = vld [vmem:[#allocation5 + $0x17e0] sm:$0xff]
    %v1458 = vld [vmem:[#allocation5 + $0x17e8] sm:$0xff]
    %v1459 = vld [vmem:[#allocation5 + $0x17f0] sm:$0xff]
    %v1460 = vld [vmem:[#allocation5 + $0x17f8] sm:$0xff]
    %v1461 = vld [vmem:[#allocation7] sm:$0xf]
    %v1463 = vlaneseq
    %v1464 = vshrl.u32 %v1463, 7
    %v1465 = vsub.s32 0, %v1464
    %v1466 = vrot.slane %v1461, %v1465
    %v1467 = vlaneseq
    %v1468 = vshrl.u32 %v1467, 7
    %v1469 = vsub.s32 1, %v1468
    %v1470 = vrot.slane %v1461, %v1469
    %v1471 = vlaneseq
    %v1472 = vshrl.u32 %v1471, 7
    %v1473 = vsub.s32 2, %v1472
    %v1474 = vrot.slane %v1461, %v1473
    %v1475 = vlaneseq
    %v1476 = vshrl.u32 %v1475, 7
    %v1477 = vsub.s32 3, %v1476
    %v1478 = vrot.slane %v1461, %v1477
    %v2251 = vunpack.c.l.b16 %v693
    %v2252 = vunpack.c.h.b16 %v693
    %v2253 = vunpack.c.l.b16 %v694
    %v2254 = vunpack.c.h.b16 %v694
    %v2255 = vunpack.c.l.b16 %v695
    %v2256 = vunpack.c.h.b16 %v695
    %v2257 = vunpack.c.l.b16 %v696
    %v2258 = vunpack.c.h.b16 %v696
    %v2259 = vunpack.c.l.b16 %v697
    %v2260 = vunpack.c.h.b16 %v697
    %v2261 = vunpack.c.l.b16 %v698
    %v2262 = vunpack.c.h.b16 %v698
    %v2263 = vunpack.c.l.b16 %v699
    %v2264 = vunpack.c.h.b16 %v699
    %v2265 = vunpack.c.l.b16 %v700
    %v2266 = vunpack.c.h.b16 %v700
    %v2267 = vunpack.c.l.b16 %v701
    %v2268 = vunpack.c.h.b16 %v701
    %v2269 = vunpack.c.l.b16 %v702
    %v2270 = vunpack.c.h.b16 %v702
    %v2271 = vunpack.c.l.b16 %v703
    %v2272 = vunpack.c.h.b16 %v703
    %v2273 = vunpack.c.l.b16 %v704
    %v2274 = vunpack.c.h.b16 %v704
    %v2275 = vunpack.c.l.b16 %v705
    %v2276 = vunpack.c.h.b16 %v705
    %v2277 = vunpack.c.l.b16 %v706
    %v2278 = vunpack.c.h.b16 %v706
    %v2279 = vunpack.c.l.b16 %v707
    %v2280 = vunpack.c.h.b16 %v707
    %v2281 = vunpack.c.l.b16 %v708
    %v2282 = vunpack.c.h.b16 %v708
    %v2283 = vunpack.c.l.b16 %v709
    %v2284 = vunpack.c.h.b16 %v709
    %v2285 = vunpack.c.l.b16 %v710
    %v2286 = vunpack.c.h.b16 %v710
    %v2287 = vunpack.c.l.b16 %v711
    %v2288 = vunpack.c.h.b16 %v711
    %v2289 = vunpack.c.l.b16 %v712
    %v2290 = vunpack.c.h.b16 %v712
    %v2291 = vunpack.c.l.b16 %v713
    %v2292 = vunpack.c.h.b16 %v713
    %v2293 = vunpack.c.l.b16 %v714
    %v2294 = vunpack.c.h.b16 %v714
    %v2295 = vunpack.c.l.b16 %v715
    %v2296 = vunpack.c.h.b16 %v715
    %v2297 = vunpack.c.l.b16 %v716
    %v2298 = vunpack.c.h.b16 %v716
    %v2299 = vunpack.c.l.b16 %v717
    %v2300 = vunpack.c.h.b16 %v717
    %v2301 = vunpack.c.l.b16 %v718
    %v2302 = vunpack.c.h.b16 %v718
    %v2303 = vunpack.c.l.b16 %v719
    %v2304 = vunpack.c.h.b16 %v719
    %v2305 = vunpack.c.l.b16 %v720
    %v2306 = vunpack.c.h.b16 %v720
    %v2307 = vunpack.c.l.b16 %v721
    %v2308 = vunpack.c.h.b16 %v721
    %v2309 = vunpack.c.l.b16 %v722
    %v2310 = vunpack.c.h.b16 %v722
    %v2311 = vunpack.c.l.b16 %v723
    %v2312 = vunpack.c.h.b16 %v723
    %v2313 = vunpack.c.l.b16 %v724
    %v2314 = vunpack.c.h.b16 %v724
    %v2315 = vunpack.c.l.b16 %v725
    %v2316 = vunpack.c.h.b16 %v725
    %v2317 = vunpack.c.l.b16 %v726
    %v2318 = vunpack.c.h.b16 %v726
    %v2319 = vunpack.c.l.b16 %v727
    %v2320 = vunpack.c.h.b16 %v727
    %v2321 = vunpack.c.l.b16 %v728
    %v2322 = vunpack.c.h.b16 %v728
    %v2323 = vunpack.c.l.b16 %v729
    %v2324 = vunpack.c.h.b16 %v729
    %v2325 = vunpack.c.l.b16 %v730
    %v2326 = vunpack.c.h.b16 %v730
    %v2327 = vunpack.c.l.b16 %v731
    %v2328 = vunpack.c.h.b16 %v731
    %v2329 = vunpack.c.l.b16 %v732
    %v2330 = vunpack.c.h.b16 %v732
    %v2331 = vunpack.c.l.b16 %v733
    %v2332 = vunpack.c.h.b16 %v733
    %v2333 = vunpack.c.l.b16 %v734
    %v2334 = vunpack.c.h.b16 %v734
    %v2335 = vunpack.c.l.b16 %v735
    %v2336 = vunpack.c.h.b16 %v735
    %v2337 = vunpack.c.l.b16 %v736
    %v2338 = vunpack.c.h.b16 %v736
    %v2339 = vunpack.c.l.b16 %v737
    %v2340 = vunpack.c.h.b16 %v737
    %v2341 = vunpack.c.l.b16 %v738
    %v2342 = vunpack.c.h.b16 %v738
    %v2343 = vunpack.c.l.b16 %v739
    %v2344 = vunpack.c.h.b16 %v739
    %v2345 = vunpack.c.l.b16 %v740
    %v2346 = vunpack.c.h.b16 %v740
    %v2347 = vunpack.c.l.b16 %v741
    %v2348 = vunpack.c.h.b16 %v741
    %v2349 = vunpack.c.l.b16 %v742
    %v2350 = vunpack.c.h.b16 %v742
    %v2351 = vunpack.c.l.b16 %v743
    %v2352 = vunpack.c.h.b16 %v743
    %v2353 = vunpack.c.l.b16 %v744
    %v2354 = vunpack.c.h.b16 %v744
    %v2355 = vunpack.c.l.b16 %v745
    %v2356 = vunpack.c.h.b16 %v745
    %v2357 = vunpack.c.l.b16 %v746
    %v2358 = vunpack.c.h.b16 %v746
    %v2359 = vunpack.c.l.b16 %v747
    %v2360 = vunpack.c.h.b16 %v747
    %v2361 = vunpack.c.l.b16 %v748
    %v2362 = vunpack.c.h.b16 %v748
    %v2363 = vunpack.c.l.b16 %v749
    %v2364 = vunpack.c.h.b16 %v749
    %v2365 = vunpack.c.l.b16 %v750
    %v2366 = vunpack.c.h.b16 %v750
    %v2367 = vunpack.c.l.b16 %v751
    %v2368 = vunpack.c.h.b16 %v751
    %v2369 = vunpack.c.l.b16 %v752
    %v2370 = vunpack.c.h.b16 %v752
    %v2371 = vunpack.c.l.b16 %v753
    %v2372 = vunpack.c.h.b16 %v753
    %v2373 = vunpack.c.l.b16 %v754
    %v2374 = vunpack.c.h.b16 %v754
    %v2375 = vunpack.c.l.b16 %v755
    %v2376 = vunpack.c.h.b16 %v755
    %v2377 = vunpack.c.l.b16 %v756
    %v2378 = vunpack.c.h.b16 %v756
    %v2379 = vunpack.c.l.b16 %v757
    %v2380 = vunpack.c.h.b16 %v757
    %v2381 = vunpack.c.l.b16 %v758
    %v2382 = vunpack.c.h.b16 %v758
    %v2383 = vunpack.c.l.b16 %v759
    %v2384 = vunpack.c.h.b16 %v759
    %v2385 = vunpack.c.l.b16 %v760
    %v2386 = vunpack.c.h.b16 %v760
    %v2387 = vunpack.c.l.b16 %v761
    %v2388 = vunpack.c.h.b16 %v761
    %v2389 = vunpack.c.l.b16 %v762
    %v2390 = vunpack.c.h.b16 %v762
    %v2391 = vunpack.c.l.b16 %v763
    %v2392 = vunpack.c.h.b16 %v763
    %v2393 = vunpack.c.l.b16 %v764
    %v2394 = vunpack.c.h.b16 %v764
    %v2395 = vunpack.c.l.b16 %v765
    %v2396 = vunpack.c.h.b16 %v765
    %v2397 = vunpack.c.l.b16 %v766
    %v2398 = vunpack.c.h.b16 %v766
    %v2399 = vunpack.c.l.b16 %v767
    %v2400 = vunpack.c.h.b16 %v767
    %v2401 = vunpack.c.l.b16 %v768
    %v2402 = vunpack.c.h.b16 %v768
    %v2403 = vunpack.c.l.b16 %v769
    %v2404 = vunpack.c.h.b16 %v769
    %v2405 = vunpack.c.l.b16 %v770
    %v2406 = vunpack.c.h.b16 %v770
    %v2407 = vunpack.c.l.b16 %v771
    %v2408 = vunpack.c.h.b16 %v771
    %v2409 = vunpack.c.l.b16 %v772
    %v2410 = vunpack.c.h.b16 %v772
    %v2411 = vunpack.c.l.b16 %v773
    %v2412 = vunpack.c.h.b16 %v773
    %v2413 = vunpack.c.l.b16 %v774
    %v2414 = vunpack.c.h.b16 %v774
    %v2415 = vunpack.c.l.b16 %v775
    %v2416 = vunpack.c.h.b16 %v775
    %v2417 = vunpack.c.l.b16 %v776
    %v2418 = vunpack.c.h.b16 %v776
    %v2419 = vunpack.c.l.b16 %v777
    %v2420 = vunpack.c.h.b16 %v777
    %v2421 = vunpack.c.l.b16 %v778
    %v2422 = vunpack.c.h.b16 %v778
    %v2423 = vunpack.c.l.b16 %v779
    %v2424 = vunpack.c.h.b16 %v779
    %v2425 = vunpack.c.l.b16 %v780
    %v2426 = vunpack.c.h.b16 %v780
    %v2427 = vunpack.c.l.b16 %v781
    %v2428 = vunpack.c.h.b16 %v781
    %v2429 = vunpack.c.l.b16 %v782
    %v2430 = vunpack.c.h.b16 %v782
    %v2431 = vunpack.c.l.b16 %v783
    %v2432 = vunpack.c.h.b16 %v783
    %v2433 = vunpack.c.l.b16 %v784
    %v2434 = vunpack.c.h.b16 %v784
    %v2435 = vunpack.c.l.b16 %v785
    %v2436 = vunpack.c.h.b16 %v785
    %v2437 = vunpack.c.l.b16 %v786
    %v2438 = vunpack.c.h.b16 %v786
    %v2439 = vunpack.c.l.b16 %v787
    %v2440 = vunpack.c.h.b16 %v787
    %v2441 = vunpack.c.l.b16 %v788
    %v2442 = vunpack.c.h.b16 %v788
    %v2443 = vunpack.c.l.b16 %v789
    %v2444 = vunpack.c.h.b16 %v789
    %v2445 = vunpack.c.l.b16 %v790
    %v2446 = vunpack.c.h.b16 %v790
    %v2447 = vunpack.c.l.b16 %v791
    %v2448 = vunpack.c.h.b16 %v791
    %v2449 = vunpack.c.l.b16 %v792
    %v2450 = vunpack.c.h.b16 %v792
    %v2451 = vunpack.c.l.b16 %v793
    %v2452 = vunpack.c.h.b16 %v793
    %v2453 = vunpack.c.l.b16 %v794
    %v2454 = vunpack.c.h.b16 %v794
    %v2455 = vunpack.c.l.b16 %v795
    %v2456 = vunpack.c.h.b16 %v795
    %v2457 = vunpack.c.l.b16 %v796
    %v2458 = vunpack.c.h.b16 %v796
    %v2459 = vunpack.c.l.b16 %v797
    %v2460 = vunpack.c.h.b16 %v797
    %v2461 = vunpack.c.l.b16 %v798
    %v2462 = vunpack.c.h.b16 %v798
    %v2463 = vunpack.c.l.b16 %v799
    %v2464 = vunpack.c.h.b16 %v799
    %v2465 = vunpack.c.l.b16 %v800
    %v2466 = vunpack.c.h.b16 %v800
    %v2467 = vunpack.c.l.b16 %v801
    %v2468 = vunpack.c.h.b16 %v801
    %v2469 = vunpack.c.l.b16 %v802
    %v2470 = vunpack.c.h.b16 %v802
    %v2471 = vunpack.c.l.b16 %v803
    %v2472 = vunpack.c.h.b16 %v803
    %v2473 = vunpack.c.l.b16 %v804
    %v2474 = vunpack.c.h.b16 %v804
    %v2475 = vunpack.c.l.b16 %v805
    %v2476 = vunpack.c.h.b16 %v805
    %v2477 = vunpack.c.l.b16 %v806
    %v2478 = vunpack.c.h.b16 %v806
    %v2479 = vunpack.c.l.b16 %v807
    %v2480 = vunpack.c.h.b16 %v807
    %v2481 = vunpack.c.l.b16 %v808
    %v2482 = vunpack.c.h.b16 %v808
    %v2483 = vunpack.c.l.b16 %v809
    %v2484 = vunpack.c.h.b16 %v809
    %v2485 = vunpack.c.l.b16 %v810
    %v2486 = vunpack.c.h.b16 %v810
    %v2487 = vunpack.c.l.b16 %v811
    %v2488 = vunpack.c.h.b16 %v811
    %v2489 = vunpack.c.l.b16 %v812
    %v2490 = vunpack.c.h.b16 %v812
    %v2491 = vunpack.c.l.b16 %v813
    %v2492 = vunpack.c.h.b16 %v813
    %v2493 = vunpack.c.l.b16 %v814
    %v2494 = vunpack.c.h.b16 %v814
    %v2495 = vunpack.c.l.b16 %v815
    %v2496 = vunpack.c.h.b16 %v815
    %v2497 = vunpack.c.l.b16 %v816
    %v2498 = vunpack.c.h.b16 %v816
    %v2499 = vunpack.c.l.b16 %v817
    %v2500 = vunpack.c.h.b16 %v817
    %v2501 = vunpack.c.l.b16 %v818
    %v2502 = vunpack.c.h.b16 %v818
    %v2503 = vunpack.c.l.b16 %v819
    %v2504 = vunpack.c.h.b16 %v819
    %v2505 = vunpack.c.l.b16 %v820
    %v2506 = vunpack.c.h.b16 %v820
    %v2507 = vunpack.c.l.b16 %v821
    %v2508 = vunpack.c.h.b16 %v821
    %v2509 = vunpack.c.l.b16 %v822
    %v2510 = vunpack.c.h.b16 %v822
    %v2511 = vunpack.c.l.b16 %v823
    %v2512 = vunpack.c.h.b16 %v823
    %v2513 = vunpack.c.l.b16 %v824
    %v2514 = vunpack.c.h.b16 %v824
    %v2515 = vunpack.c.l.b16 %v825
    %v2516 = vunpack.c.h.b16 %v825
    %v2517 = vunpack.c.l.b16 %v826
    %v2518 = vunpack.c.h.b16 %v826
    %v2519 = vunpack.c.l.b16 %v827
    %v2520 = vunpack.c.h.b16 %v827
    %v2521 = vunpack.c.l.b16 %v828
    %v2522 = vunpack.c.h.b16 %v828
    %v2523 = vunpack.c.l.b16 %v829
    %v2524 = vunpack.c.h.b16 %v829
    %v2525 = vunpack.c.l.b16 %v830
    %v2526 = vunpack.c.h.b16 %v830
    %v2527 = vunpack.c.l.b16 %v831
    %v2528 = vunpack.c.h.b16 %v831
    %v2529 = vunpack.c.l.b16 %v832
    %v2530 = vunpack.c.h.b16 %v832
    %v2531 = vunpack.c.l.b16 %v833
    %v2532 = vunpack.c.h.b16 %v833
    %v2533 = vunpack.c.l.b16 %v834
    %v2534 = vunpack.c.h.b16 %v834
    %v2535 = vunpack.c.l.b16 %v835
    %v2536 = vunpack.c.h.b16 %v835
    %v2537 = vunpack.c.l.b16 %v836
    %v2538 = vunpack.c.h.b16 %v836
    %v2539 = vunpack.c.l.b16 %v837
    %v2540 = vunpack.c.h.b16 %v837
    %v2541 = vunpack.c.l.b16 %v838
    %v2542 = vunpack.c.h.b16 %v838
    %v2543 = vunpack.c.l.b16 %v839
    %v2544 = vunpack.c.h.b16 %v839
    %v2545 = vunpack.c.l.b16 %v840
    %v2546 = vunpack.c.h.b16 %v840
    %v2547 = vunpack.c.l.b16 %v841
    %v2548 = vunpack.c.h.b16 %v841
    %v2549 = vunpack.c.l.b16 %v842
    %v2550 = vunpack.c.h.b16 %v842
    %v2551 = vunpack.c.l.b16 %v843
    %v2552 = vunpack.c.h.b16 %v843
    %v2553 = vunpack.c.l.b16 %v844
    %v2554 = vunpack.c.h.b16 %v844
    %v2555 = vunpack.c.l.b16 %v845
    %v2556 = vunpack.c.h.b16 %v845
    %v2557 = vunpack.c.l.b16 %v846
    %v2558 = vunpack.c.h.b16 %v846
    %v2559 = vunpack.c.l.b16 %v847
    %v2560 = vunpack.c.h.b16 %v847
    %v2561 = vunpack.c.l.b16 %v848
    %v2562 = vunpack.c.h.b16 %v848
    %v2563 = vunpack.c.l.b16 %v849
    %v2564 = vunpack.c.h.b16 %v849
    %v2565 = vunpack.c.l.b16 %v850
    %v2566 = vunpack.c.h.b16 %v850
    %v2567 = vunpack.c.l.b16 %v851
    %v2568 = vunpack.c.h.b16 %v851
    %v2569 = vunpack.c.l.b16 %v852
    %v2570 = vunpack.c.h.b16 %v852
    %v2571 = vunpack.c.l.b16 %v853
    %v2572 = vunpack.c.h.b16 %v853
    %v2573 = vunpack.c.l.b16 %v854
    %v2574 = vunpack.c.h.b16 %v854
    %v2575 = vunpack.c.l.b16 %v855
    %v2576 = vunpack.c.h.b16 %v855
    %v2577 = vunpack.c.l.b16 %v856
    %v2578 = vunpack.c.h.b16 %v856
    %v2579 = vunpack.c.l.b16 %v857
    %v2580 = vunpack.c.h.b16 %v857
    %v2581 = vunpack.c.l.b16 %v858
    %v2582 = vunpack.c.h.b16 %v858
    %v2583 = vunpack.c.l.b16 %v859
    %v2584 = vunpack.c.h.b16 %v859
    %v2585 = vunpack.c.l.b16 %v860
    %v2586 = vunpack.c.h.b16 %v860
    %v2587 = vunpack.c.l.b16 %v861
    %v2588 = vunpack.c.h.b16 %v861
    %v2589 = vunpack.c.l.b16 %v862
    %v2590 = vunpack.c.h.b16 %v862
    %v2591 = vunpack.c.l.b16 %v863
    %v2592 = vunpack.c.h.b16 %v863
    %v2593 = vunpack.c.l.b16 %v864
    %v2594 = vunpack.c.h.b16 %v864
    %v2595 = vunpack.c.l.b16 %v865
    %v2596 = vunpack.c.h.b16 %v865
    %v2597 = vunpack.c.l.b16 %v866
    %v2598 = vunpack.c.h.b16 %v866
    %v2599 = vunpack.c.l.b16 %v867
    %v2600 = vunpack.c.h.b16 %v867
    %v2601 = vunpack.c.l.b16 %v868
    %v2602 = vunpack.c.h.b16 %v868
    %v2603 = vunpack.c.l.b16 %v869
    %v2604 = vunpack.c.h.b16 %v869
    %v2605 = vunpack.c.l.b16 %v870
    %v2606 = vunpack.c.h.b16 %v870
    %v2607 = vunpack.c.l.b16 %v871
    %v2608 = vunpack.c.h.b16 %v871
    %v2609 = vunpack.c.l.b16 %v872
    %v2610 = vunpack.c.h.b16 %v872
    %v2611 = vunpack.c.l.b16 %v873
    %v2612 = vunpack.c.h.b16 %v873
    %v2613 = vunpack.c.l.b16 %v874
    %v2614 = vunpack.c.h.b16 %v874
    %v2615 = vunpack.c.l.b16 %v875
    %v2616 = vunpack.c.h.b16 %v875
    %v2617 = vunpack.c.l.b16 %v876
    %v2618 = vunpack.c.h.b16 %v876
    %v2619 = vunpack.c.l.b16 %v877
    %v2620 = vunpack.c.h.b16 %v877
    %v2621 = vunpack.c.l.b16 %v878
    %v2622 = vunpack.c.h.b16 %v878
    %v2623 = vunpack.c.l.b16 %v879
    %v2624 = vunpack.c.h.b16 %v879
    %v2625 = vunpack.c.l.b16 %v880
    %v2626 = vunpack.c.h.b16 %v880
    %v2627 = vunpack.c.l.b16 %v881
    %v2628 = vunpack.c.h.b16 %v881
    %v2629 = vunpack.c.l.b16 %v882
    %v2630 = vunpack.c.h.b16 %v882
    %v2631 = vunpack.c.l.b16 %v883
    %v2632 = vunpack.c.h.b16 %v883
    %v2633 = vunpack.c.l.b16 %v884
    %v2634 = vunpack.c.h.b16 %v884
    %v2635 = vunpack.c.l.b16 %v885
    %v2636 = vunpack.c.h.b16 %v885
    %v2637 = vunpack.c.l.b16 %v886
    %v2638 = vunpack.c.h.b16 %v886
    %v2639 = vunpack.c.l.b16 %v887
    %v2640 = vunpack.c.h.b16 %v887
    %v2641 = vunpack.c.l.b16 %v888
    %v2642 = vunpack.c.h.b16 %v888
    %v2643 = vunpack.c.l.b16 %v889
    %v2644 = vunpack.c.h.b16 %v889
    %v2645 = vunpack.c.l.b16 %v890
    %v2646 = vunpack.c.h.b16 %v890
    %v2647 = vunpack.c.l.b16 %v891
    %v2648 = vunpack.c.h.b16 %v891
    %v2649 = vunpack.c.l.b16 %v892
    %v2650 = vunpack.c.h.b16 %v892
    %v2651 = vunpack.c.l.b16 %v893
    %v2652 = vunpack.c.h.b16 %v893
    %v2653 = vunpack.c.l.b16 %v894
    %v2654 = vunpack.c.h.b16 %v894
    %v2655 = vunpack.c.l.b16 %v895
    %v2656 = vunpack.c.h.b16 %v895
    %v2657 = vunpack.c.l.b16 %v896
    %v2658 = vunpack.c.h.b16 %v896
    %v2659 = vunpack.c.l.b16 %v897
    %v2660 = vunpack.c.h.b16 %v897
    %v2661 = vunpack.c.l.b16 %v898
    %v2662 = vunpack.c.h.b16 %v898
    %v2663 = vunpack.c.l.b16 %v899
    %v2664 = vunpack.c.h.b16 %v899
    %v2665 = vunpack.c.l.b16 %v900
    %v2666 = vunpack.c.h.b16 %v900
    %v2667 = vunpack.c.l.b16 %v901
    %v2668 = vunpack.c.h.b16 %v901
    %v2669 = vunpack.c.l.b16 %v902
    %v2670 = vunpack.c.h.b16 %v902
    %v2671 = vunpack.c.l.b16 %v903
    %v2672 = vunpack.c.h.b16 %v903
    %v2673 = vunpack.c.l.b16 %v904
    %v2674 = vunpack.c.h.b16 %v904
    %v2675 = vunpack.c.l.b16 %v905
    %v2676 = vunpack.c.h.b16 %v905
    %v2677 = vunpack.c.l.b16 %v906
    %v2678 = vunpack.c.h.b16 %v906
    %v2679 = vunpack.c.l.b16 %v907
    %v2680 = vunpack.c.h.b16 %v907
    %v2681 = vunpack.c.l.b16 %v908
    %v2682 = vunpack.c.h.b16 %v908
    %v2683 = vunpack.c.l.b16 %v909
    %v2684 = vunpack.c.h.b16 %v909
    %v2685 = vunpack.c.l.b16 %v910
    %v2686 = vunpack.c.h.b16 %v910
    %v2687 = vunpack.c.l.b16 %v911
    %v2688 = vunpack.c.h.b16 %v911
    %v2689 = vunpack.c.l.b16 %v912
    %v2690 = vunpack.c.h.b16 %v912
    %v2691 = vunpack.c.l.b16 %v913
    %v2692 = vunpack.c.h.b16 %v913
    %v2693 = vunpack.c.l.b16 %v914
    %v2694 = vunpack.c.h.b16 %v914
    %v2695 = vunpack.c.l.b16 %v915
    %v2696 = vunpack.c.h.b16 %v915
    %v2697 = vunpack.c.l.b16 %v916
    %v2698 = vunpack.c.h.b16 %v916
    %v2699 = vunpack.c.l.b16 %v917
    %v2700 = vunpack.c.h.b16 %v917
    %v2701 = vunpack.c.l.b16 %v918
    %v2702 = vunpack.c.h.b16 %v918
    %v2703 = vunpack.c.l.b16 %v919
    %v2704 = vunpack.c.h.b16 %v919
    %v2705 = vunpack.c.l.b16 %v920
    %v2706 = vunpack.c.h.b16 %v920
    %v2707 = vunpack.c.l.b16 %v921
    %v2708 = vunpack.c.h.b16 %v921
    %v2709 = vunpack.c.l.b16 %v922
    %v2710 = vunpack.c.h.b16 %v922
    %v2711 = vunpack.c.l.b16 %v923
    %v2712 = vunpack.c.h.b16 %v923
    %v2713 = vunpack.c.l.b16 %v924
    %v2714 = vunpack.c.h.b16 %v924
    %v2715 = vunpack.c.l.b16 %v925
    %v2716 = vunpack.c.h.b16 %v925
    %v2717 = vunpack.c.l.b16 %v926
    %v2718 = vunpack.c.h.b16 %v926
    %v2719 = vunpack.c.l.b16 %v927
    %v2720 = vunpack.c.h.b16 %v927
    %v2721 = vunpack.c.l.b16 %v928
    %v2722 = vunpack.c.h.b16 %v928
    %v2723 = vunpack.c.l.b16 %v929
    %v2724 = vunpack.c.h.b16 %v929
    %v2725 = vunpack.c.l.b16 %v930
    %v2726 = vunpack.c.h.b16 %v930
    %v2727 = vunpack.c.l.b16 %v931
    %v2728 = vunpack.c.h.b16 %v931
    %v2729 = vunpack.c.l.b16 %v932
    %v2730 = vunpack.c.h.b16 %v932
    %v2731 = vunpack.c.l.b16 %v933
    %v2732 = vunpack.c.h.b16 %v933
    %v2733 = vunpack.c.l.b16 %v934
    %v2734 = vunpack.c.h.b16 %v934
    %v2735 = vunpack.c.l.b16 %v935
    %v2736 = vunpack.c.h.b16 %v935
    %v2737 = vunpack.c.l.b16 %v936
    %v2738 = vunpack.c.h.b16 %v936
    %v2739 = vunpack.c.l.b16 %v937
    %v2740 = vunpack.c.h.b16 %v937
    %v2741 = vunpack.c.l.b16 %v938
    %v2742 = vunpack.c.h.b16 %v938
    %v2743 = vunpack.c.l.b16 %v939
    %v2744 = vunpack.c.h.b16 %v939
    %v2745 = vunpack.c.l.b16 %v940
    %v2746 = vunpack.c.h.b16 %v940
    %v2747 = vunpack.c.l.b16 %v941
    %v2748 = vunpack.c.h.b16 %v941
    %v2749 = vunpack.c.l.b16 %v942
    %v2750 = vunpack.c.h.b16 %v942
    %v2751 = vunpack.c.l.b16 %v943
    %v2752 = vunpack.c.h.b16 %v943
    %v2753 = vunpack.c.l.b16 %v944
    %v2754 = vunpack.c.h.b16 %v944
    %v2755 = vunpack.c.l.b16 %v945
    %v2756 = vunpack.c.h.b16 %v945
    %v2757 = vunpack.c.l.b16 %v946
    %v2758 = vunpack.c.h.b16 %v946
    %v2759 = vunpack.c.l.b16 %v947
    %v2760 = vunpack.c.h.b16 %v947
    %v2761 = vunpack.c.l.b16 %v948
    %v2762 = vunpack.c.h.b16 %v948
    %v2763 = vunpack.c.l.b16 %v949
    %v2764 = vunpack.c.h.b16 %v949
    %v2765 = vunpack.c.l.b16 %v950
    %v2766 = vunpack.c.h.b16 %v950
    %v2767 = vunpack.c.l.b16 %v951
    %v2768 = vunpack.c.h.b16 %v951
    %v2769 = vunpack.c.l.b16 %v952
    %v2770 = vunpack.c.h.b16 %v952
    %v2771 = vunpack.c.l.b16 %v953
    %v2772 = vunpack.c.h.b16 %v953
    %v2773 = vunpack.c.l.b16 %v954
    %v2774 = vunpack.c.h.b16 %v954
    %v2775 = vunpack.c.l.b16 %v955
    %v2776 = vunpack.c.h.b16 %v955
    %v2777 = vunpack.c.l.b16 %v956
    %v2778 = vunpack.c.h.b16 %v956
    %v2779 = vunpack.c.l.b16 %v957
    %v2780 = vunpack.c.h.b16 %v957
    %v2781 = vunpack.c.l.b16 %v958
    %v2782 = vunpack.c.h.b16 %v958
    %v2783 = vunpack.c.l.b16 %v959
    %v2784 = vunpack.c.h.b16 %v959
    %v2785 = vunpack.c.l.b16 %v960
    %v2786 = vunpack.c.h.b16 %v960
    %v2787 = vunpack.c.l.b16 %v961
    %v2788 = vunpack.c.h.b16 %v961
    %v2789 = vunpack.c.l.b16 %v962
    %v2790 = vunpack.c.h.b16 %v962
    %v2791 = vunpack.c.l.b16 %v963
    %v2792 = vunpack.c.h.b16 %v963
    %v2793 = vunpack.c.l.b16 %v964
    %v2794 = vunpack.c.h.b16 %v964
    %v2795 = vunpack.c.l.b16 %v965
    %v2796 = vunpack.c.h.b16 %v965
    %v2797 = vunpack.c.l.b16 %v966
    %v2798 = vunpack.c.h.b16 %v966
    %v2799 = vunpack.c.l.b16 %v967
    %v2800 = vunpack.c.h.b16 %v967
    %v2801 = vunpack.c.l.b16 %v968
    %v2802 = vunpack.c.h.b16 %v968
    %v2803 = vunpack.c.l.b16 %v969
    %v2804 = vunpack.c.h.b16 %v969
    %v2805 = vunpack.c.l.b16 %v970
    %v2806 = vunpack.c.h.b16 %v970
    %v2807 = vunpack.c.l.b16 %v971
    %v2808 = vunpack.c.h.b16 %v971
    %v2809 = vunpack.c.l.b16 %v972
    %v2810 = vunpack.c.h.b16 %v972
    %v2811 = vunpack.c.l.b16 %v973
    %v2812 = vunpack.c.h.b16 %v973
    %v2813 = vunpack.c.l.b16 %v974
    %v2814 = vunpack.c.h.b16 %v974
    %v2815 = vunpack.c.l.b16 %v975
    %v2816 = vunpack.c.h.b16 %v975
    %v2817 = vunpack.c.l.b16 %v976
    %v2818 = vunpack.c.h.b16 %v976
    %v2819 = vunpack.c.l.b16 %v977
    %v2820 = vunpack.c.h.b16 %v977
    %v2821 = vunpack.c.l.b16 %v978
    %v2822 = vunpack.c.h.b16 %v978
    %v2823 = vunpack.c.l.b16 %v979
    %v2824 = vunpack.c.h.b16 %v979
    %v2825 = vunpack.c.l.b16 %v980
    %v2826 = vunpack.c.h.b16 %v980
    %v2827 = vunpack.c.l.b16 %v981
    %v2828 = vunpack.c.h.b16 %v981
    %v2829 = vunpack.c.l.b16 %v982
    %v2830 = vunpack.c.h.b16 %v982
    %v2831 = vunpack.c.l.b16 %v983
    %v2832 = vunpack.c.h.b16 %v983
    %v2833 = vunpack.c.l.b16 %v984
    %v2834 = vunpack.c.h.b16 %v984
    %v2835 = vunpack.c.l.b16 %v985
    %v2836 = vunpack.c.h.b16 %v985
    %v2837 = vunpack.c.l.b16 %v986
    %v2838 = vunpack.c.h.b16 %v986
    %v2839 = vunpack.c.l.b16 %v987
    %v2840 = vunpack.c.h.b16 %v987
    %v2841 = vunpack.c.l.b16 %v988
    %v2842 = vunpack.c.h.b16 %v988
    %v2843 = vunpack.c.l.b16 %v989
    %v2844 = vunpack.c.h.b16 %v989
    %v2845 = vunpack.c.l.b16 %v990
    %v2846 = vunpack.c.h.b16 %v990
    %v2847 = vunpack.c.l.b16 %v991
    %v2848 = vunpack.c.h.b16 %v991
    %v2849 = vunpack.c.l.b16 %v992
    %v2850 = vunpack.c.h.b16 %v992
    %v2851 = vunpack.c.l.b16 %v993
    %v2852 = vunpack.c.h.b16 %v993
    %v2853 = vunpack.c.l.b16 %v994
    %v2854 = vunpack.c.h.b16 %v994
    %v2855 = vunpack.c.l.b16 %v995
    %v2856 = vunpack.c.h.b16 %v995
    %v2857 = vunpack.c.l.b16 %v996
    %v2858 = vunpack.c.h.b16 %v996
    %v2859 = vunpack.c.l.b16 %v997
    %v2860 = vunpack.c.h.b16 %v997
    %v2861 = vunpack.c.l.b16 %v998
    %v2862 = vunpack.c.h.b16 %v998
    %v2863 = vunpack.c.l.b16 %v999
    %v2864 = vunpack.c.h.b16 %v999
    %v2865 = vunpack.c.l.b16 %v1000
    %v2866 = vunpack.c.h.b16 %v1000
    %v2867 = vunpack.c.l.b16 %v1001
    %v2868 = vunpack.c.h.b16 %v1001
    %v2869 = vunpack.c.l.b16 %v1002
    %v2870 = vunpack.c.h.b16 %v1002
    %v2871 = vunpack.c.l.b16 %v1003
    %v2872 = vunpack.c.h.b16 %v1003
    %v2873 = vunpack.c.l.b16 %v1004
    %v2874 = vunpack.c.h.b16 %v1004
    %v2875 = vunpack.c.l.b16 %v1005
    %v2876 = vunpack.c.h.b16 %v1005
    %v2877 = vunpack.c.l.b16 %v1006
    %v2878 = vunpack.c.h.b16 %v1006
    %v2879 = vunpack.c.l.b16 %v1007
    %v2880 = vunpack.c.h.b16 %v1007
    %v2881 = vunpack.c.l.b16 %v1008
    %v2882 = vunpack.c.h.b16 %v1008
    %v2883 = vunpack.c.l.b16 %v1009
    %v2884 = vunpack.c.h.b16 %v1009
    %v2885 = vunpack.c.l.b16 %v1010
    %v2886 = vunpack.c.h.b16 %v1010
    %v2887 = vunpack.c.l.b16 %v1011
    %v2888 = vunpack.c.h.b16 %v1011
    %v2889 = vunpack.c.l.b16 %v1012
    %v2890 = vunpack.c.h.b16 %v1012
    %v2891 = vunpack.c.l.b16 %v1013
    %v2892 = vunpack.c.h.b16 %v1013
    %v2893 = vunpack.c.l.b16 %v1014
    %v2894 = vunpack.c.h.b16 %v1014
    %v2895 = vunpack.c.l.b16 %v1015
    %v2896 = vunpack.c.h.b16 %v1015
    %v2897 = vunpack.c.l.b16 %v1016
    %v2898 = vunpack.c.h.b16 %v1016
    %v2899 = vunpack.c.l.b16 %v1017
    %v2900 = vunpack.c.h.b16 %v1017
    %v2901 = vunpack.c.l.b16 %v1018
    %v2902 = vunpack.c.h.b16 %v1018
    %v2903 = vunpack.c.l.b16 %v1019
    %v2904 = vunpack.c.h.b16 %v1019
    %v2905 = vunpack.c.l.b16 %v1020
    %v2906 = vunpack.c.h.b16 %v1020
    %v2907 = vunpack.c.l.b16 %v1021
    %v2908 = vunpack.c.h.b16 %v1021
    %v2909 = vunpack.c.l.b16 %v1022
    %v2910 = vunpack.c.h.b16 %v1022
    %v2911 = vunpack.c.l.b16 %v1023
    %v2912 = vunpack.c.h.b16 %v1023
    %v2913 = vunpack.c.l.b16 %v1024
    %v2914 = vunpack.c.h.b16 %v1024
    %v2915 = vunpack.c.l.b16 %v1025
    %v2916 = vunpack.c.h.b16 %v1025
    %v2917 = vunpack.c.l.b16 %v1026
    %v2918 = vunpack.c.h.b16 %v1026
    %v2919 = vunpack.c.l.b16 %v1027
    %v2920 = vunpack.c.h.b16 %v1027
    %v2921 = vunpack.c.l.b16 %v1028
    %v2922 = vunpack.c.h.b16 %v1028
    %v2923 = vunpack.c.l.b16 %v1029
    %v2924 = vunpack.c.h.b16 %v1029
    %v2925 = vunpack.c.l.b16 %v1030
    %v2926 = vunpack.c.h.b16 %v1030
    %v2927 = vunpack.c.l.b16 %v1031
    %v2928 = vunpack.c.h.b16 %v1031
    %v2929 = vunpack.c.l.b16 %v1032
    %v2930 = vunpack.c.h.b16 %v1032
    %v2931 = vunpack.c.l.b16 %v1033
    %v2932 = vunpack.c.h.b16 %v1033
    %v2933 = vunpack.c.l.b16 %v1034
    %v2934 = vunpack.c.h.b16 %v1034
    %v2935 = vunpack.c.l.b16 %v1035
    %v2936 = vunpack.c.h.b16 %v1035
    %v2937 = vunpack.c.l.b16 %v1036
    %v2938 = vunpack.c.h.b16 %v1036
    %v2939 = vunpack.c.l.b16 %v1037
    %v2940 = vunpack.c.h.b16 %v1037
    %v2941 = vunpack.c.l.b16 %v1038
    %v2942 = vunpack.c.h.b16 %v1038
    %v2943 = vunpack.c.l.b16 %v1039
    %v2944 = vunpack.c.h.b16 %v1039
    %v2945 = vunpack.c.l.b16 %v1040
    %v2946 = vunpack.c.h.b16 %v1040
    %v2947 = vunpack.c.l.b16 %v1041
    %v2948 = vunpack.c.h.b16 %v1041
    %v2949 = vunpack.c.l.b16 %v1042
    %v2950 = vunpack.c.h.b16 %v1042
    %v2951 = vunpack.c.l.b16 %v1043
    %v2952 = vunpack.c.h.b16 %v1043
    %v2953 = vunpack.c.l.b16 %v1044
    %v2954 = vunpack.c.h.b16 %v1044
    %v2955 = vunpack.c.l.b16 %v1045
    %v2956 = vunpack.c.h.b16 %v1045
    %v2957 = vunpack.c.l.b16 %v1046
    %v2958 = vunpack.c.h.b16 %v1046
    %v2959 = vunpack.c.l.b16 %v1047
    %v2960 = vunpack.c.h.b16 %v1047
    %v2961 = vunpack.c.l.b16 %v1048
    %v2962 = vunpack.c.h.b16 %v1048
    %v2963 = vunpack.c.l.b16 %v1049
    %v2964 = vunpack.c.h.b16 %v1049
    %v2965 = vunpack.c.l.b16 %v1050
    %v2966 = vunpack.c.h.b16 %v1050
    %v2967 = vunpack.c.l.b16 %v1051
    %v2968 = vunpack.c.h.b16 %v1051
    %v2969 = vunpack.c.l.b16 %v1052
    %v2970 = vunpack.c.h.b16 %v1052
    %v2971 = vunpack.c.l.b16 %v1053
    %v2972 = vunpack.c.h.b16 %v1053
    %v2973 = vunpack.c.l.b16 %v1054
    %v2974 = vunpack.c.h.b16 %v1054
    %v2975 = vunpack.c.l.b16 %v1055
    %v2976 = vunpack.c.h.b16 %v1055
    %v2977 = vunpack.c.l.b16 %v1056
    %v2978 = vunpack.c.h.b16 %v1056
    %v2979 = vunpack.c.l.b16 %v1057
    %v2980 = vunpack.c.h.b16 %v1057
    %v2981 = vunpack.c.l.b16 %v1058
    %v2982 = vunpack.c.h.b16 %v1058
    %v2983 = vunpack.c.l.b16 %v1059
    %v2984 = vunpack.c.h.b16 %v1059
    %v2985 = vunpack.c.l.b16 %v1060
    %v2986 = vunpack.c.h.b16 %v1060
    %v2987 = vunpack.c.l.b16 %v1061
    %v2988 = vunpack.c.h.b16 %v1061
    %v2989 = vunpack.c.l.b16 %v1062
    %v2990 = vunpack.c.h.b16 %v1062
    %v2991 = vunpack.c.l.b16 %v1063
    %v2992 = vunpack.c.h.b16 %v1063
    %v2993 = vunpack.c.l.b16 %v1064
    %v2994 = vunpack.c.h.b16 %v1064
    %v2995 = vunpack.c.l.b16 %v1065
    %v2996 = vunpack.c.h.b16 %v1065
    %v2997 = vunpack.c.l.b16 %v1066
    %v2998 = vunpack.c.h.b16 %v1066
    %v2999 = vunpack.c.l.b16 %v1067
    %v3000 = vunpack.c.h.b16 %v1067
    %v3001 = vunpack.c.l.b16 %v1068
    %v3002 = vunpack.c.h.b16 %v1068
    %v3003 = vunpack.c.l.b16 %v1069
    %v3004 = vunpack.c.h.b16 %v1069
    %v3005 = vunpack.c.l.b16 %v1070
    %v3006 = vunpack.c.h.b16 %v1070
    %v3007 = vunpack.c.l.b16 %v1071
    %v3008 = vunpack.c.h.b16 %v1071
    %v3009 = vunpack.c.l.b16 %v1072
    %v3010 = vunpack.c.h.b16 %v1072
    %v3011 = vunpack.c.l.b16 %v1073
    %v3012 = vunpack.c.h.b16 %v1073
    %v3013 = vunpack.c.l.b16 %v1074
    %v3014 = vunpack.c.h.b16 %v1074
    %v3015 = vunpack.c.l.b16 %v1075
    %v3016 = vunpack.c.h.b16 %v1075
    %v3017 = vunpack.c.l.b16 %v1076
    %v3018 = vunpack.c.h.b16 %v1076
    %v3019 = vunpack.c.l.b16 %v1077
    %v3020 = vunpack.c.h.b16 %v1077
    %v3021 = vunpack.c.l.b16 %v1078
    %v3022 = vunpack.c.h.b16 %v1078
    %v3023 = vunpack.c.l.b16 %v1079
    %v3024 = vunpack.c.h.b16 %v1079
    %v3025 = vunpack.c.l.b16 %v1080
    %v3026 = vunpack.c.h.b16 %v1080
    %v3027 = vunpack.c.l.b16 %v1081
    %v3028 = vunpack.c.h.b16 %v1081
    %v3029 = vunpack.c.l.b16 %v1082
    %v3030 = vunpack.c.h.b16 %v1082
    %v3031 = vunpack.c.l.b16 %v1083
    %v3032 = vunpack.c.h.b16 %v1083
    %v3033 = vunpack.c.l.b16 %v1084
    %v3034 = vunpack.c.h.b16 %v1084
    %v3035 = vunpack.c.l.b16 %v1085
    %v3036 = vunpack.c.h.b16 %v1085
    %v3037 = vunpack.c.l.b16 %v1086
    %v3038 = vunpack.c.h.b16 %v1086
    %v3039 = vunpack.c.l.b16 %v1087
    %v3040 = vunpack.c.h.b16 %v1087
    %v3041 = vunpack.c.l.b16 %v1088
    %v3042 = vunpack.c.h.b16 %v1088
    %v3043 = vunpack.c.l.b16 %v1089
    %v3044 = vunpack.c.h.b16 %v1089
    %v3045 = vunpack.c.l.b16 %v1090
    %v3046 = vunpack.c.h.b16 %v1090
    %v3047 = vunpack.c.l.b16 %v1091
    %v3048 = vunpack.c.h.b16 %v1091
    %v3049 = vunpack.c.l.b16 %v1092
    %v3050 = vunpack.c.h.b16 %v1092
    %v3051 = vunpack.c.l.b16 %v1093
    %v3052 = vunpack.c.h.b16 %v1093
    %v3053 = vunpack.c.l.b16 %v1094
    %v3054 = vunpack.c.h.b16 %v1094
    %v3055 = vunpack.c.l.b16 %v1095
    %v3056 = vunpack.c.h.b16 %v1095
    %v3057 = vunpack.c.l.b16 %v1096
    %v3058 = vunpack.c.h.b16 %v1096
    %v3059 = vunpack.c.l.b16 %v1097
    %v3060 = vunpack.c.h.b16 %v1097
    %v3061 = vunpack.c.l.b16 %v1098
    %v3062 = vunpack.c.h.b16 %v1098
    %v3063 = vunpack.c.l.b16 %v1099
    %v3064 = vunpack.c.h.b16 %v1099
    %v3065 = vunpack.c.l.b16 %v1100
    %v3066 = vunpack.c.h.b16 %v1100
    %v3067 = vunpack.c.l.b16 %v1101
    %v3068 = vunpack.c.h.b16 %v1101
    %v3069 = vunpack.c.l.b16 %v1102
    %v3070 = vunpack.c.h.b16 %v1102
    %v3071 = vunpack.c.l.b16 %v1103
    %v3072 = vunpack.c.h.b16 %v1103
    %v3073 = vunpack.c.l.b16 %v1104
    %v3074 = vunpack.c.h.b16 %v1104
    %v3075 = vunpack.c.l.b16 %v1105
    %v3076 = vunpack.c.h.b16 %v1105
    %v3077 = vunpack.c.l.b16 %v1106
    %v3078 = vunpack.c.h.b16 %v1106
    %v3079 = vunpack.c.l.b16 %v1107
    %v3080 = vunpack.c.h.b16 %v1107
    %v3081 = vunpack.c.l.b16 %v1108
    %v3082 = vunpack.c.h.b16 %v1108
    %v3083 = vunpack.c.l.b16 %v1109
    %v3084 = vunpack.c.h.b16 %v1109
    %v3085 = vunpack.c.l.b16 %v1110
    %v3086 = vunpack.c.h.b16 %v1110
    %v3087 = vunpack.c.l.b16 %v1111
    %v3088 = vunpack.c.h.b16 %v1111
    %v3089 = vunpack.c.l.b16 %v1112
    %v3090 = vunpack.c.h.b16 %v1112
    %v3091 = vunpack.c.l.b16 %v1113
    %v3092 = vunpack.c.h.b16 %v1113
    %v3093 = vunpack.c.l.b16 %v1114
    %v3094 = vunpack.c.h.b16 %v1114
    %v3095 = vunpack.c.l.b16 %v1115
    %v3096 = vunpack.c.h.b16 %v1115
    %v3097 = vunpack.c.l.b16 %v1116
    %v3098 = vunpack.c.h.b16 %v1116
    %v3099 = vunpack.c.l.b16 %v1117
    %v3100 = vunpack.c.h.b16 %v1117
    %v3101 = vunpack.c.l.b16 %v1118
    %v3102 = vunpack.c.h.b16 %v1118
    %v3103 = vunpack.c.l.b16 %v1119
    %v3104 = vunpack.c.h.b16 %v1119
    %v3105 = vunpack.c.l.b16 %v1120
    %v3106 = vunpack.c.h.b16 %v1120
    %v3107 = vunpack.c.l.b16 %v1121
    %v3108 = vunpack.c.h.b16 %v1121
    %v3109 = vunpack.c.l.b16 %v1122
    %v3110 = vunpack.c.h.b16 %v1122
    %v3111 = vunpack.c.l.b16 %v1123
    %v3112 = vunpack.c.h.b16 %v1123
    %v3113 = vunpack.c.l.b16 %v1124
    %v3114 = vunpack.c.h.b16 %v1124
    %v3115 = vunpack.c.l.b16 %v1125
    %v3116 = vunpack.c.h.b16 %v1125
    %v3117 = vunpack.c.l.b16 %v1126
    %v3118 = vunpack.c.h.b16 %v1126
    %v3119 = vunpack.c.l.b16 %v1127
    %v3120 = vunpack.c.h.b16 %v1127
    %v3121 = vunpack.c.l.b16 %v1128
    %v3122 = vunpack.c.h.b16 %v1128
    %v3123 = vunpack.c.l.b16 %v1129
    %v3124 = vunpack.c.h.b16 %v1129
    %v3125 = vunpack.c.l.b16 %v1130
    %v3126 = vunpack.c.h.b16 %v1130
    %v3127 = vunpack.c.l.b16 %v1131
    %v3128 = vunpack.c.h.b16 %v1131
    %v3129 = vunpack.c.l.b16 %v1132
    %v3130 = vunpack.c.h.b16 %v1132
    %v3131 = vunpack.c.l.b16 %v1133
    %v3132 = vunpack.c.h.b16 %v1133
    %v3133 = vunpack.c.l.b16 %v1134
    %v3134 = vunpack.c.h.b16 %v1134
    %v3135 = vunpack.c.l.b16 %v1135
    %v3136 = vunpack.c.h.b16 %v1135
    %v3137 = vunpack.c.l.b16 %v1136
    %v3138 = vunpack.c.h.b16 %v1136
    %v3139 = vunpack.c.l.b16 %v1137
    %v3140 = vunpack.c.h.b16 %v1137
    %v3141 = vunpack.c.l.b16 %v1138
    %v3142 = vunpack.c.h.b16 %v1138
    %v3143 = vunpack.c.l.b16 %v1139
    %v3144 = vunpack.c.h.b16 %v1139
    %v3145 = vunpack.c.l.b16 %v1140
    %v3146 = vunpack.c.h.b16 %v1140
    %v3147 = vunpack.c.l.b16 %v1141
    %v3148 = vunpack.c.h.b16 %v1141
    %v3149 = vunpack.c.l.b16 %v1142
    %v3150 = vunpack.c.h.b16 %v1142
    %v3151 = vunpack.c.l.b16 %v1143
    %v3152 = vunpack.c.h.b16 %v1143
    %v3153 = vunpack.c.l.b16 %v1144
    %v3154 = vunpack.c.h.b16 %v1144
    %v3155 = vunpack.c.l.b16 %v1145
    %v3156 = vunpack.c.h.b16 %v1145
    %v3157 = vunpack.c.l.b16 %v1146
    %v3158 = vunpack.c.h.b16 %v1146
    %v3159 = vunpack.c.l.b16 %v1147
    %v3160 = vunpack.c.h.b16 %v1147
    %v3161 = vunpack.c.l.b16 %v1148
    %v3162 = vunpack.c.h.b16 %v1148
    %v3163 = vunpack.c.l.b16 %v1149
    %v3164 = vunpack.c.h.b16 %v1149
    %v3165 = vunpack.c.l.b16 %v1150
    %v3166 = vunpack.c.h.b16 %v1150
    %v3167 = vunpack.c.l.b16 %v1151
    %v3168 = vunpack.c.h.b16 %v1151
    %v3169 = vunpack.c.l.b16 %v1152
    %v3170 = vunpack.c.h.b16 %v1152
    %v3171 = vunpack.c.l.b16 %v1153
    %v3172 = vunpack.c.h.b16 %v1153
    %v3173 = vunpack.c.l.b16 %v1154
    %v3174 = vunpack.c.h.b16 %v1154
    %v3175 = vunpack.c.l.b16 %v1155
    %v3176 = vunpack.c.h.b16 %v1155
    %v3177 = vunpack.c.l.b16 %v1156
    %v3178 = vunpack.c.h.b16 %v1156
    %v3179 = vunpack.c.l.b16 %v1157
    %v3180 = vunpack.c.h.b16 %v1157
    %v3181 = vunpack.c.l.b16 %v1158
    %v3182 = vunpack.c.h.b16 %v1158
    %v3183 = vunpack.c.l.b16 %v1159
    %v3184 = vunpack.c.h.b16 %v1159
    %v3185 = vunpack.c.l.b16 %v1160
    %v3186 = vunpack.c.h.b16 %v1160
    %v3187 = vunpack.c.l.b16 %v1161
    %v3188 = vunpack.c.h.b16 %v1161
    %v3189 = vunpack.c.l.b16 %v1162
    %v3190 = vunpack.c.h.b16 %v1162
    %v3191 = vunpack.c.l.b16 %v1163
    %v3192 = vunpack.c.h.b16 %v1163
    %v3193 = vunpack.c.l.b16 %v1164
    %v3194 = vunpack.c.h.b16 %v1164
    %v3195 = vunpack.c.l.b16 %v1165
    %v3196 = vunpack.c.h.b16 %v1165
    %v3197 = vunpack.c.l.b16 %v1166
    %v3198 = vunpack.c.h.b16 %v1166
    %v3199 = vunpack.c.l.b16 %v1167
    %v3200 = vunpack.c.h.b16 %v1167
    %v3201 = vunpack.c.l.b16 %v1168
    %v3202 = vunpack.c.h.b16 %v1168
    %v3203 = vunpack.c.l.b16 %v1169
    %v3204 = vunpack.c.h.b16 %v1169
    %v3205 = vunpack.c.l.b16 %v1170
    %v3206 = vunpack.c.h.b16 %v1170
    %v3207 = vunpack.c.l.b16 %v1171
    %v3208 = vunpack.c.h.b16 %v1171
    %v3209 = vunpack.c.l.b16 %v1172
    %v3210 = vunpack.c.h.b16 %v1172
    %v3211 = vunpack.c.l.b16 %v1173
    %v3212 = vunpack.c.h.b16 %v1173
    %v3213 = vunpack.c.l.b16 %v1174
    %v3214 = vunpack.c.h.b16 %v1174
    %v3215 = vunpack.c.l.b16 %v1175
    %v3216 = vunpack.c.h.b16 %v1175
    %v3217 = vunpack.c.l.b16 %v1176
    %v3218 = vunpack.c.h.b16 %v1176
    %v3219 = vunpack.c.l.b16 %v1177
    %v3220 = vunpack.c.h.b16 %v1177
    %v3221 = vunpack.c.l.b16 %v1178
    %v3222 = vunpack.c.h.b16 %v1178
    %v3223 = vunpack.c.l.b16 %v1179
    %v3224 = vunpack.c.h.b16 %v1179
    %v3225 = vunpack.c.l.b16 %v1180
    %v3226 = vunpack.c.h.b16 %v1180
    %v3227 = vunpack.c.l.b16 %v1181
    %v3228 = vunpack.c.h.b16 %v1181
    %v3229 = vunpack.c.l.b16 %v1182
    %v3230 = vunpack.c.h.b16 %v1182
    %v3231 = vunpack.c.l.b16 %v1183
    %v3232 = vunpack.c.h.b16 %v1183
    %v3233 = vunpack.c.l.b16 %v1184
    %v3234 = vunpack.c.h.b16 %v1184
    %v3235 = vunpack.c.l.b16 %v1185
    %v3236 = vunpack.c.h.b16 %v1185
    %v3237 = vunpack.c.l.b16 %v1186
    %v3238 = vunpack.c.h.b16 %v1186
    %v3239 = vunpack.c.l.b16 %v1187
    %v3240 = vunpack.c.h.b16 %v1187
    %v3241 = vunpack.c.l.b16 %v1188
    %v3242 = vunpack.c.h.b16 %v1188
    %v3243 = vunpack.c.l.b16 %v1189
    %v3244 = vunpack.c.h.b16 %v1189
    %v3245 = vunpack.c.l.b16 %v1190
    %v3246 = vunpack.c.h.b16 %v1190
    %v3247 = vunpack.c.l.b16 %v1191
    %v3248 = vunpack.c.h.b16 %v1191
    %v3249 = vunpack.c.l.b16 %v1192
    %v3250 = vunpack.c.h.b16 %v1192
    %v3251 = vunpack.c.l.b16 %v1193
    %v3252 = vunpack.c.h.b16 %v1193
    %v3253 = vunpack.c.l.b16 %v1194
    %v3254 = vunpack.c.h.b16 %v1194
    %v3255 = vunpack.c.l.b16 %v1195
    %v3256 = vunpack.c.h.b16 %v1195
    %v3257 = vunpack.c.l.b16 %v1196
    %v3258 = vunpack.c.h.b16 %v1196
    %v3259 = vunpack.c.l.b16 %v1197
    %v3260 = vunpack.c.h.b16 %v1197
    %v3261 = vunpack.c.l.b16 %v1198
    %v3262 = vunpack.c.h.b16 %v1198
    %v3263 = vunpack.c.l.b16 %v1199
    %v3264 = vunpack.c.h.b16 %v1199
    %v3265 = vunpack.c.l.b16 %v1200
    %v3266 = vunpack.c.h.b16 %v1200
    %v3267 = vunpack.c.l.b16 %v1201
    %v3268 = vunpack.c.h.b16 %v1201
    %v3269 = vunpack.c.l.b16 %v1202
    %v3270 = vunpack.c.h.b16 %v1202
    %v3271 = vunpack.c.l.b16 %v1203
    %v3272 = vunpack.c.h.b16 %v1203
    %v3273 = vunpack.c.l.b16 %v1204
    %v3274 = vunpack.c.h.b16 %v1204
    %v3275 = vunpack.c.l.b16 %v1205
    %v3276 = vunpack.c.h.b16 %v1205
    %v3277 = vunpack.c.l.b16 %v1206
    %v3278 = vunpack.c.h.b16 %v1206
    %v3279 = vunpack.c.l.b16 %v1207
    %v3280 = vunpack.c.h.b16 %v1207
    %v3281 = vunpack.c.l.b16 %v1208
    %v3282 = vunpack.c.h.b16 %v1208
    %v3283 = vunpack.c.l.b16 %v1209
    %v3284 = vunpack.c.h.b16 %v1209
    %v3285 = vunpack.c.l.b16 %v1210
    %v3286 = vunpack.c.h.b16 %v1210
    %v3287 = vunpack.c.l.b16 %v1211
    %v3288 = vunpack.c.h.b16 %v1211
    %v3289 = vunpack.c.l.b16 %v1212
    %v3290 = vunpack.c.h.b16 %v1212
    %v3291 = vunpack.c.l.b16 %v1213
    %v3292 = vunpack.c.h.b16 %v1213
    %v3293 = vunpack.c.l.b16 %v1214
    %v3294 = vunpack.c.h.b16 %v1214
    %v3295 = vunpack.c.l.b16 %v1215
    %v3296 = vunpack.c.h.b16 %v1215
    %v3297 = vunpack.c.l.b16 %v1216
    %v3298 = vunpack.c.h.b16 %v1216
    %v3299 = vunpack.c.l.b16 %v1217
    %v3300 = vunpack.c.h.b16 %v1217
    %v3301 = vunpack.c.l.b16 %v1218
    %v3302 = vunpack.c.h.b16 %v1218
    %v3303 = vunpack.c.l.b16 %v1219
    %v3304 = vunpack.c.h.b16 %v1219
    %v3305 = vunpack.c.l.b16 %v1220
    %v3306 = vunpack.c.h.b16 %v1220
    %v3307 = vunpack.c.l.b16 %v1221
    %v3308 = vunpack.c.h.b16 %v1221
    %v3309 = vunpack.c.l.b16 %v1222
    %v3310 = vunpack.c.h.b16 %v1222
    %v3311 = vunpack.c.l.b16 %v1223
    %v3312 = vunpack.c.h.b16 %v1223
    %v3313 = vunpack.c.l.b16 %v1224
    %v3314 = vunpack.c.h.b16 %v1224
    %v3315 = vunpack.c.l.b16 %v1225
    %v3316 = vunpack.c.h.b16 %v1225
    %v3317 = vunpack.c.l.b16 %v1226
    %v3318 = vunpack.c.h.b16 %v1226
    %v3319 = vunpack.c.l.b16 %v1227
    %v3320 = vunpack.c.h.b16 %v1227
    %v3321 = vunpack.c.l.b16 %v1228
    %v3322 = vunpack.c.h.b16 %v1228
    %v3323 = vunpack.c.l.b16 %v1229
    %v3324 = vunpack.c.h.b16 %v1229
    %v3325 = vunpack.c.l.b16 %v1230
    %v3326 = vunpack.c.h.b16 %v1230
    %v3327 = vunpack.c.l.b16 %v1231
    %v3328 = vunpack.c.h.b16 %v1231
    %v3329 = vunpack.c.l.b16 %v1232
    %v3330 = vunpack.c.h.b16 %v1232
    %v3331 = vunpack.c.l.b16 %v1233
    %v3332 = vunpack.c.h.b16 %v1233
    %v3333 = vunpack.c.l.b16 %v1234
    %v3334 = vunpack.c.h.b16 %v1234
    %v3335 = vunpack.c.l.b16 %v1235
    %v3336 = vunpack.c.h.b16 %v1235
    %v3337 = vunpack.c.l.b16 %v1236
    %v3338 = vunpack.c.h.b16 %v1236
    %v3339 = vunpack.c.l.b16 %v1237
    %v3340 = vunpack.c.h.b16 %v1237
    %v3341 = vunpack.c.l.b16 %v1238
    %v3342 = vunpack.c.h.b16 %v1238
    %v3343 = vunpack.c.l.b16 %v1239
    %v3344 = vunpack.c.h.b16 %v1239
    %v3345 = vunpack.c.l.b16 %v1240
    %v3346 = vunpack.c.h.b16 %v1240
    %v3347 = vunpack.c.l.b16 %v1241
    %v3348 = vunpack.c.h.b16 %v1241
    %v3349 = vunpack.c.l.b16 %v1242
    %v3350 = vunpack.c.h.b16 %v1242
    %v3351 = vunpack.c.l.b16 %v1243
    %v3352 = vunpack.c.h.b16 %v1243
    %v3353 = vunpack.c.l.b16 %v1244
    %v3354 = vunpack.c.h.b16 %v1244
    %v3355 = vunpack.c.l.b16 %v1245
    %v3356 = vunpack.c.h.b16 %v1245
    %v3357 = vunpack.c.l.b16 %v1246
    %v3358 = vunpack.c.h.b16 %v1246
    %v3359 = vunpack.c.l.b16 %v1247
    %v3360 = vunpack.c.h.b16 %v1247
    %v3361 = vunpack.c.l.b16 %v1248
    %v3362 = vunpack.c.h.b16 %v1248
    %v3363 = vunpack.c.l.b16 %v1249
    %v3364 = vunpack.c.h.b16 %v1249
    %v3365 = vunpack.c.l.b16 %v1250
    %v3366 = vunpack.c.h.b16 %v1250
    %v3367 = vunpack.c.l.b16 %v1251
    %v3368 = vunpack.c.h.b16 %v1251
    %v3369 = vunpack.c.l.b16 %v1252
    %v3370 = vunpack.c.h.b16 %v1252
    %v3371 = vunpack.c.l.b16 %v1253
    %v3372 = vunpack.c.h.b16 %v1253
    %v3373 = vunpack.c.l.b16 %v1254
    %v3374 = vunpack.c.h.b16 %v1254
    %v3375 = vunpack.c.l.b16 %v1255
    %v3376 = vunpack.c.h.b16 %v1255
    %v3377 = vunpack.c.l.b16 %v1256
    %v3378 = vunpack.c.h.b16 %v1256
    %v3379 = vunpack.c.l.b16 %v1257
    %v3380 = vunpack.c.h.b16 %v1257
    %v3381 = vunpack.c.l.b16 %v1258
    %v3382 = vunpack.c.h.b16 %v1258
    %v3383 = vunpack.c.l.b16 %v1259
    %v3384 = vunpack.c.h.b16 %v1259
    %v3385 = vunpack.c.l.b16 %v1260
    %v3386 = vunpack.c.h.b16 %v1260
    %v3387 = vunpack.c.l.b16 %v1261
    %v3388 = vunpack.c.h.b16 %v1261
    %v3389 = vunpack.c.l.b16 %v1262
    %v3390 = vunpack.c.h.b16 %v1262
    %v3391 = vunpack.c.l.b16 %v1263
    %v3392 = vunpack.c.h.b16 %v1263
    %v3393 = vunpack.c.l.b16 %v1264
    %v3394 = vunpack.c.h.b16 %v1264
    %v3395 = vunpack.c.l.b16 %v1265
    %v3396 = vunpack.c.h.b16 %v1265
    %v3397 = vunpack.c.l.b16 %v1266
    %v3398 = vunpack.c.h.b16 %v1266
    %v3399 = vunpack.c.l.b16 %v1267
    %v3400 = vunpack.c.h.b16 %v1267
    %v3401 = vunpack.c.l.b16 %v1268
    %v3402 = vunpack.c.h.b16 %v1268
    %v3403 = vunpack.c.l.b16 %v1269
    %v3404 = vunpack.c.h.b16 %v1269
    %v3405 = vunpack.c.l.b16 %v1270
    %v3406 = vunpack.c.h.b16 %v1270
    %v3407 = vunpack.c.l.b16 %v1271
    %v3408 = vunpack.c.h.b16 %v1271
    %v3409 = vunpack.c.l.b16 %v1272
    %v3410 = vunpack.c.h.b16 %v1272
    %v3411 = vunpack.c.l.b16 %v1273
    %v3412 = vunpack.c.h.b16 %v1273
    %v3413 = vunpack.c.l.b16 %v1274
    %v3414 = vunpack.c.h.b16 %v1274
    %v3415 = vunpack.c.l.b16 %v1275
    %v3416 = vunpack.c.h.b16 %v1275
    %v3417 = vunpack.c.l.b16 %v1276
    %v3418 = vunpack.c.h.b16 %v1276
    %v3419 = vunpack.c.l.b16 %v1277
    %v3420 = vunpack.c.h.b16 %v1277
    %v3421 = vunpack.c.l.b16 %v1278
    %v3422 = vunpack.c.h.b16 %v1278
    %v3423 = vunpack.c.l.b16 %v1279
    %v3424 = vunpack.c.h.b16 %v1279
    %v3425 = vunpack.c.l.b16 %v1280
    %v3426 = vunpack.c.h.b16 %v1280
    %v3427 = vunpack.c.l.b16 %v1281
    %v3428 = vunpack.c.h.b16 %v1281
    %v3429 = vunpack.c.l.b16 %v1282
    %v3430 = vunpack.c.h.b16 %v1282
    %v3431 = vunpack.c.l.b16 %v1283
    %v3432 = vunpack.c.h.b16 %v1283
    %v3433 = vunpack.c.l.b16 %v1284
    %v3434 = vunpack.c.h.b16 %v1284
    %v3435 = vunpack.c.l.b16 %v1285
    %v3436 = vunpack.c.h.b16 %v1285
    %v3437 = vunpack.c.l.b16 %v1286
    %v3438 = vunpack.c.h.b16 %v1286
    %v3439 = vunpack.c.l.b16 %v1287
    %v3440 = vunpack.c.h.b16 %v1287
    %v3441 = vunpack.c.l.b16 %v1288
    %v3442 = vunpack.c.h.b16 %v1288
    %v3443 = vunpack.c.l.b16 %v1289
    %v3444 = vunpack.c.h.b16 %v1289
    %v3445 = vunpack.c.l.b16 %v1290
    %v3446 = vunpack.c.h.b16 %v1290
    %v3447 = vunpack.c.l.b16 %v1291
    %v3448 = vunpack.c.h.b16 %v1291
    %v3449 = vunpack.c.l.b16 %v1292
    %v3450 = vunpack.c.h.b16 %v1292
    %v3451 = vunpack.c.l.b16 %v1293
    %v3452 = vunpack.c.h.b16 %v1293
    %v3453 = vunpack.c.l.b16 %v1294
    %v3454 = vunpack.c.h.b16 %v1294
    %v3455 = vunpack.c.l.b16 %v1295
    %v3456 = vunpack.c.h.b16 %v1295
    %v3457 = vunpack.c.l.b16 %v1296
    %v3458 = vunpack.c.h.b16 %v1296
    %v3459 = vunpack.c.l.b16 %v1297
    %v3460 = vunpack.c.h.b16 %v1297
    %v3461 = vunpack.c.l.b16 %v1298
    %v3462 = vunpack.c.h.b16 %v1298
    %v3463 = vunpack.c.l.b16 %v1299
    %v3464 = vunpack.c.h.b16 %v1299
    %v3465 = vunpack.c.l.b16 %v1300
    %v3466 = vunpack.c.h.b16 %v1300
    %v3467 = vunpack.c.l.b16 %v1301
    %v3468 = vunpack.c.h.b16 %v1301
    %v3469 = vunpack.c.l.b16 %v1302
    %v3470 = vunpack.c.h.b16 %v1302
    %v3471 = vunpack.c.l.b16 %v1303
    %v3472 = vunpack.c.h.b16 %v1303
    %v3473 = vunpack.c.l.b16 %v1304
    %v3474 = vunpack.c.h.b16 %v1304
    %v3475 = vunpack.c.l.b16 %v1305
    %v3476 = vunpack.c.h.b16 %v1305
    %v3477 = vunpack.c.l.b16 %v1306
    %v3478 = vunpack.c.h.b16 %v1306
    %v3479 = vunpack.c.l.b16 %v1307
    %v3480 = vunpack.c.h.b16 %v1307
    %v3481 = vunpack.c.l.b16 %v1308
    %v3482 = vunpack.c.h.b16 %v1308
    %v3483 = vunpack.c.l.b16 %v1309
    %v3484 = vunpack.c.h.b16 %v1309
    %v3485 = vunpack.c.l.b16 %v1310
    %v3486 = vunpack.c.h.b16 %v1310
    %v3487 = vunpack.c.l.b16 %v1311
    %v3488 = vunpack.c.h.b16 %v1311
    %v3489 = vunpack.c.l.b16 %v1312
    %v3490 = vunpack.c.h.b16 %v1312
    %v3491 = vunpack.c.l.b16 %v1313
    %v3492 = vunpack.c.h.b16 %v1313
    %v3493 = vunpack.c.l.b16 %v1314
    %v3494 = vunpack.c.h.b16 %v1314
    %v3495 = vunpack.c.l.b16 %v1315
    %v3496 = vunpack.c.h.b16 %v1315
    %v3497 = vunpack.c.l.b16 %v1316
    %v3498 = vunpack.c.h.b16 %v1316
    %v3499 = vunpack.c.l.b16 %v1317
    %v3500 = vunpack.c.h.b16 %v1317
    %v3501 = vunpack.c.l.b16 %v1318
    %v3502 = vunpack.c.h.b16 %v1318
    %v3503 = vunpack.c.l.b16 %v1319
    %v3504 = vunpack.c.h.b16 %v1319
    %v3505 = vunpack.c.l.b16 %v1320
    %v3506 = vunpack.c.h.b16 %v1320
    %v3507 = vunpack.c.l.b16 %v1321
    %v3508 = vunpack.c.h.b16 %v1321
    %v3509 = vunpack.c.l.b16 %v1322
    %v3510 = vunpack.c.h.b16 %v1322
    %v3511 = vunpack.c.l.b16 %v1323
    %v3512 = vunpack.c.h.b16 %v1323
    %v3513 = vunpack.c.l.b16 %v1324
    %v3514 = vunpack.c.h.b16 %v1324
    %v3515 = vunpack.c.l.b16 %v1325
    %v3516 = vunpack.c.h.b16 %v1325
    %v3517 = vunpack.c.l.b16 %v1326
    %v3518 = vunpack.c.h.b16 %v1326
    %v3519 = vunpack.c.l.b16 %v1327
    %v3520 = vunpack.c.h.b16 %v1327
    %v3521 = vunpack.c.l.b16 %v1328
    %v3522 = vunpack.c.h.b16 %v1328
    %v3523 = vunpack.c.l.b16 %v1329
    %v3524 = vunpack.c.h.b16 %v1329
    %v3525 = vunpack.c.l.b16 %v1330
    %v3526 = vunpack.c.h.b16 %v1330
    %v3527 = vunpack.c.l.b16 %v1331
    %v3528 = vunpack.c.h.b16 %v1331
    %v3529 = vunpack.c.l.b16 %v1332
    %v3530 = vunpack.c.h.b16 %v1332
    %v3531 = vunpack.c.l.b16 %v1333
    %v3532 = vunpack.c.h.b16 %v1333
    %v3533 = vunpack.c.l.b16 %v1334
    %v3534 = vunpack.c.h.b16 %v1334
    %v3535 = vunpack.c.l.b16 %v1335
    %v3536 = vunpack.c.h.b16 %v1335
    %v3537 = vunpack.c.l.b16 %v1336
    %v3538 = vunpack.c.h.b16 %v1336
    %v3539 = vunpack.c.l.b16 %v1337
    %v3540 = vunpack.c.h.b16 %v1337
    %v3541 = vunpack.c.l.b16 %v1338
    %v3542 = vunpack.c.h.b16 %v1338
    %v3543 = vunpack.c.l.b16 %v1339
    %v3544 = vunpack.c.h.b16 %v1339
    %v3545 = vunpack.c.l.b16 %v1340
    %v3546 = vunpack.c.h.b16 %v1340
    %v3547 = vunpack.c.l.b16 %v1341
    %v3548 = vunpack.c.h.b16 %v1341
    %v3549 = vunpack.c.l.b16 %v1342
    %v3550 = vunpack.c.h.b16 %v1342
    %v3551 = vunpack.c.l.b16 %v1343
    %v3552 = vunpack.c.h.b16 %v1343
    %v3553 = vunpack.c.l.b16 %v1344
    %v3554 = vunpack.c.h.b16 %v1344
    %v3555 = vunpack.c.l.b16 %v1345
    %v3556 = vunpack.c.h.b16 %v1345
    %v3557 = vunpack.c.l.b16 %v1346
    %v3558 = vunpack.c.h.b16 %v1346
    %v3559 = vunpack.c.l.b16 %v1347
    %v3560 = vunpack.c.h.b16 %v1347
    %v3561 = vunpack.c.l.b16 %v1348
    %v3562 = vunpack.c.h.b16 %v1348
    %v3563 = vunpack.c.l.b16 %v1349
    %v3564 = vunpack.c.h.b16 %v1349
    %v3565 = vunpack.c.l.b16 %v1350
    %v3566 = vunpack.c.h.b16 %v1350
    %v3567 = vunpack.c.l.b16 %v1351
    %v3568 = vunpack.c.h.b16 %v1351
    %v3569 = vunpack.c.l.b16 %v1352
    %v3570 = vunpack.c.h.b16 %v1352
    %v3571 = vunpack.c.l.b16 %v1353
    %v3572 = vunpack.c.h.b16 %v1353
    %v3573 = vunpack.c.l.b16 %v1354
    %v3574 = vunpack.c.h.b16 %v1354
    %v3575 = vunpack.c.l.b16 %v1355
    %v3576 = vunpack.c.h.b16 %v1355
    %v3577 = vunpack.c.l.b16 %v1356
    %v3578 = vunpack.c.h.b16 %v1356
    %v3579 = vunpack.c.l.b16 %v1357
    %v3580 = vunpack.c.h.b16 %v1357
    %v3581 = vunpack.c.l.b16 %v1358
    %v3582 = vunpack.c.h.b16 %v1358
    %v3583 = vunpack.c.l.b16 %v1359
    %v3584 = vunpack.c.h.b16 %v1359
    %v3585 = vunpack.c.l.b16 %v1360
    %v3586 = vunpack.c.h.b16 %v1360
    %v3587 = vunpack.c.l.b16 %v1361
    %v3588 = vunpack.c.h.b16 %v1361
    %v3589 = vunpack.c.l.b16 %v1362
    %v3590 = vunpack.c.h.b16 %v1362
    %v3591 = vunpack.c.l.b16 %v1363
    %v3592 = vunpack.c.h.b16 %v1363
    %v3593 = vunpack.c.l.b16 %v1364
    %v3594 = vunpack.c.h.b16 %v1364
    %v3595 = vunpack.c.l.b16 %v1365
    %v3596 = vunpack.c.h.b16 %v1365
    %v3597 = vunpack.c.l.b16 %v1366
    %v3598 = vunpack.c.h.b16 %v1366
    %v3599 = vunpack.c.l.b16 %v1367
    %v3600 = vunpack.c.h.b16 %v1367
    %v3601 = vunpack.c.l.b16 %v1368
    %v3602 = vunpack.c.h.b16 %v1368
    %v3603 = vunpack.c.l.b16 %v1369
    %v3604 = vunpack.c.h.b16 %v1369
    %v3605 = vunpack.c.l.b16 %v1370
    %v3606 = vunpack.c.h.b16 %v1370
    %v3607 = vunpack.c.l.b16 %v1371
    %v3608 = vunpack.c.h.b16 %v1371
    %v3609 = vunpack.c.l.b16 %v1372
    %v3610 = vunpack.c.h.b16 %v1372
    %v3611 = vunpack.c.l.b16 %v1373
    %v3612 = vunpack.c.h.b16 %v1373
    %v3613 = vunpack.c.l.b16 %v1374
    %v3614 = vunpack.c.h.b16 %v1374
    %v3615 = vunpack.c.l.b16 %v1375
    %v3616 = vunpack.c.h.b16 %v1375
    %v3617 = vunpack.c.l.b16 %v1376
    %v3618 = vunpack.c.h.b16 %v1376
    %v3619 = vunpack.c.l.b16 %v1377
    %v3620 = vunpack.c.h.b16 %v1377
    %v3621 = vunpack.c.l.b16 %v1378
    %v3622 = vunpack.c.h.b16 %v1378
    %v3623 = vunpack.c.l.b16 %v1379
    %v3624 = vunpack.c.h.b16 %v1379
    %v3625 = vunpack.c.l.b16 %v1380
    %v3626 = vunpack.c.h.b16 %v1380
    %v3627 = vunpack.c.l.b16 %v1381
    %v3628 = vunpack.c.h.b16 %v1381
    %v3629 = vunpack.c.l.b16 %v1382
    %v3630 = vunpack.c.h.b16 %v1382
    %v3631 = vunpack.c.l.b16 %v1383
    %v3632 = vunpack.c.h.b16 %v1383
    %v3633 = vunpack.c.l.b16 %v1384
    %v3634 = vunpack.c.h.b16 %v1384
    %v3635 = vunpack.c.l.b16 %v1385
    %v3636 = vunpack.c.h.b16 %v1385
    %v3637 = vunpack.c.l.b16 %v1386
    %v3638 = vunpack.c.h.b16 %v1386
    %v3639 = vunpack.c.l.b16 %v1387
    %v3640 = vunpack.c.h.b16 %v1387
    %v3641 = vunpack.c.l.b16 %v1388
    %v3642 = vunpack.c.h.b16 %v1388
    %v3643 = vunpack.c.l.b16 %v1389
    %v3644 = vunpack.c.h.b16 %v1389
    %v3645 = vunpack.c.l.b16 %v1390
    %v3646 = vunpack.c.h.b16 %v1390
    %v3647 = vunpack.c.l.b16 %v1391
    %v3648 = vunpack.c.h.b16 %v1391
    %v3649 = vunpack.c.l.b16 %v1392
    %v3650 = vunpack.c.h.b16 %v1392
    %v3651 = vunpack.c.l.b16 %v1393
    %v3652 = vunpack.c.h.b16 %v1393
    %v3653 = vunpack.c.l.b16 %v1394
    %v3654 = vunpack.c.h.b16 %v1394
    %v3655 = vunpack.c.l.b16 %v1395
    %v3656 = vunpack.c.h.b16 %v1395
    %v3657 = vunpack.c.l.b16 %v1396
    %v3658 = vunpack.c.h.b16 %v1396
    %v3659 = vunpack.c.l.b16 %v1397
    %v3660 = vunpack.c.h.b16 %v1397
    %v3661 = vunpack.c.l.b16 %v1398
    %v3662 = vunpack.c.h.b16 %v1398
    %v3663 = vunpack.c.l.b16 %v1399
    %v3664 = vunpack.c.h.b16 %v1399
    %v3665 = vunpack.c.l.b16 %v1400
    %v3666 = vunpack.c.h.b16 %v1400
    %v3667 = vunpack.c.l.b16 %v1401
    %v3668 = vunpack.c.h.b16 %v1401
    %v3669 = vunpack.c.l.b16 %v1402
    %v3670 = vunpack.c.h.b16 %v1402
    %v3671 = vunpack.c.l.b16 %v1403
    %v3672 = vunpack.c.h.b16 %v1403
    %v3673 = vunpack.c.l.b16 %v1404
    %v3674 = vunpack.c.h.b16 %v1404
    %v3675 = vunpack.c.l.b16 %v1405
    %v3676 = vunpack.c.h.b16 %v1405
    %v3677 = vunpack.c.l.b16 %v1406
    %v3678 = vunpack.c.h.b16 %v1406
    %v3679 = vunpack.c.l.b16 %v1407
    %v3680 = vunpack.c.h.b16 %v1407
    %v3681 = vunpack.c.l.b16 %v1408
    %v3682 = vunpack.c.h.b16 %v1408
    %v3683 = vunpack.c.l.b16 %v1409
    %v3684 = vunpack.c.h.b16 %v1409
    %v3685 = vunpack.c.l.b16 %v1410
    %v3686 = vunpack.c.h.b16 %v1410
    %v3687 = vunpack.c.l.b16 %v1411
    %v3688 = vunpack.c.h.b16 %v1411
    %v3689 = vunpack.c.l.b16 %v1412
    %v3690 = vunpack.c.h.b16 %v1412
    %v3691 = vunpack.c.l.b16 %v1413
    %v3692 = vunpack.c.h.b16 %v1413
    %v3693 = vunpack.c.l.b16 %v1414
    %v3694 = vunpack.c.h.b16 %v1414
    %v3695 = vunpack.c.l.b16 %v1415
    %v3696 = vunpack.c.h.b16 %v1415
    %v3697 = vunpack.c.l.b16 %v1416
    %v3698 = vunpack.c.h.b16 %v1416
    %v3699 = vunpack.c.l.b16 %v1417
    %v3700 = vunpack.c.h.b16 %v1417
    %v3701 = vunpack.c.l.b16 %v1418
    %v3702 = vunpack.c.h.b16 %v1418
    %v3703 = vunpack.c.l.b16 %v1419
    %v3704 = vunpack.c.h.b16 %v1419
    %v3705 = vunpack.c.l.b16 %v1420
    %v3706 = vunpack.c.h.b16 %v1420
    %v3707 = vunpack.c.l.b16 %v1421
    %v3708 = vunpack.c.h.b16 %v1421
    %v3709 = vunpack.c.l.b16 %v1422
    %v3710 = vunpack.c.h.b16 %v1422
    %v3711 = vunpack.c.l.b16 %v1423
    %v3712 = vunpack.c.h.b16 %v1423
    %v3713 = vunpack.c.l.b16 %v1424
    %v3714 = vunpack.c.h.b16 %v1424
    %v3715 = vunpack.c.l.b16 %v1425
    %v3716 = vunpack.c.h.b16 %v1425
    %v3717 = vunpack.c.l.b16 %v1426
    %v3718 = vunpack.c.h.b16 %v1426
    %v3719 = vunpack.c.l.b16 %v1427
    %v3720 = vunpack.c.h.b16 %v1427
    %v3721 = vunpack.c.l.b16 %v1428
    %v3722 = vunpack.c.h.b16 %v1428
    %v3723 = vunpack.c.l.b16 %v1429
    %v3724 = vunpack.c.h.b16 %v1429
    %v3725 = vunpack.c.l.b16 %v1430
    %v3726 = vunpack.c.h.b16 %v1430
    %v3727 = vunpack.c.l.b16 %v1431
    %v3728 = vunpack.c.h.b16 %v1431
    %v3729 = vunpack.c.l.b16 %v1432
    %v3730 = vunpack.c.h.b16 %v1432
    %v3731 = vunpack.c.l.b16 %v1433
    %v3732 = vunpack.c.h.b16 %v1433
    %v3733 = vunpack.c.l.b16 %v1434
    %v3734 = vunpack.c.h.b16 %v1434
    %v3735 = vunpack.c.l.b16 %v1435
    %v3736 = vunpack.c.h.b16 %v1435
    %v3737 = vunpack.c.l.b16 %v1436
    %v3738 = vunpack.c.h.b16 %v1436
    %v3739 = vunpack.c.l.b16 %v1437
    %v3740 = vunpack.c.h.b16 %v1437
    %v3741 = vunpack.c.l.b16 %v1438
    %v3742 = vunpack.c.h.b16 %v1438
    %v3743 = vunpack.c.l.b16 %v1439
    %v3744 = vunpack.c.h.b16 %v1439
    %v3745 = vunpack.c.l.b16 %v1440
    %v3746 = vunpack.c.h.b16 %v1440
    %v3747 = vunpack.c.l.b16 %v1441
    %v3748 = vunpack.c.h.b16 %v1441
    %v3749 = vunpack.c.l.b16 %v1442
    %v3750 = vunpack.c.h.b16 %v1442
    %v3751 = vunpack.c.l.b16 %v1443
    %v3752 = vunpack.c.h.b16 %v1443
    %v3753 = vunpack.c.l.b16 %v1444
    %v3754 = vunpack.c.h.b16 %v1444
    %v3755 = vunpack.c.l.b16 %v1445
    %v3756 = vunpack.c.h.b16 %v1445
    %v3757 = vunpack.c.l.b16 %v1446
    %v3758 = vunpack.c.h.b16 %v1446
    %v3759 = vunpack.c.l.b16 %v1447
    %v3760 = vunpack.c.h.b16 %v1447
    %v3761 = vunpack.c.l.b16 %v1448
    %v3762 = vunpack.c.h.b16 %v1448
    %v3763 = vunpack.c.l.b16 %v1449
    %v3764 = vunpack.c.h.b16 %v1449
    %v3765 = vunpack.c.l.b16 %v1450
    %v3766 = vunpack.c.h.b16 %v1450
    %v3767 = vunpack.c.l.b16 %v1451
    %v3768 = vunpack.c.h.b16 %v1451
    %v3769 = vunpack.c.l.b16 %v1452
    %v3770 = vunpack.c.h.b16 %v1452
    %v3771 = vunpack.c.l.b16 %v1453
    %v3772 = vunpack.c.h.b16 %v1453
    %v3773 = vunpack.c.l.b16 %v1454
    %v3774 = vunpack.c.h.b16 %v1454
    %v3775 = vunpack.c.l.b16 %v1455
    %v3776 = vunpack.c.h.b16 %v1455
    %v3777 = vunpack.c.l.b16 %v1456
    %v3778 = vunpack.c.h.b16 %v1456
    %v3779 = vunpack.c.l.b16 %v1457
    %v3780 = vunpack.c.h.b16 %v1457
    %v3781 = vunpack.c.l.b16 %v1458
    %v3782 = vunpack.c.h.b16 %v1458
    %v3783 = vunpack.c.l.b16 %v1459
    %v3784 = vunpack.c.h.b16 %v1459
    %v3785 = vunpack.c.l.b16 %v1460
    %v3786 = vunpack.c.h.b16 %v1460
    %v3787 = vpack.c.b16 %v2255, %v2251
    %v3788 = vpack.c.b16 %v2256, %v2252
    %v3789 = vpack.c.b16 %v2257, %v2253
    %v3790 = vpack.c.b16 %v2258, %v2254
    %v3791 = vpack.c.b16 %v2263, %v2259
    %v3792 = vpack.c.b16 %v2264, %v2260
    %v3793 = vpack.c.b16 %v2265, %v2261
    %v3794 = vpack.c.b16 %v2266, %v2262
    %v3795 = vpack.c.b16 %v2271, %v2267
    %v3796 = vpack.c.b16 %v2272, %v2268
    %v3797 = vpack.c.b16 %v2273, %v2269
    %v3798 = vpack.c.b16 %v2274, %v2270
    %v3799 = vpack.c.b16 %v2279, %v2275
    %v3800 = vpack.c.b16 %v2280, %v2276
    %v3801 = vpack.c.b16 %v2281, %v2277
    %v3802 = vpack.c.b16 %v2282, %v2278
    %v3803 = vpack.c.b16 %v2287, %v2283
    %v3804 = vpack.c.b16 %v2288, %v2284
    %v3805 = vpack.c.b16 %v2289, %v2285
    %v3806 = vpack.c.b16 %v2290, %v2286
    %v3807 = vpack.c.b16 %v2295, %v2291
    %v3808 = vpack.c.b16 %v2296, %v2292
    %v3809 = vpack.c.b16 %v2297, %v2293
    %v3810 = vpack.c.b16 %v2298, %v2294
    %v3811 = vpack.c.b16 %v2303, %v2299
    %v3812 = vpack.c.b16 %v2304, %v2300
    %v3813 = vpack.c.b16 %v2305, %v2301
    %v3814 = vpack.c.b16 %v2306, %v2302
    %v3815 = vpack.c.b16 %v2311, %v2307
    %v3816 = vpack.c.b16 %v2312, %v2308
    %v3817 = vpack.c.b16 %v2313, %v2309
    %v3818 = vpack.c.b16 %v2314, %v2310
    %v3819 = vpack.c.b16 %v2319, %v2315
    %v3820 = vpack.c.b16 %v2320, %v2316
    %v3821 = vpack.c.b16 %v2321, %v2317
    %v3822 = vpack.c.b16 %v2322, %v2318
    %v3823 = vpack.c.b16 %v2327, %v2323
    %v3824 = vpack.c.b16 %v2328, %v2324
    %v3825 = vpack.c.b16 %v2329, %v2325
    %v3826 = vpack.c.b16 %v2330, %v2326
    %v3827 = vpack.c.b16 %v2335, %v2331
    %v3828 = vpack.c.b16 %v2336, %v2332
    %v3829 = vpack.c.b16 %v2337, %v2333
    %v3830 = vpack.c.b16 %v2338, %v2334
    %v3831 = vpack.c.b16 %v2343, %v2339
    %v3832 = vpack.c.b16 %v2344, %v2340
    %v3833 = vpack.c.b16 %v2345, %v2341
    %v3834 = vpack.c.b16 %v2346, %v2342
    %v3835 = vpack.c.b16 %v2351, %v2347
    %v3836 = vpack.c.b16 %v2352, %v2348
    %v3837 = vpack.c.b16 %v2353, %v2349
    %v3838 = vpack.c.b16 %v2354, %v2350
    %v3839 = vpack.c.b16 %v2359, %v2355
    %v3840 = vpack.c.b16 %v2360, %v2356
    %v3841 = vpack.c.b16 %v2361, %v2357
    %v3842 = vpack.c.b16 %v2362, %v2358
    %v3843 = vpack.c.b16 %v2367, %v2363
    %v3844 = vpack.c.b16 %v2368, %v2364
    %v3845 = vpack.c.b16 %v2369, %v2365
    %v3846 = vpack.c.b16 %v2370, %v2366
    %v3847 = vpack.c.b16 %v2375, %v2371
    %v3848 = vpack.c.b16 %v2376, %v2372
    %v3849 = vpack.c.b16 %v2377, %v2373
    %v3850 = vpack.c.b16 %v2378, %v2374
    %v3851 = vpack.c.b16 %v2383, %v2379
    %v3852 = vpack.c.b16 %v2384, %v2380
    %v3853 = vpack.c.b16 %v2385, %v2381
    %v3854 = vpack.c.b16 %v2386, %v2382
    %v3855 = vpack.c.b16 %v2391, %v2387
    %v3856 = vpack.c.b16 %v2392, %v2388
    %v3857 = vpack.c.b16 %v2393, %v2389
    %v3858 = vpack.c.b16 %v2394, %v2390
    %v3859 = vpack.c.b16 %v2399, %v2395
    %v3860 = vpack.c.b16 %v2400, %v2396
    %v3861 = vpack.c.b16 %v2401, %v2397
    %v3862 = vpack.c.b16 %v2402, %v2398
    %v3863 = vpack.c.b16 %v2407, %v2403
    %v3864 = vpack.c.b16 %v2408, %v2404
    %v3865 = vpack.c.b16 %v2409, %v2405
    %v3866 = vpack.c.b16 %v2410, %v2406
    %v3867 = vpack.c.b16 %v2415, %v2411
    %v3868 = vpack.c.b16 %v2416, %v2412
    %v3869 = vpack.c.b16 %v2417, %v2413
    %v3870 = vpack.c.b16 %v2418, %v2414
    %v3871 = vpack.c.b16 %v2423, %v2419
    %v3872 = vpack.c.b16 %v2424, %v2420
    %v3873 = vpack.c.b16 %v2425, %v2421
    %v3874 = vpack.c.b16 %v2426, %v2422
    %v3875 = vpack.c.b16 %v2431, %v2427
    %v3876 = vpack.c.b16 %v2432, %v2428
    %v3877 = vpack.c.b16 %v2433, %v2429
    %v3878 = vpack.c.b16 %v2434, %v2430
    %v3879 = vpack.c.b16 %v2439, %v2435
    %v3880 = vpack.c.b16 %v2440, %v2436
    %v3881 = vpack.c.b16 %v2441, %v2437
    %v3882 = vpack.c.b16 %v2442, %v2438
    %v3883 = vpack.c.b16 %v2447, %v2443
    %v3884 = vpack.c.b16 %v2448, %v2444
    %v3885 = vpack.c.b16 %v2449, %v2445
    %v3886 = vpack.c.b16 %v2450, %v2446
    %v3887 = vpack.c.b16 %v2455, %v2451
    %v3888 = vpack.c.b16 %v2456, %v2452
    %v3889 = vpack.c.b16 %v2457, %v2453
    %v3890 = vpack.c.b16 %v2458, %v2454
    %v3891 = vpack.c.b16 %v2463, %v2459
    %v3892 = vpack.c.b16 %v2464, %v2460
    %v3893 = vpack.c.b16 %v2465, %v2461
    %v3894 = vpack.c.b16 %v2466, %v2462
    %v3895 = vpack.c.b16 %v2471, %v2467
    %v3896 = vpack.c.b16 %v2472, %v2468
    %v3897 = vpack.c.b16 %v2473, %v2469
    %v3898 = vpack.c.b16 %v2474, %v2470
    %v3899 = vpack.c.b16 %v2479, %v2475
    %v3900 = vpack.c.b16 %v2480, %v2476
    %v3901 = vpack.c.b16 %v2481, %v2477
    %v3902 = vpack.c.b16 %v2482, %v2478
    %v3903 = vpack.c.b16 %v2487, %v2483
    %v3904 = vpack.c.b16 %v2488, %v2484
    %v3905 = vpack.c.b16 %v2489, %v2485
    %v3906 = vpack.c.b16 %v2490, %v2486
    %v3907 = vpack.c.b16 %v2495, %v2491
    %v3908 = vpack.c.b16 %v2496, %v2492
    %v3909 = vpack.c.b16 %v2497, %v2493
    %v3910 = vpack.c.b16 %v2498, %v2494
    %v3911 = vpack.c.b16 %v2503, %v2499
    %v3912 = vpack.c.b16 %v2504, %v2500
    %v3913 = vpack.c.b16 %v2505, %v2501
    %v3914 = vpack.c.b16 %v2506, %v2502
    %v3915 = vpack.c.b16 %v2511, %v2507
    %v3916 = vpack.c.b16 %v2512, %v2508
    %v3917 = vpack.c.b16 %v2513, %v2509
    %v3918 = vpack.c.b16 %v2514, %v2510
    %v3919 = vpack.c.b16 %v2519, %v2515
    %v3920 = vpack.c.b16 %v2520, %v2516
    %v3921 = vpack.c.b16 %v2521, %v2517
    %v3922 = vpack.c.b16 %v2522, %v2518
    %v3923 = vpack.c.b16 %v2527, %v2523
    %v3924 = vpack.c.b16 %v2528, %v2524
    %v3925 = vpack.c.b16 %v2529, %v2525
    %v3926 = vpack.c.b16 %v2530, %v2526
    %v3927 = vpack.c.b16 %v2535, %v2531
    %v3928 = vpack.c.b16 %v2536, %v2532
    %v3929 = vpack.c.b16 %v2537, %v2533
    %v3930 = vpack.c.b16 %v2538, %v2534
    %v3931 = vpack.c.b16 %v2543, %v2539
    %v3932 = vpack.c.b16 %v2544, %v2540
    %v3933 = vpack.c.b16 %v2545, %v2541
    %v3934 = vpack.c.b16 %v2546, %v2542
    %v3935 = vpack.c.b16 %v2551, %v2547
    %v3936 = vpack.c.b16 %v2552, %v2548
    %v3937 = vpack.c.b16 %v2553, %v2549
    %v3938 = vpack.c.b16 %v2554, %v2550
    %v3939 = vpack.c.b16 %v2559, %v2555
    %v3940 = vpack.c.b16 %v2560, %v2556
    %v3941 = vpack.c.b16 %v2561, %v2557
    %v3942 = vpack.c.b16 %v2562, %v2558
    %v3943 = vpack.c.b16 %v2567, %v2563
    %v3944 = vpack.c.b16 %v2568, %v2564
    %v3945 = vpack.c.b16 %v2569, %v2565
    %v3946 = vpack.c.b16 %v2570, %v2566
    %v3947 = vpack.c.b16 %v2575, %v2571
    %v3948 = vpack.c.b16 %v2576, %v2572
    %v3949 = vpack.c.b16 %v2577, %v2573
    %v3950 = vpack.c.b16 %v2578, %v2574
    %v3951 = vpack.c.b16 %v2583, %v2579
    %v3952 = vpack.c.b16 %v2584, %v2580
    %v3953 = vpack.c.b16 %v2585, %v2581
    %v3954 = vpack.c.b16 %v2586, %v2582
    %v3955 = vpack.c.b16 %v2591, %v2587
    %v3956 = vpack.c.b16 %v2592, %v2588
    %v3957 = vpack.c.b16 %v2593, %v2589
    %v3958 = vpack.c.b16 %v2594, %v2590
    %v3959 = vpack.c.b16 %v2599, %v2595
    %v3960 = vpack.c.b16 %v2600, %v2596
    %v3961 = vpack.c.b16 %v2601, %v2597
    %v3962 = vpack.c.b16 %v2602, %v2598
    %v3963 = vpack.c.b16 %v2607, %v2603
    %v3964 = vpack.c.b16 %v2608, %v2604
    %v3965 = vpack.c.b16 %v2609, %v2605
    %v3966 = vpack.c.b16 %v2610, %v2606
    %v3967 = vpack.c.b16 %v2615, %v2611
    %v3968 = vpack.c.b16 %v2616, %v2612
    %v3969 = vpack.c.b16 %v2617, %v2613
    %v3970 = vpack.c.b16 %v2618, %v2614
    %v3971 = vpack.c.b16 %v2623, %v2619
    %v3972 = vpack.c.b16 %v2624, %v2620
    %v3973 = vpack.c.b16 %v2625, %v2621
    %v3974 = vpack.c.b16 %v2626, %v2622
    %v3975 = vpack.c.b16 %v2631, %v2627
    %v3976 = vpack.c.b16 %v2632, %v2628
    %v3977 = vpack.c.b16 %v2633, %v2629
    %v3978 = vpack.c.b16 %v2634, %v2630
    %v3979 = vpack.c.b16 %v2639, %v2635
    %v3980 = vpack.c.b16 %v2640, %v2636
    %v3981 = vpack.c.b16 %v2641, %v2637
    %v3982 = vpack.c.b16 %v2642, %v2638
    %v3983 = vpack.c.b16 %v2647, %v2643
    %v3984 = vpack.c.b16 %v2648, %v2644
    %v3985 = vpack.c.b16 %v2649, %v2645
    %v3986 = vpack.c.b16 %v2650, %v2646
    %v3987 = vpack.c.b16 %v2655, %v2651
    %v3988 = vpack.c.b16 %v2656, %v2652
    %v3989 = vpack.c.b16 %v2657, %v2653
    %v3990 = vpack.c.b16 %v2658, %v2654
    %v3991 = vpack.c.b16 %v2663, %v2659
    %v3992 = vpack.c.b16 %v2664, %v2660
    %v3993 = vpack.c.b16 %v2665, %v2661
    %v3994 = vpack.c.b16 %v2666, %v2662
    %v3995 = vpack.c.b16 %v2671, %v2667
    %v3996 = vpack.c.b16 %v2672, %v2668
    %v3997 = vpack.c.b16 %v2673, %v2669
    %v3998 = vpack.c.b16 %v2674, %v2670
    %v3999 = vpack.c.b16 %v2679, %v2675
    %v4000 = vpack.c.b16 %v2680, %v2676
    %v4001 = vpack.c.b16 %v2681, %v2677
    %v4002 = vpack.c.b16 %v2682, %v2678
    %v4003 = vpack.c.b16 %v2687, %v2683
    %v4004 = vpack.c.b16 %v2688, %v2684
    %v4005 = vpack.c.b16 %v2689, %v2685
    %v4006 = vpack.c.b16 %v2690, %v2686
    %v4007 = vpack.c.b16 %v2695, %v2691
    %v4008 = vpack.c.b16 %v2696, %v2692
    %v4009 = vpack.c.b16 %v2697, %v2693
    %v4010 = vpack.c.b16 %v2698, %v2694
    %v4011 = vpack.c.b16 %v2703, %v2699
    %v4012 = vpack.c.b16 %v2704, %v2700
    %v4013 = vpack.c.b16 %v2705, %v2701
    %v4014 = vpack.c.b16 %v2706, %v2702
    %v4015 = vpack.c.b16 %v2711, %v2707
    %v4016 = vpack.c.b16 %v2712, %v2708
    %v4017 = vpack.c.b16 %v2713, %v2709
    %v4018 = vpack.c.b16 %v2714, %v2710
    %v4019 = vpack.c.b16 %v2719, %v2715
    %v4020 = vpack.c.b16 %v2720, %v2716
    %v4021 = vpack.c.b16 %v2721, %v2717
    %v4022 = vpack.c.b16 %v2722, %v2718
    %v4023 = vpack.c.b16 %v2727, %v2723
    %v4024 = vpack.c.b16 %v2728, %v2724
    %v4025 = vpack.c.b16 %v2729, %v2725
    %v4026 = vpack.c.b16 %v2730, %v2726
    %v4027 = vpack.c.b16 %v2735, %v2731
    %v4028 = vpack.c.b16 %v2736, %v2732
    %v4029 = vpack.c.b16 %v2737, %v2733
    %v4030 = vpack.c.b16 %v2738, %v2734
    %v4031 = vpack.c.b16 %v2743, %v2739
    %v4032 = vpack.c.b16 %v2744, %v2740
    %v4033 = vpack.c.b16 %v2745, %v2741
    %v4034 = vpack.c.b16 %v2746, %v2742
    %v4035 = vpack.c.b16 %v2751, %v2747
    %v4036 = vpack.c.b16 %v2752, %v2748
    %v4037 = vpack.c.b16 %v2753, %v2749
    %v4038 = vpack.c.b16 %v2754, %v2750
    %v4039 = vpack.c.b16 %v2759, %v2755
    %v4040 = vpack.c.b16 %v2760, %v2756
    %v4041 = vpack.c.b16 %v2761, %v2757
    %v4042 = vpack.c.b16 %v2762, %v2758
    %v4043 = vpack.c.b16 %v2767, %v2763
    %v4044 = vpack.c.b16 %v2768, %v2764
    %v4045 = vpack.c.b16 %v2769, %v2765
    %v4046 = vpack.c.b16 %v2770, %v2766
    %v4047 = vpack.c.b16 %v2775, %v2771
    %v4048 = vpack.c.b16 %v2776, %v2772
    %v4049 = vpack.c.b16 %v2777, %v2773
    %v4050 = vpack.c.b16 %v2778, %v2774
    %v4051 = vpack.c.b16 %v2783, %v2779
    %v4052 = vpack.c.b16 %v2784, %v2780
    %v4053 = vpack.c.b16 %v2785, %v2781
    %v4054 = vpack.c.b16 %v2786, %v2782
    %v4055 = vpack.c.b16 %v2791, %v2787
    %v4056 = vpack.c.b16 %v2792, %v2788
    %v4057 = vpack.c.b16 %v2793, %v2789
    %v4058 = vpack.c.b16 %v2794, %v2790
    %v4059 = vpack.c.b16 %v2799, %v2795
    %v4060 = vpack.c.b16 %v2800, %v2796
    %v4061 = vpack.c.b16 %v2801, %v2797
    %v4062 = vpack.c.b16 %v2802, %v2798
    %v4063 = vpack.c.b16 %v2807, %v2803
    %v4064 = vpack.c.b16 %v2808, %v2804
    %v4065 = vpack.c.b16 %v2809, %v2805
    %v4066 = vpack.c.b16 %v2810, %v2806
    %v4067 = vpack.c.b16 %v2815, %v2811
    %v4068 = vpack.c.b16 %v2816, %v2812
    %v4069 = vpack.c.b16 %v2817, %v2813
    %v4070 = vpack.c.b16 %v2818, %v2814
    %v4071 = vpack.c.b16 %v2823, %v2819
    %v4072 = vpack.c.b16 %v2824, %v2820
    %v4073 = vpack.c.b16 %v2825, %v2821
    %v4074 = vpack.c.b16 %v2826, %v2822
    %v4075 = vpack.c.b16 %v2831, %v2827
    %v4076 = vpack.c.b16 %v2832, %v2828
    %v4077 = vpack.c.b16 %v2833, %v2829
    %v4078 = vpack.c.b16 %v2834, %v2830
    %v4079 = vpack.c.b16 %v2839, %v2835
    %v4080 = vpack.c.b16 %v2840, %v2836
    %v4081 = vpack.c.b16 %v2841, %v2837
    %v4082 = vpack.c.b16 %v2842, %v2838
    %v4083 = vpack.c.b16 %v2847, %v2843
    %v4084 = vpack.c.b16 %v2848, %v2844
    %v4085 = vpack.c.b16 %v2849, %v2845
    %v4086 = vpack.c.b16 %v2850, %v2846
    %v4087 = vpack.c.b16 %v2855, %v2851
    %v4088 = vpack.c.b16 %v2856, %v2852
    %v4089 = vpack.c.b16 %v2857, %v2853
    %v4090 = vpack.c.b16 %v2858, %v2854
    %v4091 = vpack.c.b16 %v2863, %v2859
    %v4092 = vpack.c.b16 %v2864, %v2860
    %v4093 = vpack.c.b16 %v2865, %v2861
    %v4094 = vpack.c.b16 %v2866, %v2862
    %v4095 = vpack.c.b16 %v2871, %v2867
    %v4096 = vpack.c.b16 %v2872, %v2868
    %v4097 = vpack.c.b16 %v2873, %v2869
    %v4098 = vpack.c.b16 %v2874, %v2870
    %v4099 = vpack.c.b16 %v2879, %v2875
    %v4100 = vpack.c.b16 %v2880, %v2876
    %v4101 = vpack.c.b16 %v2881, %v2877
    %v4102 = vpack.c.b16 %v2882, %v2878
    %v4103 = vpack.c.b16 %v2887, %v2883
    %v4104 = vpack.c.b16 %v2888, %v2884
    %v4105 = vpack.c.b16 %v2889, %v2885
    %v4106 = vpack.c.b16 %v2890, %v2886
    %v4107 = vpack.c.b16 %v2895, %v2891
    %v4108 = vpack.c.b16 %v2896, %v2892
    %v4109 = vpack.c.b16 %v2897, %v2893
    %v4110 = vpack.c.b16 %v2898, %v2894
    %v4111 = vpack.c.b16 %v2903, %v2899
    %v4112 = vpack.c.b16 %v2904, %v2900
    %v4113 = vpack.c.b16 %v2905, %v2901
    %v4114 = vpack.c.b16 %v2906, %v2902
    %v4115 = vpack.c.b16 %v2911, %v2907
    %v4116 = vpack.c.b16 %v2912, %v2908
    %v4117 = vpack.c.b16 %v2913, %v2909
    %v4118 = vpack.c.b16 %v2914, %v2910
    %v4119 = vpack.c.b16 %v2919, %v2915
    %v4120 = vpack.c.b16 %v2920, %v2916
    %v4121 = vpack.c.b16 %v2921, %v2917
    %v4122 = vpack.c.b16 %v2922, %v2918
    %v4123 = vpack.c.b16 %v2927, %v2923
    %v4124 = vpack.c.b16 %v2928, %v2924
    %v4125 = vpack.c.b16 %v2929, %v2925
    %v4126 = vpack.c.b16 %v2930, %v2926
    %v4127 = vpack.c.b16 %v2935, %v2931
    %v4128 = vpack.c.b16 %v2936, %v2932
    %v4129 = vpack.c.b16 %v2937, %v2933
    %v4130 = vpack.c.b16 %v2938, %v2934
    %v4131 = vpack.c.b16 %v2943, %v2939
    %v4132 = vpack.c.b16 %v2944, %v2940
    %v4133 = vpack.c.b16 %v2945, %v2941
    %v4134 = vpack.c.b16 %v2946, %v2942
    %v4135 = vpack.c.b16 %v2951, %v2947
    %v4136 = vpack.c.b16 %v2952, %v2948
    %v4137 = vpack.c.b16 %v2953, %v2949
    %v4138 = vpack.c.b16 %v2954, %v2950
    %v4139 = vpack.c.b16 %v2959, %v2955
    %v4140 = vpack.c.b16 %v2960, %v2956
    %v4141 = vpack.c.b16 %v2961, %v2957
    %v4142 = vpack.c.b16 %v2962, %v2958
    %v4143 = vpack.c.b16 %v2967, %v2963
    %v4144 = vpack.c.b16 %v2968, %v2964
    %v4145 = vpack.c.b16 %v2969, %v2965
    %v4146 = vpack.c.b16 %v2970, %v2966
    %v4147 = vpack.c.b16 %v2975, %v2971
    %v4148 = vpack.c.b16 %v2976, %v2972
    %v4149 = vpack.c.b16 %v2977, %v2973
    %v4150 = vpack.c.b16 %v2978, %v2974
    %v4151 = vpack.c.b16 %v2983, %v2979
    %v4152 = vpack.c.b16 %v2984, %v2980
    %v4153 = vpack.c.b16 %v2985, %v2981
    %v4154 = vpack.c.b16 %v2986, %v2982
    %v4155 = vpack.c.b16 %v2991, %v2987
    %v4156 = vpack.c.b16 %v2992, %v2988
    %v4157 = vpack.c.b16 %v2993, %v2989
    %v4158 = vpack.c.b16 %v2994, %v2990
    %v4159 = vpack.c.b16 %v2999, %v2995
    %v4160 = vpack.c.b16 %v3000, %v2996
    %v4161 = vpack.c.b16 %v3001, %v2997
    %v4162 = vpack.c.b16 %v3002, %v2998
    %v4163 = vpack.c.b16 %v3007, %v3003
    %v4164 = vpack.c.b16 %v3008, %v3004
    %v4165 = vpack.c.b16 %v3009, %v3005
    %v4166 = vpack.c.b16 %v3010, %v3006
    %v4167 = vpack.c.b16 %v3015, %v3011
    %v4168 = vpack.c.b16 %v3016, %v3012
    %v4169 = vpack.c.b16 %v3017, %v3013
    %v4170 = vpack.c.b16 %v3018, %v3014
    %v4171 = vpack.c.b16 %v3023, %v3019
    %v4172 = vpack.c.b16 %v3024, %v3020
    %v4173 = vpack.c.b16 %v3025, %v3021
    %v4174 = vpack.c.b16 %v3026, %v3022
    %v4175 = vpack.c.b16 %v3031, %v3027
    %v4176 = vpack.c.b16 %v3032, %v3028
    %v4177 = vpack.c.b16 %v3033, %v3029
    %v4178 = vpack.c.b16 %v3034, %v3030
    %v4179 = vpack.c.b16 %v3039, %v3035
    %v4180 = vpack.c.b16 %v3040, %v3036
    %v4181 = vpack.c.b16 %v3041, %v3037
    %v4182 = vpack.c.b16 %v3042, %v3038
    %v4183 = vpack.c.b16 %v3047, %v3043
    %v4184 = vpack.c.b16 %v3048, %v3044
    %v4185 = vpack.c.b16 %v3049, %v3045
    %v4186 = vpack.c.b16 %v3050, %v3046
    %v4187 = vpack.c.b16 %v3055, %v3051
    %v4188 = vpack.c.b16 %v3056, %v3052
    %v4189 = vpack.c.b16 %v3057, %v3053
    %v4190 = vpack.c.b16 %v3058, %v3054
    %v4191 = vpack.c.b16 %v3063, %v3059
    %v4192 = vpack.c.b16 %v3064, %v3060
    %v4193 = vpack.c.b16 %v3065, %v3061
    %v4194 = vpack.c.b16 %v3066, %v3062
    %v4195 = vpack.c.b16 %v3071, %v3067
    %v4196 = vpack.c.b16 %v3072, %v3068
    %v4197 = vpack.c.b16 %v3073, %v3069
    %v4198 = vpack.c.b16 %v3074, %v3070
    %v4199 = vpack.c.b16 %v3079, %v3075
    %v4200 = vpack.c.b16 %v3080, %v3076
    %v4201 = vpack.c.b16 %v3081, %v3077
    %v4202 = vpack.c.b16 %v3082, %v3078
    %v4203 = vpack.c.b16 %v3087, %v3083
    %v4204 = vpack.c.b16 %v3088, %v3084
    %v4205 = vpack.c.b16 %v3089, %v3085
    %v4206 = vpack.c.b16 %v3090, %v3086
    %v4207 = vpack.c.b16 %v3095, %v3091
    %v4208 = vpack.c.b16 %v3096, %v3092
    %v4209 = vpack.c.b16 %v3097, %v3093
    %v4210 = vpack.c.b16 %v3098, %v3094
    %v4211 = vpack.c.b16 %v3103, %v3099
    %v4212 = vpack.c.b16 %v3104, %v3100
    %v4213 = vpack.c.b16 %v3105, %v3101
    %v4214 = vpack.c.b16 %v3106, %v3102
    %v4215 = vpack.c.b16 %v3111, %v3107
    %v4216 = vpack.c.b16 %v3112, %v3108
    %v4217 = vpack.c.b16 %v3113, %v3109
    %v4218 = vpack.c.b16 %v3114, %v3110
    %v4219 = vpack.c.b16 %v3119, %v3115
    %v4220 = vpack.c.b16 %v3120, %v3116
    %v4221 = vpack.c.b16 %v3121, %v3117
    %v4222 = vpack.c.b16 %v3122, %v3118
    %v4223 = vpack.c.b16 %v3127, %v3123
    %v4224 = vpack.c.b16 %v3128, %v3124
    %v4225 = vpack.c.b16 %v3129, %v3125
    %v4226 = vpack.c.b16 %v3130, %v3126
    %v4227 = vpack.c.b16 %v3135, %v3131
    %v4228 = vpack.c.b16 %v3136, %v3132
    %v4229 = vpack.c.b16 %v3137, %v3133
    %v4230 = vpack.c.b16 %v3138, %v3134
    %v4231 = vpack.c.b16 %v3143, %v3139
    %v4232 = vpack.c.b16 %v3144, %v3140
    %v4233 = vpack.c.b16 %v3145, %v3141
    %v4234 = vpack.c.b16 %v3146, %v3142
    %v4235 = vpack.c.b16 %v3151, %v3147
    %v4236 = vpack.c.b16 %v3152, %v3148
    %v4237 = vpack.c.b16 %v3153, %v3149
    %v4238 = vpack.c.b16 %v3154, %v3150
    %v4239 = vpack.c.b16 %v3159, %v3155
    %v4240 = vpack.c.b16 %v3160, %v3156
    %v4241 = vpack.c.b16 %v3161, %v3157
    %v4242 = vpack.c.b16 %v3162, %v3158
    %v4243 = vpack.c.b16 %v3167, %v3163
    %v4244 = vpack.c.b16 %v3168, %v3164
    %v4245 = vpack.c.b16 %v3169, %v3165
    %v4246 = vpack.c.b16 %v3170, %v3166
    %v4247 = vpack.c.b16 %v3175, %v3171
    %v4248 = vpack.c.b16 %v3176, %v3172
    %v4249 = vpack.c.b16 %v3177, %v3173
    %v4250 = vpack.c.b16 %v3178, %v3174
    %v4251 = vpack.c.b16 %v3183, %v3179
    %v4252 = vpack.c.b16 %v3184, %v3180
    %v4253 = vpack.c.b16 %v3185, %v3181
    %v4254 = vpack.c.b16 %v3186, %v3182
    %v4255 = vpack.c.b16 %v3191, %v3187
    %v4256 = vpack.c.b16 %v3192, %v3188
    %v4257 = vpack.c.b16 %v3193, %v3189
    %v4258 = vpack.c.b16 %v3194, %v3190
    %v4259 = vpack.c.b16 %v3199, %v3195
    %v4260 = vpack.c.b16 %v3200, %v3196
    %v4261 = vpack.c.b16 %v3201, %v3197
    %v4262 = vpack.c.b16 %v3202, %v3198
    %v4263 = vpack.c.b16 %v3207, %v3203
    %v4264 = vpack.c.b16 %v3208, %v3204
    %v4265 = vpack.c.b16 %v3209, %v3205
    %v4266 = vpack.c.b16 %v3210, %v3206
    %v4267 = vpack.c.b16 %v3215, %v3211
    %v4268 = vpack.c.b16 %v3216, %v3212
    %v4269 = vpack.c.b16 %v3217, %v3213
    %v4270 = vpack.c.b16 %v3218, %v3214
    %v4271 = vpack.c.b16 %v3223, %v3219
    %v4272 = vpack.c.b16 %v3224, %v3220
    %v4273 = vpack.c.b16 %v3225, %v3221
    %v4274 = vpack.c.b16 %v3226, %v3222
    %v4275 = vpack.c.b16 %v3231, %v3227
    %v4276 = vpack.c.b16 %v3232, %v3228
    %v4277 = vpack.c.b16 %v3233, %v3229
    %v4278 = vpack.c.b16 %v3234, %v3230
    %v4279 = vpack.c.b16 %v3239, %v3235
    %v4280 = vpack.c.b16 %v3240, %v3236
    %v4281 = vpack.c.b16 %v3241, %v3237
    %v4282 = vpack.c.b16 %v3242, %v3238
    %v4283 = vpack.c.b16 %v3247, %v3243
    %v4284 = vpack.c.b16 %v3248, %v3244
    %v4285 = vpack.c.b16 %v3249, %v3245
    %v4286 = vpack.c.b16 %v3250, %v3246
    %v4287 = vpack.c.b16 %v3255, %v3251
    %v4288 = vpack.c.b16 %v3256, %v3252
    %v4289 = vpack.c.b16 %v3257, %v3253
    %v4290 = vpack.c.b16 %v3258, %v3254
    %v4291 = vpack.c.b16 %v3263, %v3259
    %v4292 = vpack.c.b16 %v3264, %v3260
    %v4293 = vpack.c.b16 %v3265, %v3261
    %v4294 = vpack.c.b16 %v3266, %v3262
    %v4295 = vpack.c.b16 %v3271, %v3267
    %v4296 = vpack.c.b16 %v3272, %v3268
    %v4297 = vpack.c.b16 %v3273, %v3269
    %v4298 = vpack.c.b16 %v3274, %v3270
    %v4299 = vpack.c.b16 %v3279, %v3275
    %v4300 = vpack.c.b16 %v3280, %v3276
    %v4301 = vpack.c.b16 %v3281, %v3277
    %v4302 = vpack.c.b16 %v3282, %v3278
    %v4303 = vpack.c.b16 %v3287, %v3283
    %v4304 = vpack.c.b16 %v3288, %v3284
    %v4305 = vpack.c.b16 %v3289, %v3285
    %v4306 = vpack.c.b16 %v3290, %v3286
    %v4307 = vpack.c.b16 %v3295, %v3291
    %v4308 = vpack.c.b16 %v3296, %v3292
    %v4309 = vpack.c.b16 %v3297, %v3293
    %v4310 = vpack.c.b16 %v3298, %v3294
    %v4311 = vpack.c.b16 %v3303, %v3299
    %v4312 = vpack.c.b16 %v3304, %v3300
    %v4313 = vpack.c.b16 %v3305, %v3301
    %v4314 = vpack.c.b16 %v3306, %v3302
    %v4315 = vpack.c.b16 %v3311, %v3307
    %v4316 = vpack.c.b16 %v3312, %v3308
    %v4317 = vpack.c.b16 %v3313, %v3309
    %v4318 = vpack.c.b16 %v3314, %v3310
    %v4319 = vpack.c.b16 %v3319, %v3315
    %v4320 = vpack.c.b16 %v3320, %v3316
    %v4321 = vpack.c.b16 %v3321, %v3317
    %v4322 = vpack.c.b16 %v3322, %v3318
    %v4323 = vpack.c.b16 %v3327, %v3323
    %v4324 = vpack.c.b16 %v3328, %v3324
    %v4325 = vpack.c.b16 %v3329, %v3325
    %v4326 = vpack.c.b16 %v3330, %v3326
    %v4327 = vpack.c.b16 %v3335, %v3331
    %v4328 = vpack.c.b16 %v3336, %v3332
    %v4329 = vpack.c.b16 %v3337, %v3333
    %v4330 = vpack.c.b16 %v3338, %v3334
    %v4331 = vpack.c.b16 %v3343, %v3339
    %v4332 = vpack.c.b16 %v3344, %v3340
    %v4333 = vpack.c.b16 %v3345, %v3341
    %v4334 = vpack.c.b16 %v3346, %v3342
    %v4335 = vpack.c.b16 %v3351, %v3347
    %v4336 = vpack.c.b16 %v3352, %v3348
    %v4337 = vpack.c.b16 %v3353, %v3349
    %v4338 = vpack.c.b16 %v3354, %v3350
    %v4339 = vpack.c.b16 %v3359, %v3355
    %v4340 = vpack.c.b16 %v3360, %v3356
    %v4341 = vpack.c.b16 %v3361, %v3357
    %v4342 = vpack.c.b16 %v3362, %v3358
    %v4343 = vpack.c.b16 %v3367, %v3363
    %v4344 = vpack.c.b16 %v3368, %v3364
    %v4345 = vpack.c.b16 %v3369, %v3365
    %v4346 = vpack.c.b16 %v3370, %v3366
    %v4347 = vpack.c.b16 %v3375, %v3371
    %v4348 = vpack.c.b16 %v3376, %v3372
    %v4349 = vpack.c.b16 %v3377, %v3373
    %v4350 = vpack.c.b16 %v3378, %v3374
    %v4351 = vpack.c.b16 %v3383, %v3379
    %v4352 = vpack.c.b16 %v3384, %v3380
    %v4353 = vpack.c.b16 %v3385, %v3381
    %v4354 = vpack.c.b16 %v3386, %v3382
    %v4355 = vpack.c.b16 %v3391, %v3387
    %v4356 = vpack.c.b16 %v3392, %v3388
    %v4357 = vpack.c.b16 %v3393, %v3389
    %v4358 = vpack.c.b16 %v3394, %v3390
    %v4359 = vpack.c.b16 %v3399, %v3395
    %v4360 = vpack.c.b16 %v3400, %v3396
    %v4361 = vpack.c.b16 %v3401, %v3397
    %v4362 = vpack.c.b16 %v3402, %v3398
    %v4363 = vpack.c.b16 %v3407, %v3403
    %v4364 = vpack.c.b16 %v3408, %v3404
    %v4365 = vpack.c.b16 %v3409, %v3405
    %v4366 = vpack.c.b16 %v3410, %v3406
    %v4367 = vpack.c.b16 %v3415, %v3411
    %v4368 = vpack.c.b16 %v3416, %v3412
    %v4369 = vpack.c.b16 %v3417, %v3413
    %v4370 = vpack.c.b16 %v3418, %v3414
    %v4371 = vpack.c.b16 %v3423, %v3419
    %v4372 = vpack.c.b16 %v3424, %v3420
    %v4373 = vpack.c.b16 %v3425, %v3421
    %v4374 = vpack.c.b16 %v3426, %v3422
    %v4375 = vpack.c.b16 %v3431, %v3427
    %v4376 = vpack.c.b16 %v3432, %v3428
    %v4377 = vpack.c.b16 %v3433, %v3429
    %v4378 = vpack.c.b16 %v3434, %v3430
    %v4379 = vpack.c.b16 %v3439, %v3435
    %v4380 = vpack.c.b16 %v3440, %v3436
    %v4381 = vpack.c.b16 %v3441, %v3437
    %v4382 = vpack.c.b16 %v3442, %v3438
    %v4383 = vpack.c.b16 %v3447, %v3443
    %v4384 = vpack.c.b16 %v3448, %v3444
    %v4385 = vpack.c.b16 %v3449, %v3445
    %v4386 = vpack.c.b16 %v3450, %v3446
    %v4387 = vpack.c.b16 %v3455, %v3451
    %v4388 = vpack.c.b16 %v3456, %v3452
    %v4389 = vpack.c.b16 %v3457, %v3453
    %v4390 = vpack.c.b16 %v3458, %v3454
    %v4391 = vpack.c.b16 %v3463, %v3459
    %v4392 = vpack.c.b16 %v3464, %v3460
    %v4393 = vpack.c.b16 %v3465, %v3461
    %v4394 = vpack.c.b16 %v3466, %v3462
    %v4395 = vpack.c.b16 %v3471, %v3467
    %v4396 = vpack.c.b16 %v3472, %v3468
    %v4397 = vpack.c.b16 %v3473, %v3469
    %v4398 = vpack.c.b16 %v3474, %v3470
    %v4399 = vpack.c.b16 %v3479, %v3475
    %v4400 = vpack.c.b16 %v3480, %v3476
    %v4401 = vpack.c.b16 %v3481, %v3477
    %v4402 = vpack.c.b16 %v3482, %v3478
    %v4403 = vpack.c.b16 %v3487, %v3483
    %v4404 = vpack.c.b16 %v3488, %v3484
    %v4405 = vpack.c.b16 %v3489, %v3485
    %v4406 = vpack.c.b16 %v3490, %v3486
    %v4407 = vpack.c.b16 %v3495, %v3491
    %v4408 = vpack.c.b16 %v3496, %v3492
    %v4409 = vpack.c.b16 %v3497, %v3493
    %v4410 = vpack.c.b16 %v3498, %v3494
    %v4411 = vpack.c.b16 %v3503, %v3499
    %v4412 = vpack.c.b16 %v3504, %v3500
    %v4413 = vpack.c.b16 %v3505, %v3501
    %v4414 = vpack.c.b16 %v3506, %v3502
    %v4415 = vpack.c.b16 %v3511, %v3507
    %v4416 = vpack.c.b16 %v3512, %v3508
    %v4417 = vpack.c.b16 %v3513, %v3509
    %v4418 = vpack.c.b16 %v3514, %v3510
    %v4419 = vpack.c.b16 %v3519, %v3515
    %v4420 = vpack.c.b16 %v3520, %v3516
    %v4421 = vpack.c.b16 %v3521, %v3517
    %v4422 = vpack.c.b16 %v3522, %v3518
    %v4423 = vpack.c.b16 %v3527, %v3523
    %v4424 = vpack.c.b16 %v3528, %v3524
    %v4425 = vpack.c.b16 %v3529, %v3525
    %v4426 = vpack.c.b16 %v3530, %v3526
    %v4427 = vpack.c.b16 %v3535, %v3531
    %v4428 = vpack.c.b16 %v3536, %v3532
    %v4429 = vpack.c.b16 %v3537, %v3533
    %v4430 = vpack.c.b16 %v3538, %v3534
    %v4431 = vpack.c.b16 %v3543, %v3539
    %v4432 = vpack.c.b16 %v3544, %v3540
    %v4433 = vpack.c.b16 %v3545, %v3541
    %v4434 = vpack.c.b16 %v3546, %v3542
    %v4435 = vpack.c.b16 %v3551, %v3547
    %v4436 = vpack.c.b16 %v3552, %v3548
    %v4437 = vpack.c.b16 %v3553, %v3549
    %v4438 = vpack.c.b16 %v3554, %v3550
    %v4439 = vpack.c.b16 %v3559, %v3555
    %v4440 = vpack.c.b16 %v3560, %v3556
    %v4441 = vpack.c.b16 %v3561, %v3557
    %v4442 = vpack.c.b16 %v3562, %v3558
    %v4443 = vpack.c.b16 %v3567, %v3563
    %v4444 = vpack.c.b16 %v3568, %v3564
    %v4445 = vpack.c.b16 %v3569, %v3565
    %v4446 = vpack.c.b16 %v3570, %v3566
    %v4447 = vpack.c.b16 %v3575, %v3571
    %v4448 = vpack.c.b16 %v3576, %v3572
    %v4449 = vpack.c.b16 %v3577, %v3573
    %v4450 = vpack.c.b16 %v3578, %v3574
    %v4451 = vpack.c.b16 %v3583, %v3579
    %v4452 = vpack.c.b16 %v3584, %v3580
    %v4453 = vpack.c.b16 %v3585, %v3581
    %v4454 = vpack.c.b16 %v3586, %v3582
    %v4455 = vpack.c.b16 %v3591, %v3587
    %v4456 = vpack.c.b16 %v3592, %v3588
    %v4457 = vpack.c.b16 %v3593, %v3589
    %v4458 = vpack.c.b16 %v3594, %v3590
    %v4459 = vpack.c.b16 %v3599, %v3595
    %v4460 = vpack.c.b16 %v3600, %v3596
    %v4461 = vpack.c.b16 %v3601, %v3597
    %v4462 = vpack.c.b16 %v3602, %v3598
    %v4463 = vpack.c.b16 %v3607, %v3603
    %v4464 = vpack.c.b16 %v3608, %v3604
    %v4465 = vpack.c.b16 %v3609, %v3605
    %v4466 = vpack.c.b16 %v3610, %v3606
    %v4467 = vpack.c.b16 %v3615, %v3611
    %v4468 = vpack.c.b16 %v3616, %v3612
    %v4469 = vpack.c.b16 %v3617, %v3613
    %v4470 = vpack.c.b16 %v3618, %v3614
    %v4471 = vpack.c.b16 %v3623, %v3619
    %v4472 = vpack.c.b16 %v3624, %v3620
    %v4473 = vpack.c.b16 %v3625, %v3621
    %v4474 = vpack.c.b16 %v3626, %v3622
    %v4475 = vpack.c.b16 %v3631, %v3627
    %v4476 = vpack.c.b16 %v3632, %v3628
    %v4477 = vpack.c.b16 %v3633, %v3629
    %v4478 = vpack.c.b16 %v3634, %v3630
    %v4479 = vpack.c.b16 %v3639, %v3635
    %v4480 = vpack.c.b16 %v3640, %v3636
    %v4481 = vpack.c.b16 %v3641, %v3637
    %v4482 = vpack.c.b16 %v3642, %v3638
    %v4483 = vpack.c.b16 %v3647, %v3643
    %v4484 = vpack.c.b16 %v3648, %v3644
    %v4485 = vpack.c.b16 %v3649, %v3645
    %v4486 = vpack.c.b16 %v3650, %v3646
    %v4487 = vpack.c.b16 %v3655, %v3651
    %v4488 = vpack.c.b16 %v3656, %v3652
    %v4489 = vpack.c.b16 %v3657, %v3653
    %v4490 = vpack.c.b16 %v3658, %v3654
    %v4491 = vpack.c.b16 %v3663, %v3659
    %v4492 = vpack.c.b16 %v3664, %v3660
    %v4493 = vpack.c.b16 %v3665, %v3661
    %v4494 = vpack.c.b16 %v3666, %v3662
    %v4495 = vpack.c.b16 %v3671, %v3667
    %v4496 = vpack.c.b16 %v3672, %v3668
    %v4497 = vpack.c.b16 %v3673, %v3669
    %v4498 = vpack.c.b16 %v3674, %v3670
    %v4499 = vpack.c.b16 %v3679, %v3675
    %v4500 = vpack.c.b16 %v3680, %v3676
    %v4501 = vpack.c.b16 %v3681, %v3677
    %v4502 = vpack.c.b16 %v3682, %v3678
    %v4503 = vpack.c.b16 %v3687, %v3683
    %v4504 = vpack.c.b16 %v3688, %v3684
    %v4505 = vpack.c.b16 %v3689, %v3685
    %v4506 = vpack.c.b16 %v3690, %v3686
    %v4507 = vpack.c.b16 %v3695, %v3691
    %v4508 = vpack.c.b16 %v3696, %v3692
    %v4509 = vpack.c.b16 %v3697, %v3693
    %v4510 = vpack.c.b16 %v3698, %v3694
    %v4511 = vpack.c.b16 %v3703, %v3699
    %v4512 = vpack.c.b16 %v3704, %v3700
    %v4513 = vpack.c.b16 %v3705, %v3701
    %v4514 = vpack.c.b16 %v3706, %v3702
    %v4515 = vpack.c.b16 %v3711, %v3707
    %v4516 = vpack.c.b16 %v3712, %v3708
    %v4517 = vpack.c.b16 %v3713, %v3709
    %v4518 = vpack.c.b16 %v3714, %v3710
    %v4519 = vpack.c.b16 %v3719, %v3715
    %v4520 = vpack.c.b16 %v3720, %v3716
    %v4521 = vpack.c.b16 %v3721, %v3717
    %v4522 = vpack.c.b16 %v3722, %v3718
    %v4523 = vpack.c.b16 %v3727, %v3723
    %v4524 = vpack.c.b16 %v3728, %v3724
    %v4525 = vpack.c.b16 %v3729, %v3725
    %v4526 = vpack.c.b16 %v3730, %v3726
    %v4527 = vpack.c.b16 %v3735, %v3731
    %v4528 = vpack.c.b16 %v3736, %v3732
    %v4529 = vpack.c.b16 %v3737, %v3733
    %v4530 = vpack.c.b16 %v3738, %v3734
    %v4531 = vpack.c.b16 %v3743, %v3739
    %v4532 = vpack.c.b16 %v3744, %v3740
    %v4533 = vpack.c.b16 %v3745, %v3741
    %v4534 = vpack.c.b16 %v3746, %v3742
    %v4535 = vpack.c.b16 %v3751, %v3747
    %v4536 = vpack.c.b16 %v3752, %v3748
    %v4537 = vpack.c.b16 %v3753, %v3749
    %v4538 = vpack.c.b16 %v3754, %v3750
    %v4539 = vpack.c.b16 %v3759, %v3755
    %v4540 = vpack.c.b16 %v3760, %v3756
    %v4541 = vpack.c.b16 %v3761, %v3757
    %v4542 = vpack.c.b16 %v3762, %v3758
    %v4543 = vpack.c.b16 %v3767, %v3763
    %v4544 = vpack.c.b16 %v3768, %v3764
    %v4545 = vpack.c.b16 %v3769, %v3765
    %v4546 = vpack.c.b16 %v3770, %v3766
    %v4547 = vpack.c.b16 %v3775, %v3771
    %v4548 = vpack.c.b16 %v3776, %v3772
    %v4549 = vpack.c.b16 %v3777, %v3773
    %v4550 = vpack.c.b16 %v3778, %v3774
    %v4551 = vpack.c.b16 %v3783, %v3779
    %v4552 = vpack.c.b16 %v3784, %v3780
    %v4553 = vpack.c.b16 %v3785, %v3781
    %v4554 = vpack.c.b16 %v3786, %v3782
    %5323 = vmatprep.subr.bf16.mxu0 %v3816
    %5324 = vmatpush1.bf16.msra.mxu0 %v3815
    %5325 = vmatprep.subr.bf16.mxu0 %v3812
    %5326 = vmatpush1.bf16.msra.mxu0 %v3811
    %5327 = vmatprep.subr.bf16.mxu0 %v3808
    %5328 = vmatpush1.bf16.msra.mxu0 %v3807
    %5329 = vmatprep.subr.bf16.mxu0 %v3804
    %5330 = vmatpush1.bf16.msra.mxu0 %v3803
    %5331 = vmatprep.subr.bf16.mxu0 %v3800
    %5332 = vmatpush1.bf16.msra.mxu0 %v3799
    %5333 = vmatprep.subr.bf16.mxu0 %v3796
    %5334 = vmatpush1.bf16.msra.mxu0 %v3795
    %5335 = vmatprep.subr.bf16.mxu0 %v3792
    %5336 = vmatpush1.bf16.msra.mxu0 %v3791
    %5337 = vmatprep.subr.bf16.mxu0 %v3788
    %5338 = vmatpush1.bf16.msra.mxu0 %v3787
    %5339 = vmatprep.subr.bf16.mxu0 %v3848
    %5340 = vmatpush2.bf16.msra.mxu0 %v3847
    %5341 = vmatprep.subr.bf16.mxu0 %v3844
    %5342 = vmatpush2.bf16.msra.mxu0 %v3843
    %5343 = vmatprep.subr.bf16.mxu0 %v3840
    %5344 = vmatpush2.bf16.msra.mxu0 %v3839
    %5345 = vmatprep.subr.bf16.mxu0 %v3836
    %5346 = vmatpush2.bf16.msra.mxu0 %v3835
    %5347 = vmatprep.subr.bf16.mxu0 %v3832
    %5348 = vmatpush2.bf16.msra.mxu0 %v3831
    %5349 = vmatprep.subr.bf16.mxu0 %v3828
    %5350 = vmatpush2.bf16.msra.mxu0 %v3827
    %5351 = vmatprep.subr.bf16.mxu0 %v3824
    %5352 = vmatpush2.bf16.msra.mxu0 %v3823
    %5353 = vmatprep.subr.bf16.mxu0 %v3820
    %5354 = vmatpush2.bf16.msra.mxu0 %v3819
    %5355 = vmatprep.mubr.bf16.mxu0 %v502
    %5356 = vmatmul.mubr.bf16.gmra.mxu0 %v501
    %v5357 = vpop.f32.mrf.mxu0
    %v5358 = vadd.f32 %v1466, %v5357
    %v5359 = vpop.f32.mrf.mxu0
    %v5360 = vadd.f32 %v1470, %v5359
    %v5361 = vpop.f32.mrf.mxu0
    %v5362 = vadd.f32 %v1466, %v5361
    %v5363 = vpop.f32.mrf.mxu0
    %v5364 = vadd.f32 %v1470, %v5363
    %5365 = vmatprep.mubr.bf16.mxu0 %v526
    %5366 = vmatmul.mubr.bf16.gmra.mxu0 %v525
    %v5367 = vpop.f32.mrf.mxu0
    %v5368 = vadd.f32 %v1466, %v5367
    %v5369 = vpop.f32.mrf.mxu0
    %v5370 = vadd.f32 %v1470, %v5369
    %v5371 = vpop.f32.mrf.mxu0
    %v5372 = vadd.f32 %v1466, %v5371
    %v5373 = vpop.f32.mrf.mxu0
    %v5374 = vadd.f32 %v1470, %v5373
    %5375 = vmatprep.mubr.bf16.mxu0 %v550
    %5376 = vmatmul.mubr.bf16.gmra.mxu0 %v549
    %v5377 = vpop.f32.mrf.mxu0
    %v5378 = vadd.f32 %v1466, %v5377
    %v5379 = vpop.f32.mrf.mxu0
    %v5380 = vadd.f32 %v1470, %v5379
    %v5381 = vpop.f32.mrf.mxu0
    %v5382 = vadd.f32 %v1466, %v5381
    %v5383 = vpop.f32.mrf.mxu0
    %v5384 = vadd.f32 %v1470, %v5383
    %5385 = vmatprep.mubr.bf16.mxu0 %v574
    %5386 = vmatmul.mubr.bf16.gmra.mxu0 %v573
    %v5387 = vpop.f32.mrf.mxu0
    %v5388 = vadd.f32 %v1466, %v5387
    %v5389 = vpop.f32.mrf.mxu0
    %v5390 = vadd.f32 %v1470, %v5389
    %v5391 = vpop.f32.mrf.mxu0
    %v5392 = vadd.f32 %v1466, %v5391
    %v5393 = vpop.f32.mrf.mxu0
    %v5394 = vadd.f32 %v1470, %v5393
    %5395 = vmatprep.mubr.bf16.mxu0 %v598
    %5396 = vmatmul.mubr.bf16.gmra.mxu0 %v597
    %v5397 = vpop.f32.mrf.mxu0
    %v5398 = vadd.f32 %v1466, %v5397
    %v5399 = vpop.f32.mrf.mxu0
    %v5400 = vadd.f32 %v1470, %v5399
    %v5401 = vpop.f32.mrf.mxu0
    %v5402 = vadd.f32 %v1466, %v5401
    %v5403 = vpop.f32.mrf.mxu0
    %v5404 = vadd.f32 %v1470, %v5403
    %5405 = vmatprep.mubr.bf16.mxu0 %v622
    %5406 = vmatmul.mubr.bf16.gmra.mxu0 %v621
    %v5407 = vpop.f32.mrf.mxu0
    %v5408 = vadd.f32 %v1466, %v5407
    %v5409 = vpop.f32.mrf.mxu0
    %v5410 = vadd.f32 %v1470, %v5409
    %v5411 = vpop.f32.mrf.mxu0
    %v5412 = vadd.f32 %v1466, %v5411
    %v5413 = vpop.f32.mrf.mxu0
    %v5414 = vadd.f32 %v1470, %v5413
    %5415 = vmatprep.mubr.bf16.mxu0 %v646
    %5416 = vmatmul.mubr.bf16.gmra.mxu0 %v645
    %v5417 = vpop.f32.mrf.mxu0
    %v5418 = vadd.f32 %v1466, %v5417
    %v5419 = vpop.f32.mrf.mxu0
    %v5420 = vadd.f32 %v1470, %v5419
    %v5421 = vpop.f32.mrf.mxu0
    %v5422 = vadd.f32 %v1466, %v5421
    %v5423 = vpop.f32.mrf.mxu0
    %v5424 = vadd.f32 %v1470, %v5423
    %5425 = vmatprep.mubr.bf16.mxu0 %v670
    %5426 = vmatmul.mubr.bf16.gmra.mxu0 %v669
    %v5427 = vpop.f32.mrf.mxu0
    %v5428 = vadd.f32 %v1466, %v5427
    %v5429 = vpop.f32.mrf.mxu0
    %v5430 = vadd.f32 %v1470, %v5429
    %v5431 = vpop.f32.mrf.mxu0
    %v5432 = vadd.f32 %v1466, %v5431
    %v5433 = vpop.f32.mrf.mxu0
    %v5434 = vadd.f32 %v1470, %v5433
    %5435 = vdwg.mxu0
    %5436 = vmatprep.subr.bf16.mxu0 %v3880
    %5437 = vmatpush1.bf16.msra.mxu0 %v3879
    %5438 = vmatprep.subr.bf16.mxu0 %v3876
    %5439 = vmatpush1.bf16.msra.mxu0 %v3875
    %5440 = vmatprep.subr.bf16.mxu0 %v3872
    %5441 = vmatpush1.bf16.msra.mxu0 %v3871
    %5442 = vmatprep.subr.bf16.mxu0 %v3868
    %5443 = vmatpush1.bf16.msra.mxu0 %v3867
    %5444 = vmatprep.subr.bf16.mxu0 %v3864
    %5445 = vmatpush1.bf16.msra.mxu0 %v3863
    %5446 = vmatprep.subr.bf16.mxu0 %v3860
    %5447 = vmatpush1.bf16.msra.mxu0 %v3859
    %5448 = vmatprep.subr.bf16.mxu0 %v3856
    %5449 = vmatpush1.bf16.msra.mxu0 %v3855
    %5450 = vmatprep.subr.bf16.mxu0 %v3852
    %5451 = vmatpush1.bf16.msra.mxu0 %v3851
    %5452 = vmatprep.subr.bf16.mxu0 %v3912
    %5453 = vmatpush2.bf16.msra.mxu0 %v3911
    %5454 = vmatprep.subr.bf16.mxu0 %v3908
    %5455 = vmatpush2.bf16.msra.mxu0 %v3907
    %5456 = vmatprep.subr.bf16.mxu0 %v3904
    %5457 = vmatpush2.bf16.msra.mxu0 %v3903
    %5458 = vmatprep.subr.bf16.mxu0 %v3900
    %5459 = vmatpush2.bf16.msra.mxu0 %v3899
    %5460 = vmatprep.subr.bf16.mxu0 %v3896
    %5461 = vmatpush2.bf16.msra.mxu0 %v3895
    %5462 = vmatprep.subr.bf16.mxu0 %v3892
    %5463 = vmatpush2.bf16.msra.mxu0 %v3891
    %5464 = vmatprep.subr.bf16.mxu0 %v3888
    %5465 = vmatpush2.bf16.msra.mxu0 %v3887
    %5466 = vmatprep.subr.bf16.mxu0 %v3884
    %5467 = vmatpush2.bf16.msra.mxu0 %v3883
    %5468 = vmatprep.mubr.bf16.mxu0 %v504
    %5469 = vmatmul.mubr.bf16.gmra.mxu0 %v503
    %v5470 = vpop.f32.mrf.mxu0
    %v5471 = vadd.f32 %v5358, %v5470
    %v5472 = vpop.f32.mrf.mxu0
    %v5473 = vadd.f32 %v5360, %v5472
    %v5474 = vpop.f32.mrf.mxu0
    %v5475 = vadd.f32 %v5362, %v5474
    %v5476 = vpop.f32.mrf.mxu0
    %v5477 = vadd.f32 %v5364, %v5476
    %5478 = vmatprep.mubr.bf16.mxu0 %v528
    %5479 = vmatmul.mubr.bf16.gmra.mxu0 %v527
    %v5480 = vpop.f32.mrf.mxu0
    %v5481 = vadd.f32 %v5368, %v5480
    %v5482 = vpop.f32.mrf.mxu0
    %v5483 = vadd.f32 %v5370, %v5482
    %v5484 = vpop.f32.mrf.mxu0
    %v5485 = vadd.f32 %v5372, %v5484
    %v5486 = vpop.f32.mrf.mxu0
    %v5487 = vadd.f32 %v5374, %v5486
    %5488 = vmatprep.mubr.bf16.mxu0 %v552
    %5489 = vmatmul.mubr.bf16.gmra.mxu0 %v551
    %v5490 = vpop.f32.mrf.mxu0
    %v5491 = vadd.f32 %v5378, %v5490
    %v5492 = vpop.f32.mrf.mxu0
    %v5493 = vadd.f32 %v5380, %v5492
    %v5494 = vpop.f32.mrf.mxu0
    %v5495 = vadd.f32 %v5382, %v5494
    %v5496 = vpop.f32.mrf.mxu0
    %v5497 = vadd.f32 %v5384, %v5496
    %5498 = vmatprep.mubr.bf16.mxu0 %v576
    %5499 = vmatmul.mubr.bf16.gmra.mxu0 %v575
    %v5500 = vpop.f32.mrf.mxu0
    %v5501 = vadd.f32 %v5388, %v5500
    %v5502 = vpop.f32.mrf.mxu0
    %v5503 = vadd.f32 %v5390, %v5502
    %v5504 = vpop.f32.mrf.mxu0
    %v5505 = vadd.f32 %v5392, %v5504
    %v5506 = vpop.f32.mrf.mxu0
    %v5507 = vadd.f32 %v5394, %v5506
    %5508 = vmatprep.mubr.bf16.mxu0 %v600
    %5509 = vmatmul.mubr.bf16.gmra.mxu0 %v599
    %v5510 = vpop.f32.mrf.mxu0
    %v5511 = vadd.f32 %v5398, %v5510
    %v5512 = vpop.f32.mrf.mxu0
    %v5513 = vadd.f32 %v5400, %v5512
    %v5514 = vpop.f32.mrf.mxu0
    %v5515 = vadd.f32 %v5402, %v5514
    %v5516 = vpop.f32.mrf.mxu0
    %v5517 = vadd.f32 %v5404, %v5516
    %5518 = vmatprep.mubr.bf16.mxu0 %v624
    %5519 = vmatmul.mubr.bf16.gmra.mxu0 %v623
    %v5520 = vpop.f32.mrf.mxu0
    %v5521 = vadd.f32 %v5408, %v5520
    %v5522 = vpop.f32.mrf.mxu0
    %v5523 = vadd.f32 %v5410, %v5522
    %v5524 = vpop.f32.mrf.mxu0
    %v5525 = vadd.f32 %v5412, %v5524
    %v5526 = vpop.f32.mrf.mxu0
    %v5527 = vadd.f32 %v5414, %v5526
    %5528 = vmatprep.mubr.bf16.mxu0 %v648
    %5529 = vmatmul.mubr.bf16.gmra.mxu0 %v647
    %v5530 = vpop.f32.mrf.mxu0
    %v5531 = vadd.f32 %v5418, %v5530
    %v5532 = vpop.f32.mrf.mxu0
    %v5533 = vadd.f32 %v5420, %v5532
    %v5534 = vpop.f32.mrf.mxu0
    %v5535 = vadd.f32 %v5422, %v5534
    %v5536 = vpop.f32.mrf.mxu0
    %v5537 = vadd.f32 %v5424, %v5536
    %5538 = vmatprep.mubr.bf16.mxu0 %v672
    %5539 = vmatmul.mubr.bf16.gmra.mxu0 %v671
    %v5540 = vpop.f32.mrf.mxu0
    %v5541 = vadd.f32 %v5428, %v5540
    %v5542 = vpop.f32.mrf.mxu0
    %v5543 = vadd.f32 %v5430, %v5542
    %v5544 = vpop.f32.mrf.mxu0
    %v5545 = vadd.f32 %v5432, %v5544
    %v5546 = vpop.f32.mrf.mxu0
    %v5547 = vadd.f32 %v5434, %v5546
    %5548 = vdwg.mxu0
    %5549 = vmatprep.subr.bf16.mxu0 %v3944
    %5550 = vmatpush1.bf16.msra.mxu0 %v3943
    %5551 = vmatprep.subr.bf16.mxu0 %v3940
    %5552 = vmatpush1.bf16.msra.mxu0 %v3939
    %5553 = vmatprep.subr.bf16.mxu0 %v3936
    %5554 = vmatpush1.bf16.msra.mxu0 %v3935
    %5555 = vmatprep.subr.bf16.mxu0 %v3932
    %5556 = vmatpush1.bf16.msra.mxu0 %v3931
    %5557 = vmatprep.subr.bf16.mxu0 %v3928
    %5558 = vmatpush1.bf16.msra.mxu0 %v3927
    %5559 = vmatprep.subr.bf16.mxu0 %v3924
    %5560 = vmatpush1.bf16.msra.mxu0 %v3923
    %5561 = vmatprep.subr.bf16.mxu0 %v3920
    %5562 = vmatpush1.bf16.msra.mxu0 %v3919
    %5563 = vmatprep.subr.bf16.mxu0 %v3916
    %5564 = vmatpush1.bf16.msra.mxu0 %v3915
    %5565 = vmatprep.subr.bf16.mxu0 %v3976
    %5566 = vmatpush2.bf16.msra.mxu0 %v3975
    %5567 = vmatprep.subr.bf16.mxu0 %v3972
    %5568 = vmatpush2.bf16.msra.mxu0 %v3971
    %5569 = vmatprep.subr.bf16.mxu0 %v3968
    %5570 = vmatpush2.bf16.msra.mxu0 %v3967
    %5571 = vmatprep.subr.bf16.mxu0 %v3964
    %5572 = vmatpush2.bf16.msra.mxu0 %v3963
    %5573 = vmatprep.subr.bf16.mxu0 %v3960
    %5574 = vmatpush2.bf16.msra.mxu0 %v3959
    %5575 = vmatprep.subr.bf16.mxu0 %v3956
    %5576 = vmatpush2.bf16.msra.mxu0 %v3955
    %5577 = vmatprep.subr.bf16.mxu0 %v3952
    %5578 = vmatpush2.bf16.msra.mxu0 %v3951
    %5579 = vmatprep.subr.bf16.mxu0 %v3948
    %5580 = vmatpush2.bf16.msra.mxu0 %v3947
    %5581 = vmatprep.mubr.bf16.mxu0 %v506
    %5582 = vmatmul.mubr.bf16.gmra.mxu0 %v505
    %v5583 = vpop.f32.mrf.mxu0
    %v5584 = vadd.f32 %v5471, %v5583
    %v5585 = vpop.f32.mrf.mxu0
    %v5586 = vadd.f32 %v5473, %v5585
    %v5587 = vpop.f32.mrf.mxu0
    %v5588 = vadd.f32 %v5475, %v5587
    %v5589 = vpop.f32.mrf.mxu0
    %v5590 = vadd.f32 %v5477, %v5589
    %5591 = vmatprep.mubr.bf16.mxu0 %v530
    %5592 = vmatmul.mubr.bf16.gmra.mxu0 %v529
    %v5593 = vpop.f32.mrf.mxu0
    %v5594 = vadd.f32 %v5481, %v5593
    %v5595 = vpop.f32.mrf.mxu0
    %v5596 = vadd.f32 %v5483, %v5595
    %v5597 = vpop.f32.mrf.mxu0
    %v5598 = vadd.f32 %v5485, %v5597
    %v5599 = vpop.f32.mrf.mxu0
    %v5600 = vadd.f32 %v5487, %v5599
    %5601 = vmatprep.mubr.bf16.mxu0 %v554
    %5602 = vmatmul.mubr.bf16.gmra.mxu0 %v553
    %v5603 = vpop.f32.mrf.mxu0
    %v5604 = vadd.f32 %v5491, %v5603
    %v5605 = vpop.f32.mrf.mxu0
    %v5606 = vadd.f32 %v5493, %v5605
    %v5607 = vpop.f32.mrf.mxu0
    %v5608 = vadd.f32 %v5495, %v5607
    %v5609 = vpop.f32.mrf.mxu0
    %v5610 = vadd.f32 %v5497, %v5609
    %5611 = vmatprep.mubr.bf16.mxu0 %v578
    %5612 = vmatmul.mubr.bf16.gmra.mxu0 %v577
    %v5613 = vpop.f32.mrf.mxu0
    %v5614 = vadd.f32 %v5501, %v5613
    %v5615 = vpop.f32.mrf.mxu0
    %v5616 = vadd.f32 %v5503, %v5615
    %v5617 = vpop.f32.mrf.mxu0
    %v5618 = vadd.f32 %v5505, %v5617
    %v5619 = vpop.f32.mrf.mxu0
    %v5620 = vadd.f32 %v5507, %v5619
    %5621 = vmatprep.mubr.bf16.mxu0 %v602
    %5622 = vmatmul.mubr.bf16.gmra.mxu0 %v601
    %v5623 = vpop.f32.mrf.mxu0
    %v5624 = vadd.f32 %v5511, %v5623
    %v5625 = vpop.f32.mrf.mxu0
    %v5626 = vadd.f32 %v5513, %v5625
    %v5627 = vpop.f32.mrf.mxu0
    %v5628 = vadd.f32 %v5515, %v5627
    %v5629 = vpop.f32.mrf.mxu0
    %v5630 = vadd.f32 %v5517, %v5629
    %5631 = vmatprep.mubr.bf16.mxu0 %v626
    %5632 = vmatmul.mubr.bf16.gmra.mxu0 %v625
    %v5633 = vpop.f32.mrf.mxu0
    %v5634 = vadd.f32 %v5521, %v5633
    %v5635 = vpop.f32.mrf.mxu0
    %v5636 = vadd.f32 %v5523, %v5635
    %v5637 = vpop.f32.mrf.mxu0
    %v5638 = vadd.f32 %v5525, %v5637
    %v5639 = vpop.f32.mrf.mxu0
    %v5640 = vadd.f32 %v5527, %v5639
    %5641 = vmatprep.mubr.bf16.mxu0 %v650
    %5642 = vmatmul.mubr.bf16.gmra.mxu0 %v649
    %v5643 = vpop.f32.mrf.mxu0
    %v5644 = vadd.f32 %v5531, %v5643
    %v5645 = vpop.f32.mrf.mxu0
    %v5646 = vadd.f32 %v5533, %v5645
    %v5647 = vpop.f32.mrf.mxu0
    %v5648 = vadd.f32 %v5535, %v5647
    %v5649 = vpop.f32.mrf.mxu0
    %v5650 = vadd.f32 %v5537, %v5649
    %5651 = vmatprep.mubr.bf16.mxu0 %v674
    %5652 = vmatmul.mubr.bf16.gmra.mxu0 %v673
    %v5653 = vpop.f32.mrf.mxu0
    %v5654 = vadd.f32 %v5541, %v5653
    %v5655 = vpop.f32.mrf.mxu0
    %v5656 = vadd.f32 %v5543, %v5655
    %v5657 = vpop.f32.mrf.mxu0
    %v5658 = vadd.f32 %v5545, %v5657
    %v5659 = vpop.f32.mrf.mxu0
    %v5660 = vadd.f32 %v5547, %v5659
    %5661 = vdwg.mxu0
    %5662 = vmatprep.subr.bf16.mxu0 %v4008
    %5663 = vmatpush1.bf16.msra.mxu0 %v4007
    %5664 = vmatprep.subr.bf16.mxu0 %v4004
    %5665 = vmatpush1.bf16.msra.mxu0 %v4003
    %5666 = vmatprep.subr.bf16.mxu0 %v4000
    %5667 = vmatpush1.bf16.msra.mxu0 %v3999
    %5668 = vmatprep.subr.bf16.mxu0 %v3996
    %5669 = vmatpush1.bf16.msra.mxu0 %v3995
    %5670 = vmatprep.subr.bf16.mxu0 %v3992
    %5671 = vmatpush1.bf16.msra.mxu0 %v3991
    %5672 = vmatprep.subr.bf16.mxu0 %v3988
    %5673 = vmatpush1.bf16.msra.mxu0 %v3987
    %5674 = vmatprep.subr.bf16.mxu0 %v3984
    %5675 = vmatpush1.bf16.msra.mxu0 %v3983
    %5676 = vmatprep.subr.bf16.mxu0 %v3980
    %5677 = vmatpush1.bf16.msra.mxu0 %v3979
    %5678 = vmatprep.subr.bf16.mxu0 %v4040
    %5679 = vmatpush2.bf16.msra.mxu0 %v4039
    %5680 = vmatprep.subr.bf16.mxu0 %v4036
    %5681 = vmatpush2.bf16.msra.mxu0 %v4035
    %5682 = vmatprep.subr.bf16.mxu0 %v4032
    %5683 = vmatpush2.bf16.msra.mxu0 %v4031
    %5684 = vmatprep.subr.bf16.mxu0 %v4028
    %5685 = vmatpush2.bf16.msra.mxu0 %v4027
    %5686 = vmatprep.subr.bf16.mxu0 %v4024
    %5687 = vmatpush2.bf16.msra.mxu0 %v4023
    %5688 = vmatprep.subr.bf16.mxu0 %v4020
    %5689 = vmatpush2.bf16.msra.mxu0 %v4019
    %5690 = vmatprep.subr.bf16.mxu0 %v4016
    %5691 = vmatpush2.bf16.msra.mxu0 %v4015
    %5692 = vmatprep.subr.bf16.mxu0 %v4012
    %5693 = vmatpush2.bf16.msra.mxu0 %v4011
    %5694 = vmatprep.mubr.bf16.mxu0 %v508
    %5695 = vmatmul.mubr.bf16.gmra.mxu0 %v507
    %v5696 = vpop.f32.mrf.mxu0
    %v5697 = vadd.f32 %v5584, %v5696
    %v5698 = vpop.f32.mrf.mxu0
    %v5699 = vadd.f32 %v5586, %v5698
    %v5700 = vpop.f32.mrf.mxu0
    %v5701 = vadd.f32 %v5588, %v5700
    %v5702 = vpop.f32.mrf.mxu0
    %v5703 = vadd.f32 %v5590, %v5702
    %5704 = vmatprep.mubr.bf16.mxu0 %v532
    %5705 = vmatmul.mubr.bf16.gmra.mxu0 %v531
    %v5706 = vpop.f32.mrf.mxu0
    %v5707 = vadd.f32 %v5594, %v5706
    %v5708 = vpop.f32.mrf.mxu0
    %v5709 = vadd.f32 %v5596, %v5708
    %v5710 = vpop.f32.mrf.mxu0
    %v5711 = vadd.f32 %v5598, %v5710
    %v5712 = vpop.f32.mrf.mxu0
    %v5713 = vadd.f32 %v5600, %v5712
    %5714 = vmatprep.mubr.bf16.mxu0 %v556
    %5715 = vmatmul.mubr.bf16.gmra.mxu0 %v555
    %v5716 = vpop.f32.mrf.mxu0
    %v5717 = vadd.f32 %v5604, %v5716
    %v5718 = vpop.f32.mrf.mxu0
    %v5719 = vadd.f32 %v5606, %v5718
    %v5720 = vpop.f32.mrf.mxu0
    %v5721 = vadd.f32 %v5608, %v5720
    %v5722 = vpop.f32.mrf.mxu0
    %v5723 = vadd.f32 %v5610, %v5722
    %5724 = vmatprep.mubr.bf16.mxu0 %v580
    %5725 = vmatmul.mubr.bf16.gmra.mxu0 %v579
    %v5726 = vpop.f32.mrf.mxu0
    %v5727 = vadd.f32 %v5614, %v5726
    %v5728 = vpop.f32.mrf.mxu0
    %v5729 = vadd.f32 %v5616, %v5728
    %v5730 = vpop.f32.mrf.mxu0
    %v5731 = vadd.f32 %v5618, %v5730
    %v5732 = vpop.f32.mrf.mxu0
    %v5733 = vadd.f32 %v5620, %v5732
    %5734 = vmatprep.mubr.bf16.mxu0 %v604
    %5735 = vmatmul.mubr.bf16.gmra.mxu0 %v603
    %v5736 = vpop.f32.mrf.mxu0
    %v5737 = vadd.f32 %v5624, %v5736
    %v5738 = vpop.f32.mrf.mxu0
    %v5739 = vadd.f32 %v5626, %v5738
    %v5740 = vpop.f32.mrf.mxu0
    %v5741 = vadd.f32 %v5628, %v5740
    %v5742 = vpop.f32.mrf.mxu0
    %v5743 = vadd.f32 %v5630, %v5742
    %5744 = vmatprep.mubr.bf16.mxu0 %v628
    %5745 = vmatmul.mubr.bf16.gmra.mxu0 %v627
    %v5746 = vpop.f32.mrf.mxu0
    %v5747 = vadd.f32 %v5634, %v5746
    %v5748 = vpop.f32.mrf.mxu0
    %v5749 = vadd.f32 %v5636, %v5748
    %v5750 = vpop.f32.mrf.mxu0
    %v5751 = vadd.f32 %v5638, %v5750
    %v5752 = vpop.f32.mrf.mxu0
    %v5753 = vadd.f32 %v5640, %v5752
    %5754 = vmatprep.mubr.bf16.mxu0 %v652
    %5755 = vmatmul.mubr.bf16.gmra.mxu0 %v651
    %v5756 = vpop.f32.mrf.mxu0
    %v5757 = vadd.f32 %v5644, %v5756
    %v5758 = vpop.f32.mrf.mxu0
    %v5759 = vadd.f32 %v5646, %v5758
    %v5760 = vpop.f32.mrf.mxu0
    %v5761 = vadd.f32 %v5648, %v5760
    %v5762 = vpop.f32.mrf.mxu0
    %v5763 = vadd.f32 %v5650, %v5762
    %5764 = vmatprep.mubr.bf16.mxu0 %v676
    %5765 = vmatmul.mubr.bf16.gmra.mxu0 %v675
    %v5766 = vpop.f32.mrf.mxu0
    %v5767 = vadd.f32 %v5654, %v5766
    %v5768 = vpop.f32.mrf.mxu0
    %v5769 = vadd.f32 %v5656, %v5768
    %v5770 = vpop.f32.mrf.mxu0
    %v5771 = vadd.f32 %v5658, %v5770
    %v5772 = vpop.f32.mrf.mxu0
    %v5773 = vadd.f32 %v5660, %v5772
    %5774 = vdwg.mxu0
    %5775 = vmatprep.subr.bf16.mxu0 %v4072
    %5776 = vmatpush1.bf16.msra.mxu0 %v4071
    %5777 = vmatprep.subr.bf16.mxu0 %v4068
    %5778 = vmatpush1.bf16.msra.mxu0 %v4067
    %5779 = vmatprep.subr.bf16.mxu0 %v4064
    %5780 = vmatpush1.bf16.msra.mxu0 %v4063
    %5781 = vmatprep.subr.bf16.mxu0 %v4060
    %5782 = vmatpush1.bf16.msra.mxu0 %v4059
    %5783 = vmatprep.subr.bf16.mxu0 %v4056
    %5784 = vmatpush1.bf16.msra.mxu0 %v4055
    %5785 = vmatprep.subr.bf16.mxu0 %v4052
    %5786 = vmatpush1.bf16.msra.mxu0 %v4051
    %5787 = vmatprep.subr.bf16.mxu0 %v4048
    %5788 = vmatpush1.bf16.msra.mxu0 %v4047
    %5789 = vmatprep.subr.bf16.mxu0 %v4044
    %5790 = vmatpush1.bf16.msra.mxu0 %v4043
    %5791 = vmatprep.subr.bf16.mxu0 %v4104
    %5792 = vmatpush2.bf16.msra.mxu0 %v4103
    %5793 = vmatprep.subr.bf16.mxu0 %v4100
    %5794 = vmatpush2.bf16.msra.mxu0 %v4099
    %5795 = vmatprep.subr.bf16.mxu0 %v4096
    %5796 = vmatpush2.bf16.msra.mxu0 %v4095
    %5797 = vmatprep.subr.bf16.mxu0 %v4092
    %5798 = vmatpush2.bf16.msra.mxu0 %v4091
    %5799 = vmatprep.subr.bf16.mxu0 %v4088
    %5800 = vmatpush2.bf16.msra.mxu0 %v4087
    %5801 = vmatprep.subr.bf16.mxu0 %v4084
    %5802 = vmatpush2.bf16.msra.mxu0 %v4083
    %5803 = vmatprep.subr.bf16.mxu0 %v4080
    %5804 = vmatpush2.bf16.msra.mxu0 %v4079
    %5805 = vmatprep.subr.bf16.mxu0 %v4076
    %5806 = vmatpush2.bf16.msra.mxu0 %v4075
    %5807 = vmatprep.mubr.bf16.mxu0 %v510
    %5808 = vmatmul.mubr.bf16.gmra.mxu0 %v509
    %v5809 = vpop.f32.mrf.mxu0
    %v5810 = vadd.f32 %v5697, %v5809
    %v5811 = vpop.f32.mrf.mxu0
    %v5812 = vadd.f32 %v5699, %v5811
    %v5813 = vpop.f32.mrf.mxu0
    %v5814 = vadd.f32 %v5701, %v5813
    %v5815 = vpop.f32.mrf.mxu0
    %v5816 = vadd.f32 %v5703, %v5815
    %5817 = vmatprep.mubr.bf16.mxu0 %v534
    %5818 = vmatmul.mubr.bf16.gmra.mxu0 %v533
    %v5819 = vpop.f32.mrf.mxu0
    %v5820 = vadd.f32 %v5707, %v5819
    %v5821 = vpop.f32.mrf.mxu0
    %v5822 = vadd.f32 %v5709, %v5821
    %v5823 = vpop.f32.mrf.mxu0
    %v5824 = vadd.f32 %v5711, %v5823
    %v5825 = vpop.f32.mrf.mxu0
    %v5826 = vadd.f32 %v5713, %v5825
    %5827 = vmatprep.mubr.bf16.mxu0 %v558
    %5828 = vmatmul.mubr.bf16.gmra.mxu0 %v557
    %v5829 = vpop.f32.mrf.mxu0
    %v5830 = vadd.f32 %v5717, %v5829
    %v5831 = vpop.f32.mrf.mxu0
    %v5832 = vadd.f32 %v5719, %v5831
    %v5833 = vpop.f32.mrf.mxu0
    %v5834 = vadd.f32 %v5721, %v5833
    %v5835 = vpop.f32.mrf.mxu0
    %v5836 = vadd.f32 %v5723, %v5835
    %5837 = vmatprep.mubr.bf16.mxu0 %v582
    %5838 = vmatmul.mubr.bf16.gmra.mxu0 %v581
    %v5839 = vpop.f32.mrf.mxu0
    %v5840 = vadd.f32 %v5727, %v5839
    %v5841 = vpop.f32.mrf.mxu0
    %v5842 = vadd.f32 %v5729, %v5841
    %v5843 = vpop.f32.mrf.mxu0
    %v5844 = vadd.f32 %v5731, %v5843
    %v5845 = vpop.f32.mrf.mxu0
    %v5846 = vadd.f32 %v5733, %v5845
    %5847 = vmatprep.mubr.bf16.mxu0 %v606
    %5848 = vmatmul.mubr.bf16.gmra.mxu0 %v605
    %v5849 = vpop.f32.mrf.mxu0
    %v5850 = vadd.f32 %v5737, %v5849
    %v5851 = vpop.f32.mrf.mxu0
    %v5852 = vadd.f32 %v5739, %v5851
    %v5853 = vpop.f32.mrf.mxu0
    %v5854 = vadd.f32 %v5741, %v5853
    %v5855 = vpop.f32.mrf.mxu0
    %v5856 = vadd.f32 %v5743, %v5855
    %5857 = vmatprep.mubr.bf16.mxu0 %v630
    %5858 = vmatmul.mubr.bf16.gmra.mxu0 %v629
    %v5859 = vpop.f32.mrf.mxu0
    %v5860 = vadd.f32 %v5747, %v5859
    %v5861 = vpop.f32.mrf.mxu0
    %v5862 = vadd.f32 %v5749, %v5861
    %v5863 = vpop.f32.mrf.mxu0
    %v5864 = vadd.f32 %v5751, %v5863
    %v5865 = vpop.f32.mrf.mxu0
    %v5866 = vadd.f32 %v5753, %v5865
    %5867 = vmatprep.mubr.bf16.mxu0 %v654
    %5868 = vmatmul.mubr.bf16.gmra.mxu0 %v653
    %v5869 = vpop.f32.mrf.mxu0
    %v5870 = vadd.f32 %v5757, %v5869
    %v5871 = vpop.f32.mrf.mxu0
    %v5872 = vadd.f32 %v5759, %v5871
    %v5873 = vpop.f32.mrf.mxu0
    %v5874 = vadd.f32 %v5761, %v5873
    %v5875 = vpop.f32.mrf.mxu0
    %v5876 = vadd.f32 %v5763, %v5875
    %5877 = vmatprep.mubr.bf16.mxu0 %v678
    %5878 = vmatmul.mubr.bf16.gmra.mxu0 %v677
    %v5879 = vpop.f32.mrf.mxu0
    %v5880 = vadd.f32 %v5767, %v5879
    %v5881 = vpop.f32.mrf.mxu0
    %v5882 = vadd.f32 %v5769, %v5881
    %v5883 = vpop.f32.mrf.mxu0
    %v5884 = vadd.f32 %v5771, %v5883
    %v5885 = vpop.f32.mrf.mxu0
    %v5886 = vadd.f32 %v5773, %v5885
    %5887 = vdwg.mxu0
    %5888 = vmatprep.subr.bf16.mxu0 %v4136
    %5889 = vmatpush1.bf16.msra.mxu0 %v4135
    %5890 = vmatprep.subr.bf16.mxu0 %v4132
    %5891 = vmatpush1.bf16.msra.mxu0 %v4131
    %5892 = vmatprep.subr.bf16.mxu0 %v4128
    %5893 = vmatpush1.bf16.msra.mxu0 %v4127
    %5894 = vmatprep.subr.bf16.mxu0 %v4124
    %5895 = vmatpush1.bf16.msra.mxu0 %v4123
    %5896 = vmatprep.subr.bf16.mxu0 %v4120
    %5897 = vmatpush1.bf16.msra.mxu0 %v4119
    %5898 = vmatprep.subr.bf16.mxu0 %v4116
    %5899 = vmatpush1.bf16.msra.mxu0 %v4115
    %5900 = vmatprep.subr.bf16.mxu0 %v4112
    %5901 = vmatpush1.bf16.msra.mxu0 %v4111
    %5902 = vmatprep.subr.bf16.mxu0 %v4108
    %5903 = vmatpush1.bf16.msra.mxu0 %v4107
    %5904 = vmatprep.subr.bf16.mxu0 %v4168
    %5905 = vmatpush2.bf16.msra.mxu0 %v4167
    %5906 = vmatprep.subr.bf16.mxu0 %v4164
    %5907 = vmatpush2.bf16.msra.mxu0 %v4163
    %5908 = vmatprep.subr.bf16.mxu0 %v4160
    %5909 = vmatpush2.bf16.msra.mxu0 %v4159
    %5910 = vmatprep.subr.bf16.mxu0 %v4156
    %5911 = vmatpush2.bf16.msra.mxu0 %v4155
    %5912 = vmatprep.subr.bf16.mxu0 %v4152
    %5913 = vmatpush2.bf16.msra.mxu0 %v4151
    %5914 = vmatprep.subr.bf16.mxu0 %v4148
    %5915 = vmatpush2.bf16.msra.mxu0 %v4147
    %5916 = vmatprep.subr.bf16.mxu0 %v4144
    %5917 = vmatpush2.bf16.msra.mxu0 %v4143
    %5918 = vmatprep.subr.bf16.mxu0 %v4140
    %5919 = vmatpush2.bf16.msra.mxu0 %v4139
    %5920 = vmatprep.mubr.bf16.mxu0 %v512
    %5921 = vmatmul.mubr.bf16.gmra.mxu0 %v511
    %v5922 = vpop.f32.mrf.mxu0
    %v5923 = vadd.f32 %v5810, %v5922
    %v5924 = vpop.f32.mrf.mxu0
    %v5925 = vadd.f32 %v5812, %v5924
    %v5926 = vpop.f32.mrf.mxu0
    %v5927 = vadd.f32 %v5814, %v5926
    %v5928 = vpop.f32.mrf.mxu0
    %v5929 = vadd.f32 %v5816, %v5928
    %5930 = vmatprep.mubr.bf16.mxu0 %v536
    %5931 = vmatmul.mubr.bf16.gmra.mxu0 %v535
    %v5932 = vpop.f32.mrf.mxu0
    %v5933 = vadd.f32 %v5820, %v5932
    %v5934 = vpop.f32.mrf.mxu0
    %v5935 = vadd.f32 %v5822, %v5934
    %v5936 = vpop.f32.mrf.mxu0
    %v5937 = vadd.f32 %v5824, %v5936
    %v5938 = vpop.f32.mrf.mxu0
    %v5939 = vadd.f32 %v5826, %v5938
    %5940 = vmatprep.mubr.bf16.mxu0 %v560
    %5941 = vmatmul.mubr.bf16.gmra.mxu0 %v559
    %v5942 = vpop.f32.mrf.mxu0
    %v5943 = vadd.f32 %v5830, %v5942
    %v5944 = vpop.f32.mrf.mxu0
    %v5945 = vadd.f32 %v5832, %v5944
    %v5946 = vpop.f32.mrf.mxu0
    %v5947 = vadd.f32 %v5834, %v5946
    %v5948 = vpop.f32.mrf.mxu0
    %v5949 = vadd.f32 %v5836, %v5948
    %5950 = vmatprep.mubr.bf16.mxu0 %v584
    %5951 = vmatmul.mubr.bf16.gmra.mxu0 %v583
    %v5952 = vpop.f32.mrf.mxu0
    %v5953 = vadd.f32 %v5840, %v5952
    %v5954 = vpop.f32.mrf.mxu0
    %v5955 = vadd.f32 %v5842, %v5954
    %v5956 = vpop.f32.mrf.mxu0
    %v5957 = vadd.f32 %v5844, %v5956
    %v5958 = vpop.f32.mrf.mxu0
    %v5959 = vadd.f32 %v5846, %v5958
    %5960 = vmatprep.mubr.bf16.mxu0 %v608
    %5961 = vmatmul.mubr.bf16.gmra.mxu0 %v607
    %v5962 = vpop.f32.mrf.mxu0
    %v5963 = vadd.f32 %v5850, %v5962
    %v5964 = vpop.f32.mrf.mxu0
    %v5965 = vadd.f32 %v5852, %v5964
    %v5966 = vpop.f32.mrf.mxu0
    %v5967 = vadd.f32 %v5854, %v5966
    %v5968 = vpop.f32.mrf.mxu0
    %v5969 = vadd.f32 %v5856, %v5968
    %5970 = vmatprep.mubr.bf16.mxu0 %v632
    %5971 = vmatmul.mubr.bf16.gmra.mxu0 %v631
    %v5972 = vpop.f32.mrf.mxu0
    %v5973 = vadd.f32 %v5860, %v5972
    %v5974 = vpop.f32.mrf.mxu0
    %v5975 = vadd.f32 %v5862, %v5974
    %v5976 = vpop.f32.mrf.mxu0
    %v5977 = vadd.f32 %v5864, %v5976
    %v5978 = vpop.f32.mrf.mxu0
    %v5979 = vadd.f32 %v5866, %v5978
    %5980 = vmatprep.mubr.bf16.mxu0 %v656
    %5981 = vmatmul.mubr.bf16.gmra.mxu0 %v655
    %v5982 = vpop.f32.mrf.mxu0
    %v5983 = vadd.f32 %v5870, %v5982
    %v5984 = vpop.f32.mrf.mxu0
    %v5985 = vadd.f32 %v5872, %v5984
    %v5986 = vpop.f32.mrf.mxu0
    %v5987 = vadd.f32 %v5874, %v5986
    %v5988 = vpop.f32.mrf.mxu0
    %v5989 = vadd.f32 %v5876, %v5988
    %5990 = vmatprep.mubr.bf16.mxu0 %v680
    %5991 = vmatmul.mubr.bf16.gmra.mxu0 %v679
    %v5992 = vpop.f32.mrf.mxu0
    %v5993 = vadd.f32 %v5880, %v5992
    %v5994 = vpop.f32.mrf.mxu0
    %v5995 = vadd.f32 %v5882, %v5994
    %v5996 = vpop.f32.mrf.mxu0
    %v5997 = vadd.f32 %v5884, %v5996
    %v5998 = vpop.f32.mrf.mxu0
    %v5999 = vadd.f32 %v5886, %v5998
    %6000 = vdwg.mxu0
    %6001 = vmatprep.subr.bf16.mxu0 %v4200
    %6002 = vmatpush1.bf16.msra.mxu0 %v4199
    %6003 = vmatprep.subr.bf16.mxu0 %v4196
    %6004 = vmatpush1.bf16.msra.mxu0 %v4195
    %6005 = vmatprep.subr.bf16.mxu0 %v4192
    %6006 = vmatpush1.bf16.msra.mxu0 %v4191
    %6007 = vmatprep.subr.bf16.mxu0 %v4188
    %6008 = vmatpush1.bf16.msra.mxu0 %v4187
    %6009 = vmatprep.subr.bf16.mxu0 %v4184
    %6010 = vmatpush1.bf16.msra.mxu0 %v4183
    %6011 = vmatprep.subr.bf16.mxu0 %v4180
    %6012 = vmatpush1.bf16.msra.mxu0 %v4179
    %6013 = vmatprep.subr.bf16.mxu0 %v4176
    %6014 = vmatpush1.bf16.msra.mxu0 %v4175
    %6015 = vmatprep.subr.bf16.mxu0 %v4172
    %6016 = vmatpush1.bf16.msra.mxu0 %v4171
    %6017 = vmatprep.subr.bf16.mxu0 %v4232
    %6018 = vmatpush2.bf16.msra.mxu0 %v4231
    %6019 = vmatprep.subr.bf16.mxu0 %v4228
    %6020 = vmatpush2.bf16.msra.mxu0 %v4227
    %6021 = vmatprep.subr.bf16.mxu0 %v4224
    %6022 = vmatpush2.bf16.msra.mxu0 %v4223
    %6023 = vmatprep.subr.bf16.mxu0 %v4220
    %6024 = vmatpush2.bf16.msra.mxu0 %v4219
    %6025 = vmatprep.subr.bf16.mxu0 %v4216
    %6026 = vmatpush2.bf16.msra.mxu0 %v4215
    %6027 = vmatprep.subr.bf16.mxu0 %v4212
    %6028 = vmatpush2.bf16.msra.mxu0 %v4211
    %6029 = vmatprep.subr.bf16.mxu0 %v4208
    %6030 = vmatpush2.bf16.msra.mxu0 %v4207
    %6031 = vmatprep.subr.bf16.mxu0 %v4204
    %6032 = vmatpush2.bf16.msra.mxu0 %v4203
    %6033 = vmatprep.mubr.bf16.mxu0 %v514
    %6034 = vmatmul.mubr.bf16.gmra.mxu0 %v513
    %v6035 = vpop.f32.mrf.mxu0
    %v6036 = vadd.f32 %v5923, %v6035
    %v6037 = vpop.f32.mrf.mxu0
    %v6038 = vadd.f32 %v5925, %v6037
    %v6039 = vpop.f32.mrf.mxu0
    %v6040 = vadd.f32 %v5927, %v6039
    %v6041 = vpop.f32.mrf.mxu0
    %v6042 = vadd.f32 %v5929, %v6041
    %6043 = vmatprep.mubr.bf16.mxu0 %v538
    %6044 = vmatmul.mubr.bf16.gmra.mxu0 %v537
    %v6045 = vpop.f32.mrf.mxu0
    %v6046 = vadd.f32 %v5933, %v6045
    %v6047 = vpop.f32.mrf.mxu0
    %v6048 = vadd.f32 %v5935, %v6047
    %v6049 = vpop.f32.mrf.mxu0
    %v6050 = vadd.f32 %v5937, %v6049
    %v6051 = vpop.f32.mrf.mxu0
    %v6052 = vadd.f32 %v5939, %v6051
    %6053 = vmatprep.mubr.bf16.mxu0 %v562
    %6054 = vmatmul.mubr.bf16.gmra.mxu0 %v561
    %v6055 = vpop.f32.mrf.mxu0
    %v6056 = vadd.f32 %v5943, %v6055
    %v6057 = vpop.f32.mrf.mxu0
    %v6058 = vadd.f32 %v5945, %v6057
    %v6059 = vpop.f32.mrf.mxu0
    %v6060 = vadd.f32 %v5947, %v6059
    %v6061 = vpop.f32.mrf.mxu0
    %v6062 = vadd.f32 %v5949, %v6061
    %6063 = vmatprep.mubr.bf16.mxu0 %v586
    %6064 = vmatmul.mubr.bf16.gmra.mxu0 %v585
    %v6065 = vpop.f32.mrf.mxu0
    %v6066 = vadd.f32 %v5953, %v6065
    %v6067 = vpop.f32.mrf.mxu0
    %v6068 = vadd.f32 %v5955, %v6067
    %v6069 = vpop.f32.mrf.mxu0
    %v6070 = vadd.f32 %v5957, %v6069
    %v6071 = vpop.f32.mrf.mxu0
    %v6072 = vadd.f32 %v5959, %v6071
    %6073 = vmatprep.mubr.bf16.mxu0 %v610
    %6074 = vmatmul.mubr.bf16.gmra.mxu0 %v609
    %v6075 = vpop.f32.mrf.mxu0
    %v6076 = vadd.f32 %v5963, %v6075
    %v6077 = vpop.f32.mrf.mxu0
    %v6078 = vadd.f32 %v5965, %v6077
    %v6079 = vpop.f32.mrf.mxu0
    %v6080 = vadd.f32 %v5967, %v6079
    %v6081 = vpop.f32.mrf.mxu0
    %v6082 = vadd.f32 %v5969, %v6081
    %6083 = vmatprep.mubr.bf16.mxu0 %v634
    %6084 = vmatmul.mubr.bf16.gmra.mxu0 %v633
    %v6085 = vpop.f32.mrf.mxu0
    %v6086 = vadd.f32 %v5973, %v6085
    %v6087 = vpop.f32.mrf.mxu0
    %v6088 = vadd.f32 %v5975, %v6087
    %v6089 = vpop.f32.mrf.mxu0
    %v6090 = vadd.f32 %v5977, %v6089
    %v6091 = vpop.f32.mrf.mxu0
    %v6092 = vadd.f32 %v5979, %v6091
    %6093 = vmatprep.mubr.bf16.mxu0 %v658
    %6094 = vmatmul.mubr.bf16.gmra.mxu0 %v657
    %v6095 = vpop.f32.mrf.mxu0
    %v6096 = vadd.f32 %v5983, %v6095
    %v6097 = vpop.f32.mrf.mxu0
    %v6098 = vadd.f32 %v5985, %v6097
    %v6099 = vpop.f32.mrf.mxu0
    %v6100 = vadd.f32 %v5987, %v6099
    %v6101 = vpop.f32.mrf.mxu0
    %v6102 = vadd.f32 %v5989, %v6101
    %6103 = vmatprep.mubr.bf16.mxu0 %v682
    %6104 = vmatmul.mubr.bf16.gmra.mxu0 %v681
    %v6105 = vpop.f32.mrf.mxu0
    %v6106 = vadd.f32 %v5993, %v6105
    %v6107 = vpop.f32.mrf.mxu0
    %v6108 = vadd.f32 %v5995, %v6107
    %v6109 = vpop.f32.mrf.mxu0
    %v6110 = vadd.f32 %v5997, %v6109
    %v6111 = vpop.f32.mrf.mxu0
    %v6112 = vadd.f32 %v5999, %v6111
    %6113 = vdwg.mxu0
    %6114 = vmatprep.subr.bf16.mxu0 %v4264
    %6115 = vmatpush1.bf16.msra.mxu0 %v4263
    %6116 = vmatprep.subr.bf16.mxu0 %v4260
    %6117 = vmatpush1.bf16.msra.mxu0 %v4259
    %6118 = vmatprep.subr.bf16.mxu0 %v4256
    %6119 = vmatpush1.bf16.msra.mxu0 %v4255
    %6120 = vmatprep.subr.bf16.mxu0 %v4252
    %6121 = vmatpush1.bf16.msra.mxu0 %v4251
    %6122 = vmatprep.subr.bf16.mxu0 %v4248
    %6123 = vmatpush1.bf16.msra.mxu0 %v4247
    %6124 = vmatprep.subr.bf16.mxu0 %v4244
    %6125 = vmatpush1.bf16.msra.mxu0 %v4243
    %6126 = vmatprep.subr.bf16.mxu0 %v4240
    %6127 = vmatpush1.bf16.msra.mxu0 %v4239
    %6128 = vmatprep.subr.bf16.mxu0 %v4236
    %6129 = vmatpush1.bf16.msra.mxu0 %v4235
    %6130 = vmatprep.subr.bf16.mxu0 %v4296
    %6131 = vmatpush2.bf16.msra.mxu0 %v4295
    %6132 = vmatprep.subr.bf16.mxu0 %v4292
    %6133 = vmatpush2.bf16.msra.mxu0 %v4291
    %6134 = vmatprep.subr.bf16.mxu0 %v4288
    %6135 = vmatpush2.bf16.msra.mxu0 %v4287
    %6136 = vmatprep.subr.bf16.mxu0 %v4284
    %6137 = vmatpush2.bf16.msra.mxu0 %v4283
    %6138 = vmatprep.subr.bf16.mxu0 %v4280
    %6139 = vmatpush2.bf16.msra.mxu0 %v4279
    %6140 = vmatprep.subr.bf16.mxu0 %v4276
    %6141 = vmatpush2.bf16.msra.mxu0 %v4275
    %6142 = vmatprep.subr.bf16.mxu0 %v4272
    %6143 = vmatpush2.bf16.msra.mxu0 %v4271
    %6144 = vmatprep.subr.bf16.mxu0 %v4268
    %6145 = vmatpush2.bf16.msra.mxu0 %v4267
    %6146 = vmatprep.mubr.bf16.mxu0 %v516
    %6147 = vmatmul.mubr.bf16.gmra.mxu0 %v515
    %v6148 = vpop.f32.mrf.mxu0
    %v6149 = vadd.f32 %v6036, %v6148
    %v6150 = vpop.f32.mrf.mxu0
    %v6151 = vadd.f32 %v6038, %v6150
    %v6152 = vpop.f32.mrf.mxu0
    %v6153 = vadd.f32 %v6040, %v6152
    %v6154 = vpop.f32.mrf.mxu0
    %v6155 = vadd.f32 %v6042, %v6154
    %6156 = vmatprep.mubr.bf16.mxu0 %v540
    %6157 = vmatmul.mubr.bf16.gmra.mxu0 %v539
    %v6158 = vpop.f32.mrf.mxu0
    %v6159 = vadd.f32 %v6046, %v6158
    %v6160 = vpop.f32.mrf.mxu0
    %v6161 = vadd.f32 %v6048, %v6160
    %v6162 = vpop.f32.mrf.mxu0
    %v6163 = vadd.f32 %v6050, %v6162
    %v6164 = vpop.f32.mrf.mxu0
    %v6165 = vadd.f32 %v6052, %v6164
    %6166 = vmatprep.mubr.bf16.mxu0 %v564
    %6167 = vmatmul.mubr.bf16.gmra.mxu0 %v563
    %v6168 = vpop.f32.mrf.mxu0
    %v6169 = vadd.f32 %v6056, %v6168
    %v6170 = vpop.f32.mrf.mxu0
    %v6171 = vadd.f32 %v6058, %v6170
    %v6172 = vpop.f32.mrf.mxu0
    %v6173 = vadd.f32 %v6060, %v6172
    %v6174 = vpop.f32.mrf.mxu0
    %v6175 = vadd.f32 %v6062, %v6174
    %6176 = vmatprep.mubr.bf16.mxu0 %v588
    %6177 = vmatmul.mubr.bf16.gmra.mxu0 %v587
    %v6178 = vpop.f32.mrf.mxu0
    %v6179 = vadd.f32 %v6066, %v6178
    %v6180 = vpop.f32.mrf.mxu0
    %v6181 = vadd.f32 %v6068, %v6180
    %v6182 = vpop.f32.mrf.mxu0
    %v6183 = vadd.f32 %v6070, %v6182
    %v6184 = vpop.f32.mrf.mxu0
    %v6185 = vadd.f32 %v6072, %v6184
    %6186 = vmatprep.mubr.bf16.mxu0 %v612
    %6187 = vmatmul.mubr.bf16.gmra.mxu0 %v611
    %v6188 = vpop.f32.mrf.mxu0
    %v6189 = vadd.f32 %v6076, %v6188
    %v6190 = vpop.f32.mrf.mxu0
    %v6191 = vadd.f32 %v6078, %v6190
    %v6192 = vpop.f32.mrf.mxu0
    %v6193 = vadd.f32 %v6080, %v6192
    %v6194 = vpop.f32.mrf.mxu0
    %v6195 = vadd.f32 %v6082, %v6194
    %6196 = vmatprep.mubr.bf16.mxu0 %v636
    %6197 = vmatmul.mubr.bf16.gmra.mxu0 %v635
    %v6198 = vpop.f32.mrf.mxu0
    %v6199 = vadd.f32 %v6086, %v6198
    %v6200 = vpop.f32.mrf.mxu0
    %v6201 = vadd.f32 %v6088, %v6200
    %v6202 = vpop.f32.mrf.mxu0
    %v6203 = vadd.f32 %v6090, %v6202
    %v6204 = vpop.f32.mrf.mxu0
    %v6205 = vadd.f32 %v6092, %v6204
    %6206 = vmatprep.mubr.bf16.mxu0 %v660
    %6207 = vmatmul.mubr.bf16.gmra.mxu0 %v659
    %v6208 = vpop.f32.mrf.mxu0
    %v6209 = vadd.f32 %v6096, %v6208
    %v6210 = vpop.f32.mrf.mxu0
    %v6211 = vadd.f32 %v6098, %v6210
    %v6212 = vpop.f32.mrf.mxu0
    %v6213 = vadd.f32 %v6100, %v6212
    %v6214 = vpop.f32.mrf.mxu0
    %v6215 = vadd.f32 %v6102, %v6214
    %6216 = vmatprep.mubr.bf16.mxu0 %v684
    %6217 = vmatmul.mubr.bf16.gmra.mxu0 %v683
    %v6218 = vpop.f32.mrf.mxu0
    %v6219 = vadd.f32 %v6106, %v6218
    %v6220 = vpop.f32.mrf.mxu0
    %v6221 = vadd.f32 %v6108, %v6220
    %v6222 = vpop.f32.mrf.mxu0
    %v6223 = vadd.f32 %v6110, %v6222
    %v6224 = vpop.f32.mrf.mxu0
    %v6225 = vadd.f32 %v6112, %v6224
    %6226 = vdwg.mxu0
    %6227 = vmatprep.subr.bf16.mxu0 %v4328
    %6228 = vmatpush1.bf16.msra.mxu0 %v4327
    %6229 = vmatprep.subr.bf16.mxu0 %v4324
    %6230 = vmatpush1.bf16.msra.mxu0 %v4323
    %6231 = vmatprep.subr.bf16.mxu0 %v4320
    %6232 = vmatpush1.bf16.msra.mxu0 %v4319
    %6233 = vmatprep.subr.bf16.mxu0 %v4316
    %6234 = vmatpush1.bf16.msra.mxu0 %v4315
    %6235 = vmatprep.subr.bf16.mxu0 %v4312
    %6236 = vmatpush1.bf16.msra.mxu0 %v4311
    %6237 = vmatprep.subr.bf16.mxu0 %v4308
    %6238 = vmatpush1.bf16.msra.mxu0 %v4307
    %6239 = vmatprep.subr.bf16.mxu0 %v4304
    %6240 = vmatpush1.bf16.msra.mxu0 %v4303
    %6241 = vmatprep.subr.bf16.mxu0 %v4300
    %6242 = vmatpush1.bf16.msra.mxu0 %v4299
    %6243 = vmatprep.subr.bf16.mxu0 %v4360
    %6244 = vmatpush2.bf16.msra.mxu0 %v4359
    %6245 = vmatprep.subr.bf16.mxu0 %v4356
    %6246 = vmatpush2.bf16.msra.mxu0 %v4355
    %6247 = vmatprep.subr.bf16.mxu0 %v4352
    %6248 = vmatpush2.bf16.msra.mxu0 %v4351
    %6249 = vmatprep.subr.bf16.mxu0 %v4348
    %6250 = vmatpush2.bf16.msra.mxu0 %v4347
    %6251 = vmatprep.subr.bf16.mxu0 %v4344
    %6252 = vmatpush2.bf16.msra.mxu0 %v4343
    %6253 = vmatprep.subr.bf16.mxu0 %v4340
    %6254 = vmatpush2.bf16.msra.mxu0 %v4339
    %6255 = vmatprep.subr.bf16.mxu0 %v4336
    %6256 = vmatpush2.bf16.msra.mxu0 %v4335
    %6257 = vmatprep.subr.bf16.mxu0 %v4332
    %6258 = vmatpush2.bf16.msra.mxu0 %v4331
    %6259 = vmatprep.mubr.bf16.mxu0 %v518
    %6260 = vmatmul.mubr.bf16.gmra.mxu0 %v517
    %v6261 = vpop.f32.mrf.mxu0
    %v6262 = vadd.f32 %v6149, %v6261
    %v6263 = vpop.f32.mrf.mxu0
    %v6264 = vadd.f32 %v6151, %v6263
    %v6265 = vpop.f32.mrf.mxu0
    %v6266 = vadd.f32 %v6153, %v6265
    %v6267 = vpop.f32.mrf.mxu0
    %v6268 = vadd.f32 %v6155, %v6267
    %6269 = vmatprep.mubr.bf16.mxu0 %v542
    %6270 = vmatmul.mubr.bf16.gmra.mxu0 %v541
    %v6271 = vpop.f32.mrf.mxu0
    %v6272 = vadd.f32 %v6159, %v6271
    %v6273 = vpop.f32.mrf.mxu0
    %v6274 = vadd.f32 %v6161, %v6273
    %v6275 = vpop.f32.mrf.mxu0
    %v6276 = vadd.f32 %v6163, %v6275
    %v6277 = vpop.f32.mrf.mxu0
    %v6278 = vadd.f32 %v6165, %v6277
    %6279 = vmatprep.mubr.bf16.mxu0 %v566
    %6280 = vmatmul.mubr.bf16.gmra.mxu0 %v565
    %v6281 = vpop.f32.mrf.mxu0
    %v6282 = vadd.f32 %v6169, %v6281
    %v6283 = vpop.f32.mrf.mxu0
    %v6284 = vadd.f32 %v6171, %v6283
    %v6285 = vpop.f32.mrf.mxu0
    %v6286 = vadd.f32 %v6173, %v6285
    %v6287 = vpop.f32.mrf.mxu0
    %v6288 = vadd.f32 %v6175, %v6287
    %6289 = vmatprep.mubr.bf16.mxu0 %v590
    %6290 = vmatmul.mubr.bf16.gmra.mxu0 %v589
    %v6291 = vpop.f32.mrf.mxu0
    %v6292 = vadd.f32 %v6179, %v6291
    %v6293 = vpop.f32.mrf.mxu0
    %v6294 = vadd.f32 %v6181, %v6293
    %v6295 = vpop.f32.mrf.mxu0
    %v6296 = vadd.f32 %v6183, %v6295
    %v6297 = vpop.f32.mrf.mxu0
    %v6298 = vadd.f32 %v6185, %v6297
    %6299 = vmatprep.mubr.bf16.mxu0 %v614
    %6300 = vmatmul.mubr.bf16.gmra.mxu0 %v613
    %v6301 = vpop.f32.mrf.mxu0
    %v6302 = vadd.f32 %v6189, %v6301
    %v6303 = vpop.f32.mrf.mxu0
    %v6304 = vadd.f32 %v6191, %v6303
    %v6305 = vpop.f32.mrf.mxu0
    %v6306 = vadd.f32 %v6193, %v6305
    %v6307 = vpop.f32.mrf.mxu0
    %v6308 = vadd.f32 %v6195, %v6307
    %6309 = vmatprep.mubr.bf16.mxu0 %v638
    %6310 = vmatmul.mubr.bf16.gmra.mxu0 %v637
    %v6311 = vpop.f32.mrf.mxu0
    %v6312 = vadd.f32 %v6199, %v6311
    %v6313 = vpop.f32.mrf.mxu0
    %v6314 = vadd.f32 %v6201, %v6313
    %v6315 = vpop.f32.mrf.mxu0
    %v6316 = vadd.f32 %v6203, %v6315
    %v6317 = vpop.f32.mrf.mxu0
    %v6318 = vadd.f32 %v6205, %v6317
    %6319 = vmatprep.mubr.bf16.mxu0 %v662
    %6320 = vmatmul.mubr.bf16.gmra.mxu0 %v661
    %v6321 = vpop.f32.mrf.mxu0
    %v6322 = vadd.f32 %v6209, %v6321
    %v6323 = vpop.f32.mrf.mxu0
    %v6324 = vadd.f32 %v6211, %v6323
    %v6325 = vpop.f32.mrf.mxu0
    %v6326 = vadd.f32 %v6213, %v6325
    %v6327 = vpop.f32.mrf.mxu0
    %v6328 = vadd.f32 %v6215, %v6327
    %6329 = vmatprep.mubr.bf16.mxu0 %v686
    %6330 = vmatmul.mubr.bf16.gmra.mxu0 %v685
    %v6331 = vpop.f32.mrf.mxu0
    %v6332 = vadd.f32 %v6219, %v6331
    %v6333 = vpop.f32.mrf.mxu0
    %v6334 = vadd.f32 %v6221, %v6333
    %v6335 = vpop.f32.mrf.mxu0
    %v6336 = vadd.f32 %v6223, %v6335
    %v6337 = vpop.f32.mrf.mxu0
    %v6338 = vadd.f32 %v6225, %v6337
    %6339 = vdwg.mxu0
    %6340 = vmatprep.subr.bf16.mxu0 %v4392
    %6341 = vmatpush1.bf16.msra.mxu0 %v4391
    %6342 = vmatprep.subr.bf16.mxu0 %v4388
    %6343 = vmatpush1.bf16.msra.mxu0 %v4387
    %6344 = vmatprep.subr.bf16.mxu0 %v4384
    %6345 = vmatpush1.bf16.msra.mxu0 %v4383
    %6346 = vmatprep.subr.bf16.mxu0 %v4380
    %6347 = vmatpush1.bf16.msra.mxu0 %v4379
    %6348 = vmatprep.subr.bf16.mxu0 %v4376
    %6349 = vmatpush1.bf16.msra.mxu0 %v4375
    %6350 = vmatprep.subr.bf16.mxu0 %v4372
    %6351 = vmatpush1.bf16.msra.mxu0 %v4371
    %6352 = vmatprep.subr.bf16.mxu0 %v4368
    %6353 = vmatpush1.bf16.msra.mxu0 %v4367
    %6354 = vmatprep.subr.bf16.mxu0 %v4364
    %6355 = vmatpush1.bf16.msra.mxu0 %v4363
    %6356 = vmatprep.subr.bf16.mxu0 %v4424
    %6357 = vmatpush2.bf16.msra.mxu0 %v4423
    %6358 = vmatprep.subr.bf16.mxu0 %v4420
    %6359 = vmatpush2.bf16.msra.mxu0 %v4419
    %6360 = vmatprep.subr.bf16.mxu0 %v4416
    %6361 = vmatpush2.bf16.msra.mxu0 %v4415
    %6362 = vmatprep.subr.bf16.mxu0 %v4412
    %6363 = vmatpush2.bf16.msra.mxu0 %v4411
    %6364 = vmatprep.subr.bf16.mxu0 %v4408
    %6365 = vmatpush2.bf16.msra.mxu0 %v4407
    %6366 = vmatprep.subr.bf16.mxu0 %v4404
    %6367 = vmatpush2.bf16.msra.mxu0 %v4403
    %6368 = vmatprep.subr.bf16.mxu0 %v4400
    %6369 = vmatpush2.bf16.msra.mxu0 %v4399
    %6370 = vmatprep.subr.bf16.mxu0 %v4396
    %6371 = vmatpush2.bf16.msra.mxu0 %v4395
    %6372 = vmatprep.mubr.bf16.mxu0 %v520
    %6373 = vmatmul.mubr.bf16.gmra.mxu0 %v519
    %v6374 = vpop.f32.mrf.mxu0
    %v6375 = vadd.f32 %v6262, %v6374
    %v6376 = vpop.f32.mrf.mxu0
    %v6377 = vadd.f32 %v6264, %v6376
    %v6378 = vpop.f32.mrf.mxu0
    %v6379 = vadd.f32 %v6266, %v6378
    %v6380 = vpop.f32.mrf.mxu0
    %v6381 = vadd.f32 %v6268, %v6380
    %6382 = vmatprep.mubr.bf16.mxu0 %v544
    %6383 = vmatmul.mubr.bf16.gmra.mxu0 %v543
    %v6384 = vpop.f32.mrf.mxu0
    %v6385 = vadd.f32 %v6272, %v6384
    %v6386 = vpop.f32.mrf.mxu0
    %v6387 = vadd.f32 %v6274, %v6386
    %v6388 = vpop.f32.mrf.mxu0
    %v6389 = vadd.f32 %v6276, %v6388
    %v6390 = vpop.f32.mrf.mxu0
    %v6391 = vadd.f32 %v6278, %v6390
    %6392 = vmatprep.mubr.bf16.mxu0 %v568
    %6393 = vmatmul.mubr.bf16.gmra.mxu0 %v567
    %v6394 = vpop.f32.mrf.mxu0
    %v6395 = vadd.f32 %v6282, %v6394
    %v6396 = vpop.f32.mrf.mxu0
    %v6397 = vadd.f32 %v6284, %v6396
    %v6398 = vpop.f32.mrf.mxu0
    %v6399 = vadd.f32 %v6286, %v6398
    %v6400 = vpop.f32.mrf.mxu0
    %v6401 = vadd.f32 %v6288, %v6400
    %6402 = vmatprep.mubr.bf16.mxu0 %v592
    %6403 = vmatmul.mubr.bf16.gmra.mxu0 %v591
    %v6404 = vpop.f32.mrf.mxu0
    %v6405 = vadd.f32 %v6292, %v6404
    %v6406 = vpop.f32.mrf.mxu0
    %v6407 = vadd.f32 %v6294, %v6406
    %v6408 = vpop.f32.mrf.mxu0
    %v6409 = vadd.f32 %v6296, %v6408
    %v6410 = vpop.f32.mrf.mxu0
    %v6411 = vadd.f32 %v6298, %v6410
    %6412 = vmatprep.mubr.bf16.mxu0 %v616
    %6413 = vmatmul.mubr.bf16.gmra.mxu0 %v615
    %v6414 = vpop.f32.mrf.mxu0
    %v6415 = vadd.f32 %v6302, %v6414
    %v6416 = vpop.f32.mrf.mxu0
    %v6417 = vadd.f32 %v6304, %v6416
    %v6418 = vpop.f32.mrf.mxu0
    %v6419 = vadd.f32 %v6306, %v6418
    %v6420 = vpop.f32.mrf.mxu0
    %v6421 = vadd.f32 %v6308, %v6420
    %6422 = vmatprep.mubr.bf16.mxu0 %v640
    %6423 = vmatmul.mubr.bf16.gmra.mxu0 %v639
    %v6424 = vpop.f32.mrf.mxu0
    %v6425 = vadd.f32 %v6312, %v6424
    %v6426 = vpop.f32.mrf.mxu0
    %v6427 = vadd.f32 %v6314, %v6426
    %v6428 = vpop.f32.mrf.mxu0
    %v6429 = vadd.f32 %v6316, %v6428
    %v6430 = vpop.f32.mrf.mxu0
    %v6431 = vadd.f32 %v6318, %v6430
    %6432 = vmatprep.mubr.bf16.mxu0 %v664
    %6433 = vmatmul.mubr.bf16.gmra.mxu0 %v663
    %v6434 = vpop.f32.mrf.mxu0
    %v6435 = vadd.f32 %v6322, %v6434
    %v6436 = vpop.f32.mrf.mxu0
    %v6437 = vadd.f32 %v6324, %v6436
    %v6438 = vpop.f32.mrf.mxu0
    %v6439 = vadd.f32 %v6326, %v6438
    %v6440 = vpop.f32.mrf.mxu0
    %v6441 = vadd.f32 %v6328, %v6440
    %6442 = vmatprep.mubr.bf16.mxu0 %v688
    %6443 = vmatmul.mubr.bf16.gmra.mxu0 %v687
    %v6444 = vpop.f32.mrf.mxu0
    %v6445 = vadd.f32 %v6332, %v6444
    %v6446 = vpop.f32.mrf.mxu0
    %v6447 = vadd.f32 %v6334, %v6446
    %v6448 = vpop.f32.mrf.mxu0
    %v6449 = vadd.f32 %v6336, %v6448
    %v6450 = vpop.f32.mrf.mxu0
    %v6451 = vadd.f32 %v6338, %v6450
    %6452 = vdwg.mxu0
    %6453 = vmatprep.subr.bf16.mxu0 %v4456
    %6454 = vmatpush1.bf16.msra.mxu0 %v4455
    %6455 = vmatprep.subr.bf16.mxu0 %v4452
    %6456 = vmatpush1.bf16.msra.mxu0 %v4451
    %6457 = vmatprep.subr.bf16.mxu0 %v4448
    %6458 = vmatpush1.bf16.msra.mxu0 %v4447
    %6459 = vmatprep.subr.bf16.mxu0 %v4444
    %6460 = vmatpush1.bf16.msra.mxu0 %v4443
    %6461 = vmatprep.subr.bf16.mxu0 %v4440
    %6462 = vmatpush1.bf16.msra.mxu0 %v4439
    %6463 = vmatprep.subr.bf16.mxu0 %v4436
    %6464 = vmatpush1.bf16.msra.mxu0 %v4435
    %6465 = vmatprep.subr.bf16.mxu0 %v4432
    %6466 = vmatpush1.bf16.msra.mxu0 %v4431
    %6467 = vmatprep.subr.bf16.mxu0 %v4428
    %6468 = vmatpush1.bf16.msra.mxu0 %v4427
    %6469 = vmatprep.subr.bf16.mxu0 %v4488
    %6470 = vmatpush2.bf16.msra.mxu0 %v4487
    %6471 = vmatprep.subr.bf16.mxu0 %v4484
    %6472 = vmatpush2.bf16.msra.mxu0 %v4483
    %6473 = vmatprep.subr.bf16.mxu0 %v4480
    %6474 = vmatpush2.bf16.msra.mxu0 %v4479
    %6475 = vmatprep.subr.bf16.mxu0 %v4476
    %6476 = vmatpush2.bf16.msra.mxu0 %v4475
    %6477 = vmatprep.subr.bf16.mxu0 %v4472
    %6478 = vmatpush2.bf16.msra.mxu0 %v4471
    %6479 = vmatprep.subr.bf16.mxu0 %v4468
    %6480 = vmatpush2.bf16.msra.mxu0 %v4467
    %6481 = vmatprep.subr.bf16.mxu0 %v4464
    %6482 = vmatpush2.bf16.msra.mxu0 %v4463
    %6483 = vmatprep.subr.bf16.mxu0 %v4460
    %6484 = vmatpush2.bf16.msra.mxu0 %v4459
    %6485 = vmatprep.mubr.bf16.mxu0 %v522
    %6486 = vmatmul.mubr.bf16.gmra.mxu0 %v521
    %v6487 = vpop.f32.mrf.mxu0
    %v6488 = vadd.f32 %v6375, %v6487
    %v6489 = vpop.f32.mrf.mxu0
    %v6490 = vadd.f32 %v6377, %v6489
    %v6491 = vpop.f32.mrf.mxu0
    %v6492 = vadd.f32 %v6379, %v6491
    %v6493 = vpop.f32.mrf.mxu0
    %v6494 = vadd.f32 %v6381, %v6493
    %6495 = vmatprep.mubr.bf16.mxu0 %v546
    %6496 = vmatmul.mubr.bf16.gmra.mxu0 %v545
    %v6497 = vpop.f32.mrf.mxu0
    %v6498 = vadd.f32 %v6385, %v6497
    %v6499 = vpop.f32.mrf.mxu0
    %v6500 = vadd.f32 %v6387, %v6499
    %v6501 = vpop.f32.mrf.mxu0
    %v6502 = vadd.f32 %v6389, %v6501
    %v6503 = vpop.f32.mrf.mxu0
    %v6504 = vadd.f32 %v6391, %v6503
    %6505 = vmatprep.mubr.bf16.mxu0 %v570
    %6506 = vmatmul.mubr.bf16.gmra.mxu0 %v569
    %v6507 = vpop.f32.mrf.mxu0
    %v6508 = vadd.f32 %v6395, %v6507
    %v6509 = vpop.f32.mrf.mxu0
    %v6510 = vadd.f32 %v6397, %v6509
    %v6511 = vpop.f32.mrf.mxu0
    %v6512 = vadd.f32 %v6399, %v6511
    %v6513 = vpop.f32.mrf.mxu0
    %v6514 = vadd.f32 %v6401, %v6513
    %6515 = vmatprep.mubr.bf16.mxu0 %v594
    %6516 = vmatmul.mubr.bf16.gmra.mxu0 %v593
    %v6517 = vpop.f32.mrf.mxu0
    %v6518 = vadd.f32 %v6405, %v6517
    %v6519 = vpop.f32.mrf.mxu0
    %v6520 = vadd.f32 %v6407, %v6519
    %v6521 = vpop.f32.mrf.mxu0
    %v6522 = vadd.f32 %v6409, %v6521
    %v6523 = vpop.f32.mrf.mxu0
    %v6524 = vadd.f32 %v6411, %v6523
    %6525 = vmatprep.mubr.bf16.mxu0 %v618
    %6526 = vmatmul.mubr.bf16.gmra.mxu0 %v617
    %v6527 = vpop.f32.mrf.mxu0
    %v6528 = vadd.f32 %v6415, %v6527
    %v6529 = vpop.f32.mrf.mxu0
    %v6530 = vadd.f32 %v6417, %v6529
    %v6531 = vpop.f32.mrf.mxu0
    %v6532 = vadd.f32 %v6419, %v6531
    %v6533 = vpop.f32.mrf.mxu0
    %v6534 = vadd.f32 %v6421, %v6533
    %6535 = vmatprep.mubr.bf16.mxu0 %v642
    %6536 = vmatmul.mubr.bf16.gmra.mxu0 %v641
    %v6537 = vpop.f32.mrf.mxu0
    %v6538 = vadd.f32 %v6425, %v6537
    %v6539 = vpop.f32.mrf.mxu0
    %v6540 = vadd.f32 %v6427, %v6539
    %v6541 = vpop.f32.mrf.mxu0
    %v6542 = vadd.f32 %v6429, %v6541
    %v6543 = vpop.f32.mrf.mxu0
    %v6544 = vadd.f32 %v6431, %v6543
    %6545 = vmatprep.mubr.bf16.mxu0 %v666
    %6546 = vmatmul.mubr.bf16.gmra.mxu0 %v665
    %v6547 = vpop.f32.mrf.mxu0
    %v6548 = vadd.f32 %v6435, %v6547
    %v6549 = vpop.f32.mrf.mxu0
    %v6550 = vadd.f32 %v6437, %v6549
    %v6551 = vpop.f32.mrf.mxu0
    %v6552 = vadd.f32 %v6439, %v6551
    %v6553 = vpop.f32.mrf.mxu0
    %v6554 = vadd.f32 %v6441, %v6553
    %6555 = vmatprep.mubr.bf16.mxu0 %v690
    %6556 = vmatmul.mubr.bf16.gmra.mxu0 %v689
    %v6557 = vpop.f32.mrf.mxu0
    %v6558 = vadd.f32 %v6445, %v6557
    %v6559 = vpop.f32.mrf.mxu0
    %v6560 = vadd.f32 %v6447, %v6559
    %v6561 = vpop.f32.mrf.mxu0
    %v6562 = vadd.f32 %v6449, %v6561
    %v6563 = vpop.f32.mrf.mxu0
    %v6564 = vadd.f32 %v6451, %v6563
    %6565 = vdwg.mxu0
    %6566 = vmatprep.subr.bf16.mxu0 %v4520
    %6567 = vmatpush1.bf16.msra.mxu0 %v4519
    %6568 = vmatprep.subr.bf16.mxu0 %v4516
    %6569 = vmatpush1.bf16.msra.mxu0 %v4515
    %6570 = vmatprep.subr.bf16.mxu0 %v4512
    %6571 = vmatpush1.bf16.msra.mxu0 %v4511
    %6572 = vmatprep.subr.bf16.mxu0 %v4508
    %6573 = vmatpush1.bf16.msra.mxu0 %v4507
    %6574 = vmatprep.subr.bf16.mxu0 %v4504
    %6575 = vmatpush1.bf16.msra.mxu0 %v4503
    %6576 = vmatprep.subr.bf16.mxu0 %v4500
    %6577 = vmatpush1.bf16.msra.mxu0 %v4499
    %6578 = vmatprep.subr.bf16.mxu0 %v4496
    %6579 = vmatpush1.bf16.msra.mxu0 %v4495
    %6580 = vmatprep.subr.bf16.mxu0 %v4492
    %6581 = vmatpush1.bf16.msra.mxu0 %v4491
    %6582 = vmatprep.subr.bf16.mxu0 %v4552
    %6583 = vmatpush2.bf16.msra.mxu0 %v4551
    %6584 = vmatprep.subr.bf16.mxu0 %v4548
    %6585 = vmatpush2.bf16.msra.mxu0 %v4547
    %6586 = vmatprep.subr.bf16.mxu0 %v4544
    %6587 = vmatpush2.bf16.msra.mxu0 %v4543
    %6588 = vmatprep.subr.bf16.mxu0 %v4540
    %6589 = vmatpush2.bf16.msra.mxu0 %v4539
    %6590 = vmatprep.subr.bf16.mxu0 %v4536
    %6591 = vmatpush2.bf16.msra.mxu0 %v4535
    %6592 = vmatprep.subr.bf16.mxu0 %v4532
    %6593 = vmatpush2.bf16.msra.mxu0 %v4531
    %6594 = vmatprep.subr.bf16.mxu0 %v4528
    %6595 = vmatpush2.bf16.msra.mxu0 %v4527
    %6596 = vmatprep.subr.bf16.mxu0 %v4524
    %6597 = vmatpush2.bf16.msra.mxu0 %v4523
    %6598 = vmatprep.mubr.bf16.mxu0 %v524
    %6599 = vmatmul.mubr.bf16.gmra.mxu0 %v523
    %v6600 = vpop.f32.mrf.mxu0
    %v6601 = vadd.f32 %v6488, %v6600
    %v6602 = vpop.f32.mrf.mxu0
    %v6603 = vadd.f32 %v6490, %v6602
    %v6604 = vpop.f32.mrf.mxu0
    %v6605 = vadd.f32 %v6492, %v6604
    %v6606 = vpop.f32.mrf.mxu0
    %v6607 = vadd.f32 %v6494, %v6606
    %6608 = vmatprep.mubr.bf16.mxu0 %v548
    %6609 = vmatmul.mubr.bf16.gmra.mxu0 %v547
    %v6610 = vpop.f32.mrf.mxu0
    %v6611 = vadd.f32 %v6498, %v6610
    %v6612 = vpop.f32.mrf.mxu0
    %v6613 = vadd.f32 %v6500, %v6612
    %v6614 = vpop.f32.mrf.mxu0
    %v6615 = vadd.f32 %v6502, %v6614
    %v6616 = vpop.f32.mrf.mxu0
    %v6617 = vadd.f32 %v6504, %v6616
    %6618 = vmatprep.mubr.bf16.mxu0 %v572
    %6619 = vmatmul.mubr.bf16.gmra.mxu0 %v571
    %v6620 = vpop.f32.mrf.mxu0
    %v6621 = vadd.f32 %v6508, %v6620
    %v6622 = vpop.f32.mrf.mxu0
    %v6623 = vadd.f32 %v6510, %v6622
    %v6624 = vpop.f32.mrf.mxu0
    %v6625 = vadd.f32 %v6512, %v6624
    %v6626 = vpop.f32.mrf.mxu0
    %v6627 = vadd.f32 %v6514, %v6626
    %6628 = vmatprep.mubr.bf16.mxu0 %v596
    %6629 = vmatmul.mubr.bf16.gmra.mxu0 %v595
    %v6630 = vpop.f32.mrf.mxu0
    %v6631 = vadd.f32 %v6518, %v6630
    %v6632 = vpop.f32.mrf.mxu0
    %v6633 = vadd.f32 %v6520, %v6632
    %v6634 = vpop.f32.mrf.mxu0
    %v6635 = vadd.f32 %v6522, %v6634
    %v6636 = vpop.f32.mrf.mxu0
    %v6637 = vadd.f32 %v6524, %v6636
    %6638 = vmatprep.mubr.bf16.mxu0 %v620
    %6639 = vmatmul.mubr.bf16.gmra.mxu0 %v619
    %v6640 = vpop.f32.mrf.mxu0
    %v6641 = vadd.f32 %v6528, %v6640
    %v6642 = vpop.f32.mrf.mxu0
    %v6643 = vadd.f32 %v6530, %v6642
    %v6644 = vpop.f32.mrf.mxu0
    %v6645 = vadd.f32 %v6532, %v6644
    %v6646 = vpop.f32.mrf.mxu0
    %v6647 = vadd.f32 %v6534, %v6646
    %6648 = vmatprep.mubr.bf16.mxu0 %v644
    %6649 = vmatmul.mubr.bf16.gmra.mxu0 %v643
    %v6650 = vpop.f32.mrf.mxu0
    %v6651 = vadd.f32 %v6538, %v6650
    %v6652 = vpop.f32.mrf.mxu0
    %v6653 = vadd.f32 %v6540, %v6652
    %v6654 = vpop.f32.mrf.mxu0
    %v6655 = vadd.f32 %v6542, %v6654
    %v6656 = vpop.f32.mrf.mxu0
    %v6657 = vadd.f32 %v6544, %v6656
    %6658 = vmatprep.mubr.bf16.mxu0 %v668
    %6659 = vmatmul.mubr.bf16.gmra.mxu0 %v667
    %v6660 = vpop.f32.mrf.mxu0
    %v6661 = vadd.f32 %v6548, %v6660
    %v6662 = vpop.f32.mrf.mxu0
    %v6663 = vadd.f32 %v6550, %v6662
    %v6664 = vpop.f32.mrf.mxu0
    %v6665 = vadd.f32 %v6552, %v6664
    %v6666 = vpop.f32.mrf.mxu0
    %v6667 = vadd.f32 %v6554, %v6666
    %6668 = vmatprep.mubr.bf16.mxu0 %v692
    %6669 = vmatmul.mubr.bf16.gmra.mxu0 %v691
    %v6670 = vpop.f32.mrf.mxu0
    %v6671 = vadd.f32 %v6558, %v6670
    %v6672 = vpop.f32.mrf.mxu0
    %v6673 = vadd.f32 %v6560, %v6672
    %v6674 = vpop.f32.mrf.mxu0
    %v6675 = vadd.f32 %v6562, %v6674
    %v6676 = vpop.f32.mrf.mxu0
    %v6677 = vadd.f32 %v6564, %v6676
    %6678 = vdwg.mxu0
    %6679 = vmatprep.subr.bf16.mxu0 %v3818
    %6680 = vmatpush1.bf16.msra.mxu0 %v3817
    %6681 = vmatprep.subr.bf16.mxu0 %v3814
    %6682 = vmatpush1.bf16.msra.mxu0 %v3813
    %6683 = vmatprep.subr.bf16.mxu0 %v3810
    %6684 = vmatpush1.bf16.msra.mxu0 %v3809
    %6685 = vmatprep.subr.bf16.mxu0 %v3806
    %6686 = vmatpush1.bf16.msra.mxu0 %v3805
    %6687 = vmatprep.subr.bf16.mxu0 %v3802
    %6688 = vmatpush1.bf16.msra.mxu0 %v3801
    %6689 = vmatprep.subr.bf16.mxu0 %v3798
    %6690 = vmatpush1.bf16.msra.mxu0 %v3797
    %6691 = vmatprep.subr.bf16.mxu0 %v3794
    %6692 = vmatpush1.bf16.msra.mxu0 %v3793
    %6693 = vmatprep.subr.bf16.mxu0 %v3790
    %6694 = vmatpush1.bf16.msra.mxu0 %v3789
    %6695 = vmatprep.subr.bf16.mxu0 %v3850
    %6696 = vmatpush2.bf16.msra.mxu0 %v3849
    %6697 = vmatprep.subr.bf16.mxu0 %v3846
    %6698 = vmatpush2.bf16.msra.mxu0 %v3845
    %6699 = vmatprep.subr.bf16.mxu0 %v3842
    %6700 = vmatpush2.bf16.msra.mxu0 %v3841
    %6701 = vmatprep.subr.bf16.mxu0 %v3838
    %6702 = vmatpush2.bf16.msra.mxu0 %v3837
    %6703 = vmatprep.subr.bf16.mxu0 %v3834
    %6704 = vmatpush2.bf16.msra.mxu0 %v3833
    %6705 = vmatprep.subr.bf16.mxu0 %v3830
    %6706 = vmatpush2.bf16.msra.mxu0 %v3829
    %6707 = vmatprep.subr.bf16.mxu0 %v3826
    %6708 = vmatpush2.bf16.msra.mxu0 %v3825
    %6709 = vmatprep.subr.bf16.mxu0 %v3822
    %6710 = vmatpush2.bf16.msra.mxu0 %v3821
    %6711 = vmatprep.mubr.bf16.mxu0 %v502
    %6712 = vmatmul.mubr.bf16.gmra.mxu0 %v501
    %v6713 = vpop.f32.mrf.mxu0
    %v6714 = vadd.f32 %v1474, %v6713
    %v6715 = vpop.f32.mrf.mxu0
    %v6716 = vadd.f32 %v1478, %v6715
    %v6717 = vpop.f32.mrf.mxu0
    %v6718 = vadd.f32 %v1474, %v6717
    %v6719 = vpop.f32.mrf.mxu0
    %v6720 = vadd.f32 %v1478, %v6719
    %6721 = vmatprep.mubr.bf16.mxu0 %v526
    %6722 = vmatmul.mubr.bf16.gmra.mxu0 %v525
    %v6723 = vpop.f32.mrf.mxu0
    %v6724 = vadd.f32 %v1474, %v6723
    %v6725 = vpop.f32.mrf.mxu0
    %v6726 = vadd.f32 %v1478, %v6725
    %v6727 = vpop.f32.mrf.mxu0
    %v6728 = vadd.f32 %v1474, %v6727
    %v6729 = vpop.f32.mrf.mxu0
    %v6730 = vadd.f32 %v1478, %v6729
    %6731 = vmatprep.mubr.bf16.mxu0 %v550
    %6732 = vmatmul.mubr.bf16.gmra.mxu0 %v549
    %v6733 = vpop.f32.mrf.mxu0
    %v6734 = vadd.f32 %v1474, %v6733
    %v6735 = vpop.f32.mrf.mxu0
    %v6736 = vadd.f32 %v1478, %v6735
    %v6737 = vpop.f32.mrf.mxu0
    %v6738 = vadd.f32 %v1474, %v6737
    %v6739 = vpop.f32.mrf.mxu0
    %v6740 = vadd.f32 %v1478, %v6739
    %6741 = vmatprep.mubr.bf16.mxu0 %v574
    %6742 = vmatmul.mubr.bf16.gmra.mxu0 %v573
    %v6743 = vpop.f32.mrf.mxu0
    %v6744 = vadd.f32 %v1474, %v6743
    %v6745 = vpop.f32.mrf.mxu0
    %v6746 = vadd.f32 %v1478, %v6745
    %v6747 = vpop.f32.mrf.mxu0
    %v6748 = vadd.f32 %v1474, %v6747
    %v6749 = vpop.f32.mrf.mxu0
    %v6750 = vadd.f32 %v1478, %v6749
    %6751 = vmatprep.mubr.bf16.mxu0 %v598
    %6752 = vmatmul.mubr.bf16.gmra.mxu0 %v597
    %v6753 = vpop.f32.mrf.mxu0
    %v6754 = vadd.f32 %v1474, %v6753
    %v6755 = vpop.f32.mrf.mxu0
    %v6756 = vadd.f32 %v1478, %v6755
    %v6757 = vpop.f32.mrf.mxu0
    %v6758 = vadd.f32 %v1474, %v6757
    %v6759 = vpop.f32.mrf.mxu0
    %v6760 = vadd.f32 %v1478, %v6759
    %6761 = vmatprep.mubr.bf16.mxu0 %v622
    %6762 = vmatmul.mubr.bf16.gmra.mxu0 %v621
    %v6763 = vpop.f32.mrf.mxu0
    %v6764 = vadd.f32 %v1474, %v6763
    %v6765 = vpop.f32.mrf.mxu0
    %v6766 = vadd.f32 %v1478, %v6765
    %v6767 = vpop.f32.mrf.mxu0
    %v6768 = vadd.f32 %v1474, %v6767
    %v6769 = vpop.f32.mrf.mxu0
    %v6770 = vadd.f32 %v1478, %v6769
    %6771 = vmatprep.mubr.bf16.mxu0 %v646
    %6772 = vmatmul.mubr.bf16.gmra.mxu0 %v645
    %v6773 = vpop.f32.mrf.mxu0
    %v6774 = vadd.f32 %v1474, %v6773
    %v6775 = vpop.f32.mrf.mxu0
    %v6776 = vadd.f32 %v1478, %v6775
    %v6777 = vpop.f32.mrf.mxu0
    %v6778 = vadd.f32 %v1474, %v6777
    %v6779 = vpop.f32.mrf.mxu0
    %v6780 = vadd.f32 %v1478, %v6779
    %6781 = vmatprep.mubr.bf16.mxu0 %v670
    %6782 = vmatmul.mubr.bf16.gmra.mxu0 %v669
    %v6783 = vpop.f32.mrf.mxu0
    %v6784 = vadd.f32 %v1474, %v6783
    %v6785 = vpop.f32.mrf.mxu0
    %v6786 = vadd.f32 %v1478, %v6785
    %v6787 = vpop.f32.mrf.mxu0
    %v6788 = vadd.f32 %v1474, %v6787
    %v6789 = vpop.f32.mrf.mxu0
    %v6790 = vadd.f32 %v1478, %v6789
    %6791 = vdwg.mxu0
    %6792 = vmatprep.subr.bf16.mxu0 %v3882
    %6793 = vmatpush1.bf16.msra.mxu0 %v3881
    %6794 = vmatprep.subr.bf16.mxu0 %v3878
    %6795 = vmatpush1.bf16.msra.mxu0 %v3877
    %6796 = vmatprep.subr.bf16.mxu0 %v3874
    %6797 = vmatpush1.bf16.msra.mxu0 %v3873
    %6798 = vmatprep.subr.bf16.mxu0 %v3870
    %6799 = vmatpush1.bf16.msra.mxu0 %v3869
    %6800 = vmatprep.subr.bf16.mxu0 %v3866
    %6801 = vmatpush1.bf16.msra.mxu0 %v3865
    %6802 = vmatprep.subr.bf16.mxu0 %v3862
    %6803 = vmatpush1.bf16.msra.mxu0 %v3861
    %6804 = vmatprep.subr.bf16.mxu0 %v3858
    %6805 = vmatpush1.bf16.msra.mxu0 %v3857
    %6806 = vmatprep.subr.bf16.mxu0 %v3854
    %6807 = vmatpush1.bf16.msra.mxu0 %v3853
    %6808 = vmatprep.subr.bf16.mxu0 %v3914
    %6809 = vmatpush2.bf16.msra.mxu0 %v3913
    %6810 = vmatprep.subr.bf16.mxu0 %v3910
    %6811 = vmatpush2.bf16.msra.mxu0 %v3909
    %6812 = vmatprep.subr.bf16.mxu0 %v3906
    %6813 = vmatpush2.bf16.msra.mxu0 %v3905
    %6814 = vmatprep.subr.bf16.mxu0 %v3902
    %6815 = vmatpush2.bf16.msra.mxu0 %v3901
    %6816 = vmatprep.subr.bf16.mxu0 %v3898
    %6817 = vmatpush2.bf16.msra.mxu0 %v3897
    %6818 = vmatprep.subr.bf16.mxu0 %v3894
    %6819 = vmatpush2.bf16.msra.mxu0 %v3893
    %6820 = vmatprep.subr.bf16.mxu0 %v3890
    %6821 = vmatpush2.bf16.msra.mxu0 %v3889
    %6822 = vmatprep.subr.bf16.mxu0 %v3886
    %6823 = vmatpush2.bf16.msra.mxu0 %v3885
    %6824 = vmatprep.mubr.bf16.mxu0 %v504
    %6825 = vmatmul.mubr.bf16.gmra.mxu0 %v503
    %v6826 = vpop.f32.mrf.mxu0
    %v6827 = vadd.f32 %v6714, %v6826
    %v6828 = vpop.f32.mrf.mxu0
    %v6829 = vadd.f32 %v6716, %v6828
    %v6830 = vpop.f32.mrf.mxu0
    %v6831 = vadd.f32 %v6718, %v6830
    %v6832 = vpop.f32.mrf.mxu0
    %v6833 = vadd.f32 %v6720, %v6832
    %6834 = vmatprep.mubr.bf16.mxu0 %v528
    %6835 = vmatmul.mubr.bf16.gmra.mxu0 %v527
    %v6836 = vpop.f32.mrf.mxu0
    %v6837 = vadd.f32 %v6724, %v6836
    %v6838 = vpop.f32.mrf.mxu0
    %v6839 = vadd.f32 %v6726, %v6838
    %v6840 = vpop.f32.mrf.mxu0
    %v6841 = vadd.f32 %v6728, %v6840
    %v6842 = vpop.f32.mrf.mxu0
    %v6843 = vadd.f32 %v6730, %v6842
    %6844 = vmatprep.mubr.bf16.mxu0 %v552
    %6845 = vmatmul.mubr.bf16.gmra.mxu0 %v551
    %v6846 = vpop.f32.mrf.mxu0
    %v6847 = vadd.f32 %v6734, %v6846
    %v6848 = vpop.f32.mrf.mxu0
    %v6849 = vadd.f32 %v6736, %v6848
    %v6850 = vpop.f32.mrf.mxu0
    %v6851 = vadd.f32 %v6738, %v6850
    %v6852 = vpop.f32.mrf.mxu0
    %v6853 = vadd.f32 %v6740, %v6852
    %6854 = vmatprep.mubr.bf16.mxu0 %v576
    %6855 = vmatmul.mubr.bf16.gmra.mxu0 %v575
    %v6856 = vpop.f32.mrf.mxu0
    %v6857 = vadd.f32 %v6744, %v6856
    %v6858 = vpop.f32.mrf.mxu0
    %v6859 = vadd.f32 %v6746, %v6858
    %v6860 = vpop.f32.mrf.mxu0
    %v6861 = vadd.f32 %v6748, %v6860
    %v6862 = vpop.f32.mrf.mxu0
    %v6863 = vadd.f32 %v6750, %v6862
    %6864 = vmatprep.mubr.bf16.mxu0 %v600
    %6865 = vmatmul.mubr.bf16.gmra.mxu0 %v599
    %v6866 = vpop.f32.mrf.mxu0
    %v6867 = vadd.f32 %v6754, %v6866
    %v6868 = vpop.f32.mrf.mxu0
    %v6869 = vadd.f32 %v6756, %v6868
    %v6870 = vpop.f32.mrf.mxu0
    %v6871 = vadd.f32 %v6758, %v6870
    %v6872 = vpop.f32.mrf.mxu0
    %v6873 = vadd.f32 %v6760, %v6872
    %6874 = vmatprep.mubr.bf16.mxu0 %v624
    %6875 = vmatmul.mubr.bf16.gmra.mxu0 %v623
    %v6876 = vpop.f32.mrf.mxu0
    %v6877 = vadd.f32 %v6764, %v6876
    %v6878 = vpop.f32.mrf.mxu0
    %v6879 = vadd.f32 %v6766, %v6878
    %v6880 = vpop.f32.mrf.mxu0
    %v6881 = vadd.f32 %v6768, %v6880
    %v6882 = vpop.f32.mrf.mxu0
    %v6883 = vadd.f32 %v6770, %v6882
    %6884 = vmatprep.mubr.bf16.mxu0 %v648
    %6885 = vmatmul.mubr.bf16.gmra.mxu0 %v647
    %v6886 = vpop.f32.mrf.mxu0
    %v6887 = vadd.f32 %v6774, %v6886
    %v6888 = vpop.f32.mrf.mxu0
    %v6889 = vadd.f32 %v6776, %v6888
    %v6890 = vpop.f32.mrf.mxu0
    %v6891 = vadd.f32 %v6778, %v6890
    %v6892 = vpop.f32.mrf.mxu0
    %v6893 = vadd.f32 %v6780, %v6892
    %6894 = vmatprep.mubr.bf16.mxu0 %v672
    %6895 = vmatmul.mubr.bf16.gmra.mxu0 %v671
    %v6896 = vpop.f32.mrf.mxu0
    %v6897 = vadd.f32 %v6784, %v6896
    %v6898 = vpop.f32.mrf.mxu0
    %v6899 = vadd.f32 %v6786, %v6898
    %v6900 = vpop.f32.mrf.mxu0
    %v6901 = vadd.f32 %v6788, %v6900
    %v6902 = vpop.f32.mrf.mxu0
    %v6903 = vadd.f32 %v6790, %v6902
    %6904 = vdwg.mxu0
    %6905 = vmatprep.subr.bf16.mxu0 %v3946
    %6906 = vmatpush1.bf16.msra.mxu0 %v3945
    %6907 = vmatprep.subr.bf16.mxu0 %v3942
    %6908 = vmatpush1.bf16.msra.mxu0 %v3941
    %6909 = vmatprep.subr.bf16.mxu0 %v3938
    %6910 = vmatpush1.bf16.msra.mxu0 %v3937
    %6911 = vmatprep.subr.bf16.mxu0 %v3934
    %6912 = vmatpush1.bf16.msra.mxu0 %v3933
    %6913 = vmatprep.subr.bf16.mxu0 %v3930
    %6914 = vmatpush1.bf16.msra.mxu0 %v3929
    %6915 = vmatprep.subr.bf16.mxu0 %v3926
    %6916 = vmatpush1.bf16.msra.mxu0 %v3925
    %6917 = vmatprep.subr.bf16.mxu0 %v3922
    %6918 = vmatpush1.bf16.msra.mxu0 %v3921
    %6919 = vmatprep.subr.bf16.mxu0 %v3918
    %6920 = vmatpush1.bf16.msra.mxu0 %v3917
    %6921 = vmatprep.subr.bf16.mxu0 %v3978
    %6922 = vmatpush2.bf16.msra.mxu0 %v3977
    %6923 = vmatprep.subr.bf16.mxu0 %v3974
    %6924 = vmatpush2.bf16.msra.mxu0 %v3973
    %6925 = vmatprep.subr.bf16.mxu0 %v3970
    %6926 = vmatpush2.bf16.msra.mxu0 %v3969
    %6927 = vmatprep.subr.bf16.mxu0 %v3966
    %6928 = vmatpush2.bf16.msra.mxu0 %v3965
    %6929 = vmatprep.subr.bf16.mxu0 %v3962
    %6930 = vmatpush2.bf16.msra.mxu0 %v3961
    %6931 = vmatprep.subr.bf16.mxu0 %v3958
    %6932 = vmatpush2.bf16.msra.mxu0 %v3957
    %6933 = vmatprep.subr.bf16.mxu0 %v3954
    %6934 = vmatpush2.bf16.msra.mxu0 %v3953
    %6935 = vmatprep.subr.bf16.mxu0 %v3950
    %6936 = vmatpush2.bf16.msra.mxu0 %v3949
    %6937 = vmatprep.mubr.bf16.mxu0 %v506
    %6938 = vmatmul.mubr.bf16.gmra.mxu0 %v505
    %v6939 = vpop.f32.mrf.mxu0
    %v6940 = vadd.f32 %v6827, %v6939
    %v6941 = vpop.f32.mrf.mxu0
    %v6942 = vadd.f32 %v6829, %v6941
    %v6943 = vpop.f32.mrf.mxu0
    %v6944 = vadd.f32 %v6831, %v6943
    %v6945 = vpop.f32.mrf.mxu0
    %v6946 = vadd.f32 %v6833, %v6945
    %6947 = vmatprep.mubr.bf16.mxu0 %v530
    %6948 = vmatmul.mubr.bf16.gmra.mxu0 %v529
    %v6949 = vpop.f32.mrf.mxu0
    %v6950 = vadd.f32 %v6837, %v6949
    %v6951 = vpop.f32.mrf.mxu0
    %v6952 = vadd.f32 %v6839, %v6951
    %v6953 = vpop.f32.mrf.mxu0
    %v6954 = vadd.f32 %v6841, %v6953
    %v6955 = vpop.f32.mrf.mxu0
    %v6956 = vadd.f32 %v6843, %v6955
    %6957 = vmatprep.mubr.bf16.mxu0 %v554
    %6958 = vmatmul.mubr.bf16.gmra.mxu0 %v553
    %v6959 = vpop.f32.mrf.mxu0
    %v6960 = vadd.f32 %v6847, %v6959
    %v6961 = vpop.f32.mrf.mxu0
    %v6962 = vadd.f32 %v6849, %v6961
    %v6963 = vpop.f32.mrf.mxu0
    %v6964 = vadd.f32 %v6851, %v6963
    %v6965 = vpop.f32.mrf.mxu0
    %v6966 = vadd.f32 %v6853, %v6965
    %6967 = vmatprep.mubr.bf16.mxu0 %v578
    %6968 = vmatmul.mubr.bf16.gmra.mxu0 %v577
    %v6969 = vpop.f32.mrf.mxu0
    %v6970 = vadd.f32 %v6857, %v6969
    %v6971 = vpop.f32.mrf.mxu0
    %v6972 = vadd.f32 %v6859, %v6971
    %v6973 = vpop.f32.mrf.mxu0
    %v6974 = vadd.f32 %v6861, %v6973
    %v6975 = vpop.f32.mrf.mxu0
    %v6976 = vadd.f32 %v6863, %v6975
    %6977 = vmatprep.mubr.bf16.mxu0 %v602
    %6978 = vmatmul.mubr.bf16.gmra.mxu0 %v601
    %v6979 = vpop.f32.mrf.mxu0
    %v6980 = vadd.f32 %v6867, %v6979
    %v6981 = vpop.f32.mrf.mxu0
    %v6982 = vadd.f32 %v6869, %v6981
    %v6983 = vpop.f32.mrf.mxu0
    %v6984 = vadd.f32 %v6871, %v6983
    %v6985 = vpop.f32.mrf.mxu0
    %v6986 = vadd.f32 %v6873, %v6985
    %6987 = vmatprep.mubr.bf16.mxu0 %v626
    %6988 = vmatmul.mubr.bf16.gmra.mxu0 %v625
    %v6989 = vpop.f32.mrf.mxu0
    %v6990 = vadd.f32 %v6877, %v6989
    %v6991 = vpop.f32.mrf.mxu0
    %v6992 = vadd.f32 %v6879, %v6991
    %v6993 = vpop.f32.mrf.mxu0
    %v6994 = vadd.f32 %v6881, %v6993
    %v6995 = vpop.f32.mrf.mxu0
    %v6996 = vadd.f32 %v6883, %v6995
    %6997 = vmatprep.mubr.bf16.mxu0 %v650
    %6998 = vmatmul.mubr.bf16.gmra.mxu0 %v649
    %v6999 = vpop.f32.mrf.mxu0
    %v7000 = vadd.f32 %v6887, %v6999
    %v7001 = vpop.f32.mrf.mxu0
    %v7002 = vadd.f32 %v6889, %v7001
    %v7003 = vpop.f32.mrf.mxu0
    %v7004 = vadd.f32 %v6891, %v7003
    %v7005 = vpop.f32.mrf.mxu0
    %v7006 = vadd.f32 %v6893, %v7005
    %7007 = vmatprep.mubr.bf16.mxu0 %v674
    %7008 = vmatmul.mubr.bf16.gmra.mxu0 %v673
    %v7009 = vpop.f32.mrf.mxu0
    %v7010 = vadd.f32 %v6897, %v7009
    %v7011 = vpop.f32.mrf.mxu0
    %v7012 = vadd.f32 %v6899, %v7011
    %v7013 = vpop.f32.mrf.mxu0
    %v7014 = vadd.f32 %v6901, %v7013
    %v7015 = vpop.f32.mrf.mxu0
    %v7016 = vadd.f32 %v6903, %v7015
    %7017 = vdwg.mxu0
    %7018 = vmatprep.subr.bf16.mxu0 %v4010
    %7019 = vmatpush1.bf16.msra.mxu0 %v4009
    %7020 = vmatprep.subr.bf16.mxu0 %v4006
    %7021 = vmatpush1.bf16.msra.mxu0 %v4005
    %7022 = vmatprep.subr.bf16.mxu0 %v4002
    %7023 = vmatpush1.bf16.msra.mxu0 %v4001
    %7024 = vmatprep.subr.bf16.mxu0 %v3998
    %7025 = vmatpush1.bf16.msra.mxu0 %v3997
    %7026 = vmatprep.subr.bf16.mxu0 %v3994
    %7027 = vmatpush1.bf16.msra.mxu0 %v3993
    %7028 = vmatprep.subr.bf16.mxu0 %v3990
    %7029 = vmatpush1.bf16.msra.mxu0 %v3989
    %7030 = vmatprep.subr.bf16.mxu0 %v3986
    %7031 = vmatpush1.bf16.msra.mxu0 %v3985
    %7032 = vmatprep.subr.bf16.mxu0 %v3982
    %7033 = vmatpush1.bf16.msra.mxu0 %v3981
    %7034 = vmatprep.subr.bf16.mxu0 %v4042
    %7035 = vmatpush2.bf16.msra.mxu0 %v4041
    %7036 = vmatprep.subr.bf16.mxu0 %v4038
    %7037 = vmatpush2.bf16.msra.mxu0 %v4037
    %7038 = vmatprep.subr.bf16.mxu0 %v4034
    %7039 = vmatpush2.bf16.msra.mxu0 %v4033
    %7040 = vmatprep.subr.bf16.mxu0 %v4030
    %7041 = vmatpush2.bf16.msra.mxu0 %v4029
    %7042 = vmatprep.subr.bf16.mxu0 %v4026
    %7043 = vmatpush2.bf16.msra.mxu0 %v4025
    %7044 = vmatprep.subr.bf16.mxu0 %v4022
    %7045 = vmatpush2.bf16.msra.mxu0 %v4021
    %7046 = vmatprep.subr.bf16.mxu0 %v4018
    %7047 = vmatpush2.bf16.msra.mxu0 %v4017
    %7048 = vmatprep.subr.bf16.mxu0 %v4014
    %7049 = vmatpush2.bf16.msra.mxu0 %v4013
    %7050 = vmatprep.mubr.bf16.mxu0 %v508
    %7051 = vmatmul.mubr.bf16.gmra.mxu0 %v507
    %v7052 = vpop.f32.mrf.mxu0
    %v7053 = vadd.f32 %v6940, %v7052
    %v7054 = vpop.f32.mrf.mxu0
    %v7055 = vadd.f32 %v6942, %v7054
    %v7056 = vpop.f32.mrf.mxu0
    %v7057 = vadd.f32 %v6944, %v7056
    %v7058 = vpop.f32.mrf.mxu0
    %v7059 = vadd.f32 %v6946, %v7058
    %7060 = vmatprep.mubr.bf16.mxu0 %v532
    %7061 = vmatmul.mubr.bf16.gmra.mxu0 %v531
    %v7062 = vpop.f32.mrf.mxu0
    %v7063 = vadd.f32 %v6950, %v7062
    %v7064 = vpop.f32.mrf.mxu0
    %v7065 = vadd.f32 %v6952, %v7064
    %v7066 = vpop.f32.mrf.mxu0
    %v7067 = vadd.f32 %v6954, %v7066
    %v7068 = vpop.f32.mrf.mxu0
    %v7069 = vadd.f32 %v6956, %v7068
    %7070 = vmatprep.mubr.bf16.mxu0 %v556
    %7071 = vmatmul.mubr.bf16.gmra.mxu0 %v555
    %v7072 = vpop.f32.mrf.mxu0
    %v7073 = vadd.f32 %v6960, %v7072
    %v7074 = vpop.f32.mrf.mxu0
    %v7075 = vadd.f32 %v6962, %v7074
    %v7076 = vpop.f32.mrf.mxu0
    %v7077 = vadd.f32 %v6964, %v7076
    %v7078 = vpop.f32.mrf.mxu0
    %v7079 = vadd.f32 %v6966, %v7078
    %7080 = vmatprep.mubr.bf16.mxu0 %v580
    %7081 = vmatmul.mubr.bf16.gmra.mxu0 %v579
    %v7082 = vpop.f32.mrf.mxu0
    %v7083 = vadd.f32 %v6970, %v7082
    %v7084 = vpop.f32.mrf.mxu0
    %v7085 = vadd.f32 %v6972, %v7084
    %v7086 = vpop.f32.mrf.mxu0
    %v7087 = vadd.f32 %v6974, %v7086
    %v7088 = vpop.f32.mrf.mxu0
    %v7089 = vadd.f32 %v6976, %v7088
    %7090 = vmatprep.mubr.bf16.mxu0 %v604
    %7091 = vmatmul.mubr.bf16.gmra.mxu0 %v603
    %v7092 = vpop.f32.mrf.mxu0
    %v7093 = vadd.f32 %v6980, %v7092
    %v7094 = vpop.f32.mrf.mxu0
    %v7095 = vadd.f32 %v6982, %v7094
    %v7096 = vpop.f32.mrf.mxu0
    %v7097 = vadd.f32 %v6984, %v7096
    %v7098 = vpop.f32.mrf.mxu0
    %v7099 = vadd.f32 %v6986, %v7098
    %7100 = vmatprep.mubr.bf16.mxu0 %v628
    %7101 = vmatmul.mubr.bf16.gmra.mxu0 %v627
    %v7102 = vpop.f32.mrf.mxu0
    %v7103 = vadd.f32 %v6990, %v7102
    %v7104 = vpop.f32.mrf.mxu0
    %v7105 = vadd.f32 %v6992, %v7104
    %v7106 = vpop.f32.mrf.mxu0
    %v7107 = vadd.f32 %v6994, %v7106
    %v7108 = vpop.f32.mrf.mxu0
    %v7109 = vadd.f32 %v6996, %v7108
    %7110 = vmatprep.mubr.bf16.mxu0 %v652
    %7111 = vmatmul.mubr.bf16.gmra.mxu0 %v651
    %v7112 = vpop.f32.mrf.mxu0
    %v7113 = vadd.f32 %v7000, %v7112
    %v7114 = vpop.f32.mrf.mxu0
    %v7115 = vadd.f32 %v7002, %v7114
    %v7116 = vpop.f32.mrf.mxu0
    %v7117 = vadd.f32 %v7004, %v7116
    %v7118 = vpop.f32.mrf.mxu0
    %v7119 = vadd.f32 %v7006, %v7118
    %7120 = vmatprep.mubr.bf16.mxu0 %v676
    %7121 = vmatmul.mubr.bf16.gmra.mxu0 %v675
    %v7122 = vpop.f32.mrf.mxu0
    %v7123 = vadd.f32 %v7010, %v7122
    %v7124 = vpop.f32.mrf.mxu0
    %v7125 = vadd.f32 %v7012, %v7124
    %v7126 = vpop.f32.mrf.mxu0
    %v7127 = vadd.f32 %v7014, %v7126
    %v7128 = vpop.f32.mrf.mxu0
    %v7129 = vadd.f32 %v7016, %v7128
    %7130 = vdwg.mxu0
    %7131 = vmatprep.subr.bf16.mxu0 %v4074
    %7132 = vmatpush1.bf16.msra.mxu0 %v4073
    %7133 = vmatprep.subr.bf16.mxu0 %v4070
    %7134 = vmatpush1.bf16.msra.mxu0 %v4069
    %7135 = vmatprep.subr.bf16.mxu0 %v4066
    %7136 = vmatpush1.bf16.msra.mxu0 %v4065
    %7137 = vmatprep.subr.bf16.mxu0 %v4062
    %7138 = vmatpush1.bf16.msra.mxu0 %v4061
    %7139 = vmatprep.subr.bf16.mxu0 %v4058
    %7140 = vmatpush1.bf16.msra.mxu0 %v4057
    %7141 = vmatprep.subr.bf16.mxu0 %v4054
    %7142 = vmatpush1.bf16.msra.mxu0 %v4053
    %7143 = vmatprep.subr.bf16.mxu0 %v4050
    %7144 = vmatpush1.bf16.msra.mxu0 %v4049
    %7145 = vmatprep.subr.bf16.mxu0 %v4046
    %7146 = vmatpush1.bf16.msra.mxu0 %v4045
    %7147 = vmatprep.subr.bf16.mxu0 %v4106
    %7148 = vmatpush2.bf16.msra.mxu0 %v4105
    %7149 = vmatprep.subr.bf16.mxu0 %v4102
    %7150 = vmatpush2.bf16.msra.mxu0 %v4101
    %7151 = vmatprep.subr.bf16.mxu0 %v4098
    %7152 = vmatpush2.bf16.msra.mxu0 %v4097
    %7153 = vmatprep.subr.bf16.mxu0 %v4094
    %7154 = vmatpush2.bf16.msra.mxu0 %v4093
    %7155 = vmatprep.subr.bf16.mxu0 %v4090
    %7156 = vmatpush2.bf16.msra.mxu0 %v4089
    %7157 = vmatprep.subr.bf16.mxu0 %v4086
    %7158 = vmatpush2.bf16.msra.mxu0 %v4085
    %7159 = vmatprep.subr.bf16.mxu0 %v4082
    %7160 = vmatpush2.bf16.msra.mxu0 %v4081
    %7161 = vmatprep.subr.bf16.mxu0 %v4078
    %7162 = vmatpush2.bf16.msra.mxu0 %v4077
    %7163 = vmatprep.mubr.bf16.mxu0 %v510
    %7164 = vmatmul.mubr.bf16.gmra.mxu0 %v509
    %v7165 = vpop.f32.mrf.mxu0
    %v7166 = vadd.f32 %v7053, %v7165
    %v7167 = vpop.f32.mrf.mxu0
    %v7168 = vadd.f32 %v7055, %v7167
    %v7169 = vpop.f32.mrf.mxu0
    %v7170 = vadd.f32 %v7057, %v7169
    %v7171 = vpop.f32.mrf.mxu0
    %v7172 = vadd.f32 %v7059, %v7171
    %7173 = vmatprep.mubr.bf16.mxu0 %v534
    %7174 = vmatmul.mubr.bf16.gmra.mxu0 %v533
    %v7175 = vpop.f32.mrf.mxu0
    %v7176 = vadd.f32 %v7063, %v7175
    %v7177 = vpop.f32.mrf.mxu0
    %v7178 = vadd.f32 %v7065, %v7177
    %v7179 = vpop.f32.mrf.mxu0
    %v7180 = vadd.f32 %v7067, %v7179
    %v7181 = vpop.f32.mrf.mxu0
    %v7182 = vadd.f32 %v7069, %v7181
    %7183 = vmatprep.mubr.bf16.mxu0 %v558
    %7184 = vmatmul.mubr.bf16.gmra.mxu0 %v557
    %v7185 = vpop.f32.mrf.mxu0
    %v7186 = vadd.f32 %v7073, %v7185
    %v7187 = vpop.f32.mrf.mxu0
    %v7188 = vadd.f32 %v7075, %v7187
    %v7189 = vpop.f32.mrf.mxu0
    %v7190 = vadd.f32 %v7077, %v7189
    %v7191 = vpop.f32.mrf.mxu0
    %v7192 = vadd.f32 %v7079, %v7191
    %7193 = vmatprep.mubr.bf16.mxu0 %v582
    %7194 = vmatmul.mubr.bf16.gmra.mxu0 %v581
    %v7195 = vpop.f32.mrf.mxu0
    %v7196 = vadd.f32 %v7083, %v7195
    %v7197 = vpop.f32.mrf.mxu0
    %v7198 = vadd.f32 %v7085, %v7197
    %v7199 = vpop.f32.mrf.mxu0
    %v7200 = vadd.f32 %v7087, %v7199
    %v7201 = vpop.f32.mrf.mxu0
    %v7202 = vadd.f32 %v7089, %v7201
    %7203 = vmatprep.mubr.bf16.mxu0 %v606
    %7204 = vmatmul.mubr.bf16.gmra.mxu0 %v605
    %v7205 = vpop.f32.mrf.mxu0
    %v7206 = vadd.f32 %v7093, %v7205
    %v7207 = vpop.f32.mrf.mxu0
    %v7208 = vadd.f32 %v7095, %v7207
    %v7209 = vpop.f32.mrf.mxu0
    %v7210 = vadd.f32 %v7097, %v7209
    %v7211 = vpop.f32.mrf.mxu0
    %v7212 = vadd.f32 %v7099, %v7211
    %7213 = vmatprep.mubr.bf16.mxu0 %v630
    %7214 = vmatmul.mubr.bf16.gmra.mxu0 %v629
    %v7215 = vpop.f32.mrf.mxu0
    %v7216 = vadd.f32 %v7103, %v7215
    %v7217 = vpop.f32.mrf.mxu0
    %v7218 = vadd.f32 %v7105, %v7217
    %v7219 = vpop.f32.mrf.mxu0
    %v7220 = vadd.f32 %v7107, %v7219
    %v7221 = vpop.f32.mrf.mxu0
    %v7222 = vadd.f32 %v7109, %v7221
    %7223 = vmatprep.mubr.bf16.mxu0 %v654
    %7224 = vmatmul.mubr.bf16.gmra.mxu0 %v653
    %v7225 = vpop.f32.mrf.mxu0
    %v7226 = vadd.f32 %v7113, %v7225
    %v7227 = vpop.f32.mrf.mxu0
    %v7228 = vadd.f32 %v7115, %v7227
    %v7229 = vpop.f32.mrf.mxu0
    %v7230 = vadd.f32 %v7117, %v7229
    %v7231 = vpop.f32.mrf.mxu0
    %v7232 = vadd.f32 %v7119, %v7231
    %7233 = vmatprep.mubr.bf16.mxu0 %v678
    %7234 = vmatmul.mubr.bf16.gmra.mxu0 %v677
    %v7235 = vpop.f32.mrf.mxu0
    %v7236 = vadd.f32 %v7123, %v7235
    %v7237 = vpop.f32.mrf.mxu0
    %v7238 = vadd.f32 %v7125, %v7237
    %v7239 = vpop.f32.mrf.mxu0
    %v7240 = vadd.f32 %v7127, %v7239
    %v7241 = vpop.f32.mrf.mxu0
    %v7242 = vadd.f32 %v7129, %v7241
    %7243 = vdwg.mxu0
    %7244 = vmatprep.subr.bf16.mxu0 %v4138
    %7245 = vmatpush1.bf16.msra.mxu0 %v4137
    %7246 = vmatprep.subr.bf16.mxu0 %v4134
    %7247 = vmatpush1.bf16.msra.mxu0 %v4133
    %7248 = vmatprep.subr.bf16.mxu0 %v4130
    %7249 = vmatpush1.bf16.msra.mxu0 %v4129
    %7250 = vmatprep.subr.bf16.mxu0 %v4126
    %7251 = vmatpush1.bf16.msra.mxu0 %v4125
    %7252 = vmatprep.subr.bf16.mxu0 %v4122
    %7253 = vmatpush1.bf16.msra.mxu0 %v4121
    %7254 = vmatprep.subr.bf16.mxu0 %v4118
    %7255 = vmatpush1.bf16.msra.mxu0 %v4117
    %7256 = vmatprep.subr.bf16.mxu0 %v4114
    %7257 = vmatpush1.bf16.msra.mxu0 %v4113
    %7258 = vmatprep.subr.bf16.mxu0 %v4110
    %7259 = vmatpush1.bf16.msra.mxu0 %v4109
    %7260 = vmatprep.subr.bf16.mxu0 %v4170
    %7261 = vmatpush2.bf16.msra.mxu0 %v4169
    %7262 = vmatprep.subr.bf16.mxu0 %v4166
    %7263 = vmatpush2.bf16.msra.mxu0 %v4165
    %7264 = vmatprep.subr.bf16.mxu0 %v4162
    %7265 = vmatpush2.bf16.msra.mxu0 %v4161
    %7266 = vmatprep.subr.bf16.mxu0 %v4158
    %7267 = vmatpush2.bf16.msra.mxu0 %v4157
    %7268 = vmatprep.subr.bf16.mxu0 %v4154
    %7269 = vmatpush2.bf16.msra.mxu0 %v4153
    %7270 = vmatprep.subr.bf16.mxu0 %v4150
    %7271 = vmatpush2.bf16.msra.mxu0 %v4149
    %7272 = vmatprep.subr.bf16.mxu0 %v4146
    %7273 = vmatpush2.bf16.msra.mxu0 %v4145
    %7274 = vmatprep.subr.bf16.mxu0 %v4142
    %7275 = vmatpush2.bf16.msra.mxu0 %v4141
    %7276 = vmatprep.mubr.bf16.mxu0 %v512
    %7277 = vmatmul.mubr.bf16.gmra.mxu0 %v511
    %v7278 = vpop.f32.mrf.mxu0
    %v7279 = vadd.f32 %v7166, %v7278
    %v7280 = vpop.f32.mrf.mxu0
    %v7281 = vadd.f32 %v7168, %v7280
    %v7282 = vpop.f32.mrf.mxu0
    %v7283 = vadd.f32 %v7170, %v7282
    %v7284 = vpop.f32.mrf.mxu0
    %v7285 = vadd.f32 %v7172, %v7284
    %7286 = vmatprep.mubr.bf16.mxu0 %v536
    %7287 = vmatmul.mubr.bf16.gmra.mxu0 %v535
    %v7288 = vpop.f32.mrf.mxu0
    %v7289 = vadd.f32 %v7176, %v7288
    %v7290 = vpop.f32.mrf.mxu0
    %v7291 = vadd.f32 %v7178, %v7290
    %v7292 = vpop.f32.mrf.mxu0
    %v7293 = vadd.f32 %v7180, %v7292
    %v7294 = vpop.f32.mrf.mxu0
    %v7295 = vadd.f32 %v7182, %v7294
    %7296 = vmatprep.mubr.bf16.mxu0 %v560
    %7297 = vmatmul.mubr.bf16.gmra.mxu0 %v559
    %v7298 = vpop.f32.mrf.mxu0
    %v7299 = vadd.f32 %v7186, %v7298
    %v7300 = vpop.f32.mrf.mxu0
    %v7301 = vadd.f32 %v7188, %v7300
    %v7302 = vpop.f32.mrf.mxu0
    %v7303 = vadd.f32 %v7190, %v7302
    %v7304 = vpop.f32.mrf.mxu0
    %v7305 = vadd.f32 %v7192, %v7304
    %7306 = vmatprep.mubr.bf16.mxu0 %v584
    %7307 = vmatmul.mubr.bf16.gmra.mxu0 %v583
    %v7308 = vpop.f32.mrf.mxu0
    %v7309 = vadd.f32 %v7196, %v7308
    %v7310 = vpop.f32.mrf.mxu0
    %v7311 = vadd.f32 %v7198, %v7310
    %v7312 = vpop.f32.mrf.mxu0
    %v7313 = vadd.f32 %v7200, %v7312
    %v7314 = vpop.f32.mrf.mxu0
    %v7315 = vadd.f32 %v7202, %v7314
    %7316 = vmatprep.mubr.bf16.mxu0 %v608
    %7317 = vmatmul.mubr.bf16.gmra.mxu0 %v607
    %v7318 = vpop.f32.mrf.mxu0
    %v7319 = vadd.f32 %v7206, %v7318
    %v7320 = vpop.f32.mrf.mxu0
    %v7321 = vadd.f32 %v7208, %v7320
    %v7322 = vpop.f32.mrf.mxu0
    %v7323 = vadd.f32 %v7210, %v7322
    %v7324 = vpop.f32.mrf.mxu0
    %v7325 = vadd.f32 %v7212, %v7324
    %7326 = vmatprep.mubr.bf16.mxu0 %v632
    %7327 = vmatmul.mubr.bf16.gmra.mxu0 %v631
    %v7328 = vpop.f32.mrf.mxu0
    %v7329 = vadd.f32 %v7216, %v7328
    %v7330 = vpop.f32.mrf.mxu0
    %v7331 = vadd.f32 %v7218, %v7330
    %v7332 = vpop.f32.mrf.mxu0
    %v7333 = vadd.f32 %v7220, %v7332
    %v7334 = vpop.f32.mrf.mxu0
    %v7335 = vadd.f32 %v7222, %v7334
    %7336 = vmatprep.mubr.bf16.mxu0 %v656
    %7337 = vmatmul.mubr.bf16.gmra.mxu0 %v655
    %v7338 = vpop.f32.mrf.mxu0
    %v7339 = vadd.f32 %v7226, %v7338
    %v7340 = vpop.f32.mrf.mxu0
    %v7341 = vadd.f32 %v7228, %v7340
    %v7342 = vpop.f32.mrf.mxu0
    %v7343 = vadd.f32 %v7230, %v7342
    %v7344 = vpop.f32.mrf.mxu0
    %v7345 = vadd.f32 %v7232, %v7344
    %7346 = vmatprep.mubr.bf16.mxu0 %v680
    %7347 = vmatmul.mubr.bf16.gmra.mxu0 %v679
    %v7348 = vpop.f32.mrf.mxu0
    %v7349 = vadd.f32 %v7236, %v7348
    %v7350 = vpop.f32.mrf.mxu0
    %v7351 = vadd.f32 %v7238, %v7350
    %v7352 = vpop.f32.mrf.mxu0
    %v7353 = vadd.f32 %v7240, %v7352
    %v7354 = vpop.f32.mrf.mxu0
    %v7355 = vadd.f32 %v7242, %v7354
    %7356 = vdwg.mxu0
    %7357 = vmatprep.subr.bf16.mxu0 %v4202
    %7358 = vmatpush1.bf16.msra.mxu0 %v4201
    %7359 = vmatprep.subr.bf16.mxu0 %v4198
    %7360 = vmatpush1.bf16.msra.mxu0 %v4197
    %7361 = vmatprep.subr.bf16.mxu0 %v4194
    %7362 = vmatpush1.bf16.msra.mxu0 %v4193
    %7363 = vmatprep.subr.bf16.mxu0 %v4190
    %7364 = vmatpush1.bf16.msra.mxu0 %v4189
    %7365 = vmatprep.subr.bf16.mxu0 %v4186
    %7366 = vmatpush1.bf16.msra.mxu0 %v4185
    %7367 = vmatprep.subr.bf16.mxu0 %v4182
    %7368 = vmatpush1.bf16.msra.mxu0 %v4181
    %7369 = vmatprep.subr.bf16.mxu0 %v4178
    %7370 = vmatpush1.bf16.msra.mxu0 %v4177
    %7371 = vmatprep.subr.bf16.mxu0 %v4174
    %7372 = vmatpush1.bf16.msra.mxu0 %v4173
    %7373 = vmatprep.subr.bf16.mxu0 %v4234
    %7374 = vmatpush2.bf16.msra.mxu0 %v4233
    %7375 = vmatprep.subr.bf16.mxu0 %v4230
    %7376 = vmatpush2.bf16.msra.mxu0 %v4229
    %7377 = vmatprep.subr.bf16.mxu0 %v4226
    %7378 = vmatpush2.bf16.msra.mxu0 %v4225
    %7379 = vmatprep.subr.bf16.mxu0 %v4222
    %7380 = vmatpush2.bf16.msra.mxu0 %v4221
    %7381 = vmatprep.subr.bf16.mxu0 %v4218
    %7382 = vmatpush2.bf16.msra.mxu0 %v4217
    %7383 = vmatprep.subr.bf16.mxu0 %v4214
    %7384 = vmatpush2.bf16.msra.mxu0 %v4213
    %7385 = vmatprep.subr.bf16.mxu0 %v4210
    %7386 = vmatpush2.bf16.msra.mxu0 %v4209
    %7387 = vmatprep.subr.bf16.mxu0 %v4206
    %7388 = vmatpush2.bf16.msra.mxu0 %v4205
    %7389 = vmatprep.mubr.bf16.mxu0 %v514
    %7390 = vmatmul.mubr.bf16.gmra.mxu0 %v513
    %v7391 = vpop.f32.mrf.mxu0
    %v7392 = vadd.f32 %v7279, %v7391
    %v7393 = vpop.f32.mrf.mxu0
    %v7394 = vadd.f32 %v7281, %v7393
    %v7395 = vpop.f32.mrf.mxu0
    %v7396 = vadd.f32 %v7283, %v7395
    %v7397 = vpop.f32.mrf.mxu0
    %v7398 = vadd.f32 %v7285, %v7397
    %7399 = vmatprep.mubr.bf16.mxu0 %v538
    %7400 = vmatmul.mubr.bf16.gmra.mxu0 %v537
    %v7401 = vpop.f32.mrf.mxu0
    %v7402 = vadd.f32 %v7289, %v7401
    %v7403 = vpop.f32.mrf.mxu0
    %v7404 = vadd.f32 %v7291, %v7403
    %v7405 = vpop.f32.mrf.mxu0
    %v7406 = vadd.f32 %v7293, %v7405
    %v7407 = vpop.f32.mrf.mxu0
    %v7408 = vadd.f32 %v7295, %v7407
    %7409 = vmatprep.mubr.bf16.mxu0 %v562
    %7410 = vmatmul.mubr.bf16.gmra.mxu0 %v561
    %v7411 = vpop.f32.mrf.mxu0
    %v7412 = vadd.f32 %v7299, %v7411
    %v7413 = vpop.f32.mrf.mxu0
    %v7414 = vadd.f32 %v7301, %v7413
    %v7415 = vpop.f32.mrf.mxu0
    %v7416 = vadd.f32 %v7303, %v7415
    %v7417 = vpop.f32.mrf.mxu0
    %v7418 = vadd.f32 %v7305, %v7417
    %7419 = vmatprep.mubr.bf16.mxu0 %v586
    %7420 = vmatmul.mubr.bf16.gmra.mxu0 %v585
    %v7421 = vpop.f32.mrf.mxu0
    %v7422 = vadd.f32 %v7309, %v7421
    %v7423 = vpop.f32.mrf.mxu0
    %v7424 = vadd.f32 %v7311, %v7423
    %v7425 = vpop.f32.mrf.mxu0
    %v7426 = vadd.f32 %v7313, %v7425
    %v7427 = vpop.f32.mrf.mxu0
    %v7428 = vadd.f32 %v7315, %v7427
    %7429 = vmatprep.mubr.bf16.mxu0 %v610
    %7430 = vmatmul.mubr.bf16.gmra.mxu0 %v609
    %v7431 = vpop.f32.mrf.mxu0
    %v7432 = vadd.f32 %v7319, %v7431
    %v7433 = vpop.f32.mrf.mxu0
    %v7434 = vadd.f32 %v7321, %v7433
    %v7435 = vpop.f32.mrf.mxu0
    %v7436 = vadd.f32 %v7323, %v7435
    %v7437 = vpop.f32.mrf.mxu0
    %v7438 = vadd.f32 %v7325, %v7437
    %7439 = vmatprep.mubr.bf16.mxu0 %v634
    %7440 = vmatmul.mubr.bf16.gmra.mxu0 %v633
    %v7441 = vpop.f32.mrf.mxu0
    %v7442 = vadd.f32 %v7329, %v7441
    %v7443 = vpop.f32.mrf.mxu0
    %v7444 = vadd.f32 %v7331, %v7443
    %v7445 = vpop.f32.mrf.mxu0
    %v7446 = vadd.f32 %v7333, %v7445
    %v7447 = vpop.f32.mrf.mxu0
    %v7448 = vadd.f32 %v7335, %v7447
    %7449 = vmatprep.mubr.bf16.mxu0 %v658
    %7450 = vmatmul.mubr.bf16.gmra.mxu0 %v657
    %v7451 = vpop.f32.mrf.mxu0
    %v7452 = vadd.f32 %v7339, %v7451
    %v7453 = vpop.f32.mrf.mxu0
    %v7454 = vadd.f32 %v7341, %v7453
    %v7455 = vpop.f32.mrf.mxu0
    %v7456 = vadd.f32 %v7343, %v7455
    %v7457 = vpop.f32.mrf.mxu0
    %v7458 = vadd.f32 %v7345, %v7457
    %7459 = vmatprep.mubr.bf16.mxu0 %v682
    %7460 = vmatmul.mubr.bf16.gmra.mxu0 %v681
    %v7461 = vpop.f32.mrf.mxu0
    %v7462 = vadd.f32 %v7349, %v7461
    %v7463 = vpop.f32.mrf.mxu0
    %v7464 = vadd.f32 %v7351, %v7463
    %v7465 = vpop.f32.mrf.mxu0
    %v7466 = vadd.f32 %v7353, %v7465
    %v7467 = vpop.f32.mrf.mxu0
    %v7468 = vadd.f32 %v7355, %v7467
    %7469 = vdwg.mxu0
    %7470 = vmatprep.subr.bf16.mxu0 %v4266
    %7471 = vmatpush1.bf16.msra.mxu0 %v4265
    %7472 = vmatprep.subr.bf16.mxu0 %v4262
    %7473 = vmatpush1.bf16.msra.mxu0 %v4261
    %7474 = vmatprep.subr.bf16.mxu0 %v4258
    %7475 = vmatpush1.bf16.msra.mxu0 %v4257
    %7476 = vmatprep.subr.bf16.mxu0 %v4254
    %7477 = vmatpush1.bf16.msra.mxu0 %v4253
    %7478 = vmatprep.subr.bf16.mxu0 %v4250
    %7479 = vmatpush1.bf16.msra.mxu0 %v4249
    %7480 = vmatprep.subr.bf16.mxu0 %v4246
    %7481 = vmatpush1.bf16.msra.mxu0 %v4245
    %7482 = vmatprep.subr.bf16.mxu0 %v4242
    %7483 = vmatpush1.bf16.msra.mxu0 %v4241
    %7484 = vmatprep.subr.bf16.mxu0 %v4238
    %7485 = vmatpush1.bf16.msra.mxu0 %v4237
    %7486 = vmatprep.subr.bf16.mxu0 %v4298
    %7487 = vmatpush2.bf16.msra.mxu0 %v4297
    %7488 = vmatprep.subr.bf16.mxu0 %v4294
    %7489 = vmatpush2.bf16.msra.mxu0 %v4293
    %7490 = vmatprep.subr.bf16.mxu0 %v4290
    %7491 = vmatpush2.bf16.msra.mxu0 %v4289
    %7492 = vmatprep.subr.bf16.mxu0 %v4286
    %7493 = vmatpush2.bf16.msra.mxu0 %v4285
    %7494 = vmatprep.subr.bf16.mxu0 %v4282
    %7495 = vmatpush2.bf16.msra.mxu0 %v4281
    %7496 = vmatprep.subr.bf16.mxu0 %v4278
    %7497 = vmatpush2.bf16.msra.mxu0 %v4277
    %7498 = vmatprep.subr.bf16.mxu0 %v4274
    %7499 = vmatpush2.bf16.msra.mxu0 %v4273
    %7500 = vmatprep.subr.bf16.mxu0 %v4270
    %7501 = vmatpush2.bf16.msra.mxu0 %v4269
    %7502 = vmatprep.mubr.bf16.mxu0 %v516
    %7503 = vmatmul.mubr.bf16.gmra.mxu0 %v515
    %v7504 = vpop.f32.mrf.mxu0
    %v7505 = vadd.f32 %v7392, %v7504
    %v7506 = vpop.f32.mrf.mxu0
    %v7507 = vadd.f32 %v7394, %v7506
    %v7508 = vpop.f32.mrf.mxu0
    %v7509 = vadd.f32 %v7396, %v7508
    %v7510 = vpop.f32.mrf.mxu0
    %v7511 = vadd.f32 %v7398, %v7510
    %7512 = vmatprep.mubr.bf16.mxu0 %v540
    %7513 = vmatmul.mubr.bf16.gmra.mxu0 %v539
    %v7514 = vpop.f32.mrf.mxu0
    %v7515 = vadd.f32 %v7402, %v7514
    %v7516 = vpop.f32.mrf.mxu0
    %v7517 = vadd.f32 %v7404, %v7516
    %v7518 = vpop.f32.mrf.mxu0
    %v7519 = vadd.f32 %v7406, %v7518
    %v7520 = vpop.f32.mrf.mxu0
    %v7521 = vadd.f32 %v7408, %v7520
    %7522 = vmatprep.mubr.bf16.mxu0 %v564
    %7523 = vmatmul.mubr.bf16.gmra.mxu0 %v563
    %v7524 = vpop.f32.mrf.mxu0
    %v7525 = vadd.f32 %v7412, %v7524
    %v7526 = vpop.f32.mrf.mxu0
    %v7527 = vadd.f32 %v7414, %v7526
    %v7528 = vpop.f32.mrf.mxu0
    %v7529 = vadd.f32 %v7416, %v7528
    %v7530 = vpop.f32.mrf.mxu0
    %v7531 = vadd.f32 %v7418, %v7530
    %7532 = vmatprep.mubr.bf16.mxu0 %v588
    %7533 = vmatmul.mubr.bf16.gmra.mxu0 %v587
    %v7534 = vpop.f32.mrf.mxu0
    %v7535 = vadd.f32 %v7422, %v7534
    %v7536 = vpop.f32.mrf.mxu0
    %v7537 = vadd.f32 %v7424, %v7536
    %v7538 = vpop.f32.mrf.mxu0
    %v7539 = vadd.f32 %v7426, %v7538
    %v7540 = vpop.f32.mrf.mxu0
    %v7541 = vadd.f32 %v7428, %v7540
    %7542 = vmatprep.mubr.bf16.mxu0 %v612
    %7543 = vmatmul.mubr.bf16.gmra.mxu0 %v611
    %v7544 = vpop.f32.mrf.mxu0
    %v7545 = vadd.f32 %v7432, %v7544
    %v7546 = vpop.f32.mrf.mxu0
    %v7547 = vadd.f32 %v7434, %v7546
    %v7548 = vpop.f32.mrf.mxu0
    %v7549 = vadd.f32 %v7436, %v7548
    %v7550 = vpop.f32.mrf.mxu0
    %v7551 = vadd.f32 %v7438, %v7550
    %7552 = vmatprep.mubr.bf16.mxu0 %v636
    %7553 = vmatmul.mubr.bf16.gmra.mxu0 %v635
    %v7554 = vpop.f32.mrf.mxu0
    %v7555 = vadd.f32 %v7442, %v7554
    %v7556 = vpop.f32.mrf.mxu0
    %v7557 = vadd.f32 %v7444, %v7556
    %v7558 = vpop.f32.mrf.mxu0
    %v7559 = vadd.f32 %v7446, %v7558
    %v7560 = vpop.f32.mrf.mxu0
    %v7561 = vadd.f32 %v7448, %v7560
    %7562 = vmatprep.mubr.bf16.mxu0 %v660
    %7563 = vmatmul.mubr.bf16.gmra.mxu0 %v659
    %v7564 = vpop.f32.mrf.mxu0
    %v7565 = vadd.f32 %v7452, %v7564
    %v7566 = vpop.f32.mrf.mxu0
    %v7567 = vadd.f32 %v7454, %v7566
    %v7568 = vpop.f32.mrf.mxu0
    %v7569 = vadd.f32 %v7456, %v7568
    %v7570 = vpop.f32.mrf.mxu0
    %v7571 = vadd.f32 %v7458, %v7570
    %7572 = vmatprep.mubr.bf16.mxu0 %v684
    %7573 = vmatmul.mubr.bf16.gmra.mxu0 %v683
    %v7574 = vpop.f32.mrf.mxu0
    %v7575 = vadd.f32 %v7462, %v7574
    %v7576 = vpop.f32.mrf.mxu0
    %v7577 = vadd.f32 %v7464, %v7576
    %v7578 = vpop.f32.mrf.mxu0
    %v7579 = vadd.f32 %v7466, %v7578
    %v7580 = vpop.f32.mrf.mxu0
    %v7581 = vadd.f32 %v7468, %v7580
    %7582 = vdwg.mxu0
    %7583 = vmatprep.subr.bf16.mxu0 %v4330
    %7584 = vmatpush1.bf16.msra.mxu0 %v4329
    %7585 = vmatprep.subr.bf16.mxu0 %v4326
    %7586 = vmatpush1.bf16.msra.mxu0 %v4325
    %7587 = vmatprep.subr.bf16.mxu0 %v4322
    %7588 = vmatpush1.bf16.msra.mxu0 %v4321
    %7589 = vmatprep.subr.bf16.mxu0 %v4318
    %7590 = vmatpush1.bf16.msra.mxu0 %v4317
    %7591 = vmatprep.subr.bf16.mxu0 %v4314
    %7592 = vmatpush1.bf16.msra.mxu0 %v4313
    %7593 = vmatprep.subr.bf16.mxu0 %v4310
    %7594 = vmatpush1.bf16.msra.mxu0 %v4309
    %7595 = vmatprep.subr.bf16.mxu0 %v4306
    %7596 = vmatpush1.bf16.msra.mxu0 %v4305
    %7597 = vmatprep.subr.bf16.mxu0 %v4302
    %7598 = vmatpush1.bf16.msra.mxu0 %v4301
    %7599 = vmatprep.subr.bf16.mxu0 %v4362
    %7600 = vmatpush2.bf16.msra.mxu0 %v4361
    %7601 = vmatprep.subr.bf16.mxu0 %v4358
    %7602 = vmatpush2.bf16.msra.mxu0 %v4357
    %7603 = vmatprep.subr.bf16.mxu0 %v4354
    %7604 = vmatpush2.bf16.msra.mxu0 %v4353
    %7605 = vmatprep.subr.bf16.mxu0 %v4350
    %7606 = vmatpush2.bf16.msra.mxu0 %v4349
    %7607 = vmatprep.subr.bf16.mxu0 %v4346
    %7608 = vmatpush2.bf16.msra.mxu0 %v4345
    %7609 = vmatprep.subr.bf16.mxu0 %v4342
    %7610 = vmatpush2.bf16.msra.mxu0 %v4341
    %7611 = vmatprep.subr.bf16.mxu0 %v4338
    %7612 = vmatpush2.bf16.msra.mxu0 %v4337
    %7613 = vmatprep.subr.bf16.mxu0 %v4334
    %7614 = vmatpush2.bf16.msra.mxu0 %v4333
    %7615 = vmatprep.mubr.bf16.mxu0 %v518
    %7616 = vmatmul.mubr.bf16.gmra.mxu0 %v517
    %v7617 = vpop.f32.mrf.mxu0
    %v7618 = vadd.f32 %v7505, %v7617
    %v7619 = vpop.f32.mrf.mxu0
    %v7620 = vadd.f32 %v7507, %v7619
    %v7621 = vpop.f32.mrf.mxu0
    %v7622 = vadd.f32 %v7509, %v7621
    %v7623 = vpop.f32.mrf.mxu0
    %v7624 = vadd.f32 %v7511, %v7623
    %7625 = vmatprep.mubr.bf16.mxu0 %v542
    %7626 = vmatmul.mubr.bf16.gmra.mxu0 %v541
    %v7627 = vpop.f32.mrf.mxu0
    %v7628 = vadd.f32 %v7515, %v7627
    %v7629 = vpop.f32.mrf.mxu0
    %v7630 = vadd.f32 %v7517, %v7629
    %v7631 = vpop.f32.mrf.mxu0
    %v7632 = vadd.f32 %v7519, %v7631
    %v7633 = vpop.f32.mrf.mxu0
    %v7634 = vadd.f32 %v7521, %v7633
    %7635 = vmatprep.mubr.bf16.mxu0 %v566
    %7636 = vmatmul.mubr.bf16.gmra.mxu0 %v565
    %v7637 = vpop.f32.mrf.mxu0
    %v7638 = vadd.f32 %v7525, %v7637
    %v7639 = vpop.f32.mrf.mxu0
    %v7640 = vadd.f32 %v7527, %v7639
    %v7641 = vpop.f32.mrf.mxu0
    %v7642 = vadd.f32 %v7529, %v7641
    %v7643 = vpop.f32.mrf.mxu0
    %v7644 = vadd.f32 %v7531, %v7643
    %7645 = vmatprep.mubr.bf16.mxu0 %v590
    %7646 = vmatmul.mubr.bf16.gmra.mxu0 %v589
    %v7647 = vpop.f32.mrf.mxu0
    %v7648 = vadd.f32 %v7535, %v7647
    %v7649 = vpop.f32.mrf.mxu0
    %v7650 = vadd.f32 %v7537, %v7649
    %v7651 = vpop.f32.mrf.mxu0
    %v7652 = vadd.f32 %v7539, %v7651
    %v7653 = vpop.f32.mrf.mxu0
    %v7654 = vadd.f32 %v7541, %v7653
    %7655 = vmatprep.mubr.bf16.mxu0 %v614
    %7656 = vmatmul.mubr.bf16.gmra.mxu0 %v613
    %v7657 = vpop.f32.mrf.mxu0
    %v7658 = vadd.f32 %v7545, %v7657
    %v7659 = vpop.f32.mrf.mxu0
    %v7660 = vadd.f32 %v7547, %v7659
    %v7661 = vpop.f32.mrf.mxu0
    %v7662 = vadd.f32 %v7549, %v7661
    %v7663 = vpop.f32.mrf.mxu0
    %v7664 = vadd.f32 %v7551, %v7663
    %7665 = vmatprep.mubr.bf16.mxu0 %v638
    %7666 = vmatmul.mubr.bf16.gmra.mxu0 %v637
    %v7667 = vpop.f32.mrf.mxu0
    %v7668 = vadd.f32 %v7555, %v7667
    %v7669 = vpop.f32.mrf.mxu0
    %v7670 = vadd.f32 %v7557, %v7669
    %v7671 = vpop.f32.mrf.mxu0
    %v7672 = vadd.f32 %v7559, %v7671
    %v7673 = vpop.f32.mrf.mxu0
    %v7674 = vadd.f32 %v7561, %v7673
    %7675 = vmatprep.mubr.bf16.mxu0 %v662
    %7676 = vmatmul.mubr.bf16.gmra.mxu0 %v661
    %v7677 = vpop.f32.mrf.mxu0
    %v7678 = vadd.f32 %v7565, %v7677
    %v7679 = vpop.f32.mrf.mxu0
    %v7680 = vadd.f32 %v7567, %v7679
    %v7681 = vpop.f32.mrf.mxu0
    %v7682 = vadd.f32 %v7569, %v7681
    %v7683 = vpop.f32.mrf.mxu0
    %v7684 = vadd.f32 %v7571, %v7683
    %7685 = vmatprep.mubr.bf16.mxu0 %v686
    %7686 = vmatmul.mubr.bf16.gmra.mxu0 %v685
    %v7687 = vpop.f32.mrf.mxu0
    %v7688 = vadd.f32 %v7575, %v7687
    %v7689 = vpop.f32.mrf.mxu0
    %v7690 = vadd.f32 %v7577, %v7689
    %v7691 = vpop.f32.mrf.mxu0
    %v7692 = vadd.f32 %v7579, %v7691
    %v7693 = vpop.f32.mrf.mxu0
    %v7694 = vadd.f32 %v7581, %v7693
    %7695 = vdwg.mxu0
    %7696 = vmatprep.subr.bf16.mxu0 %v4394
    %7697 = vmatpush1.bf16.msra.mxu0 %v4393
    %7698 = vmatprep.subr.bf16.mxu0 %v4390
    %7699 = vmatpush1.bf16.msra.mxu0 %v4389
    %7700 = vmatprep.subr.bf16.mxu0 %v4386
    %7701 = vmatpush1.bf16.msra.mxu0 %v4385
    %7702 = vmatprep.subr.bf16.mxu0 %v4382
    %7703 = vmatpush1.bf16.msra.mxu0 %v4381
    %7704 = vmatprep.subr.bf16.mxu0 %v4378
    %7705 = vmatpush1.bf16.msra.mxu0 %v4377
    %7706 = vmatprep.subr.bf16.mxu0 %v4374
    %7707 = vmatpush1.bf16.msra.mxu0 %v4373
    %7708 = vmatprep.subr.bf16.mxu0 %v4370
    %7709 = vmatpush1.bf16.msra.mxu0 %v4369
    %7710 = vmatprep.subr.bf16.mxu0 %v4366
    %7711 = vmatpush1.bf16.msra.mxu0 %v4365
    %7712 = vmatprep.subr.bf16.mxu0 %v4426
    %7713 = vmatpush2.bf16.msra.mxu0 %v4425
    %7714 = vmatprep.subr.bf16.mxu0 %v4422
    %7715 = vmatpush2.bf16.msra.mxu0 %v4421
    %7716 = vmatprep.subr.bf16.mxu0 %v4418
    %7717 = vmatpush2.bf16.msra.mxu0 %v4417
    %7718 = vmatprep.subr.bf16.mxu0 %v4414
    %7719 = vmatpush2.bf16.msra.mxu0 %v4413
    %7720 = vmatprep.subr.bf16.mxu0 %v4410
    %7721 = vmatpush2.bf16.msra.mxu0 %v4409
    %7722 = vmatprep.subr.bf16.mxu0 %v4406
    %7723 = vmatpush2.bf16.msra.mxu0 %v4405
    %7724 = vmatprep.subr.bf16.mxu0 %v4402
    %7725 = vmatpush2.bf16.msra.mxu0 %v4401
    %7726 = vmatprep.subr.bf16.mxu0 %v4398
    %7727 = vmatpush2.bf16.msra.mxu0 %v4397
    %7728 = vmatprep.mubr.bf16.mxu0 %v520
    %7729 = vmatmul.mubr.bf16.gmra.mxu0 %v519
    %v7730 = vpop.f32.mrf.mxu0
    %v7731 = vadd.f32 %v7618, %v7730
    %v7732 = vpop.f32.mrf.mxu0
    %v7733 = vadd.f32 %v7620, %v7732
    %v7734 = vpop.f32.mrf.mxu0
    %v7735 = vadd.f32 %v7622, %v7734
    %v7736 = vpop.f32.mrf.mxu0
    %v7737 = vadd.f32 %v7624, %v7736
    %7738 = vmatprep.mubr.bf16.mxu0 %v544
    %7739 = vmatmul.mubr.bf16.gmra.mxu0 %v543
    %v7740 = vpop.f32.mrf.mxu0
    %v7741 = vadd.f32 %v7628, %v7740
    %v7742 = vpop.f32.mrf.mxu0
    %v7743 = vadd.f32 %v7630, %v7742
    %v7744 = vpop.f32.mrf.mxu0
    %v7745 = vadd.f32 %v7632, %v7744
    %v7746 = vpop.f32.mrf.mxu0
    %v7747 = vadd.f32 %v7634, %v7746
    %7748 = vmatprep.mubr.bf16.mxu0 %v568
    %7749 = vmatmul.mubr.bf16.gmra.mxu0 %v567
    %v7750 = vpop.f32.mrf.mxu0
    %v7751 = vadd.f32 %v7638, %v7750
    %v7752 = vpop.f32.mrf.mxu0
    %v7753 = vadd.f32 %v7640, %v7752
    %v7754 = vpop.f32.mrf.mxu0
    %v7755 = vadd.f32 %v7642, %v7754
    %v7756 = vpop.f32.mrf.mxu0
    %v7757 = vadd.f32 %v7644, %v7756
    %7758 = vmatprep.mubr.bf16.mxu0 %v592
    %7759 = vmatmul.mubr.bf16.gmra.mxu0 %v591
    %v7760 = vpop.f32.mrf.mxu0
    %v7761 = vadd.f32 %v7648, %v7760
    %v7762 = vpop.f32.mrf.mxu0
    %v7763 = vadd.f32 %v7650, %v7762
    %v7764 = vpop.f32.mrf.mxu0
    %v7765 = vadd.f32 %v7652, %v7764
    %v7766 = vpop.f32.mrf.mxu0
    %v7767 = vadd.f32 %v7654, %v7766
    %7768 = vmatprep.mubr.bf16.mxu0 %v616
    %7769 = vmatmul.mubr.bf16.gmra.mxu0 %v615
    %v7770 = vpop.f32.mrf.mxu0
    %v7771 = vadd.f32 %v7658, %v7770
    %v7772 = vpop.f32.mrf.mxu0
    %v7773 = vadd.f32 %v7660, %v7772
    %v7774 = vpop.f32.mrf.mxu0
    %v7775 = vadd.f32 %v7662, %v7774
    %v7776 = vpop.f32.mrf.mxu0
    %v7777 = vadd.f32 %v7664, %v7776
    %7778 = vmatprep.mubr.bf16.mxu0 %v640
    %7779 = vmatmul.mubr.bf16.gmra.mxu0 %v639
    %v7780 = vpop.f32.mrf.mxu0
    %v7781 = vadd.f32 %v7668, %v7780
    %v7782 = vpop.f32.mrf.mxu0
    %v7783 = vadd.f32 %v7670, %v7782
    %v7784 = vpop.f32.mrf.mxu0
    %v7785 = vadd.f32 %v7672, %v7784
    %v7786 = vpop.f32.mrf.mxu0
    %v7787 = vadd.f32 %v7674, %v7786
    %7788 = vmatprep.mubr.bf16.mxu0 %v664
    %7789 = vmatmul.mubr.bf16.gmra.mxu0 %v663
    %v7790 = vpop.f32.mrf.mxu0
    %v7791 = vadd.f32 %v7678, %v7790
    %v7792 = vpop.f32.mrf.mxu0
    %v7793 = vadd.f32 %v7680, %v7792
    %v7794 = vpop.f32.mrf.mxu0
    %v7795 = vadd.f32 %v7682, %v7794
    %v7796 = vpop.f32.mrf.mxu0
    %v7797 = vadd.f32 %v7684, %v7796
    %7798 = vmatprep.mubr.bf16.mxu0 %v688
    %7799 = vmatmul.mubr.bf16.gmra.mxu0 %v687
    %v7800 = vpop.f32.mrf.mxu0
    %v7801 = vadd.f32 %v7688, %v7800
    %v7802 = vpop.f32.mrf.mxu0
    %v7803 = vadd.f32 %v7690, %v7802
    %v7804 = vpop.f32.mrf.mxu0
    %v7805 = vadd.f32 %v7692, %v7804
    %v7806 = vpop.f32.mrf.mxu0
    %v7807 = vadd.f32 %v7694, %v7806
    %7808 = vdwg.mxu0
    %7809 = vmatprep.subr.bf16.mxu0 %v4458
    %7810 = vmatpush1.bf16.msra.mxu0 %v4457
    %7811 = vmatprep.subr.bf16.mxu0 %v4454
    %7812 = vmatpush1.bf16.msra.mxu0 %v4453
    %7813 = vmatprep.subr.bf16.mxu0 %v4450
    %7814 = vmatpush1.bf16.msra.mxu0 %v4449
    %7815 = vmatprep.subr.bf16.mxu0 %v4446
    %7816 = vmatpush1.bf16.msra.mxu0 %v4445
    %7817 = vmatprep.subr.bf16.mxu0 %v4442
    %7818 = vmatpush1.bf16.msra.mxu0 %v4441
    %7819 = vmatprep.subr.bf16.mxu0 %v4438
    %7820 = vmatpush1.bf16.msra.mxu0 %v4437
    %7821 = vmatprep.subr.bf16.mxu0 %v4434
    %7822 = vmatpush1.bf16.msra.mxu0 %v4433
    %7823 = vmatprep.subr.bf16.mxu0 %v4430
    %7824 = vmatpush1.bf16.msra.mxu0 %v4429
    %7825 = vmatprep.subr.bf16.mxu0 %v4490
    %7826 = vmatpush2.bf16.msra.mxu0 %v4489
    %7827 = vmatprep.subr.bf16.mxu0 %v4486
    %7828 = vmatpush2.bf16.msra.mxu0 %v4485
    %7829 = vmatprep.subr.bf16.mxu0 %v4482
    %7830 = vmatpush2.bf16.msra.mxu0 %v4481
    %7831 = vmatprep.subr.bf16.mxu0 %v4478
    %7832 = vmatpush2.bf16.msra.mxu0 %v4477
    %7833 = vmatprep.subr.bf16.mxu0 %v4474
    %7834 = vmatpush2.bf16.msra.mxu0 %v4473
    %7835 = vmatprep.subr.bf16.mxu0 %v4470
    %7836 = vmatpush2.bf16.msra.mxu0 %v4469
    %7837 = vmatprep.subr.bf16.mxu0 %v4466
    %7838 = vmatpush2.bf16.msra.mxu0 %v4465
    %7839 = vmatprep.subr.bf16.mxu0 %v4462
    %7840 = vmatpush2.bf16.msra.mxu0 %v4461
    %7841 = vmatprep.mubr.bf16.mxu0 %v522
    %7842 = vmatmul.mubr.bf16.gmra.mxu0 %v521
    %v7843 = vpop.f32.mrf.mxu0
    %v7844 = vadd.f32 %v7731, %v7843
    %v7845 = vpop.f32.mrf.mxu0
    %v7846 = vadd.f32 %v7733, %v7845
    %v7847 = vpop.f32.mrf.mxu0
    %v7848 = vadd.f32 %v7735, %v7847
    %v7849 = vpop.f32.mrf.mxu0
    %v7850 = vadd.f32 %v7737, %v7849
    %7851 = vmatprep.mubr.bf16.mxu0 %v546
    %7852 = vmatmul.mubr.bf16.gmra.mxu0 %v545
    %v7853 = vpop.f32.mrf.mxu0
    %v7854 = vadd.f32 %v7741, %v7853
    %v7855 = vpop.f32.mrf.mxu0
    %v7856 = vadd.f32 %v7743, %v7855
    %v7857 = vpop.f32.mrf.mxu0
    %v7858 = vadd.f32 %v7745, %v7857
    %v7859 = vpop.f32.mrf.mxu0
    %v7860 = vadd.f32 %v7747, %v7859
    %7861 = vmatprep.mubr.bf16.mxu0 %v570
    %7862 = vmatmul.mubr.bf16.gmra.mxu0 %v569
    %v7863 = vpop.f32.mrf.mxu0
    %v7864 = vadd.f32 %v7751, %v7863
    %v7865 = vpop.f32.mrf.mxu0
    %v7866 = vadd.f32 %v7753, %v7865
    %v7867 = vpop.f32.mrf.mxu0
    %v7868 = vadd.f32 %v7755, %v7867
    %v7869 = vpop.f32.mrf.mxu0
    %v7870 = vadd.f32 %v7757, %v7869
    %7871 = vmatprep.mubr.bf16.mxu0 %v594
    %7872 = vmatmul.mubr.bf16.gmra.mxu0 %v593
    %v7873 = vpop.f32.mrf.mxu0
    %v7874 = vadd.f32 %v7761, %v7873
    %v7875 = vpop.f32.mrf.mxu0
    %v7876 = vadd.f32 %v7763, %v7875
    %v7877 = vpop.f32.mrf.mxu0
    %v7878 = vadd.f32 %v7765, %v7877
    %v7879 = vpop.f32.mrf.mxu0
    %v7880 = vadd.f32 %v7767, %v7879
    %7881 = vmatprep.mubr.bf16.mxu0 %v618
    %7882 = vmatmul.mubr.bf16.gmra.mxu0 %v617
    %v7883 = vpop.f32.mrf.mxu0
    %v7884 = vadd.f32 %v7771, %v7883
    %v7885 = vpop.f32.mrf.mxu0
    %v7886 = vadd.f32 %v7773, %v7885
    %v7887 = vpop.f32.mrf.mxu0
    %v7888 = vadd.f32 %v7775, %v7887
    %v7889 = vpop.f32.mrf.mxu0
    %v7890 = vadd.f32 %v7777, %v7889
    %7891 = vmatprep.mubr.bf16.mxu0 %v642
    %7892 = vmatmul.mubr.bf16.gmra.mxu0 %v641
    %v7893 = vpop.f32.mrf.mxu0
    %v7894 = vadd.f32 %v7781, %v7893
    %v7895 = vpop.f32.mrf.mxu0
    %v7896 = vadd.f32 %v7783, %v7895
    %v7897 = vpop.f32.mrf.mxu0
    %v7898 = vadd.f32 %v7785, %v7897
    %v7899 = vpop.f32.mrf.mxu0
    %v7900 = vadd.f32 %v7787, %v7899
    %7901 = vmatprep.mubr.bf16.mxu0 %v666
    %7902 = vmatmul.mubr.bf16.gmra.mxu0 %v665
    %v7903 = vpop.f32.mrf.mxu0
    %v7904 = vadd.f32 %v7791, %v7903
    %v7905 = vpop.f32.mrf.mxu0
    %v7906 = vadd.f32 %v7793, %v7905
    %v7907 = vpop.f32.mrf.mxu0
    %v7908 = vadd.f32 %v7795, %v7907
    %v7909 = vpop.f32.mrf.mxu0
    %v7910 = vadd.f32 %v7797, %v7909
    %7911 = vmatprep.mubr.bf16.mxu0 %v690
    %7912 = vmatmul.mubr.bf16.gmra.mxu0 %v689
    %v7913 = vpop.f32.mrf.mxu0
    %v7914 = vadd.f32 %v7801, %v7913
    %v7915 = vpop.f32.mrf.mxu0
    %v7916 = vadd.f32 %v7803, %v7915
    %v7917 = vpop.f32.mrf.mxu0
    %v7918 = vadd.f32 %v7805, %v7917
    %v7919 = vpop.f32.mrf.mxu0
    %v7920 = vadd.f32 %v7807, %v7919
    %7921 = vdwg.mxu0
    %7922 = vmatprep.subr.bf16.mxu0 %v4522
    %7923 = vmatpush1.bf16.msra.mxu0 %v4521
    %7924 = vmatprep.subr.bf16.mxu0 %v4518
    %7925 = vmatpush1.bf16.msra.mxu0 %v4517
    %7926 = vmatprep.subr.bf16.mxu0 %v4514
    %7927 = vmatpush1.bf16.msra.mxu0 %v4513
    %7928 = vmatprep.subr.bf16.mxu0 %v4510
    %7929 = vmatpush1.bf16.msra.mxu0 %v4509
    %7930 = vmatprep.subr.bf16.mxu0 %v4506
    %7931 = vmatpush1.bf16.msra.mxu0 %v4505
    %7932 = vmatprep.subr.bf16.mxu0 %v4502
    %7933 = vmatpush1.bf16.msra.mxu0 %v4501
    %7934 = vmatprep.subr.bf16.mxu0 %v4498
    %7935 = vmatpush1.bf16.msra.mxu0 %v4497
    %7936 = vmatprep.subr.bf16.mxu0 %v4494
    %7937 = vmatpush1.bf16.msra.mxu0 %v4493
    %7938 = vmatprep.subr.bf16.mxu0 %v4554
    %7939 = vmatpush2.bf16.msra.mxu0 %v4553
    %7940 = vmatprep.subr.bf16.mxu0 %v4550
    %7941 = vmatpush2.bf16.msra.mxu0 %v4549
    %7942 = vmatprep.subr.bf16.mxu0 %v4546
    %7943 = vmatpush2.bf16.msra.mxu0 %v4545
    %7944 = vmatprep.subr.bf16.mxu0 %v4542
    %7945 = vmatpush2.bf16.msra.mxu0 %v4541
    %7946 = vmatprep.subr.bf16.mxu0 %v4538
    %7947 = vmatpush2.bf16.msra.mxu0 %v4537
    %7948 = vmatprep.subr.bf16.mxu0 %v4534
    %7949 = vmatpush2.bf16.msra.mxu0 %v4533
    %7950 = vmatprep.subr.bf16.mxu0 %v4530
    %7951 = vmatpush2.bf16.msra.mxu0 %v4529
    %7952 = vmatprep.subr.bf16.mxu0 %v4526
    %7953 = vmatpush2.bf16.msra.mxu0 %v4525
    %7954 = vmatprep.mubr.bf16.mxu0 %v524
    %7955 = vmatmul.mubr.bf16.gmra.mxu0 %v523
    %v7956 = vpop.f32.mrf.mxu0
    %v7957 = vadd.f32 %v7844, %v7956
    %v7958 = vpop.f32.mrf.mxu0
    %v7959 = vadd.f32 %v7846, %v7958
    %v7960 = vpop.f32.mrf.mxu0
    %v7961 = vadd.f32 %v7848, %v7960
    %v7962 = vpop.f32.mrf.mxu0
    %v7963 = vadd.f32 %v7850, %v7962
    %7964 = vmatprep.mubr.bf16.mxu0 %v548
    %7965 = vmatmul.mubr.bf16.gmra.mxu0 %v547
    %v7966 = vpop.f32.mrf.mxu0
    %v7967 = vadd.f32 %v7854, %v7966
    %v7968 = vpop.f32.mrf.mxu0
    %v7969 = vadd.f32 %v7856, %v7968
    %v7970 = vpop.f32.mrf.mxu0
    %v7971 = vadd.f32 %v7858, %v7970
    %v7972 = vpop.f32.mrf.mxu0
    %v7973 = vadd.f32 %v7860, %v7972
    %7974 = vmatprep.mubr.bf16.mxu0 %v572
    %7975 = vmatmul.mubr.bf16.gmra.mxu0 %v571
    %v7976 = vpop.f32.mrf.mxu0
    %v7977 = vadd.f32 %v7864, %v7976
    %v7978 = vpop.f32.mrf.mxu0
    %v7979 = vadd.f32 %v7866, %v7978
    %v7980 = vpop.f32.mrf.mxu0
    %v7981 = vadd.f32 %v7868, %v7980
    %v7982 = vpop.f32.mrf.mxu0
    %v7983 = vadd.f32 %v7870, %v7982
    %7984 = vmatprep.mubr.bf16.mxu0 %v596
    %7985 = vmatmul.mubr.bf16.gmra.mxu0 %v595
    %v7986 = vpop.f32.mrf.mxu0
    %v7987 = vadd.f32 %v7874, %v7986
    %v7988 = vpop.f32.mrf.mxu0
    %v7989 = vadd.f32 %v7876, %v7988
    %v7990 = vpop.f32.mrf.mxu0
    %v7991 = vadd.f32 %v7878, %v7990
    %v7992 = vpop.f32.mrf.mxu0
    %v7993 = vadd.f32 %v7880, %v7992
    %7994 = vmatprep.mubr.bf16.mxu0 %v620
    %7995 = vmatmul.mubr.bf16.gmra.mxu0 %v619
    %v7996 = vpop.f32.mrf.mxu0
    %v7997 = vadd.f32 %v7884, %v7996
    %v7998 = vpop.f32.mrf.mxu0
    %v7999 = vadd.f32 %v7886, %v7998
    %v8000 = vpop.f32.mrf.mxu0
    %v8001 = vadd.f32 %v7888, %v8000
    %v8002 = vpop.f32.mrf.mxu0
    %v8003 = vadd.f32 %v7890, %v8002
    %8004 = vmatprep.mubr.bf16.mxu0 %v644
    %8005 = vmatmul.mubr.bf16.gmra.mxu0 %v643
    %v8006 = vpop.f32.mrf.mxu0
    %v8007 = vadd.f32 %v7894, %v8006
    %v8008 = vpop.f32.mrf.mxu0
    %v8009 = vadd.f32 %v7896, %v8008
    %v8010 = vpop.f32.mrf.mxu0
    %v8011 = vadd.f32 %v7898, %v8010
    %v8012 = vpop.f32.mrf.mxu0
    %v8013 = vadd.f32 %v7900, %v8012
    %8014 = vmatprep.mubr.bf16.mxu0 %v668
    %8015 = vmatmul.mubr.bf16.gmra.mxu0 %v667
    %v8016 = vpop.f32.mrf.mxu0
    %v8017 = vadd.f32 %v7904, %v8016
    %v8018 = vpop.f32.mrf.mxu0
    %v8019 = vadd.f32 %v7906, %v8018
    %v8020 = vpop.f32.mrf.mxu0
    %v8021 = vadd.f32 %v7908, %v8020
    %v8022 = vpop.f32.mrf.mxu0
    %v8023 = vadd.f32 %v7910, %v8022
    %8024 = vmatprep.mubr.bf16.mxu0 %v692
    %8025 = vmatmul.mubr.bf16.gmra.mxu0 %v691
    %v8026 = vpop.f32.mrf.mxu0
    %v8027 = vadd.f32 %v7914, %v8026
    %v8028 = vpop.f32.mrf.mxu0
    %v8029 = vadd.f32 %v7916, %v8028
    %v8030 = vpop.f32.mrf.mxu0
    %v8031 = vadd.f32 %v7918, %v8030
    %v8032 = vpop.f32.mrf.mxu0
    %v8033 = vadd.f32 %v7920, %v8032
    %8034 = vdwg.mxu0
    %v8035 = vmax.f32 %v6601, 0.0
    %v8036 = vmax.f32 %v6603, 0.0
    %v8037 = vmax.f32 %v7957, 0.0
    %v8038 = vmax.f32 %v7959, 0.0
    %v8039 = vmax.f32 %v6605, 0.0
    %v8040 = vmax.f32 %v6607, 0.0
    %v8041 = vmax.f32 %v7961, 0.0
    %v8042 = vmax.f32 %v7963, 0.0
    %v8043 = vmax.f32 %v6611, 0.0
    %v8044 = vmax.f32 %v6613, 0.0
    %v8045 = vmax.f32 %v7967, 0.0
    %v8046 = vmax.f32 %v7969, 0.0
    %v8047 = vmax.f32 %v6615, 0.0
    %v8048 = vmax.f32 %v6617, 0.0
    %v8049 = vmax.f32 %v7971, 0.0
    %v8050 = vmax.f32 %v7973, 0.0
    %v8051 = vmax.f32 %v6621, 0.0
    %v8052 = vmax.f32 %v6623, 0.0
    %v8053 = vmax.f32 %v7977, 0.0
    %v8054 = vmax.f32 %v7979, 0.0
    %v8055 = vmax.f32 %v6625, 0.0
    %v8056 = vmax.f32 %v6627, 0.0
    %v8057 = vmax.f32 %v7981, 0.0
    %v8058 = vmax.f32 %v7983, 0.0
    %v8059 = vmax.f32 %v6631, 0.0
    %v8060 = vmax.f32 %v6633, 0.0
    %v8061 = vmax.f32 %v7987, 0.0
    %v8062 = vmax.f32 %v7989, 0.0
    %v8063 = vmax.f32 %v6635, 0.0
    %v8064 = vmax.f32 %v6637, 0.0
    %v8065 = vmax.f32 %v7991, 0.0
    %v8066 = vmax.f32 %v7993, 0.0
    %v8067 = vmax.f32 %v6641, 0.0
    %v8068 = vmax.f32 %v6643, 0.0
    %v8069 = vmax.f32 %v7997, 0.0
    %v8070 = vmax.f32 %v7999, 0.0
    %v8071 = vmax.f32 %v6645, 0.0
    %v8072 = vmax.f32 %v6647, 0.0
    %v8073 = vmax.f32 %v8001, 0.0
    %v8074 = vmax.f32 %v8003, 0.0
    %v8075 = vmax.f32 %v6651, 0.0
    %v8076 = vmax.f32 %v6653, 0.0
    %v8077 = vmax.f32 %v8007, 0.0
    %v8078 = vmax.f32 %v8009, 0.0
    %v8079 = vmax.f32 %v6655, 0.0
    %v8080 = vmax.f32 %v6657, 0.0
    %v8081 = vmax.f32 %v8011, 0.0
    %v8082 = vmax.f32 %v8013, 0.0
    %v8083 = vmax.f32 %v6661, 0.0
    %v8084 = vmax.f32 %v6663, 0.0
    %v8085 = vmax.f32 %v8017, 0.0
    %v8086 = vmax.f32 %v8019, 0.0
    %v8087 = vmax.f32 %v6665, 0.0
    %v8088 = vmax.f32 %v6667, 0.0
    %v8089 = vmax.f32 %v8021, 0.0
    %v8090 = vmax.f32 %v8023, 0.0
    %v8091 = vmax.f32 %v6671, 0.0
    %v8092 = vmax.f32 %v6673, 0.0
    %v8093 = vmax.f32 %v8027, 0.0
    %v8094 = vmax.f32 %v8029, 0.0
    %v8095 = vmax.f32 %v6675, 0.0
    %v8096 = vmax.f32 %v6677, 0.0
    %v8097 = vmax.f32 %v8031, 0.0
    %v8098 = vmax.f32 %v8033, 0.0
    %v8099 = vpack.c.bf16 %v8039, %v8035
    %v8100 = vpack.c.bf16 %v8040, %v8036
    %v8101 = vpack.c.bf16 %v8041, %v8037
    %v8102 = vpack.c.bf16 %v8042, %v8038
    %v8103 = vpack.c.bf16 %v8047, %v8043
    %v8104 = vpack.c.bf16 %v8048, %v8044
    %v8105 = vpack.c.bf16 %v8049, %v8045
    %v8106 = vpack.c.bf16 %v8050, %v8046
    %v8107 = vpack.c.bf16 %v8055, %v8051
    %v8108 = vpack.c.bf16 %v8056, %v8052
    %v8109 = vpack.c.bf16 %v8057, %v8053
    %v8110 = vpack.c.bf16 %v8058, %v8054
    %v8111 = vpack.c.bf16 %v8063, %v8059
    %v8112 = vpack.c.bf16 %v8064, %v8060
    %v8113 = vpack.c.bf16 %v8065, %v8061
    %v8114 = vpack.c.bf16 %v8066, %v8062
    %v8115 = vpack.c.bf16 %v8071, %v8067
    %v8116 = vpack.c.bf16 %v8072, %v8068
    %v8117 = vpack.c.bf16 %v8073, %v8069
    %v8118 = vpack.c.bf16 %v8074, %v8070
    %v8119 = vpack.c.bf16 %v8079, %v8075
    %v8120 = vpack.c.bf16 %v8080, %v8076
    %v8121 = vpack.c.bf16 %v8081, %v8077
    %v8122 = vpack.c.bf16 %v8082, %v8078
    %v8123 = vpack.c.bf16 %v8087, %v8083
    %v8124 = vpack.c.bf16 %v8088, %v8084
    %v8125 = vpack.c.bf16 %v8089, %v8085
    %v8126 = vpack.c.bf16 %v8090, %v8086
    %v8127 = vpack.c.bf16 %v8095, %v8091
    %v8128 = vpack.c.bf16 %v8096, %v8092
    %v8129 = vpack.c.bf16 %v8097, %v8093
    %v8130 = vpack.c.bf16 %v8098, %v8094
    %v8131 = vld [vmem:[#allocation8] sm:$0xff]
    %v8132 = vld [vmem:[#allocation8 + $0x8] sm:$0xff]
    %v8133 = vld [vmem:[#allocation8 + $0x10] sm:$0xff]
    %v8134 = vld [vmem:[#allocation8 + $0x18] sm:$0xff]
    %v8135 = vld [vmem:[#allocation8 + $0x20] sm:$0xff]
    %v8136 = vld [vmem:[#allocation8 + $0x28] sm:$0xff]
    %v8137 = vld [vmem:[#allocation8 + $0x30] sm:$0xff]
    %v8138 = vld [vmem:[#allocation8 + $0x38] sm:$0xff]
    %v8139 = vld [vmem:[#allocation8 + $0x40] sm:$0xff]
    %v8140 = vld [vmem:[#allocation8 + $0x48] sm:$0xff]
    %v8141 = vld [vmem:[#allocation8 + $0x50] sm:$0xff]
    %v8142 = vld [vmem:[#allocation8 + $0x58] sm:$0xff]
    %v8143 = vld [vmem:[#allocation8 + $0x60] sm:$0xff]
    %v8144 = vld [vmem:[#allocation8 + $0x68] sm:$0xff]
    %v8145 = vld [vmem:[#allocation8 + $0x70] sm:$0xff]
    %v8146 = vld [vmem:[#allocation8 + $0x78] sm:$0xff]
    %v8147 = vld [vmem:[#allocation8 + $0x80] sm:$0xff]
    %v8148 = vld [vmem:[#allocation8 + $0x88] sm:$0xff]
    %v8149 = vld [vmem:[#allocation8 + $0x90] sm:$0xff]
    %v8150 = vld [vmem:[#allocation8 + $0x98] sm:$0xff]
    %v8151 = vld [vmem:[#allocation8 + $0xa0] sm:$0xff]
    %v8152 = vld [vmem:[#allocation8 + $0xa8] sm:$0xff]
    %v8153 = vld [vmem:[#allocation8 + $0xb0] sm:$0xff]
    %v8154 = vld [vmem:[#allocation8 + $0xb8] sm:$0xff]
    %v8155 = vld [vmem:[#allocation8 + $0xc0] sm:$0xff]
    %v8156 = vld [vmem:[#allocation8 + $0xc8] sm:$0xff]
    %v8157 = vld [vmem:[#allocation8 + $0xd0] sm:$0xff]
    %v8158 = vld [vmem:[#allocation8 + $0xd8] sm:$0xff]
    %v8159 = vld [vmem:[#allocation8 + $0xe0] sm:$0xff]
    %v8160 = vld [vmem:[#allocation8 + $0xe8] sm:$0xff]
    %v8161 = vld [vmem:[#allocation8 + $0xf0] sm:$0xff]
    %v8162 = vld [vmem:[#allocation8 + $0xf8] sm:$0xff]
    %v8163 = vld [vmem:[#allocation8 + $0x100] sm:$0xff]
    %v8164 = vld [vmem:[#allocation8 + $0x108] sm:$0xff]
    %v8165 = vld [vmem:[#allocation8 + $0x110] sm:$0xff]
    %v8166 = vld [vmem:[#allocation8 + $0x118] sm:$0xff]
    %v8167 = vld [vmem:[#allocation8 + $0x120] sm:$0xff]
    %v8168 = vld [vmem:[#allocation8 + $0x128] sm:$0xff]
    %v8169 = vld [vmem:[#allocation8 + $0x130] sm:$0xff]
    %v8170 = vld [vmem:[#allocation8 + $0x138] sm:$0xff]
    %v8171 = vld [vmem:[#allocation8 + $0x140] sm:$0xff]
    %v8172 = vld [vmem:[#allocation8 + $0x148] sm:$0xff]
    %v8173 = vld [vmem:[#allocation8 + $0x150] sm:$0xff]
    %v8174 = vld [vmem:[#allocation8 + $0x158] sm:$0xff]
    %v8175 = vld [vmem:[#allocation8 + $0x160] sm:$0xff]
    %v8176 = vld [vmem:[#allocation8 + $0x168] sm:$0xff]
    %v8177 = vld [vmem:[#allocation8 + $0x170] sm:$0xff]
    %v8178 = vld [vmem:[#allocation8 + $0x178] sm:$0xff]
    %v8179 = vld [vmem:[#allocation8 + $0x180] sm:$0xff]
    %v8180 = vld [vmem:[#allocation8 + $0x188] sm:$0xff]
    %v8181 = vld [vmem:[#allocation8 + $0x190] sm:$0xff]
    %v8182 = vld [vmem:[#allocation8 + $0x198] sm:$0xff]
    %v8183 = vld [vmem:[#allocation8 + $0x1a0] sm:$0xff]
    %v8184 = vld [vmem:[#allocation8 + $0x1a8] sm:$0xff]
    %v8185 = vld [vmem:[#allocation8 + $0x1b0] sm:$0xff]
    %v8186 = vld [vmem:[#allocation8 + $0x1b8] sm:$0xff]
    %v8187 = vld [vmem:[#allocation8 + $0x1c0] sm:$0xff]
    %v8188 = vld [vmem:[#allocation8 + $0x1c8] sm:$0xff]
    %v8189 = vld [vmem:[#allocation8 + $0x1d0] sm:$0xff]
    %v8190 = vld [vmem:[#allocation8 + $0x1d8] sm:$0xff]
    %v8191 = vld [vmem:[#allocation8 + $0x1e0] sm:$0xff]
    %v8192 = vld [vmem:[#allocation8 + $0x1e8] sm:$0xff]
    %v8193 = vld [vmem:[#allocation8 + $0x1f0] sm:$0xff]
    %v8194 = vld [vmem:[#allocation8 + $0x1f8] sm:$0xff]
    %v8195 = vld [vmem:[#allocation10] sm:$0x3]
    %v8197 = vlaneseq
    %v8198 = vshrl.u32 %v8197, 7
    %v8199 = vsub.s32 0, %v8198
    %v8200 = vrot.slane %v8195, %v8199
    %v8201 = vlaneseq
    %v8202 = vshrl.u32 %v8201, 7
    %v8203 = vsub.s32 1, %v8202
    %v8204 = vrot.slane %v8195, %v8203
    %v8271 = vunpack.c.l.b16 %v8131
    %v8272 = vunpack.c.h.b16 %v8131
    %v8273 = vunpack.c.l.b16 %v8132
    %v8274 = vunpack.c.h.b16 %v8132
    %v8275 = vunpack.c.l.b16 %v8133
    %v8276 = vunpack.c.h.b16 %v8133
    %v8277 = vunpack.c.l.b16 %v8134
    %v8278 = vunpack.c.h.b16 %v8134
    %v8279 = vunpack.c.l.b16 %v8135
    %v8280 = vunpack.c.h.b16 %v8135
    %v8281 = vunpack.c.l.b16 %v8136
    %v8282 = vunpack.c.h.b16 %v8136
    %v8283 = vunpack.c.l.b16 %v8137
    %v8284 = vunpack.c.h.b16 %v8137
    %v8285 = vunpack.c.l.b16 %v8138
    %v8286 = vunpack.c.h.b16 %v8138
    %v8287 = vunpack.c.l.b16 %v8139
    %v8288 = vunpack.c.h.b16 %v8139
    %v8289 = vunpack.c.l.b16 %v8140
    %v8290 = vunpack.c.h.b16 %v8140
    %v8291 = vunpack.c.l.b16 %v8141
    %v8292 = vunpack.c.h.b16 %v8141
    %v8293 = vunpack.c.l.b16 %v8142
    %v8294 = vunpack.c.h.b16 %v8142
    %v8295 = vunpack.c.l.b16 %v8143
    %v8296 = vunpack.c.h.b16 %v8143
    %v8297 = vunpack.c.l.b16 %v8144
    %v8298 = vunpack.c.h.b16 %v8144
    %v8299 = vunpack.c.l.b16 %v8145
    %v8300 = vunpack.c.h.b16 %v8145
    %v8301 = vunpack.c.l.b16 %v8146
    %v8302 = vunpack.c.h.b16 %v8146
    %v8303 = vunpack.c.l.b16 %v8147
    %v8304 = vunpack.c.h.b16 %v8147
    %v8305 = vunpack.c.l.b16 %v8148
    %v8306 = vunpack.c.h.b16 %v8148
    %v8307 = vunpack.c.l.b16 %v8149
    %v8308 = vunpack.c.h.b16 %v8149
    %v8309 = vunpack.c.l.b16 %v8150
    %v8310 = vunpack.c.h.b16 %v8150
    %v8311 = vunpack.c.l.b16 %v8151
    %v8312 = vunpack.c.h.b16 %v8151
    %v8313 = vunpack.c.l.b16 %v8152
    %v8314 = vunpack.c.h.b16 %v8152
    %v8315 = vunpack.c.l.b16 %v8153
    %v8316 = vunpack.c.h.b16 %v8153
    %v8317 = vunpack.c.l.b16 %v8154
    %v8318 = vunpack.c.h.b16 %v8154
    %v8319 = vunpack.c.l.b16 %v8155
    %v8320 = vunpack.c.h.b16 %v8155
    %v8321 = vunpack.c.l.b16 %v8156
    %v8322 = vunpack.c.h.b16 %v8156
    %v8323 = vunpack.c.l.b16 %v8157
    %v8324 = vunpack.c.h.b16 %v8157
    %v8325 = vunpack.c.l.b16 %v8158
    %v8326 = vunpack.c.h.b16 %v8158
    %v8327 = vunpack.c.l.b16 %v8159
    %v8328 = vunpack.c.h.b16 %v8159
    %v8329 = vunpack.c.l.b16 %v8160
    %v8330 = vunpack.c.h.b16 %v8160
    %v8331 = vunpack.c.l.b16 %v8161
    %v8332 = vunpack.c.h.b16 %v8161
    %v8333 = vunpack.c.l.b16 %v8162
    %v8334 = vunpack.c.h.b16 %v8162
    %v8335 = vunpack.c.l.b16 %v8163
    %v8336 = vunpack.c.h.b16 %v8163
    %v8337 = vunpack.c.l.b16 %v8164
    %v8338 = vunpack.c.h.b16 %v8164
    %v8339 = vunpack.c.l.b16 %v8165
    %v8340 = vunpack.c.h.b16 %v8165
    %v8341 = vunpack.c.l.b16 %v8166
    %v8342 = vunpack.c.h.b16 %v8166
    %v8343 = vunpack.c.l.b16 %v8167
    %v8344 = vunpack.c.h.b16 %v8167
    %v8345 = vunpack.c.l.b16 %v8168
    %v8346 = vunpack.c.h.b16 %v8168
    %v8347 = vunpack.c.l.b16 %v8169
    %v8348 = vunpack.c.h.b16 %v8169
    %v8349 = vunpack.c.l.b16 %v8170
    %v8350 = vunpack.c.h.b16 %v8170
    %v8351 = vunpack.c.l.b16 %v8171
    %v8352 = vunpack.c.h.b16 %v8171
    %v8353 = vunpack.c.l.b16 %v8172
    %v8354 = vunpack.c.h.b16 %v8172
    %v8355 = vunpack.c.l.b16 %v8173
    %v8356 = vunpack.c.h.b16 %v8173
    %v8357 = vunpack.c.l.b16 %v8174
    %v8358 = vunpack.c.h.b16 %v8174
    %v8359 = vunpack.c.l.b16 %v8175
    %v8360 = vunpack.c.h.b16 %v8175
    %v8361 = vunpack.c.l.b16 %v8176
    %v8362 = vunpack.c.h.b16 %v8176
    %v8363 = vunpack.c.l.b16 %v8177
    %v8364 = vunpack.c.h.b16 %v8177
    %v8365 = vunpack.c.l.b16 %v8178
    %v8366 = vunpack.c.h.b16 %v8178
    %v8367 = vunpack.c.l.b16 %v8179
    %v8368 = vunpack.c.h.b16 %v8179
    %v8369 = vunpack.c.l.b16 %v8180
    %v8370 = vunpack.c.h.b16 %v8180
    %v8371 = vunpack.c.l.b16 %v8181
    %v8372 = vunpack.c.h.b16 %v8181
    %v8373 = vunpack.c.l.b16 %v8182
    %v8374 = vunpack.c.h.b16 %v8182
    %v8375 = vunpack.c.l.b16 %v8183
    %v8376 = vunpack.c.h.b16 %v8183
    %v8377 = vunpack.c.l.b16 %v8184
    %v8378 = vunpack.c.h.b16 %v8184
    %v8379 = vunpack.c.l.b16 %v8185
    %v8380 = vunpack.c.h.b16 %v8185
    %v8381 = vunpack.c.l.b16 %v8186
    %v8382 = vunpack.c.h.b16 %v8186
    %v8383 = vunpack.c.l.b16 %v8187
    %v8384 = vunpack.c.h.b16 %v8187
    %v8385 = vunpack.c.l.b16 %v8188
    %v8386 = vunpack.c.h.b16 %v8188
    %v8387 = vunpack.c.l.b16 %v8189
    %v8388 = vunpack.c.h.b16 %v8189
    %v8389 = vunpack.c.l.b16 %v8190
    %v8390 = vunpack.c.h.b16 %v8190
    %v8391 = vunpack.c.l.b16 %v8191
    %v8392 = vunpack.c.h.b16 %v8191
    %v8393 = vunpack.c.l.b16 %v8192
    %v8394 = vunpack.c.h.b16 %v8192
    %v8395 = vunpack.c.l.b16 %v8193
    %v8396 = vunpack.c.h.b16 %v8193
    %v8397 = vunpack.c.l.b16 %v8194
    %v8398 = vunpack.c.h.b16 %v8194
    %v8399 = vpack.c.b16 %v8273, %v8271
    %v8400 = vpack.c.b16 %v8274, %v8272
    %v8401 = vpack.c.b16 %v8277, %v8275
    %v8402 = vpack.c.b16 %v8278, %v8276
    %v8403 = vpack.c.b16 %v8281, %v8279
    %v8404 = vpack.c.b16 %v8282, %v8280
    %v8405 = vpack.c.b16 %v8285, %v8283
    %v8406 = vpack.c.b16 %v8286, %v8284
    %v8407 = vpack.c.b16 %v8289, %v8287
    %v8408 = vpack.c.b16 %v8290, %v8288
    %v8409 = vpack.c.b16 %v8293, %v8291
    %v8410 = vpack.c.b16 %v8294, %v8292
    %v8411 = vpack.c.b16 %v8297, %v8295
    %v8412 = vpack.c.b16 %v8298, %v8296
    %v8413 = vpack.c.b16 %v8301, %v8299
    %v8414 = vpack.c.b16 %v8302, %v8300
    %v8415 = vpack.c.b16 %v8305, %v8303
    %v8416 = vpack.c.b16 %v8306, %v8304
    %v8417 = vpack.c.b16 %v8309, %v8307
    %v8418 = vpack.c.b16 %v8310, %v8308
    %v8419 = vpack.c.b16 %v8313, %v8311
    %v8420 = vpack.c.b16 %v8314, %v8312
    %v8421 = vpack.c.b16 %v8317, %v8315
    %v8422 = vpack.c.b16 %v8318, %v8316
    %v8423 = vpack.c.b16 %v8321, %v8319
    %v8424 = vpack.c.b16 %v8322, %v8320
    %v8425 = vpack.c.b16 %v8325, %v8323
    %v8426 = vpack.c.b16 %v8326, %v8324
    %v8427 = vpack.c.b16 %v8329, %v8327
    %v8428 = vpack.c.b16 %v8330, %v8328
    %v8429 = vpack.c.b16 %v8333, %v8331
    %v8430 = vpack.c.b16 %v8334, %v8332
    %v8431 = vpack.c.b16 %v8337, %v8335
    %v8432 = vpack.c.b16 %v8338, %v8336
    %v8433 = vpack.c.b16 %v8341, %v8339
    %v8434 = vpack.c.b16 %v8342, %v8340
    %v8435 = vpack.c.b16 %v8345, %v8343
    %v8436 = vpack.c.b16 %v8346, %v8344
    %v8437 = vpack.c.b16 %v8349, %v8347
    %v8438 = vpack.c.b16 %v8350, %v8348
    %v8439 = vpack.c.b16 %v8353, %v8351
    %v8440 = vpack.c.b16 %v8354, %v8352
    %v8441 = vpack.c.b16 %v8357, %v8355
    %v8442 = vpack.c.b16 %v8358, %v8356
    %v8443 = vpack.c.b16 %v8361, %v8359
    %v8444 = vpack.c.b16 %v8362, %v8360
    %v8445 = vpack.c.b16 %v8365, %v8363
    %v8446 = vpack.c.b16 %v8366, %v8364
    %v8447 = vpack.c.b16 %v8369, %v8367
    %v8448 = vpack.c.b16 %v8370, %v8368
    %v8449 = vpack.c.b16 %v8373, %v8371
    %v8450 = vpack.c.b16 %v8374, %v8372
    %v8451 = vpack.c.b16 %v8377, %v8375
    %v8452 = vpack.c.b16 %v8378, %v8376
    %v8453 = vpack.c.b16 %v8381, %v8379
    %v8454 = vpack.c.b16 %v8382, %v8380
    %v8455 = vpack.c.b16 %v8385, %v8383
    %v8456 = vpack.c.b16 %v8386, %v8384
    %v8457 = vpack.c.b16 %v8389, %v8387
    %v8458 = vpack.c.b16 %v8390, %v8388
    %v8459 = vpack.c.b16 %v8393, %v8391
    %v8460 = vpack.c.b16 %v8394, %v8392
    %v8461 = vpack.c.b16 %v8397, %v8395
    %v8462 = vpack.c.b16 %v8398, %v8396
    %8527 = vmatprep.subr.bf16.mxu0 %v8414
    %8528 = vmatpush1.bf16.msra.mxu0 %v8413
    %8529 = vmatprep.subr.bf16.mxu0 %v8412
    %8530 = vmatpush1.bf16.msra.mxu0 %v8411
    %8531 = vmatprep.subr.bf16.mxu0 %v8410
    %8532 = vmatpush1.bf16.msra.mxu0 %v8409
    %8533 = vmatprep.subr.bf16.mxu0 %v8408
    %8534 = vmatpush1.bf16.msra.mxu0 %v8407
    %8535 = vmatprep.subr.bf16.mxu0 %v8406
    %8536 = vmatpush1.bf16.msra.mxu0 %v8405
    %8537 = vmatprep.subr.bf16.mxu0 %v8404
    %8538 = vmatpush1.bf16.msra.mxu0 %v8403
    %8539 = vmatprep.subr.bf16.mxu0 %v8402
    %8540 = vmatpush1.bf16.msra.mxu0 %v8401
    %8541 = vmatprep.subr.bf16.mxu0 %v8400
    %8542 = vmatpush1.bf16.msra.mxu0 %v8399
    %8543 = vmatprep.subr.bf16.mxu0 %v8430
    %8544 = vmatpush2.bf16.msra.mxu0 %v8429
    %8545 = vmatprep.subr.bf16.mxu0 %v8428
    %8546 = vmatpush2.bf16.msra.mxu0 %v8427
    %8547 = vmatprep.subr.bf16.mxu0 %v8426
    %8548 = vmatpush2.bf16.msra.mxu0 %v8425
    %8549 = vmatprep.subr.bf16.mxu0 %v8424
    %8550 = vmatpush2.bf16.msra.mxu0 %v8423
    %8551 = vmatprep.subr.bf16.mxu0 %v8422
    %8552 = vmatpush2.bf16.msra.mxu0 %v8421
    %8553 = vmatprep.subr.bf16.mxu0 %v8420
    %8554 = vmatpush2.bf16.msra.mxu0 %v8419
    %8555 = vmatprep.subr.bf16.mxu0 %v8418
    %8556 = vmatpush2.bf16.msra.mxu0 %v8417
    %8557 = vmatprep.subr.bf16.mxu0 %v8416
    %8558 = vmatpush2.bf16.msra.mxu0 %v8415
    %8559 = vmatprep.mubr.bf16.mxu0 %v8100
    %8560 = vmatmul.mubr.bf16.gmra.mxu0 %v8099
    %v8561 = vpop.f32.mrf.mxu0
    %v8562 = vadd.f32 %v8200, %v8561
    %v8563 = vpop.f32.mrf.mxu0
    %v8564 = vadd.f32 %v8204, %v8563
    %v8565 = vpop.f32.mrf.mxu0
    %v8566 = vadd.f32 %v8200, %v8565
    %v8567 = vpop.f32.mrf.mxu0
    %v8568 = vadd.f32 %v8204, %v8567
    %8569 = vmatprep.mubr.bf16.mxu0 %v8104
    %8570 = vmatmul.mubr.bf16.gmra.mxu0 %v8103
    %v8571 = vpop.f32.mrf.mxu0
    %v8572 = vadd.f32 %v8200, %v8571
    %v8573 = vpop.f32.mrf.mxu0
    %v8574 = vadd.f32 %v8204, %v8573
    %v8575 = vpop.f32.mrf.mxu0
    %v8576 = vadd.f32 %v8200, %v8575
    %v8577 = vpop.f32.mrf.mxu0
    %v8578 = vadd.f32 %v8204, %v8577
    %8579 = vmatprep.mubr.bf16.mxu0 %v8108
    %8580 = vmatmul.mubr.bf16.gmra.mxu0 %v8107
    %v8581 = vpop.f32.mrf.mxu0
    %v8582 = vadd.f32 %v8200, %v8581
    %v8583 = vpop.f32.mrf.mxu0
    %v8584 = vadd.f32 %v8204, %v8583
    %v8585 = vpop.f32.mrf.mxu0
    %v8586 = vadd.f32 %v8200, %v8585
    %v8587 = vpop.f32.mrf.mxu0
    %v8588 = vadd.f32 %v8204, %v8587
    %8589 = vmatprep.mubr.bf16.mxu0 %v8112
    %8590 = vmatmul.mubr.bf16.gmra.mxu0 %v8111
    %v8591 = vpop.f32.mrf.mxu0
    %v8592 = vadd.f32 %v8200, %v8591
    %v8593 = vpop.f32.mrf.mxu0
    %v8594 = vadd.f32 %v8204, %v8593
    %v8595 = vpop.f32.mrf.mxu0
    %v8596 = vadd.f32 %v8200, %v8595
    %v8597 = vpop.f32.mrf.mxu0
    %v8598 = vadd.f32 %v8204, %v8597
    %8599 = vmatprep.mubr.bf16.mxu0 %v8116
    %8600 = vmatmul.mubr.bf16.gmra.mxu0 %v8115
    %v8601 = vpop.f32.mrf.mxu0
    %v8602 = vadd.f32 %v8200, %v8601
    %v8603 = vpop.f32.mrf.mxu0
    %v8604 = vadd.f32 %v8204, %v8603
    %v8605 = vpop.f32.mrf.mxu0
    %v8606 = vadd.f32 %v8200, %v8605
    %v8607 = vpop.f32.mrf.mxu0
    %v8608 = vadd.f32 %v8204, %v8607
    %8609 = vmatprep.mubr.bf16.mxu0 %v8120
    %8610 = vmatmul.mubr.bf16.gmra.mxu0 %v8119
    %v8611 = vpop.f32.mrf.mxu0
    %v8612 = vadd.f32 %v8200, %v8611
    %v8613 = vpop.f32.mrf.mxu0
    %v8614 = vadd.f32 %v8204, %v8613
    %v8615 = vpop.f32.mrf.mxu0
    %v8616 = vadd.f32 %v8200, %v8615
    %v8617 = vpop.f32.mrf.mxu0
    %v8618 = vadd.f32 %v8204, %v8617
    %8619 = vmatprep.mubr.bf16.mxu0 %v8124
    %8620 = vmatmul.mubr.bf16.gmra.mxu0 %v8123
    %v8621 = vpop.f32.mrf.mxu0
    %v8622 = vadd.f32 %v8200, %v8621
    %v8623 = vpop.f32.mrf.mxu0
    %v8624 = vadd.f32 %v8204, %v8623
    %v8625 = vpop.f32.mrf.mxu0
    %v8626 = vadd.f32 %v8200, %v8625
    %v8627 = vpop.f32.mrf.mxu0
    %v8628 = vadd.f32 %v8204, %v8627
    %8629 = vmatprep.mubr.bf16.mxu0 %v8128
    %8630 = vmatmul.mubr.bf16.gmra.mxu0 %v8127
    %v8631 = vpop.f32.mrf.mxu0
    %v8632 = vadd.f32 %v8200, %v8631
    %v8633 = vpop.f32.mrf.mxu0
    %v8634 = vadd.f32 %v8204, %v8633
    %v8635 = vpop.f32.mrf.mxu0
    %v8636 = vadd.f32 %v8200, %v8635
    %v8637 = vpop.f32.mrf.mxu0
    %v8638 = vadd.f32 %v8204, %v8637
    %8639 = vdwg.mxu0
    %8640 = vmatprep.subr.bf16.mxu0 %v8446
    %8641 = vmatpush1.bf16.msra.mxu0 %v8445
    %8642 = vmatprep.subr.bf16.mxu0 %v8444
    %8643 = vmatpush1.bf16.msra.mxu0 %v8443
    %8644 = vmatprep.subr.bf16.mxu0 %v8442
    %8645 = vmatpush1.bf16.msra.mxu0 %v8441
    %8646 = vmatprep.subr.bf16.mxu0 %v8440
    %8647 = vmatpush1.bf16.msra.mxu0 %v8439
    %8648 = vmatprep.subr.bf16.mxu0 %v8438
    %8649 = vmatpush1.bf16.msra.mxu0 %v8437
    %8650 = vmatprep.subr.bf16.mxu0 %v8436
    %8651 = vmatpush1.bf16.msra.mxu0 %v8435
    %8652 = vmatprep.subr.bf16.mxu0 %v8434
    %8653 = vmatpush1.bf16.msra.mxu0 %v8433
    %8654 = vmatprep.subr.bf16.mxu0 %v8432
    %8655 = vmatpush1.bf16.msra.mxu0 %v8431
    %8656 = vmatprep.subr.bf16.mxu0 %v8462
    %8657 = vmatpush2.bf16.msra.mxu0 %v8461
    %8658 = vmatprep.subr.bf16.mxu0 %v8460
    %8659 = vmatpush2.bf16.msra.mxu0 %v8459
    %8660 = vmatprep.subr.bf16.mxu0 %v8458
    %8661 = vmatpush2.bf16.msra.mxu0 %v8457
    %8662 = vmatprep.subr.bf16.mxu0 %v8456
    %8663 = vmatpush2.bf16.msra.mxu0 %v8455
    %8664 = vmatprep.subr.bf16.mxu0 %v8454
    %8665 = vmatpush2.bf16.msra.mxu0 %v8453
    %8666 = vmatprep.subr.bf16.mxu0 %v8452
    %8667 = vmatpush2.bf16.msra.mxu0 %v8451
    %8668 = vmatprep.subr.bf16.mxu0 %v8450
    %8669 = vmatpush2.bf16.msra.mxu0 %v8449
    %8670 = vmatprep.subr.bf16.mxu0 %v8448
    %8671 = vmatpush2.bf16.msra.mxu0 %v8447
    %8672 = vmatprep.mubr.bf16.mxu0 %v8102
    %8673 = vmatmul.mubr.bf16.gmra.mxu0 %v8101
    %v8674 = vpop.f32.mrf.mxu0
    %v8675 = vadd.f32 %v8562, %v8674
    %v8676 = vpop.f32.mrf.mxu0
    %v8677 = vadd.f32 %v8564, %v8676
    %v8678 = vpop.f32.mrf.mxu0
    %v8679 = vadd.f32 %v8566, %v8678
    %v8680 = vpop.f32.mrf.mxu0
    %v8681 = vadd.f32 %v8568, %v8680
    %8682 = vmatprep.mubr.bf16.mxu0 %v8106
    %8683 = vmatmul.mubr.bf16.gmra.mxu0 %v8105
    %v8684 = vpop.f32.mrf.mxu0
    %v8685 = vadd.f32 %v8572, %v8684
    %v8686 = vpop.f32.mrf.mxu0
    %v8687 = vadd.f32 %v8574, %v8686
    %v8688 = vpop.f32.mrf.mxu0
    %v8689 = vadd.f32 %v8576, %v8688
    %v8690 = vpop.f32.mrf.mxu0
    %v8691 = vadd.f32 %v8578, %v8690
    %8692 = vmatprep.mubr.bf16.mxu0 %v8110
    %8693 = vmatmul.mubr.bf16.gmra.mxu0 %v8109
    %v8694 = vpop.f32.mrf.mxu0
    %v8695 = vadd.f32 %v8582, %v8694
    %v8696 = vpop.f32.mrf.mxu0
    %v8697 = vadd.f32 %v8584, %v8696
    %v8698 = vpop.f32.mrf.mxu0
    %v8699 = vadd.f32 %v8586, %v8698
    %v8700 = vpop.f32.mrf.mxu0
    %v8701 = vadd.f32 %v8588, %v8700
    %8702 = vmatprep.mubr.bf16.mxu0 %v8114
    %8703 = vmatmul.mubr.bf16.gmra.mxu0 %v8113
    %v8704 = vpop.f32.mrf.mxu0
    %v8705 = vadd.f32 %v8592, %v8704
    %v8706 = vpop.f32.mrf.mxu0
    %v8707 = vadd.f32 %v8594, %v8706
    %v8708 = vpop.f32.mrf.mxu0
    %v8709 = vadd.f32 %v8596, %v8708
    %v8710 = vpop.f32.mrf.mxu0
    %v8711 = vadd.f32 %v8598, %v8710
    %8712 = vmatprep.mubr.bf16.mxu0 %v8118
    %8713 = vmatmul.mubr.bf16.gmra.mxu0 %v8117
    %v8714 = vpop.f32.mrf.mxu0
    %v8715 = vadd.f32 %v8602, %v8714
    %v8716 = vpop.f32.mrf.mxu0
    %v8717 = vadd.f32 %v8604, %v8716
    %v8718 = vpop.f32.mrf.mxu0
    %v8719 = vadd.f32 %v8606, %v8718
    %v8720 = vpop.f32.mrf.mxu0
    %v8721 = vadd.f32 %v8608, %v8720
    %8722 = vmatprep.mubr.bf16.mxu0 %v8122
    %8723 = vmatmul.mubr.bf16.gmra.mxu0 %v8121
    %v8724 = vpop.f32.mrf.mxu0
    %v8725 = vadd.f32 %v8612, %v8724
    %v8726 = vpop.f32.mrf.mxu0
    %v8727 = vadd.f32 %v8614, %v8726
    %v8728 = vpop.f32.mrf.mxu0
    %v8729 = vadd.f32 %v8616, %v8728
    %v8730 = vpop.f32.mrf.mxu0
    %v8731 = vadd.f32 %v8618, %v8730
    %8732 = vmatprep.mubr.bf16.mxu0 %v8126
    %8733 = vmatmul.mubr.bf16.gmra.mxu0 %v8125
    %v8734 = vpop.f32.mrf.mxu0
    %v8735 = vadd.f32 %v8622, %v8734
    %v8736 = vpop.f32.mrf.mxu0
    %v8737 = vadd.f32 %v8624, %v8736
    %v8738 = vpop.f32.mrf.mxu0
    %v8739 = vadd.f32 %v8626, %v8738
    %v8740 = vpop.f32.mrf.mxu0
    %v8741 = vadd.f32 %v8628, %v8740
    %8742 = vmatprep.mubr.bf16.mxu0 %v8130
    %8743 = vmatmul.mubr.bf16.gmra.mxu0 %v8129
    %v8744 = vpop.f32.mrf.mxu0
    %v8745 = vadd.f32 %v8632, %v8744
    %v8746 = vpop.f32.mrf.mxu0
    %v8747 = vadd.f32 %v8634, %v8746
    %v8748 = vpop.f32.mrf.mxu0
    %v8749 = vadd.f32 %v8636, %v8748
    %v8750 = vpop.f32.mrf.mxu0
    %v8751 = vadd.f32 %v8638, %v8750
    %8752 = vdwg.mxu0
    %v8753 = vmax.f32 %v8675, 0.0
    %v8754 = vmax.f32 %v8677, 0.0
    %v8755 = vmax.f32 %v8679, 0.0
    %v8756 = vmax.f32 %v8681, 0.0
    %v8757 = vmax.f32 %v8685, 0.0
    %v8758 = vmax.f32 %v8687, 0.0
    %v8759 = vmax.f32 %v8689, 0.0
    %v8760 = vmax.f32 %v8691, 0.0
    %v8761 = vmax.f32 %v8695, 0.0
    %v8762 = vmax.f32 %v8697, 0.0
    %v8763 = vmax.f32 %v8699, 0.0
    %v8764 = vmax.f32 %v8701, 0.0
    %v8765 = vmax.f32 %v8705, 0.0
    %v8766 = vmax.f32 %v8707, 0.0
    %v8767 = vmax.f32 %v8709, 0.0
    %v8768 = vmax.f32 %v8711, 0.0
    %v8769 = vmax.f32 %v8715, 0.0
    %v8770 = vmax.f32 %v8717, 0.0
    %v8771 = vmax.f32 %v8719, 0.0
    %v8772 = vmax.f32 %v8721, 0.0
    %v8773 = vmax.f32 %v8725, 0.0
    %v8774 = vmax.f32 %v8727, 0.0
    %v8775 = vmax.f32 %v8729, 0.0
    %v8776 = vmax.f32 %v8731, 0.0
    %v8777 = vmax.f32 %v8735, 0.0
    %v8778 = vmax.f32 %v8737, 0.0
    %v8779 = vmax.f32 %v8739, 0.0
    %v8780 = vmax.f32 %v8741, 0.0
    %v8781 = vmax.f32 %v8745, 0.0
    %v8782 = vmax.f32 %v8747, 0.0
    %v8783 = vmax.f32 %v8749, 0.0
    %v8784 = vmax.f32 %v8751, 0.0
    %v8785 = vpack.c.bf16 %v8755, %v8753
    %v8786 = vpack.c.bf16 %v8756, %v8754
    %v8787 = vpack.c.bf16 %v8759, %v8757
    %v8788 = vpack.c.bf16 %v8760, %v8758
    %v8789 = vpack.c.bf16 %v8763, %v8761
    %v8790 = vpack.c.bf16 %v8764, %v8762
    %v8791 = vpack.c.bf16 %v8767, %v8765
    %v8792 = vpack.c.bf16 %v8768, %v8766
    %v8793 = vpack.c.bf16 %v8771, %v8769
    %v8794 = vpack.c.bf16 %v8772, %v8770
    %v8795 = vpack.c.bf16 %v8775, %v8773
    %v8796 = vpack.c.bf16 %v8776, %v8774
    %v8797 = vpack.c.bf16 %v8779, %v8777
    %v8798 = vpack.c.bf16 %v8780, %v8778
    %v8799 = vpack.c.bf16 %v8783, %v8781
    %v8800 = vpack.c.bf16 %v8784, %v8782
    %v8801 = vld [vmem:[#allocation11] sm:$0xf]
    %v8802 = vld [vmem:[#allocation11 + $0x4] sm:$0xf]
    %v8803 = vld [vmem:[#allocation11 + $0x8] sm:$0xf]
    %v8804 = vld [vmem:[#allocation11 + $0xc] sm:$0xf]
    %v8805 = vld [vmem:[#allocation11 + $0x10] sm:$0xf]
    %v8806 = vld [vmem:[#allocation11 + $0x14] sm:$0xf]
    %v8807 = vld [vmem:[#allocation11 + $0x18] sm:$0xf]
    %v8808 = vld [vmem:[#allocation11 + $0x1c] sm:$0xf]
    %v8809 = vld [vmem:[#allocation11 + $0x20] sm:$0xf]
    %v8810 = vld [vmem:[#allocation11 + $0x24] sm:$0xf]
    %v8811 = vld [vmem:[#allocation11 + $0x28] sm:$0xf]
    %v8812 = vld [vmem:[#allocation11 + $0x2c] sm:$0xf]
    %v8813 = vld [vmem:[#allocation11 + $0x30] sm:$0xf]
    %v8814 = vld [vmem:[#allocation11 + $0x34] sm:$0xf]
    %v8815 = vld [vmem:[#allocation11 + $0x38] sm:$0xf]
    %v8816 = vld [vmem:[#allocation11 + $0x3c] sm:$0xf]
    %v8817 = vld [vmem:[#allocation11 + $0x40] sm:$0xf]
    %v8818 = vld [vmem:[#allocation11 + $0x44] sm:$0xf]
    %v8819 = vld [vmem:[#allocation11 + $0x48] sm:$0xf]
    %v8820 = vld [vmem:[#allocation11 + $0x4c] sm:$0xf]
    %v8821 = vld [vmem:[#allocation11 + $0x50] sm:$0xf]
    %v8822 = vld [vmem:[#allocation11 + $0x54] sm:$0xf]
    %v8823 = vld [vmem:[#allocation11 + $0x58] sm:$0xf]
    %v8824 = vld [vmem:[#allocation11 + $0x5c] sm:$0xf]
    %v8825 = vld [vmem:[#allocation11 + $0x60] sm:$0xf]
    %v8826 = vld [vmem:[#allocation11 + $0x64] sm:$0xf]
    %v8827 = vld [vmem:[#allocation11 + $0x68] sm:$0xf]
    %v8828 = vld [vmem:[#allocation11 + $0x6c] sm:$0xf]
    %v8829 = vld [vmem:[#allocation11 + $0x70] sm:$0xf]
    %v8830 = vld [vmem:[#allocation11 + $0x74] sm:$0xf]
    %v8831 = vld [vmem:[#allocation11 + $0x78] sm:$0xf]
    %v8832 = vld [vmem:[#allocation11 + $0x7c] sm:$0xf]
    %v8833 = vld [vmem:[#allocation13] sm:$0x1]
    %v8835 = vlaneseq
    %v8836 = vshrl.u32 %v8835, 7
    %v8837 = vsub.s32 0, %v8836
    %v8838 = vrot.slane %v8833, %v8837
    %v8872 = vunpack.c.l.b16 %v8801
    %v8873 = vunpack.c.l.b16 %v8802
    %v8874 = vunpack.c.l.b16 %v8803
    %v8875 = vunpack.c.l.b16 %v8804
    %v8876 = vunpack.c.l.b16 %v8805
    %v8877 = vunpack.c.l.b16 %v8806
    %v8878 = vunpack.c.l.b16 %v8807
    %v8879 = vunpack.c.l.b16 %v8808
    %v8880 = vunpack.c.l.b16 %v8809
    %v8881 = vunpack.c.l.b16 %v8810
    %v8882 = vunpack.c.l.b16 %v8811
    %v8883 = vunpack.c.l.b16 %v8812
    %v8884 = vunpack.c.l.b16 %v8813
    %v8885 = vunpack.c.l.b16 %v8814
    %v8886 = vunpack.c.l.b16 %v8815
    %v8887 = vunpack.c.l.b16 %v8816
    %v8888 = vunpack.c.l.b16 %v8817
    %v8889 = vunpack.c.l.b16 %v8818
    %v8890 = vunpack.c.l.b16 %v8819
    %v8891 = vunpack.c.l.b16 %v8820
    %v8892 = vunpack.c.l.b16 %v8821
    %v8893 = vunpack.c.l.b16 %v8822
    %v8894 = vunpack.c.l.b16 %v8823
    %v8895 = vunpack.c.l.b16 %v8824
    %v8896 = vunpack.c.l.b16 %v8825
    %v8897 = vunpack.c.l.b16 %v8826
    %v8898 = vunpack.c.l.b16 %v8827
    %v8899 = vunpack.c.l.b16 %v8828
    %v8900 = vunpack.c.l.b16 %v8829
    %v8901 = vunpack.c.l.b16 %v8830
    %v8902 = vunpack.c.l.b16 %v8831
    %v8903 = vunpack.c.l.b16 %v8832
    %v8904 = vpack.c.b16 %v8873, %v8872
    %v8905 = vpack.c.b16 %v8875, %v8874
    %v8906 = vpack.c.b16 %v8877, %v8876
    %v8907 = vpack.c.b16 %v8879, %v8878
    %v8908 = vpack.c.b16 %v8881, %v8880
    %v8909 = vpack.c.b16 %v8883, %v8882
    %v8910 = vpack.c.b16 %v8885, %v8884
    %v8911 = vpack.c.b16 %v8887, %v8886
    %v8912 = vpack.c.b16 %v8889, %v8888
    %v8913 = vpack.c.b16 %v8891, %v8890
    %v8914 = vpack.c.b16 %v8893, %v8892
    %v8915 = vpack.c.b16 %v8895, %v8894
    %v8916 = vpack.c.b16 %v8897, %v8896
    %v8917 = vpack.c.b16 %v8899, %v8898
    %v8918 = vpack.c.b16 %v8901, %v8900
    %v8919 = vpack.c.b16 %v8903, %v8902
    %8936 = vmatprep.subr.bf16.mxu0 0
    %8937 = vmatpush1.bf16.msra.mxu0 %v8911
    %8938 = vmatprep.subr.bf16.mxu0 0
    %8939 = vmatpush1.bf16.msra.mxu0 %v8910
    %8940 = vmatprep.subr.bf16.mxu0 0
    %8941 = vmatpush1.bf16.msra.mxu0 %v8909
    %8942 = vmatprep.subr.bf16.mxu0 0
    %8943 = vmatpush1.bf16.msra.mxu0 %v8908
    %8944 = vmatprep.subr.bf16.mxu0 0
    %8945 = vmatpush1.bf16.msra.mxu0 %v8907
    %8946 = vmatprep.subr.bf16.mxu0 0
    %8947 = vmatpush1.bf16.msra.mxu0 %v8906
    %8948 = vmatprep.subr.bf16.mxu0 0
    %8949 = vmatpush1.bf16.msra.mxu0 %v8905
    %8950 = vmatprep.subr.bf16.mxu0 0
    %8951 = vmatpush1.bf16.msra.mxu0 %v8904
    %8952 = vmatprep.subr.bf16.mxu0 0
    %8953 = vmatpush2.bf16.msra.mxu0 %v8919
    %8954 = vmatprep.subr.bf16.mxu0 0
    %8955 = vmatpush2.bf16.msra.mxu0 %v8918
    %8956 = vmatprep.subr.bf16.mxu0 0
    %8957 = vmatpush2.bf16.msra.mxu0 %v8917
    %8958 = vmatprep.subr.bf16.mxu0 0
    %8959 = vmatpush2.bf16.msra.mxu0 %v8916
    %8960 = vmatprep.subr.bf16.mxu0 0
    %8961 = vmatpush2.bf16.msra.mxu0 %v8915
    %8962 = vmatprep.subr.bf16.mxu0 0
    %8963 = vmatpush2.bf16.msra.mxu0 %v8914
    %8964 = vmatprep.subr.bf16.mxu0 0
    %8965 = vmatpush2.bf16.msra.mxu0 %v8913
    %8966 = vmatprep.subr.bf16.mxu0 0
    %8967 = vmatpush2.bf16.msra.mxu0 %v8912
    %8968 = vmatprep.mubr.bf16.mxu0 %v8786
    %8969 = vmatmul.mubr.bf16.gmra.mxu0 %v8785
    %v8970 = vpop.f32.mrf.mxu0
    %v8971 = vadd.f32 %v8838, %v8970
    %v8972 = vpop.f32.mrf.mxu0
    %v8973 = vpop.f32.mrf.mxu0
    %v8974 = vadd.f32 %v8838, %v8973
    %v8975 = vpop.f32.mrf.mxu0
    %8976 = vmatprep.mubr.bf16.mxu0 %v8788
    %8977 = vmatmul.mubr.bf16.gmra.mxu0 %v8787
    %v8978 = vpop.f32.mrf.mxu0
    %v8979 = vadd.f32 %v8838, %v8978
    %v8980 = vpop.f32.mrf.mxu0
    %v8981 = vpop.f32.mrf.mxu0
    %v8982 = vadd.f32 %v8838, %v8981
    %v8983 = vpop.f32.mrf.mxu0
    %8984 = vmatprep.mubr.bf16.mxu0 %v8790
    %8985 = vmatmul.mubr.bf16.gmra.mxu0 %v8789
    %v8986 = vpop.f32.mrf.mxu0
    %v8987 = vadd.f32 %v8838, %v8986
    %v8988 = vpop.f32.mrf.mxu0
    %v8989 = vpop.f32.mrf.mxu0
    %v8990 = vadd.f32 %v8838, %v8989
    %v8991 = vpop.f32.mrf.mxu0
    %8992 = vmatprep.mubr.bf16.mxu0 %v8792
    %8993 = vmatmul.mubr.bf16.gmra.mxu0 %v8791
    %v8994 = vpop.f32.mrf.mxu0
    %v8995 = vadd.f32 %v8838, %v8994
    %v8996 = vpop.f32.mrf.mxu0
    %v8997 = vpop.f32.mrf.mxu0
    %v8998 = vadd.f32 %v8838, %v8997
    %v8999 = vpop.f32.mrf.mxu0
    %9000 = vmatprep.mubr.bf16.mxu0 %v8794
    %9001 = vmatmul.mubr.bf16.gmra.mxu0 %v8793
    %v9002 = vpop.f32.mrf.mxu0
    %v9003 = vadd.f32 %v8838, %v9002
    %v9004 = vpop.f32.mrf.mxu0
    %v9005 = vpop.f32.mrf.mxu0
    %v9006 = vadd.f32 %v8838, %v9005
    %v9007 = vpop.f32.mrf.mxu0
    %9008 = vmatprep.mubr.bf16.mxu0 %v8796
    %9009 = vmatmul.mubr.bf16.gmra.mxu0 %v8795
    %v9010 = vpop.f32.mrf.mxu0
    %v9011 = vadd.f32 %v8838, %v9010
    %v9012 = vpop.f32.mrf.mxu0
    %v9013 = vpop.f32.mrf.mxu0
    %v9014 = vadd.f32 %v8838, %v9013
    %v9015 = vpop.f32.mrf.mxu0
    %9016 = vmatprep.mubr.bf16.mxu0 %v8798
    %9017 = vmatmul.mubr.bf16.gmra.mxu0 %v8797
    %v9018 = vpop.f32.mrf.mxu0
    %v9019 = vadd.f32 %v8838, %v9018
    %v9020 = vpop.f32.mrf.mxu0
    %v9021 = vpop.f32.mrf.mxu0
    %v9022 = vadd.f32 %v8838, %v9021
    %v9023 = vpop.f32.mrf.mxu0
    %9024 = vmatprep.mubr.bf16.mxu0 %v8800
    %9025 = vmatmul.mubr.bf16.gmra.mxu0 %v8799
    %v9026 = vpop.f32.mrf.mxu0
    %v9027 = vadd.f32 %v8838, %v9026
    %v9028 = vpop.f32.mrf.mxu0
    %v9029 = vpop.f32.mrf.mxu0
    %v9030 = vadd.f32 %v8838, %v9029
    %v9031 = vpop.f32.mrf.mxu0
    %9032 = vdwg.mxu0
    %9033 = vst [vmem:[#allocation14] sm:$0xff] %v8971
    %9034 = vst [vmem:[#allocation14 + $0x8] sm:$0xff] %v8974
    %9035 = vst [vmem:[#allocation14 + $0x10] sm:$0xff] %v8979
    %9036 = vst [vmem:[#allocation14 + $0x18] sm:$0xff] %v8982
    %9037 = vst [vmem:[#allocation14 + $0x20] sm:$0xff] %v8987
    %9038 = vst [vmem:[#allocation14 + $0x28] sm:$0xff] %v8990
    %9039 = vst [vmem:[#allocation14 + $0x30] sm:$0xff] %v8995
    %9040 = vst [vmem:[#allocation14 + $0x38] sm:$0xff] %v8998
    %9041 = vst [vmem:[#allocation14 + $0x40] sm:$0xff] %v9003
    %9042 = vst [vmem:[#allocation14 + $0x48] sm:$0xff] %v9006
    %9043 = vst [vmem:[#allocation14 + $0x50] sm:$0xff] %v9011
    %9044 = vst [vmem:[#allocation14 + $0x58] sm:$0xff] %v9014
    %9045 = vst [vmem:[#allocation14 + $0x60] sm:$0xff] %v9019
    %9046 = vst [vmem:[#allocation14 + $0x68] sm:$0xff] %v9022
    %9047 = vst [vmem:[#allocation14 + $0x70] sm:$0xff] %v9027
    %9048 = vst [vmem:[#allocation14 + $0x78] sm:$0xff] %v9030
    // Predicated region
    $region58: #{tpu_custom_call.1} parent=1 // pred_check
      _
    $region59: #{tpu_custom_call.1} parent=1 // pred_check_branch
      %9050 = sbr.rel (0) target = $region61
    $region60: #{tpu_custom_call.1} parent=1 // pred_region
      %s9052 = ssub.s32 2048, 2048
      %9053 = vsyncadd [#allocation4], %s9052
      %s9054 = sshll.u32 [#allocation14], 4
      %s9055 = int_to_ptr.vmem [resolvable:$true] %s9054
      %9060 = dma.vmem_to_hbm [thread:$0]  %s9055, 2048, %s7, [#allocation4], 128, 128, 8
    $region61: #{tpu_custom_call.1} parent=1 // pred_fallthru
      _
    // Predicated region
    $region62: #{tpu_custom_call.1} parent=1 // pred_check
      _
    $region63: #{tpu_custom_call.1} parent=1 // pred_check_branch
      %9062 = sbr.rel (0) target = $region65
    $region64: #{tpu_custom_call.1} parent=1 // pred_region
      %9063 = dma.done [#allocation4], 2048
    $region65: #{tpu_custom_call.1} parent=1 // pred_fallthru
      _
    %9064 = vsyncpa [#allocation3], 1
    %9065 = vsyncpa [#allocation6], 1
    %9066 = vsyncpa [#allocation9], 1
    %9067 = vsyncpa [#allocation12], 1
    %9068 = vsyncpa [#allocation4], 1

</llo_original>
